<compile_context>
chip_gen: v5e
topology: v5e:2x2
jax: 0.10.0
libtpu: 0.0.40
codegen_flags: <defaults>
</compile_context>

<pallas_src>
import functools

import jax
import jax.numpy as jnp
from jax import lax
from jax.experimental import pallas as pl
from jax.experimental.pallas import tpu as pltpu

FEAT_DIM = 256
EMB_DIM = 128
HID_DIM = 256                       # hidden width of tgt / pred heads
VMEM_LIMIT = 32 * 1024 * 1024       # safe on v5e/v6e (128 MiB) and v7x (64 MiB)


def _round_up(x, m):
    return (x + m - 1) // m * m


# ---------------------------------------------------------------------------
# Fused kernel: conv1 -> conv2 -> FC -> (tgt, pred) heads, all in VMEM
# ---------------------------------------------------------------------------
def _rnd_fused_kernel(x_ref, w1t_ref, b1_ref, w2t_ref, b2_ref,
                      wfc_ref, fcb_ref, wh1_ref, bh1_ref,
                      tw2_ref, tb2_ref, pw2_ref, pb2_ref,
                      p_ref, t_ref, fbuf_ref, *, H, W):
    """One grid step processes `bt` images end-to-end.

    x_ref   : [1, bt, Cin, H*W]  f32   (torch NCHW, flattened spatial)
    w1t_ref : [C1, 9*Cin]        bf16  (taps folded into the contraction dim)
    w2t_ref : [C2, 9*C1]         bf16
    b1/b2   : [C1,1]/[C2,1]      f32
    wfc_ref : [C2*(H-4)*(W-4), 256] bf16 (rows in torch NCHW-flatten order)
    wh1_ref : [256, 512] = [tgt_w1 | pred_w1] bf16,  bh1: [1,512] f32
    tw2/pw2 : [256, 128] bf16,  tb2/pb2: [1,128] f32
    p_ref/t_ref: [1, bt, 128] f32
    fbuf_ref: [bt, C2*(H-4)*(W-4)] bf16 VMEM scratch (FC LHS, built in-kernel)
    """
    bt = x_ref.shape[1]
    c2 = w2t_ref.shape[0]
    ho, wo = H - 4, W - 4                 # conv2 valid output extent
    nv = ho * wo                          # valid spatial positions per channel
    # "same-grid" trick: conv outputs are computed on the flattened HxW column
    # grid, so the next layer's 3x3 taps are plain lane-shifted slices.  The
    # column counts below are the minimum needed so that every downstream
    # *valid* output only ever reads valid upstream columns (exactly fits H*W).
    n2 = (H - 5) * W + wo                 # conv2 columns to compute
    n1 = n2 + 2 * W + 2                   # conv1 columns to compute
    offs = tuple(di * W + dj for di in range(3) for dj in range(3))

    w1t = w1t_ref[...]
    b1 = b1_ref[...]
    w2t = w2t_ref[...]
    b2 = b2_ref[...]

    for b in range(bt):                   # static unroll; bt <= 8
        x = x_ref[0, b].astype(jnp.bfloat16)                          # [Cin, H*W]
        # conv1: 9 taps folded into K -> one MXU op ([C1,9*Cin] @ [9*Cin,n1])
        l1 = jnp.concatenate([x[:, o:o + n1] for o in offs], axis=0)  # [9*Cin, n1]
        y1 = jnp.dot(w1t, l1, preferred_element_type=jnp.float32) + b1
        y1 = jnp.maximum(y1, 0.0).astype(jnp.bfloat16)                # [C1, n1]
        # conv2: same structure ([C2,9*C1] @ [9*C1,n2])
        l2 = jnp.concatenate([y1[:, o:o + n2] for o in offs], axis=0)  # [9*C1, n2]
        y2 = jnp.dot(w2t, l2, preferred_element_type=jnp.float32) + b2
        y2 = jnp.maximum(y2, 0.0)                                     # [C2, n2] f32
        # gather the valid (H-4)x(W-4) columns of the same-grid output
        yv = jnp.concatenate([y2[:, r * W:r * W + wo] for r in range(ho)],
                             axis=1).astype(jnp.bfloat16)             # [C2, nv]
        # scatter rows into the FC LHS in torch NCHW-flatten order (k = c*nv + s)
        for c in range(c2):
            fbuf_ref[pl.ds(b, 1), pl.ds(c * nv, nv)] = yv[c:c + 1, :]

    # fused encoder-FC + tgt head + pred head, batched over the bt images
    hid = tw2_ref.shape[0]
    f = jnp.dot(fbuf_ref[...], wfc_ref[...], preferred_element_type=jnp.float32)
    f = jnp.maximum(f + fcb_ref[...], 0.0).astype(jnp.bfloat16)       # [bt, 256]
    h1 = jnp.dot(f, wh1_ref[...], preferred_element_type=jnp.float32)
    h1 = jnp.maximum(h1 + bh1_ref[...], 0.0).astype(jnp.bfloat16)     # [bt, 512]
    t = jnp.dot(h1[:, :hid], tw2_ref[...],
                preferred_element_type=jnp.float32) + tb2_ref[...]
    p = jnp.dot(h1[:, hid:], pw2_ref[...],
                preferred_element_type=jnp.float32) + pb2_ref[...]
    p_ref[0, :, :] = p.astype(p_ref.dtype)
    t_ref[0, :, :] = t.astype(t_ref.dtype)


# ---------------------------------------------------------------------------
# Forward wrapper (== _RNDNet.forward): obs [B,C,H,W] f32 -> (p, t) [B,128] f32
# ---------------------------------------------------------------------------
@jax.jit
def rndnet_forward(params, obs):
    B, C, H, W = obs.shape
    assert H >= 6 and W >= 6
    hw = H * W
    c1 = params["w1t"].shape[0]
    c2 = params["w2t"].shape[0]
    kfc = c2 * (H - 4) * (W - 4)
    assert params["wfc"].shape[0] == kfc

    # images per grid step: 1 for tiny batches (both v7x TCs get a step),
    # 8 otherwise (amortize per-step overhead, M=8 for the FC / heads).
    bt = 1 if B <= 2 else min(8, B)
    bpad = _round_up(B, bt)
    nsteps = bpad // bt

    x = obs.reshape(B, C, hw)
    if bpad != B:
        x = jnp.pad(x, ((0, bpad - B), (0, 0), (0, 0)))
    x = x.reshape(nsteps, bt, C, hw)

    n2 = (H - 5) * W + (W - 4)
    n1 = n2 + 2 * W + 2
    flops = bpad * (2 * c1 * 9 * C * n1 + 2 * c2 * 9 * c1 * n2
                    + 2 * kfc * FEAT_DIM + 2 * FEAT_DIM * 2 * HID_DIM
                    + 2 * 2 * HID_DIM * EMB_DIM)
    bytes_acc = int(x.size * 4
                    + sum(int(v.size) * v.dtype.itemsize for v in params.values())
                    + 2 * bpad * EMB_DIM * 4)

    kern = functools.partial(_rnd_fused_kernel, H=H, W=W)
    full2 = lambda s: (0, 0)

    p, t = pl.pallas_call(
        kern,
        out_shape=(jax.ShapeDtypeStruct((nsteps, bt, EMB_DIM), jnp.float32),
                   jax.ShapeDtypeStruct((nsteps, bt, EMB_DIM), jnp.float32)),
        grid=(nsteps,),
        in_specs=[
            pl.BlockSpec((1, bt, C, hw), lambda s: (s, 0, 0, 0)),   # obs (NCHW f32)
            pl.BlockSpec(params["w1t"].shape, full2),
            pl.BlockSpec(params["b1"].shape, full2),
            pl.BlockSpec(params["w2t"].shape, full2),
            pl.BlockSpec(params["b2"].shape, full2),
            pl.BlockSpec(params["wfc"].shape, full2),
            pl.BlockSpec(params["fcb"].shape, full2),
            pl.BlockSpec(params["wh1"].shape, full2),
            pl.BlockSpec(params["bh1"].shape, full2),
            pl.BlockSpec(params["tw2"].shape, full2),
            pl.BlockSpec(params["tb2"].shape, full2),
            pl.BlockSpec(params["pw2"].shape, full2),
            pl.BlockSpec(params["pb2"].shape, full2),
        ],
        out_specs=(pl.BlockSpec((1, bt, EMB_DIM), lambda s: (s, 0, 0)),
                   pl.BlockSpec((1, bt, EMB_DIM), lambda s: (s, 0, 0))),
        scratch_shapes=[pltpu.VMEM((bt, kfc), jnp.bfloat16)],
        compiler_params=pltpu.CompilerParams(
            dimension_semantics=("parallel",),
            vmem_limit_bytes=VMEM_LIMIT),
        cost_estimate=pl.CostEstimate(
            flops=flops, transcendentals=0, bytes_accessed=bytes_acc),
    )(x, params["w1t"], params["b1"], params["w2t"], params["b2"],
      params["wfc"], params["fcb"], params["wh1"], params["bh1"],
      params["tw2"], params["tb2"], params["pw2"], params["pb2"])

    p = p.reshape(bpad, EMB_DIM)[:B]
    t = t.reshape(bpad, EMB_DIM)[:B]
    return p, t


# ---------------------------------------------------------------------------
# Pure-JAX f32 reference (validation only)
# ---------------------------------------------------------------------------
@jax.jit
def rndnet_reference(params, obs):
    B, C, H, W = obs.shape
    c1 = params["w1t"].shape[0]
    c2 = params["w2t"].shape[0]
    x = obs.astype(jnp.float32)
    # w1t[co, (di*3+dj)*Cin + ci] -> HWIO conv kernel
    w1 = params["w1t"].astype(jnp.float32).reshape(c1, 3, 3, C).transpose(1, 2, 3, 0)
    y = lax.conv_general_dilated(x, w1, (1, 1), "VALID",
                                 dimension_numbers=("NCHW", "HWIO", "NCHW"))
    y = jnp.maximum(y + params["b1"].reshape(1, c1, 1, 1), 0.0)
    w2 = params["w2t"].astype(jnp.float32).reshape(c2, 3, 3, c1).transpose(1, 2, 3, 0)
    y = lax.conv_general_dilated(y, w2, (1, 1), "VALID",
                                 dimension_numbers=("NCHW", "HWIO", "NCHW"))
    y = jnp.maximum(y + params["b2"].reshape(1, c2, 1, 1), 0.0)
    flat = y.reshape(B, -1)                                     # torch NCHW flatten
    f = jnp.maximum(flat @ params["wfc"].astype(jnp.float32) + params["fcb"], 0.0)
    h1 = jnp.maximum(f @ params["wh1"].astype(jnp.float32) + params["bh1"], 0.0)
    hid = params["tw2"].shape[0]
    t = h1[:, :hid] @ params["tw2"].astype(jnp.float32) + params["tb2"]
    p = h1[:, hid:] @ params["pw2"].astype(jnp.float32) + params["pb2"]
    return p, t


# ---------------------------------------------------------------------------
# Parameter construction (deterministic, synthetic)
# ---------------------------------------------------------------------------
def init_params(key, obs_channels, H, W):
    ks = jax.random.split(key, 10)
    c1, c2 = 16, 32
    kfc = c2 * (H - 4) * (W - 4)

    def xavier(k, shape):
        fan_in, fan_out = shape
        lim = (6.0 / (fan_in + fan_out)) ** 0.5
        return jax.random.uniform(k, shape, jnp.float32, -lim, lim)

    p = {}
    # frozen encoder (representative MiniHackCNN); conv weights stored as
    # w[co, (di*3+dj)*Cin + ci] for the kernel's folded-tap matmul.
    p["w1t"] = (jax.random.normal(ks[0], (c1, 9 * obs_channels)) * 0.1).astype(jnp.bfloat16)
    p["b1"] = jnp.zeros((c1, 1), jnp.float32)
    p["w2t"] = (jax.random.normal(ks[1], (c2, 9 * c1)) * 0.05).astype(jnp.bfloat16)
    p["b2"] = jnp.zeros((c2, 1), jnp.float32)
    # encoder FC: rows in torch NCHW-flatten order k = c*(H-4)*(W-4) + h*(W-4) + w
    p["wfc"] = xavier(ks[2], (kfc, FEAT_DIM)).astype(jnp.bfloat16)
    p["fcb"] = jnp.zeros((1, FEAT_DIM), jnp.float32)
    # heads: first layers fused side by side, wh1 = [tgt_w1 | pred_w1]
    tgt_w1 = xavier(ks[3], (FEAT_DIM, HID_DIM))                  # frozen, xavier
    pred_w1 = xavier(ks[4], (FEAT_DIM, HID_DIM))                 # trainable head
    p["wh1"] = jnp.concatenate([tgt_w1, pred_w1], axis=1).astype(jnp.bfloat16)
    tgt_b1 = jnp.zeros((1, HID_DIM), jnp.float32)
    pred_b1 = jax.random.uniform(ks[5], (1, HID_DIM), jnp.float32, -0.05, 0.05)
    p["bh1"] = jnp.concatenate([tgt_b1, pred_b1], axis=1)
    p["tw2"] = xavier(ks[6], (HID_DIM, EMB_DIM)).astype(jnp.bfloat16)
    p["tb2"] = jnp.zeros((1, EMB_DIM), jnp.float32)
    p["pw2"] = xavier(ks[7], (HID_DIM, EMB_DIM)).astype(jnp.bfloat16)
    p["pb2"] = jax.random.uniform(ks[8], (1, EMB_DIM), jnp.float32, -0.05, 0.05)
    return p


if __name__ == "__main__":
    key = jax.random.PRNGKey(0)
    k_obs, k_par = jax.random.split(key)

    B, C, H, W = 2, 4, 16, 16
    obs = jax.random.normal(k_obs, (B, C, H, W), jnp.float32)
    params = init_params(k_par, C, H, W)

    p_out, t_out = rndnet_forward(params, obs)
    jax.block_until_ready((p_out, t_out))

    # shape / dtype / finiteness checks
    assert p_out.shape == (B, EMB_DIM) and t_out.shape == (B, EMB_DIM)
    assert p_out.dtype == jnp.float32 and t_out.dtype == jnp.float32
    assert bool(jnp.all(jnp.isfinite(p_out))) and bool(jnp.all(jnp.isfinite(t_out)))

    # validate against a pure-JAX f32 reference (bf16 activations in the
    # kernel give small, tolerated differences)
    p_ref, t_ref = rndnet_reference(params, obs)
    assert bool(jnp.allclose(p_out, p_ref, atol=3e-2, rtol=3e-2)), (
        "pred mismatch, max abs err "
        f"{float(jnp.max(jnp.abs(p_out - p_ref)))}")
    assert bool(jnp.allclose(t_out, t_ref, atol=3e-2, rtol=3e-2)), (
        "tgt mismatch, max abs err "
        f"{float(jnp.max(jnp.abs(t_out - t_ref)))}")

    print("KERNEL_OK")
</pallas_src>

<mosaic_0001>
module attributes {stable_mosaic.version = 11 : i64} {
  func.func @_rnd_fused_kernel(%arg0: i32, %arg1: memref<1x1x4x256xf32, #tpu.memory_space<vmem>>, %arg2: memref<16x36xbf16, #tpu.memory_space<vmem>>, %arg3: memref<16x1xf32, #tpu.memory_space<vmem>>, %arg4: memref<32x144xbf16, #tpu.memory_space<vmem>>, %arg5: memref<32x1xf32, #tpu.memory_space<vmem>>, %arg6: memref<4608x256xbf16, #tpu.memory_space<vmem>>, %arg7: memref<1x256xf32, #tpu.memory_space<vmem>>, %arg8: memref<256x512xbf16, #tpu.memory_space<vmem>>, %arg9: memref<1x512xf32, #tpu.memory_space<vmem>>, %arg10: memref<256x128xbf16, #tpu.memory_space<vmem>>, %arg11: memref<1x128xf32, #tpu.memory_space<vmem>>, %arg12: memref<256x128xbf16, #tpu.memory_space<vmem>>, %arg13: memref<1x128xf32, #tpu.memory_space<vmem>>, %arg14: memref<1x1x128xf32, #tpu.memory_space<vmem>>, %arg15: memref<1x1x128xf32, #tpu.memory_space<vmem>>, %arg16: memref<1x4608xbf16, #tpu.memory_space<vmem>>) attributes {dimension_semantics = [#tpu.dimension_semantics<parallel>], iteration_bounds = array<i64: 2>, scalar_prefetch = 0 : i64, scratch_operands = 1 : i64, tpu.core_type = #tpu.core_type<tc>, window_params = [{transform_indices = @transform_0, window_bounds = array<i64: 1, 1, 4, 256>}, {pipeline_mode = #tpu.pipeline_mode<synchronous>, transform_indices = @transform_1, window_bounds = array<i64: 16, 36>}, {pipeline_mode = #tpu.pipeline_mode<synchronous>, transform_indices = @transform_2, window_bounds = array<i64: 16, 1>}, {pipeline_mode = #tpu.pipeline_mode<synchronous>, transform_indices = @transform_3, window_bounds = array<i64: 32, 144>}, {pipeline_mode = #tpu.pipeline_mode<synchronous>, transform_indices = @transform_4, window_bounds = array<i64: 32, 1>}, {pipeline_mode = #tpu.pipeline_mode<synchronous>, transform_indices = @transform_5, window_bounds = array<i64: 4608, 256>}, {pipeline_mode = #tpu.pipeline_mode<synchronous>, transform_indices = @transform_6, window_bounds = array<i64: 1, 256>}, {pipeline_mode = #tpu.pipeline_mode<synchronous>, transform_indices = @transform_7, window_bounds = array<i64: 256, 512>}, {pipeline_mode = #tpu.pipeline_mode<synchronous>, transform_indices = @transform_8, window_bounds = array<i64: 1, 512>}, {pipeline_mode = #tpu.pipeline_mode<synchronous>, transform_indices = @transform_9, window_bounds = array<i64: 256, 128>}, {pipeline_mode = #tpu.pipeline_mode<synchronous>, transform_indices = @transform_10, window_bounds = array<i64: 1, 128>}, {pipeline_mode = #tpu.pipeline_mode<synchronous>, transform_indices = @transform_11, window_bounds = array<i64: 256, 128>}, {pipeline_mode = #tpu.pipeline_mode<synchronous>, transform_indices = @transform_12, window_bounds = array<i64: 1, 128>}, {transform_indices = @transform_13, window_bounds = array<i64: 1, 1, 128>}, {transform_indices = @transform_14, window_bounds = array<i64: 1, 1, 128>}]} {
    %c0 = arith.constant 0 : index
    %c0_0 = arith.constant 0 : index
    %0 = vector.load %arg2[%c0, %c0_0] : memref<16x36xbf16, #tpu.memory_space<vmem>>, vector<16x36xbf16>
    %c0_1 = arith.constant 0 : index
    %c0_2 = arith.constant 0 : index
    %1 = vector.load %arg3[%c0_1, %c0_2] : memref<16x1xf32, #tpu.memory_space<vmem>>, vector<16x1xf32>
    %c0_3 = arith.constant 0 : index
    %c0_4 = arith.constant 0 : index
    %2 = vector.load %arg4[%c0_3, %c0_4] : memref<32x144xbf16, #tpu.memory_space<vmem>>, vector<32x144xbf16>
    %c0_5 = arith.constant 0 : index
    %c0_6 = arith.constant 0 : index
    %3 = vector.load %arg5[%c0_5, %c0_6] : memref<32x1xf32, #tpu.memory_space<vmem>>, vector<32x1xf32>
    %c0_7 = arith.constant 0 : index
    %c0_8 = arith.constant 0 : index
    %c0_9 = arith.constant 0 : index
    %c0_10 = arith.constant 0 : index
    %4 = vector.load %arg1[%c0_7, %c0_8, %c0_9, %c0_10] : memref<1x1x4x256xf32, #tpu.memory_space<vmem>>, vector<1x1x4x256xf32>
    %5 = vector.shape_cast %4 : vector<1x1x4x256xf32> to vector<4x256xf32>
    %6 = arith.truncf %5 : vector<4x256xf32> to vector<4x256xbf16>
    %7 = vector.extract_strided_slice %6 {offsets = [0, 0], sizes = [4, 222], strides = [1, 1]} : vector<4x256xbf16> to vector<4x222xbf16>
    %8 = vector.extract_strided_slice %6 {offsets = [0, 1], sizes = [4, 222], strides = [1, 1]} : vector<4x256xbf16> to vector<4x222xbf16>
    %9 = vector.extract_strided_slice %6 {offsets = [0, 2], sizes = [4, 222], strides = [1, 1]} : vector<4x256xbf16> to vector<4x222xbf16>
    %10 = vector.extract_strided_slice %6 {offsets = [0, 16], sizes = [4, 222], strides = [1, 1]} : vector<4x256xbf16> to vector<4x222xbf16>
    %11 = vector.extract_strided_slice %6 {offsets = [0, 17], sizes = [4, 222], strides = [1, 1]} : vector<4x256xbf16> to vector<4x222xbf16>
    %12 = vector.extract_strided_slice %6 {offsets = [0, 18], sizes = [4, 222], strides = [1, 1]} : vector<4x256xbf16> to vector<4x222xbf16>
    %13 = vector.extract_strided_slice %6 {offsets = [0, 32], sizes = [4, 222], strides = [1, 1]} : vector<4x256xbf16> to vector<4x222xbf16>
    %14 = vector.extract_strided_slice %6 {offsets = [0, 33], sizes = [4, 222], strides = [1, 1]} : vector<4x256xbf16> to vector<4x222xbf16>
    %15 = vector.extract_strided_slice %6 {offsets = [0, 34], sizes = [4, 222], strides = [1, 1]} : vector<4x256xbf16> to vector<4x222xbf16>
    %16 = tpu.concatenate %7, %8, %9, %10, %11, %12, %13, %14, %15 in 0 : vector<4x222xbf16>, vector<4x222xbf16>, vector<4x222xbf16>, vector<4x222xbf16>, vector<4x222xbf16>, vector<4x222xbf16>, vector<4x222xbf16>, vector<4x222xbf16>, vector<4x222xbf16> -> vector<36x222xbf16>
    %cst = arith.constant dense<0.000000e+00> : vector<16x222xf32>
    %17 = tpu.matmul %0, %16, %cst {dimension_numbers = #tpu.dot_dimension_numbers<[1], [0], [0], [1], [0, 0, 1, 1], [], []>} : vector<16x36xbf16>, vector<36x222xbf16>, vector<16x222xf32> -> vector<16x222xf32>
    %18 = vector.broadcast %1 : vector<16x1xf32> to vector<16x222xf32>
    %19 = arith.addf %17, %18 : vector<16x222xf32>
    %cst_11 = arith.constant 0.000000e+00 : f32
    %20 = vector.broadcast %cst_11 : f32 to vector<16x222xf32>
    %21 = arith.maximumf %19, %20 : vector<16x222xf32>
    %22 = arith.truncf %21 : vector<16x222xf32> to vector<16x222xbf16>
    %23 = vector.extract_strided_slice %22 {offsets = [0, 0], sizes = [16, 188], strides = [1, 1]} : vector<16x222xbf16> to vector<16x188xbf16>
    %24 = vector.extract_strided_slice %22 {offsets = [0, 1], sizes = [16, 188], strides = [1, 1]} : vector<16x222xbf16> to vector<16x188xbf16>
    %25 = vector.extract_strided_slice %22 {offsets = [0, 2], sizes = [16, 188], strides = [1, 1]} : vector<16x222xbf16> to vector<16x188xbf16>
    %26 = vector.extract_strided_slice %22 {offsets = [0, 16], sizes = [16, 188], strides = [1, 1]} : vector<16x222xbf16> to vector<16x188xbf16>
    %27 = vector.extract_strided_slice %22 {offsets = [0, 17], sizes = [16, 188], strides = [1, 1]} : vector<16x222xbf16> to vector<16x188xbf16>
    %28 = vector.extract_strided_slice %22 {offsets = [0, 18], sizes = [16, 188], strides = [1, 1]} : vector<16x222xbf16> to vector<16x188xbf16>
    %29 = vector.extract_strided_slice %22 {offsets = [0, 32], sizes = [16, 188], strides = [1, 1]} : vector<16x222xbf16> to vector<16x188xbf16>
    %30 = vector.extract_strided_slice %22 {offsets = [0, 33], sizes = [16, 188], strides = [1, 1]} : vector<16x222xbf16> to vector<16x188xbf16>
    %31 = vector.extract_strided_slice %22 {offsets = [0, 34], sizes = [16, 188], strides = [1, 1]} : vector<16x222xbf16> to vector<16x188xbf16>
    %32 = tpu.concatenate %23, %24, %25, %26, %27, %28, %29, %30, %31 in 0 : vector<16x188xbf16>, vector<16x188xbf16>, vector<16x188xbf16>, vector<16x188xbf16>, vector<16x188xbf16>, vector<16x188xbf16>, vector<16x188xbf16>, vector<16x188xbf16>, vector<16x188xbf16> -> vector<144x188xbf16>
    %cst_12 = arith.constant dense<0.000000e+00> : vector<32x188xf32>
    %33 = tpu.matmul %2, %32, %cst_12 {dimension_numbers = #tpu.dot_dimension_numbers<[1], [0], [0], [1], [0, 0, 1, 1], [], []>} : vector<32x144xbf16>, vector<144x188xbf16>, vector<32x188xf32> -> vector<32x188xf32>
    %34 = vector.broadcast %3 : vector<32x1xf32> to vector<32x188xf32>
    %35 = arith.addf %33, %34 : vector<32x188xf32>
    %cst_13 = arith.constant 0.000000e+00 : f32
    %36 = vector.broadcast %cst_13 : f32 to vector<32x188xf32>
    %37 = arith.maximumf %35, %36 : vector<32x188xf32>
    %38 = vector.extract_strided_slice %37 {offsets = [0, 0], sizes = [32, 12], strides = [1, 1]} : vector<32x188xf32> to vector<32x12xf32>
    %39 = vector.extract_strided_slice %37 {offsets = [0, 16], sizes = [32, 12], strides = [1, 1]} : vector<32x188xf32> to vector<32x12xf32>
    %40 = vector.extract_strided_slice %37 {offsets = [0, 32], sizes = [32, 12], strides = [1, 1]} : vector<32x188xf32> to vector<32x12xf32>
    %41 = vector.extract_strided_slice %37 {offsets = [0, 48], sizes = [32, 12], strides = [1, 1]} : vector<32x188xf32> to vector<32x12xf32>
    %42 = vector.extract_strided_slice %37 {offsets = [0, 64], sizes = [32, 12], strides = [1, 1]} : vector<32x188xf32> to vector<32x12xf32>
    %43 = vector.extract_strided_slice %37 {offsets = [0, 80], sizes = [32, 12], strides = [1, 1]} : vector<32x188xf32> to vector<32x12xf32>
    %44 = vector.extract_strided_slice %37 {offsets = [0, 96], sizes = [32, 12], strides = [1, 1]} : vector<32x188xf32> to vector<32x12xf32>
    %45 = vector.extract_strided_slice %37 {offsets = [0, 112], sizes = [32, 12], strides = [1, 1]} : vector<32x188xf32> to vector<32x12xf32>
    %46 = vector.extract_strided_slice %37 {offsets = [0, 128], sizes = [32, 12], strides = [1, 1]} : vector<32x188xf32> to vector<32x12xf32>
    %47 = vector.extract_strided_slice %37 {offsets = [0, 144], sizes = [32, 12], strides = [1, 1]} : vector<32x188xf32> to vector<32x12xf32>
    %48 = vector.extract_strided_slice %37 {offsets = [0, 160], sizes = [32, 12], strides = [1, 1]} : vector<32x188xf32> to vector<32x12xf32>
    %49 = vector.extract_strided_slice %37 {offsets = [0, 176], sizes = [32, 12], strides = [1, 1]} : vector<32x188xf32> to vector<32x12xf32>
    %50 = tpu.concatenate %38, %39, %40, %41, %42, %43, %44, %45, %46, %47, %48, %49 in 1 : vector<32x12xf32>, vector<32x12xf32>, vector<32x12xf32>, vector<32x12xf32>, vector<32x12xf32>, vector<32x12xf32>, vector<32x12xf32>, vector<32x12xf32>, vector<32x12xf32>, vector<32x12xf32>, vector<32x12xf32>, vector<32x12xf32> -> vector<32x144xf32>
    %51 = arith.truncf %50 : vector<32x144xf32> to vector<32x144xbf16>
    %52 = vector.extract_strided_slice %51 {offsets = [0, 0], sizes = [1, 144], strides = [1, 1]} : vector<32x144xbf16> to vector<1x144xbf16>
    %c0_14 = arith.constant 0 : index
    %c0_15 = arith.constant 0 : index
    %53 = vector.load %arg16[%c0_14, %c0_15] : memref<1x4608xbf16, #tpu.memory_space<vmem>>, vector<1x144xbf16>
    tpu.vector_store %arg16[%c0_14, %c0_15], %52 {strides = array<i32>} : memref<1x4608xbf16, #tpu.memory_space<vmem>>, vector<1x144xbf16>,
    %54 = vector.extract_strided_slice %51 {offsets = [1, 0], sizes = [1, 144], strides = [1, 1]} : vector<32x144xbf16> to vector<1x144xbf16>
    %c0_16 = arith.constant 0 : index
    %c144 = arith.constant 144 : index
    %55 = vector.load %arg16[%c0_16, %c144] : memref<1x4608xbf16, #tpu.memory_space<vmem>>, vector<1x144xbf16>
    tpu.vector_store %arg16[%c0_16, %c144], %54 {strides = array<i32>} : memref<1x4608xbf16, #tpu.memory_space<vmem>>, vector<1x144xbf16>,
    %56 = vector.extract_strided_slice %51 {offsets = [2, 0], sizes = [1, 144], strides = [1, 1]} : vector<32x144xbf16> to vector<1x144xbf16>
    %c0_17 = arith.constant 0 : index
    %c288 = arith.constant 288 : index
    %57 = vector.load %arg16[%c0_17, %c288] : memref<1x4608xbf16, #tpu.memory_space<vmem>>, vector<1x144xbf16>
    tpu.vector_store %arg16[%c0_17, %c288], %56 {strides = array<i32>} : memref<1x4608xbf16, #tpu.memory_space<vmem>>, vector<1x144xbf16>,
    %58 = vector.extract_strided_slice %51 {offsets = [3, 0], sizes = [1, 144], strides = [1, 1]} : vector<32x144xbf16> to vector<1x144xbf16>
    %c0_18 = arith.constant 0 : index
    %c432 = arith.constant 432 : index
    %59 = vector.load %arg16[%c0_18, %c432] : memref<1x4608xbf16, #tpu.memory_space<vmem>>, vector<1x144xbf16>
    tpu.vector_store %arg16[%c0_18, %c432], %58 {strides = array<i32>} : memref<1x4608xbf16, #tpu.memory_space<vmem>>, vector<1x144xbf16>,
    %60 = vector.extract_strided_slice %51 {offsets = [4, 0], sizes = [1, 144], strides = [1, 1]} : vector<32x144xbf16> to vector<1x144xbf16>
    %c0_19 = arith.constant 0 : index
    %c576 = arith.constant 576 : index
    %61 = vector.load %arg16[%c0_19, %c576] : memref<1x4608xbf16, #tpu.memory_space<vmem>>, vector<1x144xbf16>
    tpu.vector_store %arg16[%c0_19, %c576], %60 {strides = array<i32>} : memref<1x4608xbf16, #tpu.memory_space<vmem>>, vector<1x144xbf16>,
    %62 = vector.extract_strided_slice %51 {offsets = [5, 0], sizes = [1, 144], strides = [1, 1]} : vector<32x144xbf16> to vector<1x144xbf16>
    %c0_20 = arith.constant 0 : index
    %c720 = arith.constant 720 : index
    %63 = vector.load %arg16[%c0_20, %c720] : memref<1x4608xbf16, #tpu.memory_space<vmem>>, vector<1x144xbf16>
    tpu.vector_store %arg16[%c0_20, %c720], %62 {strides = array<i32>} : memref<1x4608xbf16, #tpu.memory_space<vmem>>, vector<1x144xbf16>,
    %64 = vector.extract_strided_slice %51 {offsets = [6, 0], sizes = [1, 144], strides = [1, 1]} : vector<32x144xbf16> to vector<1x144xbf16>
    %c0_21 = arith.constant 0 : index
    %c864 = arith.constant 864 : index
    %65 = vector.load %arg16[%c0_21, %c864] : memref<1x4608xbf16, #tpu.memory_space<vmem>>, vector<1x144xbf16>
    tpu.vector_store %arg16[%c0_21, %c864], %64 {strides = array<i32>} : memref<1x4608xbf16, #tpu.memory_space<vmem>>, vector<1x144xbf16>,
    %66 = vector.extract_strided_slice %51 {offsets = [7, 0], sizes = [1, 144], strides = [1, 1]} : vector<32x144xbf16> to vector<1x144xbf16>
    %c0_22 = arith.constant 0 : index
    %c1008 = arith.constant 1008 : index
    %67 = vector.load %arg16[%c0_22, %c1008] : memref<1x4608xbf16, #tpu.memory_space<vmem>>, vector<1x144xbf16>
    tpu.vector_store %arg16[%c0_22, %c1008], %66 {strides = array<i32>} : memref<1x4608xbf16, #tpu.memory_space<vmem>>, vector<1x144xbf16>,
    %68 = vector.extract_strided_slice %51 {offsets = [8, 0], sizes = [1, 144], strides = [1, 1]} : vector<32x144xbf16> to vector<1x144xbf16>
    %c0_23 = arith.constant 0 : index
    %c1152 = arith.constant 1152 : index
    %69 = vector.load %arg16[%c0_23, %c1152] : memref<1x4608xbf16, #tpu.memory_space<vmem>>, vector<1x144xbf16>
    tpu.vector_store %arg16[%c0_23, %c1152], %68 {strides = array<i32>} : memref<1x4608xbf16, #tpu.memory_space<vmem>>, vector<1x144xbf16>,
    %70 = vector.extract_strided_slice %51 {offsets = [9, 0], sizes = [1, 144], strides = [1, 1]} : vector<32x144xbf16> to vector<1x144xbf16>
    %c0_24 = arith.constant 0 : index
    %c1296 = arith.constant 1296 : index
    %71 = vector.load %arg16[%c0_24, %c1296] : memref<1x4608xbf16, #tpu.memory_space<vmem>>, vector<1x144xbf16>
    tpu.vector_store %arg16[%c0_24, %c1296], %70 {strides = array<i32>} : memref<1x4608xbf16, #tpu.memory_space<vmem>>, vector<1x144xbf16>,
    %72 = vector.extract_strided_slice %51 {offsets = [10, 0], sizes = [1, 144], strides = [1, 1]} : vector<32x144xbf16> to vector<1x144xbf16>
    %c0_25 = arith.constant 0 : index
    %c1440 = arith.constant 1440 : index
    %73 = vector.load %arg16[%c0_25, %c1440] : memref<1x4608xbf16, #tpu.memory_space<vmem>>, vector<1x144xbf16>
    tpu.vector_store %arg16[%c0_25, %c1440], %72 {strides = array<i32>} : memref<1x4608xbf16, #tpu.memory_space<vmem>>, vector<1x144xbf16>,
    %74 = vector.extract_strided_slice %51 {offsets = [11, 0], sizes = [1, 144], strides = [1, 1]} : vector<32x144xbf16> to vector<1x144xbf16>
    %c0_26 = arith.constant 0 : index
    %c1584 = arith.constant 1584 : index
    %75 = vector.load %arg16[%c0_26, %c1584] : memref<1x4608xbf16, #tpu.memory_space<vmem>>, vector<1x144xbf16>
    tpu.vector_store %arg16[%c0_26, %c1584], %74 {strides = array<i32>} : memref<1x4608xbf16, #tpu.memory_space<vmem>>, vector<1x144xbf16>,
    %76 = vector.extract_strided_slice %51 {offsets = [12, 0], sizes = [1, 144], strides = [1, 1]} : vector<32x144xbf16> to vector<1x144xbf16>
    %c0_27 = arith.constant 0 : index
    %c1728 = arith.constant 1728 : index
    %77 = vector.load %arg16[%c0_27, %c1728] : memref<1x4608xbf16, #tpu.memory_space<vmem>>, vector<1x144xbf16>
    tpu.vector_store %arg16[%c0_27, %c1728], %76 {strides = array<i32>} : memref<1x4608xbf16, #tpu.memory_space<vmem>>, vector<1x144xbf16>,
    %78 = vector.extract_strided_slice %51 {offsets = [13, 0], sizes = [1, 144], strides = [1, 1]} : vector<32x144xbf16> to vector<1x144xbf16>
    %c0_28 = arith.constant 0 : index
    %c1872 = arith.constant 1872 : index
    %79 = vector.load %arg16[%c0_28, %c1872] : memref<1x4608xbf16, #tpu.memory_space<vmem>>, vector<1x144xbf16>
    tpu.vector_store %arg16[%c0_28, %c1872], %78 {strides = array<i32>} : memref<1x4608xbf16, #tpu.memory_space<vmem>>, vector<1x144xbf16>,
    %80 = vector.extract_strided_slice %51 {offsets = [14, 0], sizes = [1, 144], strides = [1, 1]} : vector<32x144xbf16> to vector<1x144xbf16>
    %c0_29 = arith.constant 0 : index
    %c2016 = arith.constant 2016 : index
    %81 = vector.load %arg16[%c0_29, %c2016] : memref<1x4608xbf16, #tpu.memory_space<vmem>>, vector<1x144xbf16>
    tpu.vector_store %arg16[%c0_29, %c2016], %80 {strides = array<i32>} : memref<1x4608xbf16, #tpu.memory_space<vmem>>, vector<1x144xbf16>,
    %82 = vector.extract_strided_slice %51 {offsets = [15, 0], sizes = [1, 144], strides = [1, 1]} : vector<32x144xbf16> to vector<1x144xbf16>
    %c0_30 = arith.constant 0 : index
    %c2160 = arith.constant 2160 : index
    %83 = vector.load %arg16[%c0_30, %c2160] : memref<1x4608xbf16, #tpu.memory_space<vmem>>, vector<1x144xbf16>
    tpu.vector_store %arg16[%c0_30, %c2160], %82 {strides = array<i32>} : memref<1x4608xbf16, #tpu.memory_space<vmem>>, vector<1x144xbf16>,
    %84 = vector.extract_strided_slice %51 {offsets = [16, 0], sizes = [1, 144], strides = [1, 1]} : vector<32x144xbf16> to vector<1x144xbf16>
    %c0_31 = arith.constant 0 : index
    %c2304 = arith.constant 2304 : index
    %85 = vector.load %arg16[%c0_31, %c2304] : memref<1x4608xbf16, #tpu.memory_space<vmem>>, vector<1x144xbf16>
    tpu.vector_store %arg16[%c0_31, %c2304], %84 {strides = array<i32>} : memref<1x4608xbf16, #tpu.memory_space<vmem>>, vector<1x144xbf16>,
    %86 = vector.extract_strided_slice %51 {offsets = [17, 0], sizes = [1, 144], strides = [1, 1]} : vector<32x144xbf16> to vector<1x144xbf16>
    %c0_32 = arith.constant 0 : index
    %c2448 = arith.constant 2448 : index
    %87 = vector.load %arg16[%c0_32, %c2448] : memref<1x4608xbf16, #tpu.memory_space<vmem>>, vector<1x144xbf16>
    tpu.vector_store %arg16[%c0_32, %c2448], %86 {strides = array<i32>} : memref<1x4608xbf16, #tpu.memory_space<vmem>>, vector<1x144xbf16>,
    %88 = vector.extract_strided_slice %51 {offsets = [18, 0], sizes = [1, 144], strides = [1, 1]} : vector<32x144xbf16> to vector<1x144xbf16>
    %c0_33 = arith.constant 0 : index
    %c2592 = arith.constant 2592 : index
    %89 = vector.load %arg16[%c0_33, %c2592] : memref<1x4608xbf16, #tpu.memory_space<vmem>>, vector<1x144xbf16>
    tpu.vector_store %arg16[%c0_33, %c2592], %88 {strides = array<i32>} : memref<1x4608xbf16, #tpu.memory_space<vmem>>, vector<1x144xbf16>,
    %90 = vector.extract_strided_slice %51 {offsets = [19, 0], sizes = [1, 144], strides = [1, 1]} : vector<32x144xbf16> to vector<1x144xbf16>
    %c0_34 = arith.constant 0 : index
    %c2736 = arith.constant 2736 : index
    %91 = vector.load %arg16[%c0_34, %c2736] : memref<1x4608xbf16, #tpu.memory_space<vmem>>, vector<1x144xbf16>
    tpu.vector_store %arg16[%c0_34, %c2736], %90 {strides = array<i32>} : memref<1x4608xbf16, #tpu.memory_space<vmem>>, vector<1x144xbf16>,
    %92 = vector.extract_strided_slice %51 {offsets = [20, 0], sizes = [1, 144], strides = [1, 1]} : vector<32x144xbf16> to vector<1x144xbf16>
    %c0_35 = arith.constant 0 : index
    %c2880 = arith.constant 2880 : index
    %93 = vector.load %arg16[%c0_35, %c2880] : memref<1x4608xbf16, #tpu.memory_space<vmem>>, vector<1x144xbf16>
    tpu.vector_store %arg16[%c0_35, %c2880], %92 {strides = array<i32>} : memref<1x4608xbf16, #tpu.memory_space<vmem>>, vector<1x144xbf16>,
    %94 = vector.extract_strided_slice %51 {offsets = [21, 0], sizes = [1, 144], strides = [1, 1]} : vector<32x144xbf16> to vector<1x144xbf16>
    %c0_36 = arith.constant 0 : index
    %c3024 = arith.constant 3024 : index
    %95 = vector.load %arg16[%c0_36, %c3024] : memref<1x4608xbf16, #tpu.memory_space<vmem>>, vector<1x144xbf16>
    tpu.vector_store %arg16[%c0_36, %c3024], %94 {strides = array<i32>} : memref<1x4608xbf16, #tpu.memory_space<vmem>>, vector<1x144xbf16>,
    %96 = vector.extract_strided_slice %51 {offsets = [22, 0], sizes = [1, 144], strides = [1, 1]} : vector<32x144xbf16> to vector<1x144xbf16>
    %c0_37 = arith.constant 0 : index
    %c3168 = arith.constant 3168 : index
    %97 = vector.load %arg16[%c0_37, %c3168] : memref<1x4608xbf16, #tpu.memory_space<vmem>>, vector<1x144xbf16>
    tpu.vector_store %arg16[%c0_37, %c3168], %96 {strides = array<i32>} : memref<1x4608xbf16, #tpu.memory_space<vmem>>, vector<1x144xbf16>,
    %98 = vector.extract_strided_slice %51 {offsets = [23, 0], sizes = [1, 144], strides = [1, 1]} : vector<32x144xbf16> to vector<1x144xbf16>
    %c0_38 = arith.constant 0 : index
    %c3312 = arith.constant 3312 : index
    %99 = vector.load %arg16[%c0_38, %c3312] : memref<1x4608xbf16, #tpu.memory_space<vmem>>, vector<1x144xbf16>
    tpu.vector_store %arg16[%c0_38, %c3312], %98 {strides = array<i32>} : memref<1x4608xbf16, #tpu.memory_space<vmem>>, vector<1x144xbf16>,
    %100 = vector.extract_strided_slice %51 {offsets = [24, 0], sizes = [1, 144], strides = [1, 1]} : vector<32x144xbf16> to vector<1x144xbf16>
    %c0_39 = arith.constant 0 : index
    %c3456 = arith.constant 3456 : index
    %101 = vector.load %arg16[%c0_39, %c3456] : memref<1x4608xbf16, #tpu.memory_space<vmem>>, vector<1x144xbf16>
    tpu.vector_store %arg16[%c0_39, %c3456], %100 {strides = array<i32>} : memref<1x4608xbf16, #tpu.memory_space<vmem>>, vector<1x144xbf16>,
    %102 = vector.extract_strided_slice %51 {offsets = [25, 0], sizes = [1, 144], strides = [1, 1]} : vector<32x144xbf16> to vector<1x144xbf16>
    %c0_40 = arith.constant 0 : index
    %c3600 = arith.constant 3600 : index
    %103 = vector.load %arg16[%c0_40, %c3600] : memref<1x4608xbf16, #tpu.memory_space<vmem>>, vector<1x144xbf16>
    tpu.vector_store %arg16[%c0_40, %c3600], %102 {strides = array<i32>} : memref<1x4608xbf16, #tpu.memory_space<vmem>>, vector<1x144xbf16>,
    %104 = vector.extract_strided_slice %51 {offsets = [26, 0], sizes = [1, 144], strides = [1, 1]} : vector<32x144xbf16> to vector<1x144xbf16>
    %c0_41 = arith.constant 0 : index
    %c3744 = arith.constant 3744 : index
    %105 = vector.load %arg16[%c0_41, %c3744] : memref<1x4608xbf16, #tpu.memory_space<vmem>>, vector<1x144xbf16>
    tpu.vector_store %arg16[%c0_41, %c3744], %104 {strides = array<i32>} : memref<1x4608xbf16, #tpu.memory_space<vmem>>, vector<1x144xbf16>,
    %106 = vector.extract_strided_slice %51 {offsets = [27, 0], sizes = [1, 144], strides = [1, 1]} : vector<32x144xbf16> to vector<1x144xbf16>
    %c0_42 = arith.constant 0 : index
    %c3888 = arith.constant 3888 : index
    %107 = vector.load %arg16[%c0_42, %c3888] : memref<1x4608xbf16, #tpu.memory_space<vmem>>, vector<1x144xbf16>
    tpu.vector_store %arg16[%c0_42, %c3888], %106 {strides = array<i32>} : memref<1x4608xbf16, #tpu.memory_space<vmem>>, vector<1x144xbf16>,
    %108 = vector.extract_strided_slice %51 {offsets = [28, 0], sizes = [1, 144], strides = [1, 1]} : vector<32x144xbf16> to vector<1x144xbf16>
    %c0_43 = arith.constant 0 : index
    %c4032 = arith.constant 4032 : index
    %109 = vector.load %arg16[%c0_43, %c4032] : memref<1x4608xbf16, #tpu.memory_space<vmem>>, vector<1x144xbf16>
    tpu.vector_store %arg16[%c0_43, %c4032], %108 {strides = array<i32>} : memref<1x4608xbf16, #tpu.memory_space<vmem>>, vector<1x144xbf16>,
    %110 = vector.extract_strided_slice %51 {offsets = [29, 0], sizes = [1, 144], strides = [1, 1]} : vector<32x144xbf16> to vector<1x144xbf16>
    %c0_44 = arith.constant 0 : index
    %c4176 = arith.constant 4176 : index
    %111 = vector.load %arg16[%c0_44, %c4176] : memref<1x4608xbf16, #tpu.memory_space<vmem>>, vector<1x144xbf16>
    tpu.vector_store %arg16[%c0_44, %c4176], %110 {strides = array<i32>} : memref<1x4608xbf16, #tpu.memory_space<vmem>>, vector<1x144xbf16>,
    %112 = vector.extract_strided_slice %51 {offsets = [30, 0], sizes = [1, 144], strides = [1, 1]} : vector<32x144xbf16> to vector<1x144xbf16>
    %c0_45 = arith.constant 0 : index
    %c4320 = arith.constant 4320 : index
    %113 = vector.load %arg16[%c0_45, %c4320] : memref<1x4608xbf16, #tpu.memory_space<vmem>>, vector<1x144xbf16>
    tpu.vector_store %arg16[%c0_45, %c4320], %112 {strides = array<i32>} : memref<1x4608xbf16, #tpu.memory_space<vmem>>, vector<1x144xbf16>,
    %114 = vector.extract_strided_slice %51 {offsets = [31, 0], sizes = [1, 144], strides = [1, 1]} : vector<32x144xbf16> to vector<1x144xbf16>
    %c0_46 = arith.constant 0 : index
    %c4464 = arith.constant 4464 : index
    %115 = vector.load %arg16[%c0_46, %c4464] : memref<1x4608xbf16, #tpu.memory_space<vmem>>, vector<1x144xbf16>
    tpu.vector_store %arg16[%c0_46, %c4464], %114 {strides = array<i32>} : memref<1x4608xbf16, #tpu.memory_space<vmem>>, vector<1x144xbf16>,
    %c0_47 = arith.constant 0 : index
    %c0_48 = arith.constant 0 : index
    %116 = vector.load %arg16[%c0_47, %c0_48] : memref<1x4608xbf16, #tpu.memory_space<vmem>>, vector<1x4608xbf16>
    %c0_49 = arith.constant 0 : index
    %c0_50 = arith.constant 0 : index
    %117 = vector.load %arg6[%c0_49, %c0_50] : memref<4608x256xbf16, #tpu.memory_space<vmem>>, vector<4608x256xbf16>
    %cst_51 = arith.constant dense<0.000000e+00> : vector<1x256xf32>
    %118 = tpu.matmul %116, %117, %cst_51 {dimension_numbers = #tpu.dot_dimension_numbers<[1], [0], [0], [1], [0, 0, 1, 1], [], []>} : vector<1x4608xbf16>, vector<4608x256xbf16>, vector<1x256xf32> -> vector<1x256xf32>
    %c0_52 = arith.constant 0 : index
    %c0_53 = arith.constant 0 : index
    %119 = vector.load %arg7[%c0_52, %c0_53] : memref<1x256xf32, #tpu.memory_space<vmem>>, vector<1x256xf32>
    %120 = arith.addf %118, %119 : vector<1x256xf32>
    %cst_54 = arith.constant 0.000000e+00 : f32
    %121 = vector.broadcast %cst_54 : f32 to vector<1x256xf32>
    %122 = arith.maximumf %120, %121 : vector<1x256xf32>
    %123 = arith.truncf %122 : vector<1x256xf32> to vector<1x256xbf16>
    %c0_55 = arith.constant 0 : index
    %c0_56 = arith.constant 0 : index
    %124 = vector.load %arg8[%c0_55, %c0_56] : memref<256x512xbf16, #tpu.memory_space<vmem>>, vector<256x512xbf16>
    %cst_57 = arith.constant dense<0.000000e+00> : vector<1x512xf32>
    %125 = tpu.matmul %123, %124, %cst_57 {dimension_numbers = #tpu.dot_dimension_numbers<[1], [0], [0], [1], [0, 0, 1, 1], [], []>} : vector<1x256xbf16>, vector<256x512xbf16>, vector<1x512xf32> -> vector<1x512xf32>
    %c0_58 = arith.constant 0 : index
    %c0_59 = arith.constant 0 : index
    %126 = vector.load %arg9[%c0_58, %c0_59] : memref<1x512xf32, #tpu.memory_space<vmem>>, vector<1x512xf32>
    %127 = arith.addf %125, %126 : vector<1x512xf32>
    %cst_60 = arith.constant 0.000000e+00 : f32
    %128 = vector.broadcast %cst_60 : f32 to vector<1x512xf32>
    %129 = arith.maximumf %127, %128 : vector<1x512xf32>
    %130 = arith.truncf %129 : vector<1x512xf32> to vector<1x512xbf16>
    %131 = vector.extract_strided_slice %130 {offsets = [0, 0], sizes = [1, 256], strides = [1, 1]} : vector<1x512xbf16> to vector<1x256xbf16>
    %c0_61 = arith.constant 0 : index
    %c0_62 = arith.constant 0 : index
    %132 = vector.load %arg10[%c0_61, %c0_62] : memref<256x128xbf16, #tpu.memory_space<vmem>>, vector<256x128xbf16>
    %cst_63 = arith.constant dense<0.000000e+00> : vector<1x128xf32>
    %133 = tpu.matmul %131, %132, %cst_63 {dimension_numbers = #tpu.dot_dimension_numbers<[1], [0], [0], [1], [0, 0, 1, 1], [], []>} : vector<1x256xbf16>, vector<256x128xbf16>, vector<1x128xf32> -> vector<1x128xf32>
    %c0_64 = arith.constant 0 : index
    %c0_65 = arith.constant 0 : index
    %134 = vector.load %arg11[%c0_64, %c0_65] : memref<1x128xf32, #tpu.memory_space<vmem>>, vector<1x128xf32>
    %135 = arith.addf %133, %134 : vector<1x128xf32>
    %136 = vector.extract_strided_slice %130 {offsets = [0, 256], sizes = [1, 256], strides = [1, 1]} : vector<1x512xbf16> to vector<1x256xbf16>
    %c0_66 = arith.constant 0 : index
    %c0_67 = arith.constant 0 : index
    %137 = vector.load %arg12[%c0_66, %c0_67] : memref<256x128xbf16, #tpu.memory_space<vmem>>, vector<256x128xbf16>
    %cst_68 = arith.constant dense<0.000000e+00> : vector<1x128xf32>
    %138 = tpu.matmul %136, %137, %cst_68 {dimension_numbers = #tpu.dot_dimension_numbers<[1], [0], [0], [1], [0, 0, 1, 1], [], []>} : vector<1x256xbf16>, vector<256x128xbf16>, vector<1x128xf32> -> vector<1x128xf32>
    %c0_69 = arith.constant 0 : index
    %c0_70 = arith.constant 0 : index
    %139 = vector.load %arg13[%c0_69, %c0_70] : memref<1x128xf32, #tpu.memory_space<vmem>>, vector<1x128xf32>
    %140 = arith.addf %138, %139 : vector<1x128xf32>
    %c0_71 = arith.constant 0 : index
    %c0_72 = arith.constant 0 : index
    %c0_73 = arith.constant 0 : index
    %141 = vector.load %arg14[%c0_71, %c0_72, %c0_73] : memref<1x1x128xf32, #tpu.memory_space<vmem>>, vector<1x1x128xf32>
    %142 = vector.shape_cast %141 : vector<1x1x128xf32> to vector<1x128xf32>
    %143 = vector.shape_cast %140 : vector<1x128xf32> to vector<1x1x128xf32>
    tpu.vector_store %arg14[%c0_71, %c0_72, %c0_73], %143 {strides = array<i32>} : memref<1x1x128xf32, #tpu.memory_space<vmem>>, vector<1x1x128xf32>,
    %c0_74 = arith.constant 0 : index
    %c0_75 = arith.constant 0 : index
    %c0_76 = arith.constant 0 : index
    %144 = vector.load %arg15[%c0_74, %c0_75, %c0_76] : memref<1x1x128xf32, #tpu.memory_space<vmem>>, vector<1x1x128xf32>
    %145 = vector.shape_cast %144 : vector<1x1x128xf32> to vector<1x128xf32>
    %146 = vector.shape_cast %135 : vector<1x128xf32> to vector<1x1x128xf32>
    tpu.vector_store %arg15[%c0_74, %c0_75, %c0_76], %146 {strides = array<i32>} : memref<1x1x128xf32, #tpu.memory_space<vmem>>, vector<1x1x128xf32>,
    return
  }
  func.func @transform_0(%arg0: i32) -> (i32, i32, i32, i32) {
    %c0_i32 = arith.constant 0 : i32
    %c0_i32_0 = arith.constant 0 : i32
    %c0_i32_1 = arith.constant 0 : i32
    %c0_i32_2 = arith.constant 0 : i32
    return %arg0, %c0_i32, %c0_i32_0, %c0_i32_1 : i32, i32, i32, i32
  }
  func.func @transform_1(%arg0: i32) -> (i32, i32) {
    %c0_i32 = arith.constant 0 : i32
    %c0_i32_0 = arith.constant 0 : i32
    %c0_i32_1 = arith.constant 0 : i32
    return %c0_i32, %c0_i32_0 : i32, i32
  }
  func.func @transform_2(%arg0: i32) -> (i32, i32) {
    %c0_i32 = arith.constant 0 : i32
    %c0_i32_0 = arith.constant 0 : i32
    %c0_i32_1 = arith.constant 0 : i32
    return %c0_i32, %c0_i32_0 : i32, i32
  }
  func.func @transform_3(%arg0: i32) -> (i32, i32) {
    %c0_i32 = arith.constant 0 : i32
    %c0_i32_0 = arith.constant 0 : i32
    %c0_i32_1 = arith.constant 0 : i32
    return %c0_i32, %c0_i32_0 : i32, i32
  }
  func.func @transform_4(%arg0: i32) -> (i32, i32) {
    %c0_i32 = arith.constant 0 : i32
    %c0_i32_0 = arith.constant 0 : i32
    %c0_i32_1 = arith.constant 0 : i32
    return %c0_i32, %c0_i32_0 : i32, i32
  }
  func.func @transform_5(%arg0: i32) -> (i32, i32) {
    %c0_i32 = arith.constant 0 : i32
    %c0_i32_0 = arith.constant 0 : i32
    %c0_i32_1 = arith.constant 0 : i32
    return %c0_i32, %c0_i32_0 : i32, i32
  }
  func.func @transform_6(%arg0: i32) -> (i32, i32) {
    %c0_i32 = arith.constant 0 : i32
    %c0_i32_0 = arith.constant 0 : i32
    %c0_i32_1 = arith.constant 0 : i32
    return %c0_i32, %c0_i32_0 : i32, i32
  }
  func.func @transform_7(%arg0: i32) -> (i32, i32) {
    %c0_i32 = arith.constant 0 : i32
    %c0_i32_0 = arith.constant 0 : i32
    %c0_i32_1 = arith.constant 0 : i32
    return %c0_i32, %c0_i32_0 : i32, i32
  }
  func.func @transform_8(%arg0: i32) -> (i32, i32) {
    %c0_i32 = arith.constant 0 : i32
    %c0_i32_0 = arith.constant 0 : i32
    %c0_i32_1 = arith.constant 0 : i32
    return %c0_i32, %c0_i32_0 : i32, i32
  }
  func.func @transform_9(%arg0: i32) -> (i32, i32) {
    %c0_i32 = arith.constant 0 : i32
    %c0_i32_0 = arith.constant 0 : i32
    %c0_i32_1 = arith.constant 0 : i32
    return %c0_i32, %c0_i32_0 : i32, i32
  }
  func.func @transform_10(%arg0: i32) -> (i32, i32) {
    %c0_i32 = arith.constant 0 : i32
    %c0_i32_0 = arith.constant 0 : i32
    %c0_i32_1 = arith.constant 0 : i32
    return %c0_i32, %c0_i32_0 : i32, i32
  }
  func.func @transform_11(%arg0: i32) -> (i32, i32) {
    %c0_i32 = arith.constant 0 : i32
    %c0_i32_0 = arith.constant 0 : i32
    %c0_i32_1 = arith.constant 0 : i32
    return %c0_i32, %c0_i32_0 : i32, i32
  }
  func.func @transform_12(%arg0: i32) -> (i32, i32) {
    %c0_i32 = arith.constant 0 : i32
    %c0_i32_0 = arith.constant 0 : i32
    %c0_i32_1 = arith.constant 0 : i32
    return %c0_i32, %c0_i32_0 : i32, i32
  }
  func.func @transform_13(%arg0: i32) -> (i32, i32, i32) {
    %c0_i32 = arith.constant 0 : i32
    %c0_i32_0 = arith.constant 0 : i32
    %c0_i32_1 = arith.constant 0 : i32
    return %arg0, %c0_i32, %c0_i32_0 : i32, i32, i32
  }
  func.func @transform_14(%arg0: i32) -> (i32, i32, i32) {
    %c0_i32 = arith.constant 0 : i32
    %c0_i32_0 = arith.constant 0 : i32
    %c0_i32_1 = arith.constant 0 : i32
    return %arg0, %c0_i32, %c0_i32_0 : i32, i32, i32
  }
}

</mosaic_0001>

<llo_original>
// kernel: rndnet_forward.1
$region0: #{rndnet_forward.1}
  #allocation0 [shape = 'u32[]', space=smem, size = 0x4, offset = 0x4, fixed_abs, tag = 'smem constant byte address 0x4 - core index']
  #allocation1 [shape = 'u32[72,128]{1,0:T(1,128)}', space=vmem, size = 0x9000, scoped, tag = 'internal scratch']
  #allocation2 [shape = 'bf16[1,4608]{1,0:T(2,128)(2,1)}', space=vmem, size = 0x4800, scoped, tag = 'scratch operand']
  %s0 = inlined_call_operand.vmem [shape: f32[2,1,4,256], index: 0, kind: input, shape index: {}]
  %s1 = inlined_call_operand.hbm [shape: bf16[16,36], index: 1, kind: input, shape index: {}]
  %s2 = inlined_call_operand.vmem [shape: f32[16,1], index: 2, kind: input, shape index: {}]
  %s3 = inlined_call_operand.hbm [shape: bf16[32,144], index: 3, kind: input, shape index: {}]
  %s4 = inlined_call_operand.vmem [shape: f32[32,1], index: 4, kind: input, shape index: {}]
  %s5 = inlined_call_operand.hbm [shape: bf16[4608,256], index: 5, kind: input, shape index: {}]
  %s6 = inlined_call_operand.hbm [shape: f32[1,256], index: 6, kind: input, shape index: {}]
  %s7 = inlined_call_operand.hbm [shape: bf16[256,512], index: 7, kind: input, shape index: {}]
  %s8 = inlined_call_operand.hbm [shape: f32[1,512], index: 8, kind: input, shape index: {}]
  %s9 = inlined_call_operand.hbm [shape: bf16[256,128], index: 9, kind: input, shape index: {}]
  %s10 = inlined_call_operand.hbm [shape: f32[1,128], index: 10, kind: input, shape index: {}]
  %s11 = inlined_call_operand.hbm [shape: bf16[256,128], index: 11, kind: input, shape index: {}]
  %s12 = inlined_call_operand.hbm [shape: f32[1,128], index: 12, kind: input, shape index: {}]
  %s13 = inlined_call_operand.hbm [shape: f32[2,1,128], index: 13, kind: output, shape index: {0}]
  %s14 = inlined_call_operand.hbm [shape: f32[2,1,128], index: 14, kind: output, shape index: {1}]
  %15 = xla_tuple %s13, %s14
  %s16 = sld [smem:[#allocation0]]
  $region133: #{rndnet_forward.1} parent=0
    _
  %s18 = ssub.s32 1, %s16
  %s19 = scalar_select 0, %s18, %s16
  $region1: #{rndnet_forward.1} parent=0
    #allocation3 [shape = 'u8[4096]{0}', space=vmem, size = 0x1000, scoped, tag = 'input window, operand 1, single buffered']
    #allocation4 [shape = 's32[2]{0}', space=sflag, size = 0x8, scoped, tag = 'scoped memory for rndnet_forward.1']
    #allocation5 [shape = 's32[2]{0}', space=sflag, size = 0x8, scoped, tag = 'scoped memory for rndnet_forward.1']
    #allocation6 [shape = 'u8[16384]{0}', space=vmem, size = 0x4000, scoped, tag = 'input window, operand 3, single buffered']
    #allocation7 [shape = 's32[1]{0}', space=sflag, size = 0x4, scoped, tag = 'scoped memory for rndnet_forward.1']
    #allocation8 [shape = 'u8[2359296]{0}', space=vmem, size = 0x240000, scoped, tag = 'input window, operand 5, single buffered']
    #allocation9 [shape = 'u8[1024]{0}', space=vmem, size = 0x400, scoped, tag = 'input window, operand 6, single buffered']
    #allocation10 [shape = 's32[1]{0}', space=sflag, size = 0x4, scoped, tag = 'scoped memory for rndnet_forward.1']
    #allocation11 [shape = 'u8[262144]{0}', space=vmem, size = 0x40000, scoped, tag = 'input window, operand 7, single buffered']
    #allocation12 [shape = 'u8[2048]{0}', space=vmem, size = 0x800, scoped, tag = 'input window, operand 8, single buffered']
    #allocation13 [shape = 's32[1]{0}', space=sflag, size = 0x4, scoped, tag = 'scoped memory for rndnet_forward.1']
    #allocation14 [shape = 'u8[65536]{0}', space=vmem, size = 0x10000, scoped, tag = 'input window, operand 9, single buffered']
    #allocation15 [shape = 'u8[512]{0}', space=vmem, size = 0x400, scoped, tag = 'input window, operand 10, single buffered']
    #allocation16 [shape = 's32[1]{0}', space=sflag, size = 0x4, scoped, tag = 'scoped memory for rndnet_forward.1']
    #allocation17 [shape = 'u8[65536]{0}', space=vmem, size = 0x10000, scoped, tag = 'input window, operand 11, single buffered']
    #allocation18 [shape = 'u8[512]{0}', space=vmem, size = 0x400, scoped, tag = 'input window, operand 12, single buffered']
    #allocation19 [shape = 's32[1]{0}', space=sflag, size = 0x4, scoped, tag = 'scoped memory for rndnet_forward.1']
    #allocation20 [shape = 'u8[1024]{0}', space=vmem, size = 0x400, scoped, tag = 'output window, operand 0']
    #allocation21 [shape = 'u8[1024]{0}', space=vmem, size = 0x400, scoped, tag = 'output window, operand 1']
    #allocation22 [shape = 's32[2]{0}', space=sflag, size = 0x8, scoped, tag = 'scoped memory for rndnet_forward.1']
    %20 = vsyncpa [#allocation4], 0
    %21 = vsyncpa [#allocation7], 0
    %22 = vsyncpa [#allocation10], 0
    %23 = vsyncpa [#allocation13], 0
    %24 = vsyncpa [#allocation16], 0
    %25 = vsyncpa [#allocation19], 0
    %26 = vsyncpa [#allocation5], 0
    %s27 = scalar_lea.sflag [#allocation5], 1
    %28 = vsyncpa %s27, 0
    %29 = vsyncpa [#allocation22], 0
    %s30 = scalar_lea.sflag [#allocation22], 1
    %31 = vsyncpa %s30, 0
    loop: start=0, step=1, limit=4
    $region2: #{rndnet_forward.1} parent=1 // loop_pre_header
      _
    $region3: #{rndnet_forward.1} parent=1 // loop_header
      %s33 = sphi 0, %s37
      %p34 = scmp.ge.s32.totalorder %s33, 4
      %s43 = sphi 0, %s45
      %s46 = sphi 0, %s43
      %s47 = sphi 0, %s46
      %s63 = sphi 0, %s47
      %s67 = sphi 0, %s67
      %s69 = sphi 0, %s67
      %s70 = sphi 0, %s69
      %s84 = sphi 0, %s70
      %s88 = sphi 0, %s88
      %s90 = sphi 0, %s88
      %s91 = sphi 0, %s90
      %s105 = sphi 0, %s91
      %s109 = sphi 0, %s109
      %s111 = sphi 0, %s109
      %s112 = sphi 0, %s111
      %s126 = sphi 0, %s112
      %s130 = sphi 0, %s130
      %s132 = sphi 0, %s130
      %s133 = sphi 0, %s132
      %s147 = sphi 0, %s133
      %s151 = sphi 0, %s151
      %s153 = sphi 0, %s151
      %s154 = sphi 0, %s153
      %s168 = sphi 0, %s154
      %s172 = sphi 0, %s172
      %s174 = sphi 0, %s172
      %s175 = sphi 0, %s174
      %s189 = sphi 0, %s175
      %s193 = sphi 0, %s193
      %s195 = sphi 0, %s193
      %s196 = sphi 0, %s195
      %s210 = sphi 0, %s196
      %s214 = sphi 0, %s214
      %s216 = sphi 0, %s214
      %s217 = sphi 0, %s216
      %s231 = sphi 0, %s217
      %s235 = sphi 0, %s235
      %s237 = sphi 0, %s235
      %s238 = sphi 0, %s237
      %s252 = sphi 0, %s238
      %s256 = sphi 0, %s256
      %s258 = sphi 0, %s256
      %s259 = sphi 0, %s258
      %s273 = sphi 0, %s259
      %s277 = sphi 0, %s277
      %s279 = sphi 0, %s277
      %s280 = sphi 0, %s279
      %s294 = sphi 0, %s280
      %s298 = sphi 0, %s298
      %s300 = sphi 0, %s298
      %s301 = sphi 0, %s300
      %s315 = sphi 0, %s301
      %s321 = sphi 0, %s323
      %s324 = sphi 0, %s321
      %s325 = sphi 0, %s324
      %s341 = sphi 0, %s325
      %s347 = sphi 0, %s349
      %s350 = sphi 0, %s347
      %s351 = sphi 0, %s350
      %s367 = sphi 0, %s351
    $region4: #{rndnet_forward.1} parent=1 // loop_header_branch
      %36 = sbr.rel (%p34) target = $region8
    $region5: #{rndnet_forward.1} parent=1 // loop_body
      %s38 = ssub.s32 %s33, 1
      %s39 = ssub.s32 %s33, 2
      %s40 = sadd.s32 %s33, 1
      %s41 = ssub.s32 %s33, %s40
      %p42 = scmp.eq.s32.totalorder %s41, 0
      %s44 = sadd.s32 %s43, 1
      %s45 = scalar_select %p42, %s43, %s44
      %p48 = pneg %p42
      %p49 = scmp.eq.s32.totalorder %s33, 1
      %p50 = por %p48, %p49
      %p51 = scmp.ne.s32.totalorder %s43, %s46
      %p52 = scmp.eq.s32.totalorder %s33, 0
      %p53 = por %p51, %p52
      %p54 = scmp.ne.s32.totalorder %s43, %s46
      %p55 = scmp.eq.s32.totalorder %s38, 1
      %p56 = por %p54, %p55
      %p57 = scmp.ne.s32.totalorder %s46, %s47
      %p58 = scmp.eq.s32.totalorder %s38, 0
      %p59 = por %p57, %p58
      %p60 = scmp.ne.s32.totalorder %s46, %s47
      %p61 = scmp.eq.s32.totalorder %s39, 1
      %p62 = por %p60, %p61
      %p64 = scmp.ne.s32.totalorder %s47, %s63
      %p65 = scmp.eq.s32.totalorder %s39, 0
      %p66 = por %p64, %p65
      %s68 = sadd.s32 %s67, 1
      %p71 = scmp.eq.s32.totalorder %s33, 1
      %p72 = scmp.ne.s32.totalorder %s67, %s69
      %p73 = scmp.eq.s32.totalorder %s33, 0
      %p74 = por %p72, %p73
      %p75 = scmp.ne.s32.totalorder %s67, %s69
      %p76 = scmp.eq.s32.totalorder %s38, 1
      %p77 = por %p75, %p76
      %p78 = scmp.ne.s32.totalorder %s69, %s70
      %p79 = scmp.eq.s32.totalorder %s38, 0
      %p80 = por %p78, %p79
      %p81 = scmp.ne.s32.totalorder %s69, %s70
      %p82 = scmp.eq.s32.totalorder %s39, 1
      %p83 = por %p81, %p82
      %p85 = scmp.ne.s32.totalorder %s70, %s84
      %p86 = scmp.eq.s32.totalorder %s39, 0
      %p87 = por %p85, %p86
      %s89 = sadd.s32 %s88, 1
      %p92 = scmp.eq.s32.totalorder %s33, 1
      %p93 = scmp.ne.s32.totalorder %s88, %s90
      %p94 = scmp.eq.s32.totalorder %s33, 0
      %p95 = por %p93, %p94
      %p96 = scmp.ne.s32.totalorder %s88, %s90
      %p97 = scmp.eq.s32.totalorder %s38, 1
      %p98 = por %p96, %p97
      %p99 = scmp.ne.s32.totalorder %s90, %s91
      %p100 = scmp.eq.s32.totalorder %s38, 0
      %p101 = por %p99, %p100
      %p102 = scmp.ne.s32.totalorder %s90, %s91
      %p103 = scmp.eq.s32.totalorder %s39, 1
      %p104 = por %p102, %p103
      %p106 = scmp.ne.s32.totalorder %s91, %s105
      %p107 = scmp.eq.s32.totalorder %s39, 0
      %p108 = por %p106, %p107
      %s110 = sadd.s32 %s109, 1
      %p113 = scmp.eq.s32.totalorder %s33, 1
      %p114 = scmp.ne.s32.totalorder %s109, %s111
      %p115 = scmp.eq.s32.totalorder %s33, 0
      %p116 = por %p114, %p115
      %p117 = scmp.ne.s32.totalorder %s109, %s111
      %p118 = scmp.eq.s32.totalorder %s38, 1
      %p119 = por %p117, %p118
      %p120 = scmp.ne.s32.totalorder %s111, %s112
      %p121 = scmp.eq.s32.totalorder %s38, 0
      %p122 = por %p120, %p121
      %p123 = scmp.ne.s32.totalorder %s111, %s112
      %p124 = scmp.eq.s32.totalorder %s39, 1
      %p125 = por %p123, %p124
      %p127 = scmp.ne.s32.totalorder %s112, %s126
      %p128 = scmp.eq.s32.totalorder %s39, 0
      %p129 = por %p127, %p128
      %s131 = sadd.s32 %s130, 1
      %p134 = scmp.eq.s32.totalorder %s33, 1
      %p135 = scmp.ne.s32.totalorder %s130, %s132
      %p136 = scmp.eq.s32.totalorder %s33, 0
      %p137 = por %p135, %p136
      %p138 = scmp.ne.s32.totalorder %s130, %s132
      %p139 = scmp.eq.s32.totalorder %s38, 1
      %p140 = por %p138, %p139
      %p141 = scmp.ne.s32.totalorder %s132, %s133
      %p142 = scmp.eq.s32.totalorder %s38, 0
      %p143 = por %p141, %p142
      %p144 = scmp.ne.s32.totalorder %s132, %s133
      %p145 = scmp.eq.s32.totalorder %s39, 1
      %p146 = por %p144, %p145
      %p148 = scmp.ne.s32.totalorder %s133, %s147
      %p149 = scmp.eq.s32.totalorder %s39, 0
      %p150 = por %p148, %p149
      %s152 = sadd.s32 %s151, 1
      %p155 = scmp.eq.s32.totalorder %s33, 1
      %p156 = scmp.ne.s32.totalorder %s151, %s153
      %p157 = scmp.eq.s32.totalorder %s33, 0
      %p158 = por %p156, %p157
      %p159 = scmp.ne.s32.totalorder %s151, %s153
      %p160 = scmp.eq.s32.totalorder %s38, 1
      %p161 = por %p159, %p160
      %p162 = scmp.ne.s32.totalorder %s153, %s154
      %p163 = scmp.eq.s32.totalorder %s38, 0
      %p164 = por %p162, %p163
      %p165 = scmp.ne.s32.totalorder %s153, %s154
      %p166 = scmp.eq.s32.totalorder %s39, 1
      %p167 = por %p165, %p166
      %p169 = scmp.ne.s32.totalorder %s154, %s168
      %p170 = scmp.eq.s32.totalorder %s39, 0
      %p171 = por %p169, %p170
      %s173 = sadd.s32 %s172, 1
      %p176 = scmp.eq.s32.totalorder %s33, 1
      %p177 = scmp.ne.s32.totalorder %s172, %s174
      %p178 = scmp.eq.s32.totalorder %s33, 0
      %p179 = por %p177, %p178
      %p180 = scmp.ne.s32.totalorder %s172, %s174
      %p181 = scmp.eq.s32.totalorder %s38, 1
      %p182 = por %p180, %p181
      %p183 = scmp.ne.s32.totalorder %s174, %s175
      %p184 = scmp.eq.s32.totalorder %s38, 0
      %p185 = por %p183, %p184
      %p186 = scmp.ne.s32.totalorder %s174, %s175
      %p187 = scmp.eq.s32.totalorder %s39, 1
      %p188 = por %p186, %p187
      %p190 = scmp.ne.s32.totalorder %s175, %s189
      %p191 = scmp.eq.s32.totalorder %s39, 0
      %p192 = por %p190, %p191
      %s194 = sadd.s32 %s193, 1
      %p197 = scmp.eq.s32.totalorder %s33, 1
      %p198 = scmp.ne.s32.totalorder %s193, %s195
      %p199 = scmp.eq.s32.totalorder %s33, 0
      %p200 = por %p198, %p199
      %p201 = scmp.ne.s32.totalorder %s193, %s195
      %p202 = scmp.eq.s32.totalorder %s38, 1
      %p203 = por %p201, %p202
      %p204 = scmp.ne.s32.totalorder %s195, %s196
      %p205 = scmp.eq.s32.totalorder %s38, 0
      %p206 = por %p204, %p205
      %p207 = scmp.ne.s32.totalorder %s195, %s196
      %p208 = scmp.eq.s32.totalorder %s39, 1
      %p209 = por %p207, %p208
      %p211 = scmp.ne.s32.totalorder %s196, %s210
      %p212 = scmp.eq.s32.totalorder %s39, 0
      %p213 = por %p211, %p212
      %s215 = sadd.s32 %s214, 1
      %p218 = scmp.eq.s32.totalorder %s33, 1
      %p219 = scmp.ne.s32.totalorder %s214, %s216
      %p220 = scmp.eq.s32.totalorder %s33, 0
      %p221 = por %p219, %p220
      %p222 = scmp.ne.s32.totalorder %s214, %s216
      %p223 = scmp.eq.s32.totalorder %s38, 1
      %p224 = por %p222, %p223
      %p225 = scmp.ne.s32.totalorder %s216, %s217
      %p226 = scmp.eq.s32.totalorder %s38, 0
      %p227 = por %p225, %p226
      %p228 = scmp.ne.s32.totalorder %s216, %s217
      %p229 = scmp.eq.s32.totalorder %s39, 1
      %p230 = por %p228, %p229
      %p232 = scmp.ne.s32.totalorder %s217, %s231
      %p233 = scmp.eq.s32.totalorder %s39, 0
      %p234 = por %p232, %p233
      %s236 = sadd.s32 %s235, 1
      %p239 = scmp.eq.s32.totalorder %s33, 1
      %p240 = scmp.ne.s32.totalorder %s235, %s237
      %p241 = scmp.eq.s32.totalorder %s33, 0
      %p242 = por %p240, %p241
      %p243 = scmp.ne.s32.totalorder %s235, %s237
      %p244 = scmp.eq.s32.totalorder %s38, 1
      %p245 = por %p243, %p244
      %p246 = scmp.ne.s32.totalorder %s237, %s238
      %p247 = scmp.eq.s32.totalorder %s38, 0
      %p248 = por %p246, %p247
      %p249 = scmp.ne.s32.totalorder %s237, %s238
      %p250 = scmp.eq.s32.totalorder %s39, 1
      %p251 = por %p249, %p250
      %p253 = scmp.ne.s32.totalorder %s238, %s252
      %p254 = scmp.eq.s32.totalorder %s39, 0
      %p255 = por %p253, %p254
      %s257 = sadd.s32 %s256, 1
      %p260 = scmp.eq.s32.totalorder %s33, 1
      %p261 = scmp.ne.s32.totalorder %s256, %s258
      %p262 = scmp.eq.s32.totalorder %s33, 0
      %p263 = por %p261, %p262
      %p264 = scmp.ne.s32.totalorder %s256, %s258
      %p265 = scmp.eq.s32.totalorder %s38, 1
      %p266 = por %p264, %p265
      %p267 = scmp.ne.s32.totalorder %s258, %s259
      %p268 = scmp.eq.s32.totalorder %s38, 0
      %p269 = por %p267, %p268
      %p270 = scmp.ne.s32.totalorder %s258, %s259
      %p271 = scmp.eq.s32.totalorder %s39, 1
      %p272 = por %p270, %p271
      %p274 = scmp.ne.s32.totalorder %s259, %s273
      %p275 = scmp.eq.s32.totalorder %s39, 0
      %p276 = por %p274, %p275
      %s278 = sadd.s32 %s277, 1
      %p281 = scmp.eq.s32.totalorder %s33, 1
      %p282 = scmp.ne.s32.totalorder %s277, %s279
      %p283 = scmp.eq.s32.totalorder %s33, 0
      %p284 = por %p282, %p283
      %p285 = scmp.ne.s32.totalorder %s277, %s279
      %p286 = scmp.eq.s32.totalorder %s38, 1
      %p287 = por %p285, %p286
      %p288 = scmp.ne.s32.totalorder %s279, %s280
      %p289 = scmp.eq.s32.totalorder %s38, 0
      %p290 = por %p288, %p289
      %p291 = scmp.ne.s32.totalorder %s279, %s280
      %p292 = scmp.eq.s32.totalorder %s39, 1
      %p293 = por %p291, %p292
      %p295 = scmp.ne.s32.totalorder %s280, %s294
      %p296 = scmp.eq.s32.totalorder %s39, 0
      %p297 = por %p295, %p296
      %s299 = sadd.s32 %s298, 1
      %p302 = scmp.eq.s32.totalorder %s33, 1
      %p303 = scmp.ne.s32.totalorder %s298, %s300
      %p304 = scmp.eq.s32.totalorder %s33, 0
      %p305 = por %p303, %p304
      %p306 = scmp.ne.s32.totalorder %s298, %s300
      %p307 = scmp.eq.s32.totalorder %s38, 1
      %p308 = por %p306, %p307
      %p309 = scmp.ne.s32.totalorder %s300, %s301
      %p310 = scmp.eq.s32.totalorder %s38, 0
      %p311 = por %p309, %p310
      %p312 = scmp.ne.s32.totalorder %s300, %s301
      %p313 = scmp.eq.s32.totalorder %s39, 1
      %p314 = por %p312, %p313
      %p316 = scmp.ne.s32.totalorder %s301, %s315
      %p317 = scmp.eq.s32.totalorder %s39, 0
      %p318 = por %p316, %p317
      %s319 = ssub.s32 %s33, %s40
      %p320 = scmp.eq.s32.totalorder %s319, 0
      %s322 = sadd.s32 %s321, 1
      %s323 = scalar_select %p320, %s321, %s322
      %p326 = pneg %p320
      %p327 = scmp.eq.s32.totalorder %s33, 1
      %p328 = por %p326, %p327
      %p329 = scmp.ne.s32.totalorder %s321, %s324
      %p330 = scmp.eq.s32.totalorder %s33, 0
      %p331 = por %p329, %p330
      %p332 = scmp.ne.s32.totalorder %s321, %s324
      %p333 = scmp.eq.s32.totalorder %s38, 1
      %p334 = por %p332, %p333
      %p335 = scmp.ne.s32.totalorder %s324, %s325
      %p336 = scmp.eq.s32.totalorder %s38, 0
      %p337 = por %p335, %p336
      %p338 = scmp.ne.s32.totalorder %s324, %s325
      %p339 = scmp.eq.s32.totalorder %s39, 1
      %p340 = por %p338, %p339
      %p342 = scmp.ne.s32.totalorder %s325, %s341
      %p343 = scmp.eq.s32.totalorder %s39, 0
      %p344 = por %p342, %p343
      %s345 = ssub.s32 %s33, %s40
      %p346 = scmp.eq.s32.totalorder %s345, 0
      %s348 = sadd.s32 %s347, 1
      %s349 = scalar_select %p346, %s347, %s348
      %p352 = pneg %p346
      %p353 = scmp.eq.s32.totalorder %s33, 1
      %p354 = por %p352, %p353
      %p355 = scmp.ne.s32.totalorder %s347, %s350
      %p356 = scmp.eq.s32.totalorder %s33, 0
      %p357 = por %p355, %p356
      %p358 = scmp.ne.s32.totalorder %s347, %s350
      %p359 = scmp.eq.s32.totalorder %s38, 1
      %p360 = por %p358, %p359
      %p361 = scmp.ne.s32.totalorder %s350, %s351
      %p362 = scmp.eq.s32.totalorder %s38, 0
      %p363 = por %p361, %p362
      %p364 = scmp.ne.s32.totalorder %s350, %s351
      %p365 = scmp.eq.s32.totalorder %s39, 1
      %p366 = por %p364, %p365
      %p368 = scmp.ne.s32.totalorder %s351, %s367
      %p369 = scmp.eq.s32.totalorder %s39, 0
      %p370 = por %p368, %p369
      %p371 = scmp.le.s32.totalorder 1, %s33
      %p372 = scmp.lt.s32.totalorder %s33, 3
      %p373 = pnand %p371, %p372
      %p374 = pneg %p373
      // Predicated region
      $region9: #{rndnet_forward.1} parent=5 // pred_check
        _
      $region10: #{rndnet_forward.1} parent=5 // pred_check_branch
        %376 = sbr.rel (%p373) target = $region12
      $region11: #{rndnet_forward.1} parent=5 // pred_region
        %s377 = ssub.s32 %s33, 1
        // Predicated region
        $region13: #{rndnet_forward.1} parent=11 // pred_check
          %p378 = pneg %p80
        $region14: #{rndnet_forward.1} parent=11 // pred_check_branch
          %380 = sbr.rel (%p378) target = $region16
        $region15: #{rndnet_forward.1} parent=11 // pred_region
          %382 = vsyncadd [#allocation4], 0
          %s383 = sshll.u32 %s1, 4
          %s384 = int_to_ptr.hbm [resolvable:$true] %s383
          %s385 = sshll.u32 [#allocation3], 4
          %s386 = int_to_ptr.vmem [resolvable:$true] %s385
          %391 = dma.hbm_to_vmem [thread:$0]  %s384, 128, %s386, [#allocation4], 64, 64, 4
        $region16: #{rndnet_forward.1} parent=11 // pred_fallthru
          _
        // Predicated region
        $region17: #{rndnet_forward.1} parent=11 // pred_check
          %p392 = pneg %p101
        $region18: #{rndnet_forward.1} parent=11 // pred_check_branch
          %394 = sbr.rel (%p392) target = $region20
        $region19: #{rndnet_forward.1} parent=11 // pred_region
          _
        $region20: #{rndnet_forward.1} parent=11 // pred_fallthru
          _
        // Predicated region
        $region21: #{rndnet_forward.1} parent=11 // pred_check
          %p395 = pneg %p122
        $region22: #{rndnet_forward.1} parent=11 // pred_check_branch
          %397 = sbr.rel (%p395) target = $region24
        $region23: #{rndnet_forward.1} parent=11 // pred_region
          %399 = vsyncadd [#allocation7], 0
          %s400 = sshll.u32 %s3, 4
          %s401 = int_to_ptr.hbm [resolvable:$true] %s400
          %s402 = sshll.u32 [#allocation6], 4
          %s403 = int_to_ptr.vmem [resolvable:$true] %s402
          %408 = dma.hbm_to_vmem [thread:$0]  %s401, 512, %s403, [#allocation7], 128, 128, 8
        $region24: #{rndnet_forward.1} parent=11 // pred_fallthru
          _
        // Predicated region
        $region25: #{rndnet_forward.1} parent=11 // pred_check
          %p409 = pneg %p143
        $region26: #{rndnet_forward.1} parent=11 // pred_check_branch
          %411 = sbr.rel (%p409) target = $region28
        $region27: #{rndnet_forward.1} parent=11 // pred_region
          _
        $region28: #{rndnet_forward.1} parent=11 // pred_fallthru
          _
        // Predicated region
        $region29: #{rndnet_forward.1} parent=11 // pred_check
          %p412 = pneg %p164
        $region30: #{rndnet_forward.1} parent=11 // pred_check_branch
          %414 = sbr.rel (%p412) target = $region32
        $region31: #{rndnet_forward.1} parent=11 // pred_region
          %416 = vsyncadd [#allocation7], 0
          %s417 = sshll.u32 %s5, 4
          %s418 = int_to_ptr.hbm [resolvable:$true] %s417
          %s419 = sshll.u32 [#allocation8], 4
          %s420 = int_to_ptr.vmem [resolvable:$true] %s419
          %425 = dma.hbm_to_vmem [thread:$0]  %s418, 73728, %s420, [#allocation7], 128, 128, 8
        $region32: #{rndnet_forward.1} parent=11 // pred_fallthru
          _
        // Predicated region
        $region33: #{rndnet_forward.1} parent=11 // pred_check
          %p426 = pneg %p185
        $region34: #{rndnet_forward.1} parent=11 // pred_check_branch
          %428 = sbr.rel (%p426) target = $region36
        $region35: #{rndnet_forward.1} parent=11 // pred_region
          %430 = vsyncadd [#allocation10], 0
          %s432 = sshll.u32 %s6, 4
          %s433 = int_to_ptr.hbm [resolvable:$true] %s432
          %s434 = sshll.u32 [#allocation9], 4
          %s435 = int_to_ptr.vmem [resolvable:$true] %s434
          %437 = dma.hbm_to_vmem [thread:$0]  %s433, 32, %s435, [#allocation10]
        $region36: #{rndnet_forward.1} parent=11 // pred_fallthru
          _
        // Predicated region
        $region37: #{rndnet_forward.1} parent=11 // pred_check
          %p438 = pneg %p206
        $region38: #{rndnet_forward.1} parent=11 // pred_check_branch
          %440 = sbr.rel (%p438) target = $region40
        $region39: #{rndnet_forward.1} parent=11 // pred_region
          %442 = vsyncadd [#allocation10], 0
          %s443 = sshll.u32 %s7, 4
          %s444 = int_to_ptr.hbm [resolvable:$true] %s443
          %s445 = sshll.u32 [#allocation11], 4
          %s446 = int_to_ptr.vmem [resolvable:$true] %s445
          %451 = dma.hbm_to_vmem [thread:$0]  %s444, 8192, %s446, [#allocation10], 256, 256, 16
        $region40: #{rndnet_forward.1} parent=11 // pred_fallthru
          _
        // Predicated region
        $region41: #{rndnet_forward.1} parent=11 // pred_check
          %p452 = pneg %p227
        $region42: #{rndnet_forward.1} parent=11 // pred_check_branch
          %454 = sbr.rel (%p452) target = $region44
        $region43: #{rndnet_forward.1} parent=11 // pred_region
          %456 = vsyncadd [#allocation13], 0
          %s458 = sshll.u32 %s8, 4
          %s459 = int_to_ptr.hbm [resolvable:$true] %s458
          %s460 = sshll.u32 [#allocation12], 4
          %s461 = int_to_ptr.vmem [resolvable:$true] %s460
          %463 = dma.hbm_to_vmem [thread:$0]  %s459, 64, %s461, [#allocation13]
        $region44: #{rndnet_forward.1} parent=11 // pred_fallthru
          _
        // Predicated region
        $region45: #{rndnet_forward.1} parent=11 // pred_check
          %p464 = pneg %p248
        $region46: #{rndnet_forward.1} parent=11 // pred_check_branch
          %466 = sbr.rel (%p464) target = $region48
        $region47: #{rndnet_forward.1} parent=11 // pred_region
          %468 = vsyncadd [#allocation13], 0
          %s469 = sshll.u32 %s9, 4
          %s470 = int_to_ptr.hbm [resolvable:$true] %s469
          %s471 = sshll.u32 [#allocation14], 4
          %s472 = int_to_ptr.vmem [resolvable:$true] %s471
          %477 = dma.hbm_to_vmem [thread:$0]  %s470, 2048, %s472, [#allocation13], 64, 64, 4
        $region48: #{rndnet_forward.1} parent=11 // pred_fallthru
          _
        // Predicated region
        $region49: #{rndnet_forward.1} parent=11 // pred_check
          %p478 = pneg %p269
        $region50: #{rndnet_forward.1} parent=11 // pred_check_branch
          %480 = sbr.rel (%p478) target = $region52
        $region51: #{rndnet_forward.1} parent=11 // pred_region
          %482 = vsyncadd [#allocation16], 0
          %s484 = sshll.u32 %s10, 4
          %s485 = int_to_ptr.hbm [resolvable:$true] %s484
          %s486 = sshll.u32 [#allocation15], 4
          %s487 = int_to_ptr.vmem [resolvable:$true] %s486
          %489 = dma.hbm_to_vmem [thread:$0]  %s485, 16, %s487, [#allocation16]
        $region52: #{rndnet_forward.1} parent=11 // pred_fallthru
          _
        // Predicated region
        $region53: #{rndnet_forward.1} parent=11 // pred_check
          %p490 = pneg %p290
        $region54: #{rndnet_forward.1} parent=11 // pred_check_branch
          %492 = sbr.rel (%p490) target = $region56
        $region55: #{rndnet_forward.1} parent=11 // pred_region
          %494 = vsyncadd [#allocation16], 0
          %s495 = sshll.u32 %s11, 4
          %s496 = int_to_ptr.hbm [resolvable:$true] %s495
          %s497 = sshll.u32 [#allocation17], 4
          %s498 = int_to_ptr.vmem [resolvable:$true] %s497
          %503 = dma.hbm_to_vmem [thread:$0]  %s496, 2048, %s498, [#allocation16], 64, 64, 4
        $region56: #{rndnet_forward.1} parent=11 // pred_fallthru
          _
        // Predicated region
        $region57: #{rndnet_forward.1} parent=11 // pred_check
          %p504 = pneg %p311
        $region58: #{rndnet_forward.1} parent=11 // pred_check_branch
          %506 = sbr.rel (%p504) target = $region60
        $region59: #{rndnet_forward.1} parent=11 // pred_region
          %508 = vsyncadd [#allocation19], 0
          %s510 = sshll.u32 %s12, 4
          %s511 = int_to_ptr.hbm [resolvable:$true] %s510
          %s512 = sshll.u32 [#allocation18], 4
          %s513 = int_to_ptr.vmem [resolvable:$true] %s512
          %515 = dma.hbm_to_vmem [thread:$0]  %s511, 16, %s513, [#allocation19]
        $region60: #{rndnet_forward.1} parent=11 // pred_fallthru
          _
      $region12: #{rndnet_forward.1} parent=5 // pred_fallthru
        _
      %p516 = scmp.lt.s32.totalorder %s33, 2
      // Predicated region
      $region61: #{rndnet_forward.1} parent=5 // pred_check
        %p517 = pneg %p516
      $region62: #{rndnet_forward.1} parent=5 // pred_check_branch
        %519 = sbr.rel (%p517) target = $region64
      $region63: #{rndnet_forward.1} parent=5 // pred_region
        // Predicated region
        $region65: #{rndnet_forward.1} parent=63 // pred_check
          %p520 = pneg %p53
        $region66: #{rndnet_forward.1} parent=63 // pred_check_branch
          %522 = sbr.rel (%p520) target = $region68
        $region67: #{rndnet_forward.1} parent=63 // pred_region
          %p523 = scmp.lt.s32.totalorder %s33, 1
          %s524 = scalar_select %p523, %s33, 1
          %s525 = smul.addr %s524, 2
          %s526 = smul.addr %s525, 4
          %s527 = scalar_lea.vmem %s0, %s526
        $region68: #{rndnet_forward.1} parent=63 // pred_fallthru
          _
      $region64: #{rndnet_forward.1} parent=5 // pred_fallthru
        _
      %p528 = scmp.le.s32.totalorder 1, %s33
      %p529 = scmp.lt.s32.totalorder %s33, 3
      %p530 = pnand %p528, %p529
      %p531 = pneg %p530
      // Predicated region
      $region69: #{rndnet_forward.1} parent=5 // pred_check
        _
      $region70: #{rndnet_forward.1} parent=5 // pred_check_branch
        %533 = sbr.rel (%p530) target = $region72
      $region71: #{rndnet_forward.1} parent=5 // pred_region
        %s534 = ssub.s32 %s33, 1
        // Predicated region
        $region73: #{rndnet_forward.1} parent=71 // pred_check
          %p535 = pneg %p80
        $region74: #{rndnet_forward.1} parent=71 // pred_check_branch
          %537 = sbr.rel (%p535) target = $region76
        $region75: #{rndnet_forward.1} parent=71 // pred_region
          %539 = dma.done [#allocation4], 128
        $region76: #{rndnet_forward.1} parent=71 // pred_fallthru
          _
        // Predicated region
        $region77: #{rndnet_forward.1} parent=71 // pred_check
          %p540 = pneg %p122
        $region78: #{rndnet_forward.1} parent=71 // pred_check_branch
          %542 = sbr.rel (%p540) target = $region80
        $region79: #{rndnet_forward.1} parent=71 // pred_region
          %544 = dma.done [#allocation7], 512
        $region80: #{rndnet_forward.1} parent=71 // pred_fallthru
          _
        // Predicated region
        $region81: #{rndnet_forward.1} parent=71 // pred_check
          %p545 = pneg %p164
        $region82: #{rndnet_forward.1} parent=71 // pred_check_branch
          %547 = sbr.rel (%p545) target = $region84
        $region83: #{rndnet_forward.1} parent=71 // pred_region
          %549 = dma.done [#allocation7], 73728
        $region84: #{rndnet_forward.1} parent=71 // pred_fallthru
          _
        // Predicated region
        $region85: #{rndnet_forward.1} parent=71 // pred_check
          %p550 = pneg %p185
        $region86: #{rndnet_forward.1} parent=71 // pred_check_branch
          %552 = sbr.rel (%p550) target = $region88
        $region87: #{rndnet_forward.1} parent=71 // pred_region
          %554 = dma.done [#allocation10], 32
        $region88: #{rndnet_forward.1} parent=71 // pred_fallthru
          _
        // Predicated region
        $region89: #{rndnet_forward.1} parent=71 // pred_check
          %p555 = pneg %p206
        $region90: #{rndnet_forward.1} parent=71 // pred_check_branch
          %557 = sbr.rel (%p555) target = $region92
        $region91: #{rndnet_forward.1} parent=71 // pred_region
          %559 = dma.done [#allocation10], 8192
        $region92: #{rndnet_forward.1} parent=71 // pred_fallthru
          _
        // Predicated region
        $region93: #{rndnet_forward.1} parent=71 // pred_check
          %p560 = pneg %p227
        $region94: #{rndnet_forward.1} parent=71 // pred_check_branch
          %562 = sbr.rel (%p560) target = $region96
        $region95: #{rndnet_forward.1} parent=71 // pred_region
          %564 = dma.done [#allocation13], 64
        $region96: #{rndnet_forward.1} parent=71 // pred_fallthru
          _
        // Predicated region
        $region97: #{rndnet_forward.1} parent=71 // pred_check
          %p565 = pneg %p248
        $region98: #{rndnet_forward.1} parent=71 // pred_check_branch
          %567 = sbr.rel (%p565) target = $region100
        $region99: #{rndnet_forward.1} parent=71 // pred_region
          %569 = dma.done [#allocation13], 2048
        $region100: #{rndnet_forward.1} parent=71 // pred_fallthru
          _
        // Predicated region
        $region101: #{rndnet_forward.1} parent=71 // pred_check
          %p570 = pneg %p269
        $region102: #{rndnet_forward.1} parent=71 // pred_check_branch
          %572 = sbr.rel (%p570) target = $region104
        $region103: #{rndnet_forward.1} parent=71 // pred_region
          %574 = dma.done [#allocation16], 16
        $region104: #{rndnet_forward.1} parent=71 // pred_fallthru
          _
        // Predicated region
        $region105: #{rndnet_forward.1} parent=71 // pred_check
          %p575 = pneg %p290
        $region106: #{rndnet_forward.1} parent=71 // pred_check_branch
          %577 = sbr.rel (%p575) target = $region108
        $region107: #{rndnet_forward.1} parent=71 // pred_region
          %579 = dma.done [#allocation16], 2048
        $region108: #{rndnet_forward.1} parent=71 // pred_fallthru
          _
        // Predicated region
        $region109: #{rndnet_forward.1} parent=71 // pred_check
          %p580 = pneg %p311
        $region110: #{rndnet_forward.1} parent=71 // pred_check_branch
          %582 = sbr.rel (%p580) target = $region112
        $region111: #{rndnet_forward.1} parent=71 // pred_region
          %584 = dma.done [#allocation19], 16
        $region112: #{rndnet_forward.1} parent=71 // pred_fallthru
          _
        %p585 = scmp.lt.s32.totalorder %s38, 1
        %s586 = scalar_select %p585, %s38, 1
        %s587 = smul.addr %s586, 2
        %s588 = smul.addr %s587, 4
        %s589 = scalar_lea.vmem %s0, %s588
        %p590 = pneg %p59
        %p591 = pneg %p56
        %p592 = pneg %p80
        %p593 = pneg %p77
        %p594 = pneg %p101
        %p595 = pneg %p98
        %p596 = pneg %p122
        %p597 = pneg %p119
        %p598 = pneg %p143
        %p599 = pneg %p140
        %p600 = pneg %p164
        %p601 = pneg %p161
        %p602 = pneg %p185
        %p603 = pneg %p182
        %p604 = pneg %p206
        %p605 = pneg %p203
        %p606 = pneg %p227
        %p607 = pneg %p224
        %p608 = pneg %p248
        %p609 = pneg %p245
        %p610 = pneg %p269
        %p611 = pneg %p266
        %p612 = pneg %p290
        %p613 = pneg %p287
        %p614 = pneg %p311
        %p615 = pneg %p308
        %p616 = pneg %p337
        %p617 = pneg %p334
        %s618 = sand.u32 %s324, 1
        %s619 = scalar_lea.sflag [#allocation5], %s618
        %s620 = sand.u32 %s324, 1
        %s621 = scalar_lea.vmem [#allocation20], %s620
        %p622 = pneg %p363
        %p623 = pneg %p360
        %s624 = sand.u32 %s350, 1
        %s625 = scalar_lea.sflag [#allocation22], %s624
        %s626 = sand.u32 %s350, 1
        %s627 = scalar_lea.vmem [#allocation21], %s626
        %p628 = scmp.lt.s32.totalorder %s38, 1
        %s629 = scalar_select %p628, %s38, 1
        %s630 = smul.addr %s629, 2
        %s631 = smul.addr %s630, 4
        %s632 = scalar_lea.vmem %s0, %s631
        %v634 = vld [vmem:[#allocation3] sm:$0xf]
        %v635 = vld [vmem:[#allocation3 + $0x4] sm:$0xf]
        %v636 = vld [vmem:[%s2] sm:$0xff]
        %v637 = vld [vmem:[%s2 + $0x8] sm:$0xff]
        %v638 = vld [vmem:[#allocation6] sm:$0xff]
        %v639 = vld [vmem:[#allocation6 + $0x8] sm:$0xff]
        %v640 = vld [vmem:[#allocation6 + $0x10] sm:$0xff]
        %v641 = vld [vmem:[#allocation6 + $0x18] sm:$0xff]
        %v642 = vld [vmem:[%s4] sm:$0xff]
        %v643 = vld [vmem:[%s4 + $0x8] sm:$0xff]
        %v644 = vld [vmem:[%s4 + $0x10] sm:$0xff]
        %v645 = vld [vmem:[%s4 + $0x18] sm:$0xff]
        %v646 = vld [vmem:[%s632] sm:$0xff]
        %648 = vst [vmem:[#allocation1] ss:$2 sm:$0xff] %v646
        %v649 = vld.sshfl [vmem:[#allocation1] sm:$0xff pattern:$0x75316420]
        %v650 = vld.sshfl [vmem:[#allocation1 + $0x8] sm:$0xff pattern:$0x75316420]
        %v653 = vpack.c.bf16 %v650, %v649
        %v655 = vunpack.c.l.b16 %v653
        %v656 = vunpack.c.h.b16 %v653
        %v657 = vpack.c.b16 %v655, %v655
        %v658 = vpack.c.b16 %v656, %v656
        %v659 = vrot.slane %v657, 6
        %v660 = vrot.slane %v658, 6
        %661 = vrot.lane.b32.xlu0 %v659, 127
        %v662 = vpop.permute.xlu0 %661
        %663 = vrot.lane.b32.xlu0 %v660, 127
        %v664 = vpop.permute.xlu0 %663
        %vm665 = vcmask 1039360
        %v666 = vsel %vm665, %v662, %v664
        %667 = vrot.lane.b32.xlu0 %v657, 126
        %v668 = vpop.permute.xlu0 %667
        %669 = vrot.lane.b32.xlu0 %v658, 126
        %v670 = vpop.permute.xlu0 %669
        %vm671 = vcmask 1031168
        %v672 = vsel %vm671, %v668, %v670
        %v673 = vrot.slane %v657, 2
        %v674 = vrot.slane %v658, 2
        %675 = vrot.lane.b32.xlu0 %v673, 112
        %v676 = vpop.permute.xlu0 %675
        %677 = vrot.lane.b32.xlu0 %v674, 112
        %v678 = vpop.permute.xlu0 %677
        %vm679 = vcmask 916480
        %v680 = vsel %vm679, %v676, %v678
        %681 = vrot.lane.b32.xlu0 %v657, 111
        %v682 = vpop.permute.xlu0 %681
        %683 = vrot.lane.b32.xlu0 %v658, 111
        %v684 = vpop.permute.xlu0 %683
        %vm685 = vcmask 908288
        %v686 = vsel %vm685, %v682, %v684
        %687 = vrot.lane.b32.xlu0 %v659, 110
        %v688 = vpop.permute.xlu0 %687
        %689 = vrot.lane.b32.xlu0 %v660, 110
        %v690 = vpop.permute.xlu0 %689
        %vm691 = vcmask 900096
        %v692 = vsel %vm691, %v688, %v690
        %693 = vrot.lane.b32.xlu0 %v657, 96
        %v694 = vpop.permute.xlu0 %693
        %695 = vrot.lane.b32.xlu0 %v658, 96
        %v696 = vpop.permute.xlu0 %695
        %vm697 = vcmask 785408
        %v698 = vsel %vm697, %v694, %v696
        %699 = vrot.lane.b32.xlu0 %v673, 95
        %v700 = vpop.permute.xlu0 %699
        %701 = vrot.lane.b32.xlu0 %v674, 95
        %v702 = vpop.permute.xlu0 %701
        %vm703 = vcmask 777216
        %v704 = vsel %vm703, %v700, %v702
        %705 = vrot.lane.b32.xlu0 %v657, 94
        %v706 = vpop.permute.xlu0 %705
        %707 = vrot.lane.b32.xlu0 %v658, 94
        %v708 = vpop.permute.xlu0 %707
        %vm709 = vcmask 769024
        %v710 = vsel %vm709, %v706, %v708
        %vm711 = vcmask 1041408
        %v714 = vsel %vm711, %v657, %v666
        %v717 = vsel %vm711, %v658, %v664
        %vm718 = vcmask 1043456
        %v720 = vsel %vm718, %v714, %v672
        %v722 = vsel %vm718, %v717, %v670
        %vm723 = vcmask 1045504
        %v725 = vsel %vm723, %v720, %v680
        %v728 = vsel %vm723, %v722, %v678
        %v732 = vsel %vm711, %v686, %v692
        %v735 = vsel %vm711, %v684, %v690
        %v737 = vsel %vm718, %v732, %v698
        %v739 = vsel %vm718, %v735, %v696
        %v741 = vsel %vm723, %v737, %v704
        %v744 = vsel %vm723, %v739, %v702
        %747 = vset.pattern.permute.xlu0 0
        %748 = vperm.xlu0 %747, %v636
        %v749 = vpop.permute.xlu0 %748
        %752 = vset.pattern.permute.xlu0 0
        %753 = vperm.xlu0 %752, %v637
        %v754 = vpop.permute.xlu0 %753
        %v758 = vunpack.c.l.b16 %v634
        %v759 = vunpack.c.l.b16 %v635
        %v760 = vpack.c.b16 %v759, %v758
        %vm761 = vcmask 293888
        %v763 = vsel %vm761, %v760, 0
        %v766 = vsel %vm711, %v710, 0
        %v769 = vsel %vm711, %v708, 0
        %771 = vmatpush.bf16.msra.mxu0 0
        %772 = vmatpush.bf16.msra.mxu0 0
        %773 = vmatpush.bf16.msra.mxu0 0
        %774 = vmatpush.bf16.msra.mxu0 0
        %775 = vmatpush.bf16.msra.mxu0 0
        %776 = vmatpush.bf16.msra.mxu0 %v766
        %777 = vmatpush.bf16.msra.mxu0 %v741
        %778 = vmatpush.bf16.msra.mxu0 %v725
        %779 = vmatmul.bf16.gmra.mxu0 %v763
        %v780 = vpop.f32.mrf.mxu0
        %v781 = vadd.f32 %v749, %v780
        %v782 = vpop.f32.mrf.mxu0
        %v783 = vadd.f32 %v754, %v782
        %784 = vdwg.mxu0
        %785 = vmatpush.bf16.msra.mxu0 0
        %786 = vmatpush.bf16.msra.mxu0 0
        %787 = vmatpush.bf16.msra.mxu0 0
        %788 = vmatpush.bf16.msra.mxu0 0
        %789 = vmatpush.bf16.msra.mxu0 0
        %790 = vmatpush.bf16.msra.mxu0 %v769
        %791 = vmatpush.bf16.msra.mxu0 %v744
        %792 = vmatpush.bf16.msra.mxu0 %v728
        %793 = vmatmul.bf16.gmra.mxu0 %v763
        %v794 = vpop.f32.mrf.mxu0
        %v795 = vadd.f32 %v749, %v794
        %v796 = vpop.f32.mrf.mxu0
        %v797 = vadd.f32 %v754, %v796
        %798 = vdwg.mxu0
        %v799 = vmax.f32 %v781, 0.0
        %v800 = vmax.f32 %v795, 0.0
        %v801 = vmax.f32 %v783, 0.0
        %v802 = vmax.f32 %v797, 0.0
        %v803 = vpack.c.bf16 %v800, %v799
        %v804 = vpack.c.bf16 %v802, %v801
        %v807 = vunpack.c.l.b16 %v803
        %v808 = vunpack.c.h.b16 %v803
        %v809 = vunpack.c.l.b16 %v804
        %v810 = vunpack.c.h.b16 %v804
        %v811 = vpack.c.b16 %v809, %v807
        %v812 = vpack.c.b16 %v810, %v808
        %815 = vrot.lane.b32.xlu0 %v811, 127
        %v816 = vpop.permute.xlu0 %815
        %817 = vrot.lane.b32.xlu0 %v812, 127
        %v818 = vpop.permute.xlu0 %817
        %v819 = vsel %vm665, %v816, %v818
        %822 = vrot.lane.b32.xlu0 %v811, 126
        %v823 = vpop.permute.xlu0 %822
        %824 = vrot.lane.b32.xlu0 %v812, 126
        %v825 = vpop.permute.xlu0 %824
        %v826 = vsel %vm671, %v823, %v825
        %829 = vrot.lane.b32.xlu0 %v811, 112
        %v830 = vpop.permute.xlu0 %829
        %831 = vrot.lane.b32.xlu0 %v812, 112
        %v832 = vpop.permute.xlu0 %831
        %v833 = vsel %vm679, %v830, %v832
        %836 = vrot.lane.b32.xlu0 %v811, 111
        %v837 = vpop.permute.xlu0 %836
        %838 = vrot.lane.b32.xlu0 %v812, 111
        %v839 = vpop.permute.xlu0 %838
        %v840 = vsel %vm685, %v837, %v839
        %843 = vrot.lane.b32.xlu0 %v811, 110
        %v844 = vpop.permute.xlu0 %843
        %845 = vrot.lane.b32.xlu0 %v812, 110
        %v846 = vpop.permute.xlu0 %845
        %v847 = vsel %vm691, %v844, %v846
        %850 = vrot.lane.b32.xlu0 %v811, 96
        %v851 = vpop.permute.xlu0 %850
        %852 = vrot.lane.b32.xlu0 %v812, 96
        %v853 = vpop.permute.xlu0 %852
        %v854 = vsel %vm697, %v851, %v853
        %857 = vrot.lane.b32.xlu0 %v811, 95
        %v858 = vpop.permute.xlu0 %857
        %859 = vrot.lane.b32.xlu0 %v812, 95
        %v860 = vpop.permute.xlu0 %859
        %v861 = vsel %vm703, %v858, %v860
        %864 = vrot.lane.b32.xlu0 %v811, 94
        %v865 = vpop.permute.xlu0 %864
        %866 = vrot.lane.b32.xlu0 %v812, 94
        %v867 = vpop.permute.xlu0 %866
        %v868 = vsel %vm709, %v865, %v867
        %872 = vset.pattern.permute.xlu0 0
        %873 = vperm.xlu0 %872, %v642
        %v874 = vpop.permute.xlu0 %873
        %877 = vset.pattern.permute.xlu0 0
        %878 = vperm.xlu0 %877, %v643
        %v879 = vpop.permute.xlu0 %878
        %882 = vset.pattern.permute.xlu0 0
        %883 = vperm.xlu0 %882, %v644
        %v884 = vpop.permute.xlu0 %883
        %887 = vset.pattern.permute.xlu0 0
        %888 = vperm.xlu0 %887, %v645
        %v889 = vpop.permute.xlu0 %888
        %v895 = vunpack.c.l.b16 %v638
        %v896 = vunpack.c.h.b16 %v638
        %v897 = vunpack.c.l.b16 %v639
        %v898 = vunpack.c.h.b16 %v639
        %v899 = vunpack.c.l.b16 %v640
        %v900 = vunpack.c.h.b16 %v640
        %v901 = vunpack.c.l.b16 %v641
        %v902 = vunpack.c.h.b16 %v641
        %v903 = vpack.c.b16 %v897, %v895
        %v904 = vpack.c.b16 %v898, %v896
        %v905 = vpack.c.b16 %v901, %v899
        %v906 = vpack.c.b16 %v902, %v900
        %vm909 = vcmask 130048
        %v911 = vsel %vm909, %v904, 0
        %v914 = vsel %vm909, %v906, 0
        %916 = vmatpush.bf16.msra.mxu0 %v861
        %917 = vmatpush.bf16.msra.mxu0 %v854
        %918 = vmatpush.bf16.msra.mxu0 %v847
        %919 = vmatpush.bf16.msra.mxu0 %v840
        %920 = vmatpush.bf16.msra.mxu0 %v833
        %921 = vmatpush.bf16.msra.mxu0 %v826
        %922 = vmatpush.bf16.msra.mxu0 %v819
        %923 = vmatpush.bf16.msra.mxu0 %v811
        %924 = vmatmul.bf16.gmra.mxu0 %v903
        %v925 = vpop.f32.mrf.mxu0
        %v926 = vadd.f32 %v874, %v925
        %v927 = vpop.f32.mrf.mxu0
        %v928 = vadd.f32 %v879, %v927
        %929 = vmatmul.bf16.gmra.mxu0 %v905
        %v930 = vpop.f32.mrf.mxu0
        %v931 = vadd.f32 %v884, %v930
        %v932 = vpop.f32.mrf.mxu0
        %v933 = vadd.f32 %v889, %v932
        %934 = vdwg.mxu0
        %935 = vmatpush.bf16.msra.mxu0 0
        %936 = vmatpush.bf16.msra.mxu0 0
        %937 = vmatpush.bf16.msra.mxu0 0
        %938 = vmatpush.bf16.msra.mxu0 0
        %939 = vmatpush.bf16.msra.mxu0 0
        %940 = vmatpush.bf16.msra.mxu0 0
        %941 = vmatpush.bf16.msra.mxu0 0
        %942 = vmatpush.bf16.msra.mxu0 %v868
        %943 = vmatmul.bf16.gmra.mxu0 %v911
        %v944 = vpop.f32.mrf.mxu0
        %v945 = vadd.f32 %v926, %v944
        %v946 = vpop.f32.mrf.mxu0
        %v947 = vadd.f32 %v928, %v946
        %948 = vmatmul.bf16.gmra.mxu0 %v914
        %v949 = vpop.f32.mrf.mxu0
        %v950 = vadd.f32 %v931, %v949
        %v951 = vpop.f32.mrf.mxu0
        %v952 = vadd.f32 %v933, %v951
        %953 = vdwg.mxu0
        %954 = vmatpush.bf16.msra.mxu0 %v860
        %955 = vmatpush.bf16.msra.mxu0 %v853
        %956 = vmatpush.bf16.msra.mxu0 %v846
        %957 = vmatpush.bf16.msra.mxu0 %v839
        %958 = vmatpush.bf16.msra.mxu0 %v832
        %959 = vmatpush.bf16.msra.mxu0 %v825
        %960 = vmatpush.bf16.msra.mxu0 %v818
        %961 = vmatpush.bf16.msra.mxu0 %v812
        %962 = vmatmul.bf16.gmra.mxu0 %v903
        %v963 = vpop.f32.mrf.mxu0
        %v964 = vadd.f32 %v874, %v963
        %v965 = vpop.f32.mrf.mxu0
        %v966 = vadd.f32 %v879, %v965
        %967 = vmatmul.bf16.gmra.mxu0 %v905
        %v968 = vpop.f32.mrf.mxu0
        %v969 = vadd.f32 %v884, %v968
        %v970 = vpop.f32.mrf.mxu0
        %v971 = vadd.f32 %v889, %v970
        %972 = vdwg.mxu0
        %973 = vmatpush.bf16.msra.mxu0 0
        %974 = vmatpush.bf16.msra.mxu0 0
        %975 = vmatpush.bf16.msra.mxu0 0
        %976 = vmatpush.bf16.msra.mxu0 0
        %977 = vmatpush.bf16.msra.mxu0 0
        %978 = vmatpush.bf16.msra.mxu0 0
        %979 = vmatpush.bf16.msra.mxu0 0
        %980 = vmatpush.bf16.msra.mxu0 %v867
        %981 = vmatmul.bf16.gmra.mxu0 %v911
        %v982 = vpop.f32.mrf.mxu0
        %v983 = vadd.f32 %v964, %v982
        %v984 = vpop.f32.mrf.mxu0
        %v985 = vadd.f32 %v966, %v984
        %986 = vmatmul.bf16.gmra.mxu0 %v914
        %v987 = vpop.f32.mrf.mxu0
        %v988 = vadd.f32 %v969, %v987
        %v989 = vpop.f32.mrf.mxu0
        %v990 = vadd.f32 %v971, %v989
        %991 = vdwg.mxu0
        %v992 = vmax.f32 %v945, 0.0
        %v993 = vmax.f32 %v983, 0.0
        %v994 = vmax.f32 %v947, 0.0
        %v995 = vmax.f32 %v985, 0.0
        %v996 = vmax.f32 %v950, 0.0
        %v997 = vmax.f32 %v988, 0.0
        %v998 = vmax.f32 %v952, 0.0
        %v999 = vmax.f32 %v990, 0.0
        %1004 = vrot.lane.b32.xlu0 %v992, 124
        %v1005 = vpop.permute.xlu0 %1004
        %1006 = vrot.lane.b32.xlu0 %v994, 124
        %v1007 = vpop.permute.xlu0 %1006
        %1008 = vrot.lane.b32.xlu0 %v996, 124
        %v1009 = vpop.permute.xlu0 %1008
        %1010 = vrot.lane.b32.xlu0 %v998, 124
        %v1011 = vpop.permute.xlu0 %1010
        %1016 = vrot.lane.b32.xlu0 %v992, 120
        %v1017 = vpop.permute.xlu0 %1016
        %1018 = vrot.lane.b32.xlu0 %v994, 120
        %v1019 = vpop.permute.xlu0 %1018
        %1020 = vrot.lane.b32.xlu0 %v996, 120
        %v1021 = vpop.permute.xlu0 %1020
        %1022 = vrot.lane.b32.xlu0 %v998, 120
        %v1023 = vpop.permute.xlu0 %1022
        %1028 = vrot.lane.b32.xlu0 %v992, 116
        %v1029 = vpop.permute.xlu0 %1028
        %1030 = vrot.lane.b32.xlu0 %v994, 116
        %v1031 = vpop.permute.xlu0 %1030
        %1032 = vrot.lane.b32.xlu0 %v996, 116
        %v1033 = vpop.permute.xlu0 %1032
        %1034 = vrot.lane.b32.xlu0 %v998, 116
        %v1035 = vpop.permute.xlu0 %1034
        %1040 = vrot.lane.b32.xlu0 %v992, 112
        %v1041 = vpop.permute.xlu0 %1040
        %1042 = vrot.lane.b32.xlu0 %v994, 112
        %v1043 = vpop.permute.xlu0 %1042
        %1044 = vrot.lane.b32.xlu0 %v996, 112
        %v1045 = vpop.permute.xlu0 %1044
        %1046 = vrot.lane.b32.xlu0 %v998, 112
        %v1047 = vpop.permute.xlu0 %1046
        %1052 = vrot.lane.b32.xlu0 %v992, 108
        %v1053 = vpop.permute.xlu0 %1052
        %1054 = vrot.lane.b32.xlu0 %v994, 108
        %v1055 = vpop.permute.xlu0 %1054
        %1056 = vrot.lane.b32.xlu0 %v996, 108
        %v1057 = vpop.permute.xlu0 %1056
        %1058 = vrot.lane.b32.xlu0 %v998, 108
        %v1059 = vpop.permute.xlu0 %1058
        %1064 = vrot.lane.b32.xlu0 %v992, 104
        %v1065 = vpop.permute.xlu0 %1064
        %1066 = vrot.lane.b32.xlu0 %v994, 104
        %v1067 = vpop.permute.xlu0 %1066
        %1068 = vrot.lane.b32.xlu0 %v996, 104
        %v1069 = vpop.permute.xlu0 %1068
        %1070 = vrot.lane.b32.xlu0 %v998, 104
        %v1071 = vpop.permute.xlu0 %1070
        %1076 = vrot.lane.b32.xlu0 %v992, 100
        %v1077 = vpop.permute.xlu0 %1076
        %1078 = vrot.lane.b32.xlu0 %v994, 100
        %v1079 = vpop.permute.xlu0 %1078
        %1080 = vrot.lane.b32.xlu0 %v996, 100
        %v1081 = vpop.permute.xlu0 %1080
        %1082 = vrot.lane.b32.xlu0 %v998, 100
        %v1083 = vpop.permute.xlu0 %1082
        %1092 = vrot.lane.b32.xlu0 %v993, 96
        %v1093 = vpop.permute.xlu0 %1092
        %1094 = vrot.lane.b32.xlu0 %v995, 96
        %v1095 = vpop.permute.xlu0 %1094
        %1096 = vrot.lane.b32.xlu0 %v997, 96
        %v1097 = vpop.permute.xlu0 %1096
        %1098 = vrot.lane.b32.xlu0 %v999, 96
        %v1099 = vpop.permute.xlu0 %1098
        %1104 = vrot.lane.b32.xlu0 %v993, 92
        %v1105 = vpop.permute.xlu0 %1104
        %1106 = vrot.lane.b32.xlu0 %v995, 92
        %v1107 = vpop.permute.xlu0 %1106
        %1108 = vrot.lane.b32.xlu0 %v997, 92
        %v1109 = vpop.permute.xlu0 %1108
        %1110 = vrot.lane.b32.xlu0 %v999, 92
        %v1111 = vpop.permute.xlu0 %1110
        %1116 = vrot.lane.b32.xlu0 %v993, 88
        %v1117 = vpop.permute.xlu0 %1116
        %1118 = vrot.lane.b32.xlu0 %v995, 88
        %v1119 = vpop.permute.xlu0 %1118
        %1120 = vrot.lane.b32.xlu0 %v997, 88
        %v1121 = vpop.permute.xlu0 %1120
        %1122 = vrot.lane.b32.xlu0 %v999, 88
        %v1123 = vpop.permute.xlu0 %1122
        %1128 = vrot.lane.b32.xlu0 %v993, 84
        %v1129 = vpop.permute.xlu0 %1128
        %1130 = vrot.lane.b32.xlu0 %v995, 84
        %v1131 = vpop.permute.xlu0 %1130
        %1132 = vrot.lane.b32.xlu0 %v997, 84
        %v1133 = vpop.permute.xlu0 %1132
        %1134 = vrot.lane.b32.xlu0 %v999, 84
        %v1135 = vpop.permute.xlu0 %1134
        %vm1140 = vcmask 97280
        %v1141 = vsel %vm1140, %v992, %v1005
        %v1142 = vsel %vm1140, %v994, %v1007
        %v1143 = vsel %vm1140, %v996, %v1009
        %v1144 = vsel %vm1140, %v998, %v1011
        %vm1145 = vcmask 195584
        %v1146 = vsel %vm1145, %v1141, %v1017
        %v1147 = vsel %vm1145, %v1142, %v1019
        %v1148 = vsel %vm1145, %v1143, %v1021
        %v1149 = vsel %vm1145, %v1144, %v1023
        %v1150 = vsel %vm761, %v1146, %v1029
        %v1151 = vsel %vm761, %v1147, %v1031
        %v1152 = vsel %vm761, %v1148, %v1033
        %v1153 = vsel %vm761, %v1149, %v1035
        %vm1154 = vcmask 392192
        %v1155 = vsel %vm1154, %v1150, %v1041
        %v1156 = vsel %vm1154, %v1151, %v1043
        %v1157 = vsel %vm1154, %v1152, %v1045
        %v1158 = vsel %vm1154, %v1153, %v1047
        %vm1159 = vcmask 490496
        %v1160 = vsel %vm1159, %v1155, %v1053
        %v1161 = vsel %vm1159, %v1156, %v1055
        %v1162 = vsel %vm1159, %v1157, %v1057
        %v1163 = vsel %vm1159, %v1158, %v1059
        %vm1164 = vcmask 588800
        %v1165 = vsel %vm1164, %v1160, %v1065
        %v1166 = vsel %vm1164, %v1161, %v1067
        %v1167 = vsel %vm1164, %v1162, %v1069
        %v1168 = vsel %vm1164, %v1163, %v1071
        %vm1169 = vcmask 687104
        %v1170 = vsel %vm1169, %v1165, %v1077
        %v1171 = vsel %vm1169, %v1166, %v1079
        %v1172 = vsel %vm1169, %v1167, %v1081
        %v1173 = vsel %vm1169, %v1168, %v1083
        %vm1174 = vcmask 785408
        %v1175 = vsel %vm1174, %v1170, %v1093
        %v1176 = vsel %vm1174, %v1171, %v1095
        %v1177 = vsel %vm1174, %v1172, %v1097
        %v1178 = vsel %vm1174, %v1173, %v1099
        %vm1179 = vcmask 883712
        %v1180 = vsel %vm1179, %v1175, %v1105
        %v1181 = vsel %vm1179, %v1176, %v1107
        %v1182 = vsel %vm1179, %v1177, %v1109
        %v1183 = vsel %vm1179, %v1178, %v1111
        %vm1184 = vcmask 982016
        %v1185 = vsel %vm1184, %v1180, %v1117
        %v1186 = vsel %vm1184, %v1181, %v1119
        %v1187 = vsel %vm1184, %v1182, %v1121
        %v1188 = vsel %vm1184, %v1183, %v1123
        %vm1189 = vcmask 31744
        %v1190 = vsel %vm1189, %v1117, %v1129
        %v1191 = vsel %vm1189, %v1119, %v1131
        %v1192 = vsel %vm1189, %v1121, %v1133
        %v1193 = vsel %vm1189, %v1123, %v1135
        %v1194 = vpack.c.bf16 %v1190, %v1185
        %v1195 = vpack.c.bf16 %v1191, %v1186
        %v1196 = vpack.c.bf16 %v1192, %v1187
        %v1197 = vpack.c.bf16 %v1193, %v1188
        %v1199 = vrot.slane %v1194, 3
        %vm1200 = vcmask 1040384
        %v1203 = vsel %vm1200, %v1194, %v1199
        %vm1205 = vcmask 1040384
        %vm1206 = vsmask.f32 256
        %vm1207 = vmand %vm1205, %vm1206
        %vm1208 = vcmask 123905
        %vm1209 = vsmask.f32 1280
        %vm1210 = vmand %vm1208, %vm1209
        %vm1211 = vmor %vm1210, %vm1207
        %v1212 = vld [vmem:[#allocation2] sm:$0x3]
        %v1213 = vsel %vm1211, %v1203, %v1212
        %1214 = vst [vmem:[#allocation2] sm:$0x3] %v1213
        %v1215 = vshrl.u32 %v1203, 16
        %v1217 = vrot.slane %v1215, 7
        %v1218 = vrot.slane %v1217, 1
        %1219 = vrot.lane.b32.xlu0 %v1218, 16
        %v1220 = vpop.permute.xlu0 %1219
        %v1221 = vrot.slane %v1220, 7
        %vm1222 = vcmask 130048
        %v1223 = vsel %vm1222, %v1221, %v1220
        %vm1225 = vcmask 1040512
        %vm1226 = vmand %vm1225, %vm1206
        %vm1227 = vcmask 254977
        %vm1228 = vmand %vm1227, %vm1209
        %vm1229 = vmor %vm1228, %vm1226
        %v1230 = vld [vmem:[#allocation2 + $0x1] sm:$0x3]
        %v1231 = vsel %vm1229, %v1223, %v1230
        %1232 = vst [vmem:[#allocation2 + $0x1] sm:$0x3] %v1231
        %1233 = vst [vmem:[#allocation1] sm:$0xff] %v1194
        %s1234 = scalar_lea.vmem [#allocation1], 1
        %v1235 = vld [vmem:[%s1234] ss:$4 sm:$0xff]
        %1237 = vrot.lane.b32.xlu0 %v1235, 32
        %v1238 = vpop.permute.xlu0 %1237
        %v1239 = vrot.slane %v1238, 7
        %vm1240 = vcmask 261120
        %v1241 = vsel %vm1240, %v1239, %v1238
        %vm1243 = vcmask 1040640
        %vm1244 = vmand %vm1243, %vm1206
        %vm1245 = vcmask 386049
        %vm1246 = vmand %vm1245, %vm1209
        %vm1247 = vmor %vm1246, %vm1244
        %v1248 = vld [vmem:[#allocation2 + $0x2] sm:$0x3]
        %v1249 = vsel %vm1247, %v1241, %v1248
        %1250 = vst [vmem:[#allocation2 + $0x2] sm:$0x3] %v1249
        %1251 = vst [vmem:[#allocation1] sm:$0xff] %v1194
        %s1252 = scalar_lea.vmem [#allocation1], 1
        %v1253 = vld [vmem:[%s1252] ss:$4 sm:$0xff]
        %v1254 = vshrl.u32 %v1253, 16
        %v1256 = vrot.slane %v1254, 7
        %v1257 = vrot.slane %v1256, 1
        %1258 = vrot.lane.b32.xlu0 %v1257, 48
        %v1259 = vpop.permute.xlu0 %1258
        %v1260 = vrot.slane %v1259, 7
        %vm1261 = vcmask 392192
        %v1262 = vsel %vm1261, %v1260, %v1259
        %vm1264 = vcmask 1040768
        %vm1265 = vmand %vm1264, %vm1206
        %vm1266 = vcmask 517121
        %vm1267 = vmand %vm1266, %vm1209
        %vm1268 = vmor %vm1267, %vm1265
        %v1269 = vld [vmem:[#allocation2 + $0x3] sm:$0x3]
        %v1270 = vsel %vm1268, %v1262, %v1269
        %1271 = vst [vmem:[#allocation2 + $0x3] sm:$0x3] %v1270
        %1272 = vst [vmem:[#allocation1] sm:$0xff] %v1194
        %s1273 = scalar_lea.vmem [#allocation1], 2
        %v1274 = vld [vmem:[%s1273] ss:$4 sm:$0xff]
        %1276 = vrot.lane.b32.xlu0 %v1274, 64
        %v1277 = vpop.permute.xlu0 %1276
        %v1278 = vrot.slane %v1277, 7
        %vm1279 = vcmask 523264
        %v1280 = vsel %vm1279, %v1278, %v1277
        %vm1282 = vcmask 1040896
        %vm1283 = vmand %vm1282, %vm1206
        %vm1284 = vcmask 648193
        %vm1285 = vmand %vm1284, %vm1209
        %vm1286 = vmor %vm1285, %vm1283
        %v1287 = vld [vmem:[#allocation2 + $0x4] sm:$0x3]
        %v1288 = vsel %vm1286, %v1280, %v1287
        %1289 = vst [vmem:[#allocation2 + $0x4] sm:$0x3] %v1288
        %1290 = vst [vmem:[#allocation1] sm:$0xff] %v1194
        %s1291 = scalar_lea.vmem [#allocation1], 2
        %v1292 = vld [vmem:[%s1291] ss:$4 sm:$0xff]
        %v1293 = vshrl.u32 %v1292, 16
        %v1295 = vrot.slane %v1293, 7
        %v1296 = vrot.slane %v1295, 1
        %1297 = vrot.lane.b32.xlu0 %v1296, 80
        %v1298 = vpop.permute.xlu0 %1297
        %v1299 = vrot.slane %v1298, 7
        %vm1300 = vcmask 654336
        %v1301 = vsel %vm1300, %v1299, %v1298
        %vm1303 = vcmask 1041024
        %vm1304 = vmand %vm1303, %vm1206
        %vm1305 = vcmask 779265
        %vm1306 = vmand %vm1305, %vm1209
        %vm1307 = vmor %vm1306, %vm1304
        %v1308 = vld [vmem:[#allocation2 + $0x5] sm:$0x3]
        %v1309 = vsel %vm1307, %v1301, %v1308
        %1310 = vst [vmem:[#allocation2 + $0x5] sm:$0x3] %v1309
        %1311 = vst [vmem:[#allocation1] sm:$0xff] %v1194
        %s1312 = scalar_lea.vmem [#allocation1], 3
        %v1313 = vld [vmem:[%s1312] ss:$4 sm:$0xff]
        %1315 = vrot.lane.b32.xlu0 %v1313, 96
        %v1316 = vpop.permute.xlu0 %1315
        %v1317 = vrot.slane %v1316, 7
        %v1318 = vsel %vm697, %v1317, %v1316
        %vm1320 = vcmask 1041152
        %vm1321 = vmand %vm1320, %vm1206
        %vm1322 = vcmask 910337
        %vm1323 = vmand %vm1322, %vm1209
        %vm1324 = vmor %vm1323, %vm1321
        %v1325 = vld [vmem:[#allocation2 + $0x6] sm:$0x3]
        %v1326 = vsel %vm1324, %v1318, %v1325
        %1327 = vst [vmem:[#allocation2 + $0x6] sm:$0x3] %v1326
        %1328 = vst [vmem:[#allocation1] sm:$0xff] %v1194
        %s1329 = scalar_lea.vmem [#allocation1], 3
        %v1330 = vld [vmem:[%s1329] ss:$4 sm:$0xff]
        %v1331 = vshrl.u32 %v1330, 16
        %v1333 = vrot.slane %v1331, 7
        %v1334 = vrot.slane %v1333, 1
        %1335 = vrot.lane.b32.xlu0 %v1334, 112
        %v1336 = vpop.permute.xlu0 %1335
        %v1337 = vrot.slane %v1336, 7
        %v1338 = vsel %vm679, %v1337, %v1336
        %vm1340 = vcmask 1041280
        %vm1341 = vmand %vm1340, %vm1206
        %vm1342 = vcmask 1041409
        %vm1343 = vmand %vm1342, %vm1209
        %vm1344 = vmor %vm1343, %vm1341
        %v1345 = vld [vmem:[#allocation2 + $0x7] sm:$0x3]
        %v1346 = vsel %vm1344, %v1338, %v1345
        %1347 = vst [vmem:[#allocation2 + $0x7] sm:$0x3] %v1346
        %v1349 = vrot.slane %v1195, 3
        %v1352 = vsel %vm1200, %v1195, %v1349
        %v1354 = vld [vmem:[#allocation2 + $0x9] sm:$0x3]
        %v1355 = vsel %vm1211, %v1352, %v1354
        %1356 = vst [vmem:[#allocation2 + $0x9] sm:$0x3] %v1355
        %v1357 = vshrl.u32 %v1352, 16
        %v1359 = vrot.slane %v1357, 7
        %v1360 = vrot.slane %v1359, 1
        %1361 = vrot.lane.b32.xlu0 %v1360, 16
        %v1362 = vpop.permute.xlu0 %1361
        %v1363 = vrot.slane %v1362, 7
        %v1364 = vsel %vm1222, %v1363, %v1362
        %v1366 = vld [vmem:[#allocation2 + $0xa] sm:$0x3]
        %v1367 = vsel %vm1229, %v1364, %v1366
        %1368 = vst [vmem:[#allocation2 + $0xa] sm:$0x3] %v1367
        %1369 = vst [vmem:[#allocation1] sm:$0xff] %v1195
        %s1370 = scalar_lea.vmem [#allocation1], 1
        %v1371 = vld [vmem:[%s1370] ss:$4 sm:$0xff]
        %1373 = vrot.lane.b32.xlu0 %v1371, 32
        %v1374 = vpop.permute.xlu0 %1373
        %v1375 = vrot.slane %v1374, 7
        %v1376 = vsel %vm1240, %v1375, %v1374
        %v1378 = vld [vmem:[#allocation2 + $0xb] sm:$0x3]
        %v1379 = vsel %vm1247, %v1376, %v1378
        %1380 = vst [vmem:[#allocation2 + $0xb] sm:$0x3] %v1379
        %1381 = vst [vmem:[#allocation1] sm:$0xff] %v1195
        %s1382 = scalar_lea.vmem [#allocation1], 1
        %v1383 = vld [vmem:[%s1382] ss:$4 sm:$0xff]
        %v1384 = vshrl.u32 %v1383, 16
        %v1386 = vrot.slane %v1384, 7
        %v1387 = vrot.slane %v1386, 1
        %1388 = vrot.lane.b32.xlu0 %v1387, 48
        %v1389 = vpop.permute.xlu0 %1388
        %v1390 = vrot.slane %v1389, 7
        %v1391 = vsel %vm1261, %v1390, %v1389
        %v1393 = vld [vmem:[#allocation2 + $0xc] sm:$0x3]
        %v1394 = vsel %vm1268, %v1391, %v1393
        %1395 = vst [vmem:[#allocation2 + $0xc] sm:$0x3] %v1394
        %1396 = vst [vmem:[#allocation1] sm:$0xff] %v1195
        %s1397 = scalar_lea.vmem [#allocation1], 2
        %v1398 = vld [vmem:[%s1397] ss:$4 sm:$0xff]
        %1400 = vrot.lane.b32.xlu0 %v1398, 64
        %v1401 = vpop.permute.xlu0 %1400
        %v1402 = vrot.slane %v1401, 7
        %v1403 = vsel %vm1279, %v1402, %v1401
        %v1405 = vld [vmem:[#allocation2 + $0xd] sm:$0x3]
        %v1406 = vsel %vm1286, %v1403, %v1405
        %1407 = vst [vmem:[#allocation2 + $0xd] sm:$0x3] %v1406
        %1408 = vst [vmem:[#allocation1] sm:$0xff] %v1195
        %s1409 = scalar_lea.vmem [#allocation1], 2
        %v1410 = vld [vmem:[%s1409] ss:$4 sm:$0xff]
        %v1411 = vshrl.u32 %v1410, 16
        %v1413 = vrot.slane %v1411, 7
        %v1414 = vrot.slane %v1413, 1
        %1415 = vrot.lane.b32.xlu0 %v1414, 80
        %v1416 = vpop.permute.xlu0 %1415
        %v1417 = vrot.slane %v1416, 7
        %v1418 = vsel %vm1300, %v1417, %v1416
        %v1420 = vld [vmem:[#allocation2 + $0xe] sm:$0x3]
        %v1421 = vsel %vm1307, %v1418, %v1420
        %1422 = vst [vmem:[#allocation2 + $0xe] sm:$0x3] %v1421
        %1423 = vst [vmem:[#allocation1] sm:$0xff] %v1195
        %s1424 = scalar_lea.vmem [#allocation1], 3
        %v1425 = vld [vmem:[%s1424] ss:$4 sm:$0xff]
        %1427 = vrot.lane.b32.xlu0 %v1425, 96
        %v1428 = vpop.permute.xlu0 %1427
        %v1429 = vrot.slane %v1428, 7
        %v1430 = vsel %vm697, %v1429, %v1428
        %v1432 = vld [vmem:[#allocation2 + $0xf] sm:$0x3]
        %v1433 = vsel %vm1324, %v1430, %v1432
        %1434 = vst [vmem:[#allocation2 + $0xf] sm:$0x3] %v1433
        %1435 = vst [vmem:[#allocation1] sm:$0xff] %v1195
        %s1436 = scalar_lea.vmem [#allocation1], 3
        %v1437 = vld [vmem:[%s1436] ss:$4 sm:$0xff]
        %v1438 = vshrl.u32 %v1437, 16
        %v1440 = vrot.slane %v1438, 7
        %v1441 = vrot.slane %v1440, 1
        %1442 = vrot.lane.b32.xlu0 %v1441, 112
        %v1443 = vpop.permute.xlu0 %1442
        %v1444 = vrot.slane %v1443, 7
        %v1445 = vsel %vm679, %v1444, %v1443
        %v1447 = vld [vmem:[#allocation2 + $0x10] sm:$0x3]
        %v1448 = vsel %vm1344, %v1445, %v1447
        %1449 = vst [vmem:[#allocation2 + $0x10] sm:$0x3] %v1448
        %v1451 = vrot.slane %v1196, 3
        %v1454 = vsel %vm1200, %v1196, %v1451
        %v1456 = vld [vmem:[#allocation2 + $0x12] sm:$0x3]
        %v1457 = vsel %vm1211, %v1454, %v1456
        %1458 = vst [vmem:[#allocation2 + $0x12] sm:$0x3] %v1457
        %v1459 = vshrl.u32 %v1454, 16
        %v1461 = vrot.slane %v1459, 7
        %v1462 = vrot.slane %v1461, 1
        %1463 = vrot.lane.b32.xlu0 %v1462, 16
        %v1464 = vpop.permute.xlu0 %1463
        %v1465 = vrot.slane %v1464, 7
        %v1466 = vsel %vm1222, %v1465, %v1464
        %v1468 = vld [vmem:[#allocation2 + $0x13] sm:$0x3]
        %v1469 = vsel %vm1229, %v1466, %v1468
        %1470 = vst [vmem:[#allocation2 + $0x13] sm:$0x3] %v1469
        %1471 = vst [vmem:[#allocation1] sm:$0xff] %v1196
        %s1472 = scalar_lea.vmem [#allocation1], 1
        %v1473 = vld [vmem:[%s1472] ss:$4 sm:$0xff]
        %1475 = vrot.lane.b32.xlu0 %v1473, 32
        %v1476 = vpop.permute.xlu0 %1475
        %v1477 = vrot.slane %v1476, 7
        %v1478 = vsel %vm1240, %v1477, %v1476
        %v1480 = vld [vmem:[#allocation2 + $0x14] sm:$0x3]
        %v1481 = vsel %vm1247, %v1478, %v1480
        %1482 = vst [vmem:[#allocation2 + $0x14] sm:$0x3] %v1481
        %1483 = vst [vmem:[#allocation1] sm:$0xff] %v1196
        %s1484 = scalar_lea.vmem [#allocation1], 1
        %v1485 = vld [vmem:[%s1484] ss:$4 sm:$0xff]
        %v1486 = vshrl.u32 %v1485, 16
        %v1488 = vrot.slane %v1486, 7
        %v1489 = vrot.slane %v1488, 1
        %1490 = vrot.lane.b32.xlu0 %v1489, 48
        %v1491 = vpop.permute.xlu0 %1490
        %v1492 = vrot.slane %v1491, 7
        %v1493 = vsel %vm1261, %v1492, %v1491
        %v1495 = vld [vmem:[#allocation2 + $0x15] sm:$0x3]
        %v1496 = vsel %vm1268, %v1493, %v1495
        %1497 = vst [vmem:[#allocation2 + $0x15] sm:$0x3] %v1496
        %1498 = vst [vmem:[#allocation1] sm:$0xff] %v1196
        %s1499 = scalar_lea.vmem [#allocation1], 2
        %v1500 = vld [vmem:[%s1499] ss:$4 sm:$0xff]
        %1502 = vrot.lane.b32.xlu0 %v1500, 64
        %v1503 = vpop.permute.xlu0 %1502
        %v1504 = vrot.slane %v1503, 7
        %v1505 = vsel %vm1279, %v1504, %v1503
        %v1507 = vld [vmem:[#allocation2 + $0x16] sm:$0x3]
        %v1508 = vsel %vm1286, %v1505, %v1507
        %1509 = vst [vmem:[#allocation2 + $0x16] sm:$0x3] %v1508
        %1510 = vst [vmem:[#allocation1] sm:$0xff] %v1196
        %s1511 = scalar_lea.vmem [#allocation1], 2
        %v1512 = vld [vmem:[%s1511] ss:$4 sm:$0xff]
        %v1513 = vshrl.u32 %v1512, 16
        %v1515 = vrot.slane %v1513, 7
        %v1516 = vrot.slane %v1515, 1
        %1517 = vrot.lane.b32.xlu0 %v1516, 80
        %v1518 = vpop.permute.xlu0 %1517
        %v1519 = vrot.slane %v1518, 7
        %v1520 = vsel %vm1300, %v1519, %v1518
        %v1522 = vld [vmem:[#allocation2 + $0x17] sm:$0x3]
        %v1523 = vsel %vm1307, %v1520, %v1522
        %1524 = vst [vmem:[#allocation2 + $0x17] sm:$0x3] %v1523
        %1525 = vst [vmem:[#allocation1] sm:$0xff] %v1196
        %s1526 = scalar_lea.vmem [#allocation1], 3
        %v1527 = vld [vmem:[%s1526] ss:$4 sm:$0xff]
        %1529 = vrot.lane.b32.xlu0 %v1527, 96
        %v1530 = vpop.permute.xlu0 %1529
        %v1531 = vrot.slane %v1530, 7
        %v1532 = vsel %vm697, %v1531, %v1530
        %v1534 = vld [vmem:[#allocation2 + $0x18] sm:$0x3]
        %v1535 = vsel %vm1324, %v1532, %v1534
        %1536 = vst [vmem:[#allocation2 + $0x18] sm:$0x3] %v1535
        %1537 = vst [vmem:[#allocation1] sm:$0xff] %v1196
        %s1538 = scalar_lea.vmem [#allocation1], 3
        %v1539 = vld [vmem:[%s1538] ss:$4 sm:$0xff]
        %v1540 = vshrl.u32 %v1539, 16
        %v1542 = vrot.slane %v1540, 7
        %v1543 = vrot.slane %v1542, 1
        %1544 = vrot.lane.b32.xlu0 %v1543, 112
        %v1545 = vpop.permute.xlu0 %1544
        %v1546 = vrot.slane %v1545, 7
        %v1547 = vsel %vm679, %v1546, %v1545
        %v1549 = vld [vmem:[#allocation2 + $0x19] sm:$0x3]
        %v1550 = vsel %vm1344, %v1547, %v1549
        %1551 = vst [vmem:[#allocation2 + $0x19] sm:$0x3] %v1550
        %v1553 = vrot.slane %v1197, 3
        %v1556 = vsel %vm1200, %v1197, %v1553
        %v1558 = vld [vmem:[#allocation2 + $0x1b] sm:$0x3]
        %v1559 = vsel %vm1211, %v1556, %v1558
        %1560 = vst [vmem:[#allocation2 + $0x1b] sm:$0x3] %v1559
        %v1561 = vshrl.u32 %v1556, 16
        %v1563 = vrot.slane %v1561, 7
        %v1564 = vrot.slane %v1563, 1
        %1565 = vrot.lane.b32.xlu0 %v1564, 16
        %v1566 = vpop.permute.xlu0 %1565
        %v1567 = vrot.slane %v1566, 7
        %v1568 = vsel %vm1222, %v1567, %v1566
        %v1570 = vld [vmem:[#allocation2 + $0x1c] sm:$0x3]
        %v1571 = vsel %vm1229, %v1568, %v1570
        %1572 = vst [vmem:[#allocation2 + $0x1c] sm:$0x3] %v1571
        %1573 = vst [vmem:[#allocation1] sm:$0xff] %v1197
        %s1574 = scalar_lea.vmem [#allocation1], 1
        %v1575 = vld [vmem:[%s1574] ss:$4 sm:$0xff]
        %1577 = vrot.lane.b32.xlu0 %v1575, 32
        %v1578 = vpop.permute.xlu0 %1577
        %v1579 = vrot.slane %v1578, 7
        %v1580 = vsel %vm1240, %v1579, %v1578
        %v1582 = vld [vmem:[#allocation2 + $0x1d] sm:$0x3]
        %v1583 = vsel %vm1247, %v1580, %v1582
        %1584 = vst [vmem:[#allocation2 + $0x1d] sm:$0x3] %v1583
        %1585 = vst [vmem:[#allocation1] sm:$0xff] %v1197
        %s1586 = scalar_lea.vmem [#allocation1], 1
        %v1587 = vld [vmem:[%s1586] ss:$4 sm:$0xff]
        %v1588 = vshrl.u32 %v1587, 16
        %v1590 = vrot.slane %v1588, 7
        %v1591 = vrot.slane %v1590, 1
        %1592 = vrot.lane.b32.xlu0 %v1591, 48
        %v1593 = vpop.permute.xlu0 %1592
        %v1594 = vrot.slane %v1593, 7
        %v1595 = vsel %vm1261, %v1594, %v1593
        %v1597 = vld [vmem:[#allocation2 + $0x1e] sm:$0x3]
        %v1598 = vsel %vm1268, %v1595, %v1597
        %1599 = vst [vmem:[#allocation2 + $0x1e] sm:$0x3] %v1598
        %1600 = vst [vmem:[#allocation1] sm:$0xff] %v1197
        %s1601 = scalar_lea.vmem [#allocation1], 2
        %v1602 = vld [vmem:[%s1601] ss:$4 sm:$0xff]
        %1604 = vrot.lane.b32.xlu0 %v1602, 64
        %v1605 = vpop.permute.xlu0 %1604
        %v1606 = vrot.slane %v1605, 7
        %v1607 = vsel %vm1279, %v1606, %v1605
        %v1609 = vld [vmem:[#allocation2 + $0x1f] sm:$0x3]
        %v1610 = vsel %vm1286, %v1607, %v1609
        %1611 = vst [vmem:[#allocation2 + $0x1f] sm:$0x3] %v1610
        %1612 = vst [vmem:[#allocation1] sm:$0xff] %v1197
        %s1613 = scalar_lea.vmem [#allocation1], 2
        %v1614 = vld [vmem:[%s1613] ss:$4 sm:$0xff]
        %v1615 = vshrl.u32 %v1614, 16
        %v1617 = vrot.slane %v1615, 7
        %v1618 = vrot.slane %v1617, 1
        %1619 = vrot.lane.b32.xlu0 %v1618, 80
        %v1620 = vpop.permute.xlu0 %1619
        %v1621 = vrot.slane %v1620, 7
        %v1622 = vsel %vm1300, %v1621, %v1620
        %v1624 = vld [vmem:[#allocation2 + $0x20] sm:$0x3]
        %v1625 = vsel %vm1307, %v1622, %v1624
        %1626 = vst [vmem:[#allocation2 + $0x20] sm:$0x3] %v1625
        %1627 = vst [vmem:[#allocation1] sm:$0xff] %v1197
        %s1628 = scalar_lea.vmem [#allocation1], 3
        %v1629 = vld [vmem:[%s1628] ss:$4 sm:$0xff]
        %1631 = vrot.lane.b32.xlu0 %v1629, 96
        %v1632 = vpop.permute.xlu0 %1631
        %v1633 = vrot.slane %v1632, 7
        %v1634 = vsel %vm697, %v1633, %v1632
        %v1636 = vld [vmem:[#allocation2 + $0x21] sm:$0x3]
        %v1637 = vsel %vm1324, %v1634, %v1636
        %1638 = vst [vmem:[#allocation2 + $0x21] sm:$0x3] %v1637
        %1639 = vst [vmem:[#allocation1] sm:$0xff] %v1197
        %s1640 = scalar_lea.vmem [#allocation1], 3
        %v1641 = vld [vmem:[%s1640] ss:$4 sm:$0xff]
        %v1642 = vshrl.u32 %v1641, 16
        %v1644 = vrot.slane %v1642, 7
        %v1645 = vrot.slane %v1644, 1
        %1646 = vrot.lane.b32.xlu0 %v1645, 112
        %v1647 = vpop.permute.xlu0 %1646
        %v1648 = vrot.slane %v1647, 7
        %v1649 = vsel %vm679, %v1648, %v1647
        %v1651 = vld [vmem:[#allocation2 + $0x22] sm:$0x3]
        %v1652 = vsel %vm1344, %v1649, %v1651
        %1653 = vst [vmem:[#allocation2 + $0x22] sm:$0x3] %v1652
        %v1654 = vld [vmem:[#allocation2] sm:$0xff]
        %v1655 = vld [vmem:[#allocation2 + $0x8] sm:$0xff]
        %v1656 = vld [vmem:[#allocation2 + $0x10] sm:$0xff]
        %v1657 = vld [vmem:[#allocation2 + $0x18] sm:$0xff]
        %v1658 = vld [vmem:[#allocation2 + $0x20] sm:$0xf]
        %v1659 = vld [vmem:[#allocation8] sm:$0xff]
        %v1660 = vld [vmem:[#allocation8 + $0x8] sm:$0xff]
        %v1661 = vld [vmem:[#allocation8 + $0x10] sm:$0xff]
        %v1662 = vld [vmem:[#allocation8 + $0x18] sm:$0xff]
        %v1663 = vld [vmem:[#allocation8 + $0x20] sm:$0xff]
        %v1664 = vld [vmem:[#allocation8 + $0x28] sm:$0xff]
        %v1665 = vld [vmem:[#allocation8 + $0x30] sm:$0xff]
        %v1666 = vld [vmem:[#allocation8 + $0x38] sm:$0xff]
        %v1667 = vld [vmem:[#allocation8 + $0x40] sm:$0xff]
        %v1668 = vld [vmem:[#allocation8 + $0x48] sm:$0xff]
        %v1669 = vld [vmem:[#allocation8 + $0x50] sm:$0xff]
        %v1670 = vld [vmem:[#allocation8 + $0x58] sm:$0xff]
        %v1671 = vld [vmem:[#allocation8 + $0x60] sm:$0xff]
        %v1672 = vld [vmem:[#allocation8 + $0x68] sm:$0xff]
        %v1673 = vld [vmem:[#allocation8 + $0x70] sm:$0xff]
        %v1674 = vld [vmem:[#allocation8 + $0x78] sm:$0xff]
        %v1675 = vld [vmem:[#allocation8 + $0x80] sm:$0xff]
        %v1676 = vld [vmem:[#allocation8 + $0x88] sm:$0xff]
        %v1677 = vld [vmem:[#allocation8 + $0x90] sm:$0xff]
        %v1678 = vld [vmem:[#allocation8 + $0x98] sm:$0xff]
        %v1679 = vld [vmem:[#allocation8 + $0xa0] sm:$0xff]
        %v1680 = vld [vmem:[#allocation8 + $0xa8] sm:$0xff]
        %v1681 = vld [vmem:[#allocation8 + $0xb0] sm:$0xff]
        %v1682 = vld [vmem:[#allocation8 + $0xb8] sm:$0xff]
        %v1683 = vld [vmem:[#allocation8 + $0xc0] sm:$0xff]
        %v1684 = vld [vmem:[#allocation8 + $0xc8] sm:$0xff]
        %v1685 = vld [vmem:[#allocation8 + $0xd0] sm:$0xff]
        %v1686 = vld [vmem:[#allocation8 + $0xd8] sm:$0xff]
        %v1687 = vld [vmem:[#allocation8 + $0xe0] sm:$0xff]
        %v1688 = vld [vmem:[#allocation8 + $0xe8] sm:$0xff]
        %v1689 = vld [vmem:[#allocation8 + $0xf0] sm:$0xff]
        %v1690 = vld [vmem:[#allocation8 + $0xf8] sm:$0xff]
        %v1691 = vld [vmem:[#allocation8 + $0x100] sm:$0xff]
        %v1692 = vld [vmem:[#allocation8 + $0x108] sm:$0xff]
        %v1693 = vld [vmem:[#allocation8 + $0x110] sm:$0xff]
        %v1694 = vld [vmem:[#allocation8 + $0x118] sm:$0xff]
        %v1695 = vld [vmem:[#allocation8 + $0x120] sm:$0xff]
        %v1696 = vld [vmem:[#allocation8 + $0x128] sm:$0xff]
        %v1697 = vld [vmem:[#allocation8 + $0x130] sm:$0xff]
        %v1698 = vld [vmem:[#allocation8 + $0x138] sm:$0xff]
        %v1699 = vld [vmem:[#allocation8 + $0x140] sm:$0xff]
        %v1700 = vld [vmem:[#allocation8 + $0x148] sm:$0xff]
        %v1701 = vld [vmem:[#allocation8 + $0x150] sm:$0xff]
        %v1702 = vld [vmem:[#allocation8 + $0x158] sm:$0xff]
        %v1703 = vld [vmem:[#allocation8 + $0x160] sm:$0xff]
        %v1704 = vld [vmem:[#allocation8 + $0x168] sm:$0xff]
        %v1705 = vld [vmem:[#allocation8 + $0x170] sm:$0xff]
        %v1706 = vld [vmem:[#allocation8 + $0x178] sm:$0xff]
        %v1707 = vld [vmem:[#allocation8 + $0x180] sm:$0xff]
        %v1708 = vld [vmem:[#allocation8 + $0x188] sm:$0xff]
        %v1709 = vld [vmem:[#allocation8 + $0x190] sm:$0xff]
        %v1710 = vld [vmem:[#allocation8 + $0x198] sm:$0xff]
        %v1711 = vld [vmem:[#allocation8 + $0x1a0] sm:$0xff]
        %v1712 = vld [vmem:[#allocation8 + $0x1a8] sm:$0xff]
        %v1713 = vld [vmem:[#allocation8 + $0x1b0] sm:$0xff]
        %v1714 = vld [vmem:[#allocation8 + $0x1b8] sm:$0xff]
        %v1715 = vld [vmem:[#allocation8 + $0x1c0] sm:$0xff]
        %v1716 = vld [vmem:[#allocation8 + $0x1c8] sm:$0xff]
        %v1717 = vld [vmem:[#allocation8 + $0x1d0] sm:$0xff]
        %v1718 = vld [vmem:[#allocation8 + $0x1d8] sm:$0xff]
        %v1719 = vld [vmem:[#allocation8 + $0x1e0] sm:$0xff]
        %v1720 = vld [vmem:[#allocation8 + $0x1e8] sm:$0xff]
        %v1721 = vld [vmem:[#allocation8 + $0x1f0] sm:$0xff]
        %v1722 = vld [vmem:[#allocation8 + $0x1f8] sm:$0xff]
        %v1723 = vld [vmem:[#allocation8 + $0x200] sm:$0xff]
        %v1724 = vld [vmem:[#allocation8 + $0x208] sm:$0xff]
        %v1725 = vld [vmem:[#allocation8 + $0x210] sm:$0xff]
        %v1726 = vld [vmem:[#allocation8 + $0x218] sm:$0xff]
        %v1727 = vld [vmem:[#allocation8 + $0x220] sm:$0xff]
        %v1728 = vld [vmem:[#allocation8 + $0x228] sm:$0xff]
        %v1729 = vld [vmem:[#allocation8 + $0x230] sm:$0xff]
        %v1730 = vld [vmem:[#allocation8 + $0x238] sm:$0xff]
        %v1731 = vld [vmem:[#allocation8 + $0x240] sm:$0xff]
        %v1732 = vld [vmem:[#allocation8 + $0x248] sm:$0xff]
        %v1733 = vld [vmem:[#allocation8 + $0x250] sm:$0xff]
        %v1734 = vld [vmem:[#allocation8 + $0x258] sm:$0xff]
        %v1735 = vld [vmem:[#allocation8 + $0x260] sm:$0xff]
        %v1736 = vld [vmem:[#allocation8 + $0x268] sm:$0xff]
        %v1737 = vld [vmem:[#allocation8 + $0x270] sm:$0xff]
        %v1738 = vld [vmem:[#allocation8 + $0x278] sm:$0xff]
        %v1739 = vld [vmem:[#allocation8 + $0x280] sm:$0xff]
        %v1740 = vld [vmem:[#allocation8 + $0x288] sm:$0xff]
        %v1741 = vld [vmem:[#allocation8 + $0x290] sm:$0xff]
        %v1742 = vld [vmem:[#allocation8 + $0x298] sm:$0xff]
        %v1743 = vld [vmem:[#allocation8 + $0x2a0] sm:$0xff]
        %v1744 = vld [vmem:[#allocation8 + $0x2a8] sm:$0xff]
        %v1745 = vld [vmem:[#allocation8 + $0x2b0] sm:$0xff]
        %v1746 = vld [vmem:[#allocation8 + $0x2b8] sm:$0xff]
        %v1747 = vld [vmem:[#allocation8 + $0x2c0] sm:$0xff]
        %v1748 = vld [vmem:[#allocation8 + $0x2c8] sm:$0xff]
        %v1749 = vld [vmem:[#allocation8 + $0x2d0] sm:$0xff]
        %v1750 = vld [vmem:[#allocation8 + $0x2d8] sm:$0xff]
        %v1751 = vld [vmem:[#allocation8 + $0x2e0] sm:$0xff]
        %v1752 = vld [vmem:[#allocation8 + $0x2e8] sm:$0xff]
        %v1753 = vld [vmem:[#allocation8 + $0x2f0] sm:$0xff]
        %v1754 = vld [vmem:[#allocation8 + $0x2f8] sm:$0xff]
        %v1755 = vld [vmem:[#allocation8 + $0x300] sm:$0xff]
        %v1756 = vld [vmem:[#allocation8 + $0x308] sm:$0xff]
        %v1757 = vld [vmem:[#allocation8 + $0x310] sm:$0xff]
        %v1758 = vld [vmem:[#allocation8 + $0x318] sm:$0xff]
        %v1759 = vld [vmem:[#allocation8 + $0x320] sm:$0xff]
        %v1760 = vld [vmem:[#allocation8 + $0x328] sm:$0xff]
        %v1761 = vld [vmem:[#allocation8 + $0x330] sm:$0xff]
        %v1762 = vld [vmem:[#allocation8 + $0x338] sm:$0xff]
        %v1763 = vld [vmem:[#allocation8 + $0x340] sm:$0xff]
        %v1764 = vld [vmem:[#allocation8 + $0x348] sm:$0xff]
        %v1765 = vld [vmem:[#allocation8 + $0x350] sm:$0xff]
        %v1766 = vld [vmem:[#allocation8 + $0x358] sm:$0xff]
        %v1767 = vld [vmem:[#allocation8 + $0x360] sm:$0xff]
        %v1768 = vld [vmem:[#allocation8 + $0x368] sm:$0xff]
        %v1769 = vld [vmem:[#allocation8 + $0x370] sm:$0xff]
        %v1770 = vld [vmem:[#allocation8 + $0x378] sm:$0xff]
        %v1771 = vld [vmem:[#allocation8 + $0x380] sm:$0xff]
        %v1772 = vld [vmem:[#allocation8 + $0x388] sm:$0xff]
        %v1773 = vld [vmem:[#allocation8 + $0x390] sm:$0xff]
        %v1774 = vld [vmem:[#allocation8 + $0x398] sm:$0xff]
        %v1775 = vld [vmem:[#allocation8 + $0x3a0] sm:$0xff]
        %v1776 = vld [vmem:[#allocation8 + $0x3a8] sm:$0xff]
        %v1777 = vld [vmem:[#allocation8 + $0x3b0] sm:$0xff]
        %v1778 = vld [vmem:[#allocation8 + $0x3b8] sm:$0xff]
        %v1779 = vld [vmem:[#allocation8 + $0x3c0] sm:$0xff]
        %v1780 = vld [vmem:[#allocation8 + $0x3c8] sm:$0xff]
        %v1781 = vld [vmem:[#allocation8 + $0x3d0] sm:$0xff]
        %v1782 = vld [vmem:[#allocation8 + $0x3d8] sm:$0xff]
        %v1783 = vld [vmem:[#allocation8 + $0x3e0] sm:$0xff]
        %v1784 = vld [vmem:[#allocation8 + $0x3e8] sm:$0xff]
        %v1785 = vld [vmem:[#allocation8 + $0x3f0] sm:$0xff]
        %v1786 = vld [vmem:[#allocation8 + $0x3f8] sm:$0xff]
        %v1787 = vld [vmem:[#allocation8 + $0x400] sm:$0xff]
        %v1788 = vld [vmem:[#allocation8 + $0x408] sm:$0xff]
        %v1789 = vld [vmem:[#allocation8 + $0x410] sm:$0xff]
        %v1790 = vld [vmem:[#allocation8 + $0x418] sm:$0xff]
        %v1791 = vld [vmem:[#allocation8 + $0x420] sm:$0xff]
        %v1792 = vld [vmem:[#allocation8 + $0x428] sm:$0xff]
        %v1793 = vld [vmem:[#allocation8 + $0x430] sm:$0xff]
        %v1794 = vld [vmem:[#allocation8 + $0x438] sm:$0xff]
        %v1795 = vld [vmem:[#allocation8 + $0x440] sm:$0xff]
        %v1796 = vld [vmem:[#allocation8 + $0x448] sm:$0xff]
        %v1797 = vld [vmem:[#allocation8 + $0x450] sm:$0xff]
        %v1798 = vld [vmem:[#allocation8 + $0x458] sm:$0xff]
        %v1799 = vld [vmem:[#allocation8 + $0x460] sm:$0xff]
        %v1800 = vld [vmem:[#allocation8 + $0x468] sm:$0xff]
        %v1801 = vld [vmem:[#allocation8 + $0x470] sm:$0xff]
        %v1802 = vld [vmem:[#allocation8 + $0x478] sm:$0xff]
        %v1803 = vld [vmem:[#allocation8 + $0x480] sm:$0xff]
        %v1804 = vld [vmem:[#allocation8 + $0x488] sm:$0xff]
        %v1805 = vld [vmem:[#allocation8 + $0x490] sm:$0xff]
        %v1806 = vld [vmem:[#allocation8 + $0x498] sm:$0xff]
        %v1807 = vld [vmem:[#allocation8 + $0x4a0] sm:$0xff]
        %v1808 = vld [vmem:[#allocation8 + $0x4a8] sm:$0xff]
        %v1809 = vld [vmem:[#allocation8 + $0x4b0] sm:$0xff]
        %v1810 = vld [vmem:[#allocation8 + $0x4b8] sm:$0xff]
        %v1811 = vld [vmem:[#allocation8 + $0x4c0] sm:$0xff]
        %v1812 = vld [vmem:[#allocation8 + $0x4c8] sm:$0xff]
        %v1813 = vld [vmem:[#allocation8 + $0x4d0] sm:$0xff]
        %v1814 = vld [vmem:[#allocation8 + $0x4d8] sm:$0xff]
        %v1815 = vld [vmem:[#allocation8 + $0x4e0] sm:$0xff]
        %v1816 = vld [vmem:[#allocation8 + $0x4e8] sm:$0xff]
        %v1817 = vld [vmem:[#allocation8 + $0x4f0] sm:$0xff]
        %v1818 = vld [vmem:[#allocation8 + $0x4f8] sm:$0xff]
        %v1819 = vld [vmem:[#allocation8 + $0x500] sm:$0xff]
        %v1820 = vld [vmem:[#allocation8 + $0x508] sm:$0xff]
        %v1821 = vld [vmem:[#allocation8 + $0x510] sm:$0xff]
        %v1822 = vld [vmem:[#allocation8 + $0x518] sm:$0xff]
        %v1823 = vld [vmem:[#allocation8 + $0x520] sm:$0xff]
        %v1824 = vld [vmem:[#allocation8 + $0x528] sm:$0xff]
        %v1825 = vld [vmem:[#allocation8 + $0x530] sm:$0xff]
        %v1826 = vld [vmem:[#allocation8 + $0x538] sm:$0xff]
        %v1827 = vld [vmem:[#allocation8 + $0x540] sm:$0xff]
        %v1828 = vld [vmem:[#allocation8 + $0x548] sm:$0xff]
        %v1829 = vld [vmem:[#allocation8 + $0x550] sm:$0xff]
        %v1830 = vld [vmem:[#allocation8 + $0x558] sm:$0xff]
        %v1831 = vld [vmem:[#allocation8 + $0x560] sm:$0xff]
        %v1832 = vld [vmem:[#allocation8 + $0x568] sm:$0xff]
        %v1833 = vld [vmem:[#allocation8 + $0x570] sm:$0xff]
        %v1834 = vld [vmem:[#allocation8 + $0x578] sm:$0xff]
        %v1835 = vld [vmem:[#allocation8 + $0x580] sm:$0xff]
        %v1836 = vld [vmem:[#allocation8 + $0x588] sm:$0xff]
        %v1837 = vld [vmem:[#allocation8 + $0x590] sm:$0xff]
        %v1838 = vld [vmem:[#allocation8 + $0x598] sm:$0xff]
        %v1839 = vld [vmem:[#allocation8 + $0x5a0] sm:$0xff]
        %v1840 = vld [vmem:[#allocation8 + $0x5a8] sm:$0xff]
        %v1841 = vld [vmem:[#allocation8 + $0x5b0] sm:$0xff]
        %v1842 = vld [vmem:[#allocation8 + $0x5b8] sm:$0xff]
        %v1843 = vld [vmem:[#allocation8 + $0x5c0] sm:$0xff]
        %v1844 = vld [vmem:[#allocation8 + $0x5c8] sm:$0xff]
        %v1845 = vld [vmem:[#allocation8 + $0x5d0] sm:$0xff]
        %v1846 = vld [vmem:[#allocation8 + $0x5d8] sm:$0xff]
        %v1847 = vld [vmem:[#allocation8 + $0x5e0] sm:$0xff]
        %v1848 = vld [vmem:[#allocation8 + $0x5e8] sm:$0xff]
        %v1849 = vld [vmem:[#allocation8 + $0x5f0] sm:$0xff]
        %v1850 = vld [vmem:[#allocation8 + $0x5f8] sm:$0xff]
        %v1851 = vld [vmem:[#allocation8 + $0x600] sm:$0xff]
        %v1852 = vld [vmem:[#allocation8 + $0x608] sm:$0xff]
        %v1853 = vld [vmem:[#allocation8 + $0x610] sm:$0xff]
        %v1854 = vld [vmem:[#allocation8 + $0x618] sm:$0xff]
        %v1855 = vld [vmem:[#allocation8 + $0x620] sm:$0xff]
        %v1856 = vld [vmem:[#allocation8 + $0x628] sm:$0xff]
        %v1857 = vld [vmem:[#allocation8 + $0x630] sm:$0xff]
        %v1858 = vld [vmem:[#allocation8 + $0x638] sm:$0xff]
        %v1859 = vld [vmem:[#allocation8 + $0x640] sm:$0xff]
        %v1860 = vld [vmem:[#allocation8 + $0x648] sm:$0xff]
        %v1861 = vld [vmem:[#allocation8 + $0x650] sm:$0xff]
        %v1862 = vld [vmem:[#allocation8 + $0x658] sm:$0xff]
        %v1863 = vld [vmem:[#allocation8 + $0x660] sm:$0xff]
        %v1864 = vld [vmem:[#allocation8 + $0x668] sm:$0xff]
        %v1865 = vld [vmem:[#allocation8 + $0x670] sm:$0xff]
        %v1866 = vld [vmem:[#allocation8 + $0x678] sm:$0xff]
        %v1867 = vld [vmem:[#allocation8 + $0x680] sm:$0xff]
        %v1868 = vld [vmem:[#allocation8 + $0x688] sm:$0xff]
        %v1869 = vld [vmem:[#allocation8 + $0x690] sm:$0xff]
        %v1870 = vld [vmem:[#allocation8 + $0x698] sm:$0xff]
        %v1871 = vld [vmem:[#allocation8 + $0x6a0] sm:$0xff]
        %v1872 = vld [vmem:[#allocation8 + $0x6a8] sm:$0xff]
        %v1873 = vld [vmem:[#allocation8 + $0x6b0] sm:$0xff]
        %v1874 = vld [vmem:[#allocation8 + $0x6b8] sm:$0xff]
        %v1875 = vld [vmem:[#allocation8 + $0x6c0] sm:$0xff]
        %v1876 = vld [vmem:[#allocation8 + $0x6c8] sm:$0xff]
        %v1877 = vld [vmem:[#allocation8 + $0x6d0] sm:$0xff]
        %v1878 = vld [vmem:[#allocation8 + $0x6d8] sm:$0xff]
        %v1879 = vld [vmem:[#allocation8 + $0x6e0] sm:$0xff]
        %v1880 = vld [vmem:[#allocation8 + $0x6e8] sm:$0xff]
        %v1881 = vld [vmem:[#allocation8 + $0x6f0] sm:$0xff]
        %v1882 = vld [vmem:[#allocation8 + $0x6f8] sm:$0xff]
        %v1883 = vld [vmem:[#allocation8 + $0x700] sm:$0xff]
        %v1884 = vld [vmem:[#allocation8 + $0x708] sm:$0xff]
        %v1885 = vld [vmem:[#allocation8 + $0x710] sm:$0xff]
        %v1886 = vld [vmem:[#allocation8 + $0x718] sm:$0xff]
        %v1887 = vld [vmem:[#allocation8 + $0x720] sm:$0xff]
        %v1888 = vld [vmem:[#allocation8 + $0x728] sm:$0xff]
        %v1889 = vld [vmem:[#allocation8 + $0x730] sm:$0xff]
        %v1890 = vld [vmem:[#allocation8 + $0x738] sm:$0xff]
        %v1891 = vld [vmem:[#allocation8 + $0x740] sm:$0xff]
        %v1892 = vld [vmem:[#allocation8 + $0x748] sm:$0xff]
        %v1893 = vld [vmem:[#allocation8 + $0x750] sm:$0xff]
        %v1894 = vld [vmem:[#allocation8 + $0x758] sm:$0xff]
        %v1895 = vld [vmem:[#allocation8 + $0x760] sm:$0xff]
        %v1896 = vld [vmem:[#allocation8 + $0x768] sm:$0xff]
        %v1897 = vld [vmem:[#allocation8 + $0x770] sm:$0xff]
        %v1898 = vld [vmem:[#allocation8 + $0x778] sm:$0xff]
        %v1899 = vld [vmem:[#allocation8 + $0x780] sm:$0xff]
        %v1900 = vld [vmem:[#allocation8 + $0x788] sm:$0xff]
        %v1901 = vld [vmem:[#allocation8 + $0x790] sm:$0xff]
        %v1902 = vld [vmem:[#allocation8 + $0x798] sm:$0xff]
        %v1903 = vld [vmem:[#allocation8 + $0x7a0] sm:$0xff]
        %v1904 = vld [vmem:[#allocation8 + $0x7a8] sm:$0xff]
        %v1905 = vld [vmem:[#allocation8 + $0x7b0] sm:$0xff]
        %v1906 = vld [vmem:[#allocation8 + $0x7b8] sm:$0xff]
        %v1907 = vld [vmem:[#allocation8 + $0x7c0] sm:$0xff]
        %v1908 = vld [vmem:[#allocation8 + $0x7c8] sm:$0xff]
        %v1909 = vld [vmem:[#allocation8 + $0x7d0] sm:$0xff]
        %v1910 = vld [vmem:[#allocation8 + $0x7d8] sm:$0xff]
        %v1911 = vld [vmem:[#allocation8 + $0x7e0] sm:$0xff]
        %v1912 = vld [vmem:[#allocation8 + $0x7e8] sm:$0xff]
        %v1913 = vld [vmem:[#allocation8 + $0x7f0] sm:$0xff]
        %v1914 = vld [vmem:[#allocation8 + $0x7f8] sm:$0xff]
        %v1915 = vld [vmem:[#allocation8 + $0x800] sm:$0xff]
        %v1916 = vld [vmem:[#allocation8 + $0x808] sm:$0xff]
        %v1917 = vld [vmem:[#allocation8 + $0x810] sm:$0xff]
        %v1918 = vld [vmem:[#allocation8 + $0x818] sm:$0xff]
        %v1919 = vld [vmem:[#allocation8 + $0x820] sm:$0xff]
        %v1920 = vld [vmem:[#allocation8 + $0x828] sm:$0xff]
        %v1921 = vld [vmem:[#allocation8 + $0x830] sm:$0xff]
        %v1922 = vld [vmem:[#allocation8 + $0x838] sm:$0xff]
        %v1923 = vld [vmem:[#allocation8 + $0x840] sm:$0xff]
        %v1924 = vld [vmem:[#allocation8 + $0x848] sm:$0xff]
        %v1925 = vld [vmem:[#allocation8 + $0x850] sm:$0xff]
        %v1926 = vld [vmem:[#allocation8 + $0x858] sm:$0xff]
        %v1927 = vld [vmem:[#allocation8 + $0x860] sm:$0xff]
        %v1928 = vld [vmem:[#allocation8 + $0x868] sm:$0xff]
        %v1929 = vld [vmem:[#allocation8 + $0x870] sm:$0xff]
        %v1930 = vld [vmem:[#allocation8 + $0x878] sm:$0xff]
        %v1931 = vld [vmem:[#allocation8 + $0x880] sm:$0xff]
        %v1932 = vld [vmem:[#allocation8 + $0x888] sm:$0xff]
        %v1933 = vld [vmem:[#allocation8 + $0x890] sm:$0xff]
        %v1934 = vld [vmem:[#allocation8 + $0x898] sm:$0xff]
        %v1935 = vld [vmem:[#allocation8 + $0x8a0] sm:$0xff]
        %v1936 = vld [vmem:[#allocation8 + $0x8a8] sm:$0xff]
        %v1937 = vld [vmem:[#allocation8 + $0x8b0] sm:$0xff]
        %v1938 = vld [vmem:[#allocation8 + $0x8b8] sm:$0xff]
        %v1939 = vld [vmem:[#allocation8 + $0x8c0] sm:$0xff]
        %v1940 = vld [vmem:[#allocation8 + $0x8c8] sm:$0xff]
        %v1941 = vld [vmem:[#allocation8 + $0x8d0] sm:$0xff]
        %v1942 = vld [vmem:[#allocation8 + $0x8d8] sm:$0xff]
        %v1943 = vld [vmem:[#allocation8 + $0x8e0] sm:$0xff]
        %v1944 = vld [vmem:[#allocation8 + $0x8e8] sm:$0xff]
        %v1945 = vld [vmem:[#allocation8 + $0x8f0] sm:$0xff]
        %v1946 = vld [vmem:[#allocation8 + $0x8f8] sm:$0xff]
        %v1947 = vld [vmem:[#allocation8 + $0x900] sm:$0xff]
        %v1948 = vld [vmem:[#allocation8 + $0x908] sm:$0xff]
        %v1949 = vld [vmem:[#allocation8 + $0x910] sm:$0xff]
        %v1950 = vld [vmem:[#allocation8 + $0x918] sm:$0xff]
        %v1951 = vld [vmem:[#allocation8 + $0x920] sm:$0xff]
        %v1952 = vld [vmem:[#allocation8 + $0x928] sm:$0xff]
        %v1953 = vld [vmem:[#allocation8 + $0x930] sm:$0xff]
        %v1954 = vld [vmem:[#allocation8 + $0x938] sm:$0xff]
        %v1955 = vld [vmem:[#allocation8 + $0x940] sm:$0xff]
        %v1956 = vld [vmem:[#allocation8 + $0x948] sm:$0xff]
        %v1957 = vld [vmem:[#allocation8 + $0x950] sm:$0xff]
        %v1958 = vld [vmem:[#allocation8 + $0x958] sm:$0xff]
        %v1959 = vld [vmem:[#allocation8 + $0x960] sm:$0xff]
        %v1960 = vld [vmem:[#allocation8 + $0x968] sm:$0xff]
        %v1961 = vld [vmem:[#allocation8 + $0x970] sm:$0xff]
        %v1962 = vld [vmem:[#allocation8 + $0x978] sm:$0xff]
        %v1963 = vld [vmem:[#allocation8 + $0x980] sm:$0xff]
        %v1964 = vld [vmem:[#allocation8 + $0x988] sm:$0xff]
        %v1965 = vld [vmem:[#allocation8 + $0x990] sm:$0xff]
        %v1966 = vld [vmem:[#allocation8 + $0x998] sm:$0xff]
        %v1967 = vld [vmem:[#allocation8 + $0x9a0] sm:$0xff]
        %v1968 = vld [vmem:[#allocation8 + $0x9a8] sm:$0xff]
        %v1969 = vld [vmem:[#allocation8 + $0x9b0] sm:$0xff]
        %v1970 = vld [vmem:[#allocation8 + $0x9b8] sm:$0xff]
        %v1971 = vld [vmem:[#allocation8 + $0x9c0] sm:$0xff]
        %v1972 = vld [vmem:[#allocation8 + $0x9c8] sm:$0xff]
        %v1973 = vld [vmem:[#allocation8 + $0x9d0] sm:$0xff]
        %v1974 = vld [vmem:[#allocation8 + $0x9d8] sm:$0xff]
        %v1975 = vld [vmem:[#allocation8 + $0x9e0] sm:$0xff]
        %v1976 = vld [vmem:[#allocation8 + $0x9e8] sm:$0xff]
        %v1977 = vld [vmem:[#allocation8 + $0x9f0] sm:$0xff]
        %v1978 = vld [vmem:[#allocation8 + $0x9f8] sm:$0xff]
        %v1979 = vld [vmem:[#allocation8 + $0xa00] sm:$0xff]
        %v1980 = vld [vmem:[#allocation8 + $0xa08] sm:$0xff]
        %v1981 = vld [vmem:[#allocation8 + $0xa10] sm:$0xff]
        %v1982 = vld [vmem:[#allocation8 + $0xa18] sm:$0xff]
        %v1983 = vld [vmem:[#allocation8 + $0xa20] sm:$0xff]
        %v1984 = vld [vmem:[#allocation8 + $0xa28] sm:$0xff]
        %v1985 = vld [vmem:[#allocation8 + $0xa30] sm:$0xff]
        %v1986 = vld [vmem:[#allocation8 + $0xa38] sm:$0xff]
        %v1987 = vld [vmem:[#allocation8 + $0xa40] sm:$0xff]
        %v1988 = vld [vmem:[#allocation8 + $0xa48] sm:$0xff]
        %v1989 = vld [vmem:[#allocation8 + $0xa50] sm:$0xff]
        %v1990 = vld [vmem:[#allocation8 + $0xa58] sm:$0xff]
        %v1991 = vld [vmem:[#allocation8 + $0xa60] sm:$0xff]
        %v1992 = vld [vmem:[#allocation8 + $0xa68] sm:$0xff]
        %v1993 = vld [vmem:[#allocation8 + $0xa70] sm:$0xff]
        %v1994 = vld [vmem:[#allocation8 + $0xa78] sm:$0xff]
        %v1995 = vld [vmem:[#allocation8 + $0xa80] sm:$0xff]
        %v1996 = vld [vmem:[#allocation8 + $0xa88] sm:$0xff]
        %v1997 = vld [vmem:[#allocation8 + $0xa90] sm:$0xff]
        %v1998 = vld [vmem:[#allocation8 + $0xa98] sm:$0xff]
        %v1999 = vld [vmem:[#allocation8 + $0xaa0] sm:$0xff]
        %v2000 = vld [vmem:[#allocation8 + $0xaa8] sm:$0xff]
        %v2001 = vld [vmem:[#allocation8 + $0xab0] sm:$0xff]
        %v2002 = vld [vmem:[#allocation8 + $0xab8] sm:$0xff]
        %v2003 = vld [vmem:[#allocation8 + $0xac0] sm:$0xff]
        %v2004 = vld [vmem:[#allocation8 + $0xac8] sm:$0xff]
        %v2005 = vld [vmem:[#allocation8 + $0xad0] sm:$0xff]
        %v2006 = vld [vmem:[#allocation8 + $0xad8] sm:$0xff]
        %v2007 = vld [vmem:[#allocation8 + $0xae0] sm:$0xff]
        %v2008 = vld [vmem:[#allocation8 + $0xae8] sm:$0xff]
        %v2009 = vld [vmem:[#allocation8 + $0xaf0] sm:$0xff]
        %v2010 = vld [vmem:[#allocation8 + $0xaf8] sm:$0xff]
        %v2011 = vld [vmem:[#allocation8 + $0xb00] sm:$0xff]
        %v2012 = vld [vmem:[#allocation8 + $0xb08] sm:$0xff]
        %v2013 = vld [vmem:[#allocation8 + $0xb10] sm:$0xff]
        %v2014 = vld [vmem:[#allocation8 + $0xb18] sm:$0xff]
        %v2015 = vld [vmem:[#allocation8 + $0xb20] sm:$0xff]
        %v2016 = vld [vmem:[#allocation8 + $0xb28] sm:$0xff]
        %v2017 = vld [vmem:[#allocation8 + $0xb30] sm:$0xff]
        %v2018 = vld [vmem:[#allocation8 + $0xb38] sm:$0xff]
        %v2019 = vld [vmem:[#allocation8 + $0xb40] sm:$0xff]
        %v2020 = vld [vmem:[#allocation8 + $0xb48] sm:$0xff]
        %v2021 = vld [vmem:[#allocation8 + $0xb50] sm:$0xff]
        %v2022 = vld [vmem:[#allocation8 + $0xb58] sm:$0xff]
        %v2023 = vld [vmem:[#allocation8 + $0xb60] sm:$0xff]
        %v2024 = vld [vmem:[#allocation8 + $0xb68] sm:$0xff]
        %v2025 = vld [vmem:[#allocation8 + $0xb70] sm:$0xff]
        %v2026 = vld [vmem:[#allocation8 + $0xb78] sm:$0xff]
        %v2027 = vld [vmem:[#allocation8 + $0xb80] sm:$0xff]
        %v2028 = vld [vmem:[#allocation8 + $0xb88] sm:$0xff]
        %v2029 = vld [vmem:[#allocation8 + $0xb90] sm:$0xff]
        %v2030 = vld [vmem:[#allocation8 + $0xb98] sm:$0xff]
        %v2031 = vld [vmem:[#allocation8 + $0xba0] sm:$0xff]
        %v2032 = vld [vmem:[#allocation8 + $0xba8] sm:$0xff]
        %v2033 = vld [vmem:[#allocation8 + $0xbb0] sm:$0xff]
        %v2034 = vld [vmem:[#allocation8 + $0xbb8] sm:$0xff]
        %v2035 = vld [vmem:[#allocation8 + $0xbc0] sm:$0xff]
        %v2036 = vld [vmem:[#allocation8 + $0xbc8] sm:$0xff]
        %v2037 = vld [vmem:[#allocation8 + $0xbd0] sm:$0xff]
        %v2038 = vld [vmem:[#allocation8 + $0xbd8] sm:$0xff]
        %v2039 = vld [vmem:[#allocation8 + $0xbe0] sm:$0xff]
        %v2040 = vld [vmem:[#allocation8 + $0xbe8] sm:$0xff]
        %v2041 = vld [vmem:[#allocation8 + $0xbf0] sm:$0xff]
        %v2042 = vld [vmem:[#allocation8 + $0xbf8] sm:$0xff]
        %v2043 = vld [vmem:[#allocation8 + $0xc00] sm:$0xff]
        %v2044 = vld [vmem:[#allocation8 + $0xc08] sm:$0xff]
        %v2045 = vld [vmem:[#allocation8 + $0xc10] sm:$0xff]
        %v2046 = vld [vmem:[#allocation8 + $0xc18] sm:$0xff]
        %v2047 = vld [vmem:[#allocation8 + $0xc20] sm:$0xff]
        %v2048 = vld [vmem:[#allocation8 + $0xc28] sm:$0xff]
        %v2049 = vld [vmem:[#allocation8 + $0xc30] sm:$0xff]
        %v2050 = vld [vmem:[#allocation8 + $0xc38] sm:$0xff]
        %v2051 = vld [vmem:[#allocation8 + $0xc40] sm:$0xff]
        %v2052 = vld [vmem:[#allocation8 + $0xc48] sm:$0xff]
        %v2053 = vld [vmem:[#allocation8 + $0xc50] sm:$0xff]
        %v2054 = vld [vmem:[#allocation8 + $0xc58] sm:$0xff]
        %v2055 = vld [vmem:[#allocation8 + $0xc60] sm:$0xff]
        %v2056 = vld [vmem:[#allocation8 + $0xc68] sm:$0xff]
        %v2057 = vld [vmem:[#allocation8 + $0xc70] sm:$0xff]
        %v2058 = vld [vmem:[#allocation8 + $0xc78] sm:$0xff]
        %v2059 = vld [vmem:[#allocation8 + $0xc80] sm:$0xff]
        %v2060 = vld [vmem:[#allocation8 + $0xc88] sm:$0xff]
        %v2061 = vld [vmem:[#allocation8 + $0xc90] sm:$0xff]
        %v2062 = vld [vmem:[#allocation8 + $0xc98] sm:$0xff]
        %v2063 = vld [vmem:[#allocation8 + $0xca0] sm:$0xff]
        %v2064 = vld [vmem:[#allocation8 + $0xca8] sm:$0xff]
        %v2065 = vld [vmem:[#allocation8 + $0xcb0] sm:$0xff]
        %v2066 = vld [vmem:[#allocation8 + $0xcb8] sm:$0xff]
        %v2067 = vld [vmem:[#allocation8 + $0xcc0] sm:$0xff]
        %v2068 = vld [vmem:[#allocation8 + $0xcc8] sm:$0xff]
        %v2069 = vld [vmem:[#allocation8 + $0xcd0] sm:$0xff]
        %v2070 = vld [vmem:[#allocation8 + $0xcd8] sm:$0xff]
        %v2071 = vld [vmem:[#allocation8 + $0xce0] sm:$0xff]
        %v2072 = vld [vmem:[#allocation8 + $0xce8] sm:$0xff]
        %v2073 = vld [vmem:[#allocation8 + $0xcf0] sm:$0xff]
        %v2074 = vld [vmem:[#allocation8 + $0xcf8] sm:$0xff]
        %v2075 = vld [vmem:[#allocation8 + $0xd00] sm:$0xff]
        %v2076 = vld [vmem:[#allocation8 + $0xd08] sm:$0xff]
        %v2077 = vld [vmem:[#allocation8 + $0xd10] sm:$0xff]
        %v2078 = vld [vmem:[#allocation8 + $0xd18] sm:$0xff]
        %v2079 = vld [vmem:[#allocation8 + $0xd20] sm:$0xff]
        %v2080 = vld [vmem:[#allocation8 + $0xd28] sm:$0xff]
        %v2081 = vld [vmem:[#allocation8 + $0xd30] sm:$0xff]
        %v2082 = vld [vmem:[#allocation8 + $0xd38] sm:$0xff]
        %v2083 = vld [vmem:[#allocation8 + $0xd40] sm:$0xff]
        %v2084 = vld [vmem:[#allocation8 + $0xd48] sm:$0xff]
        %v2085 = vld [vmem:[#allocation8 + $0xd50] sm:$0xff]
        %v2086 = vld [vmem:[#allocation8 + $0xd58] sm:$0xff]
        %v2087 = vld [vmem:[#allocation8 + $0xd60] sm:$0xff]
        %v2088 = vld [vmem:[#allocation8 + $0xd68] sm:$0xff]
        %v2089 = vld [vmem:[#allocation8 + $0xd70] sm:$0xff]
        %v2090 = vld [vmem:[#allocation8 + $0xd78] sm:$0xff]
        %v2091 = vld [vmem:[#allocation8 + $0xd80] sm:$0xff]
        %v2092 = vld [vmem:[#allocation8 + $0xd88] sm:$0xff]
        %v2093 = vld [vmem:[#allocation8 + $0xd90] sm:$0xff]
        %v2094 = vld [vmem:[#allocation8 + $0xd98] sm:$0xff]
        %v2095 = vld [vmem:[#allocation8 + $0xda0] sm:$0xff]
        %v2096 = vld [vmem:[#allocation8 + $0xda8] sm:$0xff]
        %v2097 = vld [vmem:[#allocation8 + $0xdb0] sm:$0xff]
        %v2098 = vld [vmem:[#allocation8 + $0xdb8] sm:$0xff]
        %v2099 = vld [vmem:[#allocation8 + $0xdc0] sm:$0xff]
        %v2100 = vld [vmem:[#allocation8 + $0xdc8] sm:$0xff]
        %v2101 = vld [vmem:[#allocation8 + $0xdd0] sm:$0xff]
        %v2102 = vld [vmem:[#allocation8 + $0xdd8] sm:$0xff]
        %v2103 = vld [vmem:[#allocation8 + $0xde0] sm:$0xff]
        %v2104 = vld [vmem:[#allocation8 + $0xde8] sm:$0xff]
        %v2105 = vld [vmem:[#allocation8 + $0xdf0] sm:$0xff]
        %v2106 = vld [vmem:[#allocation8 + $0xdf8] sm:$0xff]
        %v2107 = vld [vmem:[#allocation8 + $0xe00] sm:$0xff]
        %v2108 = vld [vmem:[#allocation8 + $0xe08] sm:$0xff]
        %v2109 = vld [vmem:[#allocation8 + $0xe10] sm:$0xff]
        %v2110 = vld [vmem:[#allocation8 + $0xe18] sm:$0xff]
        %v2111 = vld [vmem:[#allocation8 + $0xe20] sm:$0xff]
        %v2112 = vld [vmem:[#allocation8 + $0xe28] sm:$0xff]
        %v2113 = vld [vmem:[#allocation8 + $0xe30] sm:$0xff]
        %v2114 = vld [vmem:[#allocation8 + $0xe38] sm:$0xff]
        %v2115 = vld [vmem:[#allocation8 + $0xe40] sm:$0xff]
        %v2116 = vld [vmem:[#allocation8 + $0xe48] sm:$0xff]
        %v2117 = vld [vmem:[#allocation8 + $0xe50] sm:$0xff]
        %v2118 = vld [vmem:[#allocation8 + $0xe58] sm:$0xff]
        %v2119 = vld [vmem:[#allocation8 + $0xe60] sm:$0xff]
        %v2120 = vld [vmem:[#allocation8 + $0xe68] sm:$0xff]
        %v2121 = vld [vmem:[#allocation8 + $0xe70] sm:$0xff]
        %v2122 = vld [vmem:[#allocation8 + $0xe78] sm:$0xff]
        %v2123 = vld [vmem:[#allocation8 + $0xe80] sm:$0xff]
        %v2124 = vld [vmem:[#allocation8 + $0xe88] sm:$0xff]
        %v2125 = vld [vmem:[#allocation8 + $0xe90] sm:$0xff]
        %v2126 = vld [vmem:[#allocation8 + $0xe98] sm:$0xff]
        %v2127 = vld [vmem:[#allocation8 + $0xea0] sm:$0xff]
        %v2128 = vld [vmem:[#allocation8 + $0xea8] sm:$0xff]
        %v2129 = vld [vmem:[#allocation8 + $0xeb0] sm:$0xff]
        %v2130 = vld [vmem:[#allocation8 + $0xeb8] sm:$0xff]
        %v2131 = vld [vmem:[#allocation8 + $0xec0] sm:$0xff]
        %v2132 = vld [vmem:[#allocation8 + $0xec8] sm:$0xff]
        %v2133 = vld [vmem:[#allocation8 + $0xed0] sm:$0xff]
        %v2134 = vld [vmem:[#allocation8 + $0xed8] sm:$0xff]
        %v2135 = vld [vmem:[#allocation8 + $0xee0] sm:$0xff]
        %v2136 = vld [vmem:[#allocation8 + $0xee8] sm:$0xff]
        %v2137 = vld [vmem:[#allocation8 + $0xef0] sm:$0xff]
        %v2138 = vld [vmem:[#allocation8 + $0xef8] sm:$0xff]
        %v2139 = vld [vmem:[#allocation8 + $0xf00] sm:$0xff]
        %v2140 = vld [vmem:[#allocation8 + $0xf08] sm:$0xff]
        %v2141 = vld [vmem:[#allocation8 + $0xf10] sm:$0xff]
        %v2142 = vld [vmem:[#allocation8 + $0xf18] sm:$0xff]
        %v2143 = vld [vmem:[#allocation8 + $0xf20] sm:$0xff]
        %v2144 = vld [vmem:[#allocation8 + $0xf28] sm:$0xff]
        %v2145 = vld [vmem:[#allocation8 + $0xf30] sm:$0xff]
        %v2146 = vld [vmem:[#allocation8 + $0xf38] sm:$0xff]
        %v2147 = vld [vmem:[#allocation8 + $0xf40] sm:$0xff]
        %v2148 = vld [vmem:[#allocation8 + $0xf48] sm:$0xff]
        %v2149 = vld [vmem:[#allocation8 + $0xf50] sm:$0xff]
        %v2150 = vld [vmem:[#allocation8 + $0xf58] sm:$0xff]
        %v2151 = vld [vmem:[#allocation8 + $0xf60] sm:$0xff]
        %v2152 = vld [vmem:[#allocation8 + $0xf68] sm:$0xff]
        %v2153 = vld [vmem:[#allocation8 + $0xf70] sm:$0xff]
        %v2154 = vld [vmem:[#allocation8 + $0xf78] sm:$0xff]
        %v2155 = vld [vmem:[#allocation8 + $0xf80] sm:$0xff]
        %v2156 = vld [vmem:[#allocation8 + $0xf88] sm:$0xff]
        %v2157 = vld [vmem:[#allocation8 + $0xf90] sm:$0xff]
        %v2158 = vld [vmem:[#allocation8 + $0xf98] sm:$0xff]
        %v2159 = vld [vmem:[#allocation8 + $0xfa0] sm:$0xff]
        %v2160 = vld [vmem:[#allocation8 + $0xfa8] sm:$0xff]
        %v2161 = vld [vmem:[#allocation8 + $0xfb0] sm:$0xff]
        %v2162 = vld [vmem:[#allocation8 + $0xfb8] sm:$0xff]
        %v2163 = vld [vmem:[#allocation8 + $0xfc0] sm:$0xff]
        %v2164 = vld [vmem:[#allocation8 + $0xfc8] sm:$0xff]
        %v2165 = vld [vmem:[#allocation8 + $0xfd0] sm:$0xff]
        %v2166 = vld [vmem:[#allocation8 + $0xfd8] sm:$0xff]
        %v2167 = vld [vmem:[#allocation8 + $0xfe0] sm:$0xff]
        %v2168 = vld [vmem:[#allocation8 + $0xfe8] sm:$0xff]
        %v2169 = vld [vmem:[#allocation8 + $0xff0] sm:$0xff]
        %v2170 = vld [vmem:[#allocation8 + $0xff8] sm:$0xff]
        %v2171 = vld [vmem:[#allocation8 + $0x1000] sm:$0xff]
        %v2172 = vld [vmem:[#allocation8 + $0x1008] sm:$0xff]
        %v2173 = vld [vmem:[#allocation8 + $0x1010] sm:$0xff]
        %v2174 = vld [vmem:[#allocation8 + $0x1018] sm:$0xff]
        %v2175 = vld [vmem:[#allocation8 + $0x1020] sm:$0xff]
        %v2176 = vld [vmem:[#allocation8 + $0x1028] sm:$0xff]
        %v2177 = vld [vmem:[#allocation8 + $0x1030] sm:$0xff]
        %v2178 = vld [vmem:[#allocation8 + $0x1038] sm:$0xff]
        %v2179 = vld [vmem:[#allocation8 + $0x1040] sm:$0xff]
        %v2180 = vld [vmem:[#allocation8 + $0x1048] sm:$0xff]
        %v2181 = vld [vmem:[#allocation8 + $0x1050] sm:$0xff]
        %v2182 = vld [vmem:[#allocation8 + $0x1058] sm:$0xff]
        %v2183 = vld [vmem:[#allocation8 + $0x1060] sm:$0xff]
        %v2184 = vld [vmem:[#allocation8 + $0x1068] sm:$0xff]
        %v2185 = vld [vmem:[#allocation8 + $0x1070] sm:$0xff]
        %v2186 = vld [vmem:[#allocation8 + $0x1078] sm:$0xff]
        %v2187 = vld [vmem:[#allocation8 + $0x1080] sm:$0xff]
        %v2188 = vld [vmem:[#allocation8 + $0x1088] sm:$0xff]
        %v2189 = vld [vmem:[#allocation8 + $0x1090] sm:$0xff]
        %v2190 = vld [vmem:[#allocation8 + $0x1098] sm:$0xff]
        %v2191 = vld [vmem:[#allocation8 + $0x10a0] sm:$0xff]
        %v2192 = vld [vmem:[#allocation8 + $0x10a8] sm:$0xff]
        %v2193 = vld [vmem:[#allocation8 + $0x10b0] sm:$0xff]
        %v2194 = vld [vmem:[#allocation8 + $0x10b8] sm:$0xff]
        %v2195 = vld [vmem:[#allocation8 + $0x10c0] sm:$0xff]
        %v2196 = vld [vmem:[#allocation8 + $0x10c8] sm:$0xff]
        %v2197 = vld [vmem:[#allocation8 + $0x10d0] sm:$0xff]
        %v2198 = vld [vmem:[#allocation8 + $0x10d8] sm:$0xff]
        %v2199 = vld [vmem:[#allocation8 + $0x10e0] sm:$0xff]
        %v2200 = vld [vmem:[#allocation8 + $0x10e8] sm:$0xff]
        %v2201 = vld [vmem:[#allocation8 + $0x10f0] sm:$0xff]
        %v2202 = vld [vmem:[#allocation8 + $0x10f8] sm:$0xff]
        %v2203 = vld [vmem:[#allocation8 + $0x1100] sm:$0xff]
        %v2204 = vld [vmem:[#allocation8 + $0x1108] sm:$0xff]
        %v2205 = vld [vmem:[#allocation8 + $0x1110] sm:$0xff]
        %v2206 = vld [vmem:[#allocation8 + $0x1118] sm:$0xff]
        %v2207 = vld [vmem:[#allocation8 + $0x1120] sm:$0xff]
        %v2208 = vld [vmem:[#allocation8 + $0x1128] sm:$0xff]
        %v2209 = vld [vmem:[#allocation8 + $0x1130] sm:$0xff]
        %v2210 = vld [vmem:[#allocation8 + $0x1138] sm:$0xff]
        %v2211 = vld [vmem:[#allocation8 + $0x1140] sm:$0xff]
        %v2212 = vld [vmem:[#allocation8 + $0x1148] sm:$0xff]
        %v2213 = vld [vmem:[#allocation8 + $0x1150] sm:$0xff]
        %v2214 = vld [vmem:[#allocation8 + $0x1158] sm:$0xff]
        %v2215 = vld [vmem:[#allocation8 + $0x1160] sm:$0xff]
        %v2216 = vld [vmem:[#allocation8 + $0x1168] sm:$0xff]
        %v2217 = vld [vmem:[#allocation8 + $0x1170] sm:$0xff]
        %v2218 = vld [vmem:[#allocation8 + $0x1178] sm:$0xff]
        %v2219 = vld [vmem:[#allocation8 + $0x1180] sm:$0xff]
        %v2220 = vld [vmem:[#allocation8 + $0x1188] sm:$0xff]
        %v2221 = vld [vmem:[#allocation8 + $0x1190] sm:$0xff]
        %v2222 = vld [vmem:[#allocation8 + $0x1198] sm:$0xff]
        %v2223 = vld [vmem:[#allocation8 + $0x11a0] sm:$0xff]
        %v2224 = vld [vmem:[#allocation8 + $0x11a8] sm:$0xff]
        %v2225 = vld [vmem:[#allocation8 + $0x11b0] sm:$0xff]
        %v2226 = vld [vmem:[#allocation8 + $0x11b8] sm:$0xff]
        %v2227 = vld [vmem:[#allocation8 + $0x11c0] sm:$0xff]
        %v2228 = vld [vmem:[#allocation8 + $0x11c8] sm:$0xff]
        %v2229 = vld [vmem:[#allocation8 + $0x11d0] sm:$0xff]
        %v2230 = vld [vmem:[#allocation8 + $0x11d8] sm:$0xff]
        %v2231 = vld [vmem:[#allocation8 + $0x11e0] sm:$0xff]
        %v2232 = vld [vmem:[#allocation8 + $0x11e8] sm:$0xff]
        %v2233 = vld [vmem:[#allocation8 + $0x11f0] sm:$0xff]
        %v2234 = vld [vmem:[#allocation8 + $0x11f8] sm:$0xff]
        %v2235 = vld [vmem:[#allocation9] sm:$0x3]
        %2237 = vst [vmem:[#allocation1] ss:$9 sm:$0xff] %v1654
        %v2238 = vld [vmem:[#allocation1] sm:$0xff]
        %v2239 = vld [vmem:[#allocation1 + $0x9] sm:$0xff]
        %v2240 = vld [vmem:[#allocation1 + $0x12] sm:$0xff]
        %v2241 = vld [vmem:[#allocation1 + $0x1b] sm:$0xff]
        %v2242 = vld [vmem:[#allocation1 + $0x24] sm:$0xff]
        %v2243 = vld [vmem:[#allocation1 + $0x2d] sm:$0xff]
        %v2244 = vld [vmem:[#allocation1 + $0x36] sm:$0xff]
        %v2245 = vld [vmem:[#allocation1 + $0x3f] sm:$0xff]
        %2247 = vst [vmem:[#allocation1] ss:$9 sm:$0xff] %v1655
        %v2248 = vld [vmem:[#allocation1] sm:$0xff]
        %v2249 = vld [vmem:[#allocation1 + $0x9] sm:$0xff]
        %v2250 = vld [vmem:[#allocation1 + $0x12] sm:$0xff]
        %v2251 = vld [vmem:[#allocation1 + $0x1b] sm:$0xff]
        %v2252 = vld [vmem:[#allocation1 + $0x24] sm:$0xff]
        %v2253 = vld [vmem:[#allocation1 + $0x2d] sm:$0xff]
        %v2254 = vld [vmem:[#allocation1 + $0x36] sm:$0xff]
        %v2255 = vld [vmem:[#allocation1 + $0x3f] sm:$0xff]
        %2257 = vst [vmem:[#allocation1] ss:$9 sm:$0xff] %v1656
        %v2258 = vld [vmem:[#allocation1] sm:$0xff]
        %v2259 = vld [vmem:[#allocation1 + $0x9] sm:$0xff]
        %v2260 = vld [vmem:[#allocation1 + $0x12] sm:$0xff]
        %v2261 = vld [vmem:[#allocation1 + $0x1b] sm:$0xff]
        %v2262 = vld [vmem:[#allocation1 + $0x24] sm:$0xff]
        %v2263 = vld [vmem:[#allocation1 + $0x2d] sm:$0xff]
        %v2264 = vld [vmem:[#allocation1 + $0x36] sm:$0xff]
        %v2265 = vld [vmem:[#allocation1 + $0x3f] sm:$0xff]
        %2267 = vst [vmem:[#allocation1] ss:$9 sm:$0xff] %v1657
        %v2268 = vld [vmem:[#allocation1] sm:$0xff]
        %v2269 = vld [vmem:[#allocation1 + $0x9] sm:$0xff]
        %v2270 = vld [vmem:[#allocation1 + $0x12] sm:$0xff]
        %v2271 = vld [vmem:[#allocation1 + $0x1b] sm:$0xff]
        %v2272 = vld [vmem:[#allocation1 + $0x24] sm:$0xff]
        %v2273 = vld [vmem:[#allocation1 + $0x2d] sm:$0xff]
        %v2274 = vld [vmem:[#allocation1 + $0x36] sm:$0xff]
        %v2275 = vld [vmem:[#allocation1 + $0x3f] sm:$0xff]
        %2277 = vst [vmem:[#allocation1] ss:$9 sm:$0xff] %v1658
        %v2278 = vld [vmem:[#allocation1] sm:$0xff]
        %v2279 = vld [vmem:[#allocation1 + $0x9] sm:$0xff]
        %v2280 = vld [vmem:[#allocation1 + $0x12] sm:$0xff]
        %v2281 = vld [vmem:[#allocation1 + $0x1b] sm:$0xff]
        %v2894 = vunpack.c.l.b16 %v1659
        %v2895 = vunpack.c.h.b16 %v1659
        %v2896 = vunpack.c.l.b16 %v1660
        %v2897 = vunpack.c.h.b16 %v1660
        %v2898 = vunpack.c.l.b16 %v1661
        %v2899 = vunpack.c.h.b16 %v1661
        %v2900 = vunpack.c.l.b16 %v1662
        %v2901 = vunpack.c.h.b16 %v1662
        %v2902 = vunpack.c.l.b16 %v1663
        %v2903 = vunpack.c.h.b16 %v1663
        %v2904 = vunpack.c.l.b16 %v1664
        %v2905 = vunpack.c.h.b16 %v1664
        %v2906 = vunpack.c.l.b16 %v1665
        %v2907 = vunpack.c.h.b16 %v1665
        %v2908 = vunpack.c.l.b16 %v1666
        %v2909 = vunpack.c.h.b16 %v1666
        %v2910 = vunpack.c.l.b16 %v1667
        %v2911 = vunpack.c.h.b16 %v1667
        %v2912 = vunpack.c.l.b16 %v1668
        %v2913 = vunpack.c.h.b16 %v1668
        %v2914 = vunpack.c.l.b16 %v1669
        %v2915 = vunpack.c.h.b16 %v1669
        %v2916 = vunpack.c.l.b16 %v1670
        %v2917 = vunpack.c.h.b16 %v1670
        %v2918 = vunpack.c.l.b16 %v1671
        %v2919 = vunpack.c.h.b16 %v1671
        %v2920 = vunpack.c.l.b16 %v1672
        %v2921 = vunpack.c.h.b16 %v1672
        %v2922 = vunpack.c.l.b16 %v1673
        %v2923 = vunpack.c.h.b16 %v1673
        %v2924 = vunpack.c.l.b16 %v1674
        %v2925 = vunpack.c.h.b16 %v1674
        %v2926 = vunpack.c.l.b16 %v1675
        %v2927 = vunpack.c.h.b16 %v1675
        %v2928 = vunpack.c.l.b16 %v1676
        %v2929 = vunpack.c.h.b16 %v1676
        %v2930 = vunpack.c.l.b16 %v1677
        %v2931 = vunpack.c.h.b16 %v1677
        %v2932 = vunpack.c.l.b16 %v1678
        %v2933 = vunpack.c.h.b16 %v1678
        %v2934 = vunpack.c.l.b16 %v1679
        %v2935 = vunpack.c.h.b16 %v1679
        %v2936 = vunpack.c.l.b16 %v1680
        %v2937 = vunpack.c.h.b16 %v1680
        %v2938 = vunpack.c.l.b16 %v1681
        %v2939 = vunpack.c.h.b16 %v1681
        %v2940 = vunpack.c.l.b16 %v1682
        %v2941 = vunpack.c.h.b16 %v1682
        %v2942 = vunpack.c.l.b16 %v1683
        %v2943 = vunpack.c.h.b16 %v1683
        %v2944 = vunpack.c.l.b16 %v1684
        %v2945 = vunpack.c.h.b16 %v1684
        %v2946 = vunpack.c.l.b16 %v1685
        %v2947 = vunpack.c.h.b16 %v1685
        %v2948 = vunpack.c.l.b16 %v1686
        %v2949 = vunpack.c.h.b16 %v1686
        %v2950 = vunpack.c.l.b16 %v1687
        %v2951 = vunpack.c.h.b16 %v1687
        %v2952 = vunpack.c.l.b16 %v1688
        %v2953 = vunpack.c.h.b16 %v1688
        %v2954 = vunpack.c.l.b16 %v1689
        %v2955 = vunpack.c.h.b16 %v1689
        %v2956 = vunpack.c.l.b16 %v1690
        %v2957 = vunpack.c.h.b16 %v1690
        %v2958 = vunpack.c.l.b16 %v1691
        %v2959 = vunpack.c.h.b16 %v1691
        %v2960 = vunpack.c.l.b16 %v1692
        %v2961 = vunpack.c.h.b16 %v1692
        %v2962 = vunpack.c.l.b16 %v1693
        %v2963 = vunpack.c.h.b16 %v1693
        %v2964 = vunpack.c.l.b16 %v1694
        %v2965 = vunpack.c.h.b16 %v1694
        %v2966 = vunpack.c.l.b16 %v1695
        %v2967 = vunpack.c.h.b16 %v1695
        %v2968 = vunpack.c.l.b16 %v1696
        %v2969 = vunpack.c.h.b16 %v1696
        %v2970 = vunpack.c.l.b16 %v1697
        %v2971 = vunpack.c.h.b16 %v1697
        %v2972 = vunpack.c.l.b16 %v1698
        %v2973 = vunpack.c.h.b16 %v1698
        %v2974 = vunpack.c.l.b16 %v1699
        %v2975 = vunpack.c.h.b16 %v1699
        %v2976 = vunpack.c.l.b16 %v1700
        %v2977 = vunpack.c.h.b16 %v1700
        %v2978 = vunpack.c.l.b16 %v1701
        %v2979 = vunpack.c.h.b16 %v1701
        %v2980 = vunpack.c.l.b16 %v1702
        %v2981 = vunpack.c.h.b16 %v1702
        %v2982 = vunpack.c.l.b16 %v1703
        %v2983 = vunpack.c.h.b16 %v1703
        %v2984 = vunpack.c.l.b16 %v1704
        %v2985 = vunpack.c.h.b16 %v1704
        %v2986 = vunpack.c.l.b16 %v1705
        %v2987 = vunpack.c.h.b16 %v1705
        %v2988 = vunpack.c.l.b16 %v1706
        %v2989 = vunpack.c.h.b16 %v1706
        %v2990 = vunpack.c.l.b16 %v1707
        %v2991 = vunpack.c.h.b16 %v1707
        %v2992 = vunpack.c.l.b16 %v1708
        %v2993 = vunpack.c.h.b16 %v1708
        %v2994 = vunpack.c.l.b16 %v1709
        %v2995 = vunpack.c.h.b16 %v1709
        %v2996 = vunpack.c.l.b16 %v1710
        %v2997 = vunpack.c.h.b16 %v1710
        %v2998 = vunpack.c.l.b16 %v1711
        %v2999 = vunpack.c.h.b16 %v1711
        %v3000 = vunpack.c.l.b16 %v1712
        %v3001 = vunpack.c.h.b16 %v1712
        %v3002 = vunpack.c.l.b16 %v1713
        %v3003 = vunpack.c.h.b16 %v1713
        %v3004 = vunpack.c.l.b16 %v1714
        %v3005 = vunpack.c.h.b16 %v1714
        %v3006 = vunpack.c.l.b16 %v1715
        %v3007 = vunpack.c.h.b16 %v1715
        %v3008 = vunpack.c.l.b16 %v1716
        %v3009 = vunpack.c.h.b16 %v1716
        %v3010 = vunpack.c.l.b16 %v1717
        %v3011 = vunpack.c.h.b16 %v1717
        %v3012 = vunpack.c.l.b16 %v1718
        %v3013 = vunpack.c.h.b16 %v1718
        %v3014 = vunpack.c.l.b16 %v1719
        %v3015 = vunpack.c.h.b16 %v1719
        %v3016 = vunpack.c.l.b16 %v1720
        %v3017 = vunpack.c.h.b16 %v1720
        %v3018 = vunpack.c.l.b16 %v1721
        %v3019 = vunpack.c.h.b16 %v1721
        %v3020 = vunpack.c.l.b16 %v1722
        %v3021 = vunpack.c.h.b16 %v1722
        %v3022 = vunpack.c.l.b16 %v1723
        %v3023 = vunpack.c.h.b16 %v1723
        %v3024 = vunpack.c.l.b16 %v1724
        %v3025 = vunpack.c.h.b16 %v1724
        %v3026 = vunpack.c.l.b16 %v1725
        %v3027 = vunpack.c.h.b16 %v1725
        %v3028 = vunpack.c.l.b16 %v1726
        %v3029 = vunpack.c.h.b16 %v1726
        %v3030 = vunpack.c.l.b16 %v1727
        %v3031 = vunpack.c.h.b16 %v1727
        %v3032 = vunpack.c.l.b16 %v1728
        %v3033 = vunpack.c.h.b16 %v1728
        %v3034 = vunpack.c.l.b16 %v1729
        %v3035 = vunpack.c.h.b16 %v1729
        %v3036 = vunpack.c.l.b16 %v1730
        %v3037 = vunpack.c.h.b16 %v1730
        %v3038 = vunpack.c.l.b16 %v1731
        %v3039 = vunpack.c.h.b16 %v1731
        %v3040 = vunpack.c.l.b16 %v1732
        %v3041 = vunpack.c.h.b16 %v1732
        %v3042 = vunpack.c.l.b16 %v1733
        %v3043 = vunpack.c.h.b16 %v1733
        %v3044 = vunpack.c.l.b16 %v1734
        %v3045 = vunpack.c.h.b16 %v1734
        %v3046 = vunpack.c.l.b16 %v1735
        %v3047 = vunpack.c.h.b16 %v1735
        %v3048 = vunpack.c.l.b16 %v1736
        %v3049 = vunpack.c.h.b16 %v1736
        %v3050 = vunpack.c.l.b16 %v1737
        %v3051 = vunpack.c.h.b16 %v1737
        %v3052 = vunpack.c.l.b16 %v1738
        %v3053 = vunpack.c.h.b16 %v1738
        %v3054 = vunpack.c.l.b16 %v1739
        %v3055 = vunpack.c.h.b16 %v1739
        %v3056 = vunpack.c.l.b16 %v1740
        %v3057 = vunpack.c.h.b16 %v1740
        %v3058 = vunpack.c.l.b16 %v1741
        %v3059 = vunpack.c.h.b16 %v1741
        %v3060 = vunpack.c.l.b16 %v1742
        %v3061 = vunpack.c.h.b16 %v1742
        %v3062 = vunpack.c.l.b16 %v1743
        %v3063 = vunpack.c.h.b16 %v1743
        %v3064 = vunpack.c.l.b16 %v1744
        %v3065 = vunpack.c.h.b16 %v1744
        %v3066 = vunpack.c.l.b16 %v1745
        %v3067 = vunpack.c.h.b16 %v1745
        %v3068 = vunpack.c.l.b16 %v1746
        %v3069 = vunpack.c.h.b16 %v1746
        %v3070 = vunpack.c.l.b16 %v1747
        %v3071 = vunpack.c.h.b16 %v1747
        %v3072 = vunpack.c.l.b16 %v1748
        %v3073 = vunpack.c.h.b16 %v1748
        %v3074 = vunpack.c.l.b16 %v1749
        %v3075 = vunpack.c.h.b16 %v1749
        %v3076 = vunpack.c.l.b16 %v1750
        %v3077 = vunpack.c.h.b16 %v1750
        %v3078 = vunpack.c.l.b16 %v1751
        %v3079 = vunpack.c.h.b16 %v1751
        %v3080 = vunpack.c.l.b16 %v1752
        %v3081 = vunpack.c.h.b16 %v1752
        %v3082 = vunpack.c.l.b16 %v1753
        %v3083 = vunpack.c.h.b16 %v1753
        %v3084 = vunpack.c.l.b16 %v1754
        %v3085 = vunpack.c.h.b16 %v1754
        %v3086 = vunpack.c.l.b16 %v1755
        %v3087 = vunpack.c.h.b16 %v1755
        %v3088 = vunpack.c.l.b16 %v1756
        %v3089 = vunpack.c.h.b16 %v1756
        %v3090 = vunpack.c.l.b16 %v1757
        %v3091 = vunpack.c.h.b16 %v1757
        %v3092 = vunpack.c.l.b16 %v1758
        %v3093 = vunpack.c.h.b16 %v1758
        %v3094 = vunpack.c.l.b16 %v1759
        %v3095 = vunpack.c.h.b16 %v1759
        %v3096 = vunpack.c.l.b16 %v1760
        %v3097 = vunpack.c.h.b16 %v1760
        %v3098 = vunpack.c.l.b16 %v1761
        %v3099 = vunpack.c.h.b16 %v1761
        %v3100 = vunpack.c.l.b16 %v1762
        %v3101 = vunpack.c.h.b16 %v1762
        %v3102 = vunpack.c.l.b16 %v1763
        %v3103 = vunpack.c.h.b16 %v1763
        %v3104 = vunpack.c.l.b16 %v1764
        %v3105 = vunpack.c.h.b16 %v1764
        %v3106 = vunpack.c.l.b16 %v1765
        %v3107 = vunpack.c.h.b16 %v1765
        %v3108 = vunpack.c.l.b16 %v1766
        %v3109 = vunpack.c.h.b16 %v1766
        %v3110 = vunpack.c.l.b16 %v1767
        %v3111 = vunpack.c.h.b16 %v1767
        %v3112 = vunpack.c.l.b16 %v1768
        %v3113 = vunpack.c.h.b16 %v1768
        %v3114 = vunpack.c.l.b16 %v1769
        %v3115 = vunpack.c.h.b16 %v1769
        %v3116 = vunpack.c.l.b16 %v1770
        %v3117 = vunpack.c.h.b16 %v1770
        %v3118 = vunpack.c.l.b16 %v1771
        %v3119 = vunpack.c.h.b16 %v1771
        %v3120 = vunpack.c.l.b16 %v1772
        %v3121 = vunpack.c.h.b16 %v1772
        %v3122 = vunpack.c.l.b16 %v1773
        %v3123 = vunpack.c.h.b16 %v1773
        %v3124 = vunpack.c.l.b16 %v1774
        %v3125 = vunpack.c.h.b16 %v1774
        %v3126 = vunpack.c.l.b16 %v1775
        %v3127 = vunpack.c.h.b16 %v1775
        %v3128 = vunpack.c.l.b16 %v1776
        %v3129 = vunpack.c.h.b16 %v1776
        %v3130 = vunpack.c.l.b16 %v1777
        %v3131 = vunpack.c.h.b16 %v1777
        %v3132 = vunpack.c.l.b16 %v1778
        %v3133 = vunpack.c.h.b16 %v1778
        %v3134 = vunpack.c.l.b16 %v1779
        %v3135 = vunpack.c.h.b16 %v1779
        %v3136 = vunpack.c.l.b16 %v1780
        %v3137 = vunpack.c.h.b16 %v1780
        %v3138 = vunpack.c.l.b16 %v1781
        %v3139 = vunpack.c.h.b16 %v1781
        %v3140 = vunpack.c.l.b16 %v1782
        %v3141 = vunpack.c.h.b16 %v1782
        %v3142 = vunpack.c.l.b16 %v1783
        %v3143 = vunpack.c.h.b16 %v1783
        %v3144 = vunpack.c.l.b16 %v1784
        %v3145 = vunpack.c.h.b16 %v1784
        %v3146 = vunpack.c.l.b16 %v1785
        %v3147 = vunpack.c.h.b16 %v1785
        %v3148 = vunpack.c.l.b16 %v1786
        %v3149 = vunpack.c.h.b16 %v1786
        %v3150 = vunpack.c.l.b16 %v1787
        %v3151 = vunpack.c.h.b16 %v1787
        %v3152 = vunpack.c.l.b16 %v1788
        %v3153 = vunpack.c.h.b16 %v1788
        %v3154 = vunpack.c.l.b16 %v1789
        %v3155 = vunpack.c.h.b16 %v1789
        %v3156 = vunpack.c.l.b16 %v1790
        %v3157 = vunpack.c.h.b16 %v1790
        %v3158 = vunpack.c.l.b16 %v1791
        %v3159 = vunpack.c.h.b16 %v1791
        %v3160 = vunpack.c.l.b16 %v1792
        %v3161 = vunpack.c.h.b16 %v1792
        %v3162 = vunpack.c.l.b16 %v1793
        %v3163 = vunpack.c.h.b16 %v1793
        %v3164 = vunpack.c.l.b16 %v1794
        %v3165 = vunpack.c.h.b16 %v1794
        %v3166 = vunpack.c.l.b16 %v1795
        %v3167 = vunpack.c.h.b16 %v1795
        %v3168 = vunpack.c.l.b16 %v1796
        %v3169 = vunpack.c.h.b16 %v1796
        %v3170 = vunpack.c.l.b16 %v1797
        %v3171 = vunpack.c.h.b16 %v1797
        %v3172 = vunpack.c.l.b16 %v1798
        %v3173 = vunpack.c.h.b16 %v1798
        %v3174 = vunpack.c.l.b16 %v1799
        %v3175 = vunpack.c.h.b16 %v1799
        %v3176 = vunpack.c.l.b16 %v1800
        %v3177 = vunpack.c.h.b16 %v1800
        %v3178 = vunpack.c.l.b16 %v1801
        %v3179 = vunpack.c.h.b16 %v1801
        %v3180 = vunpack.c.l.b16 %v1802
        %v3181 = vunpack.c.h.b16 %v1802
        %v3182 = vunpack.c.l.b16 %v1803
        %v3183 = vunpack.c.h.b16 %v1803
        %v3184 = vunpack.c.l.b16 %v1804
        %v3185 = vunpack.c.h.b16 %v1804
        %v3186 = vunpack.c.l.b16 %v1805
        %v3187 = vunpack.c.h.b16 %v1805
        %v3188 = vunpack.c.l.b16 %v1806
        %v3189 = vunpack.c.h.b16 %v1806
        %v3190 = vunpack.c.l.b16 %v1807
        %v3191 = vunpack.c.h.b16 %v1807
        %v3192 = vunpack.c.l.b16 %v1808
        %v3193 = vunpack.c.h.b16 %v1808
        %v3194 = vunpack.c.l.b16 %v1809
        %v3195 = vunpack.c.h.b16 %v1809
        %v3196 = vunpack.c.l.b16 %v1810
        %v3197 = vunpack.c.h.b16 %v1810
        %v3198 = vunpack.c.l.b16 %v1811
        %v3199 = vunpack.c.h.b16 %v1811
        %v3200 = vunpack.c.l.b16 %v1812
        %v3201 = vunpack.c.h.b16 %v1812
        %v3202 = vunpack.c.l.b16 %v1813
        %v3203 = vunpack.c.h.b16 %v1813
        %v3204 = vunpack.c.l.b16 %v1814
        %v3205 = vunpack.c.h.b16 %v1814
        %v3206 = vunpack.c.l.b16 %v1815
        %v3207 = vunpack.c.h.b16 %v1815
        %v3208 = vunpack.c.l.b16 %v1816
        %v3209 = vunpack.c.h.b16 %v1816
        %v3210 = vunpack.c.l.b16 %v1817
        %v3211 = vunpack.c.h.b16 %v1817
        %v3212 = vunpack.c.l.b16 %v1818
        %v3213 = vunpack.c.h.b16 %v1818
        %v3214 = vunpack.c.l.b16 %v1819
        %v3215 = vunpack.c.h.b16 %v1819
        %v3216 = vunpack.c.l.b16 %v1820
        %v3217 = vunpack.c.h.b16 %v1820
        %v3218 = vunpack.c.l.b16 %v1821
        %v3219 = vunpack.c.h.b16 %v1821
        %v3220 = vunpack.c.l.b16 %v1822
        %v3221 = vunpack.c.h.b16 %v1822
        %v3222 = vunpack.c.l.b16 %v1823
        %v3223 = vunpack.c.h.b16 %v1823
        %v3224 = vunpack.c.l.b16 %v1824
        %v3225 = vunpack.c.h.b16 %v1824
        %v3226 = vunpack.c.l.b16 %v1825
        %v3227 = vunpack.c.h.b16 %v1825
        %v3228 = vunpack.c.l.b16 %v1826
        %v3229 = vunpack.c.h.b16 %v1826
        %v3230 = vunpack.c.l.b16 %v1827
        %v3231 = vunpack.c.h.b16 %v1827
        %v3232 = vunpack.c.l.b16 %v1828
        %v3233 = vunpack.c.h.b16 %v1828
        %v3234 = vunpack.c.l.b16 %v1829
        %v3235 = vunpack.c.h.b16 %v1829
        %v3236 = vunpack.c.l.b16 %v1830
        %v3237 = vunpack.c.h.b16 %v1830
        %v3238 = vunpack.c.l.b16 %v1831
        %v3239 = vunpack.c.h.b16 %v1831
        %v3240 = vunpack.c.l.b16 %v1832
        %v3241 = vunpack.c.h.b16 %v1832
        %v3242 = vunpack.c.l.b16 %v1833
        %v3243 = vunpack.c.h.b16 %v1833
        %v3244 = vunpack.c.l.b16 %v1834
        %v3245 = vunpack.c.h.b16 %v1834
        %v3246 = vunpack.c.l.b16 %v1835
        %v3247 = vunpack.c.h.b16 %v1835
        %v3248 = vunpack.c.l.b16 %v1836
        %v3249 = vunpack.c.h.b16 %v1836
        %v3250 = vunpack.c.l.b16 %v1837
        %v3251 = vunpack.c.h.b16 %v1837
        %v3252 = vunpack.c.l.b16 %v1838
        %v3253 = vunpack.c.h.b16 %v1838
        %v3254 = vunpack.c.l.b16 %v1839
        %v3255 = vunpack.c.h.b16 %v1839
        %v3256 = vunpack.c.l.b16 %v1840
        %v3257 = vunpack.c.h.b16 %v1840
        %v3258 = vunpack.c.l.b16 %v1841
        %v3259 = vunpack.c.h.b16 %v1841
        %v3260 = vunpack.c.l.b16 %v1842
        %v3261 = vunpack.c.h.b16 %v1842
        %v3262 = vunpack.c.l.b16 %v1843
        %v3263 = vunpack.c.h.b16 %v1843
        %v3264 = vunpack.c.l.b16 %v1844
        %v3265 = vunpack.c.h.b16 %v1844
        %v3266 = vunpack.c.l.b16 %v1845
        %v3267 = vunpack.c.h.b16 %v1845
        %v3268 = vunpack.c.l.b16 %v1846
        %v3269 = vunpack.c.h.b16 %v1846
        %v3270 = vunpack.c.l.b16 %v1847
        %v3271 = vunpack.c.h.b16 %v1847
        %v3272 = vunpack.c.l.b16 %v1848
        %v3273 = vunpack.c.h.b16 %v1848
        %v3274 = vunpack.c.l.b16 %v1849
        %v3275 = vunpack.c.h.b16 %v1849
        %v3276 = vunpack.c.l.b16 %v1850
        %v3277 = vunpack.c.h.b16 %v1850
        %v3278 = vunpack.c.l.b16 %v1851
        %v3279 = vunpack.c.h.b16 %v1851
        %v3280 = vunpack.c.l.b16 %v1852
        %v3281 = vunpack.c.h.b16 %v1852
        %v3282 = vunpack.c.l.b16 %v1853
        %v3283 = vunpack.c.h.b16 %v1853
        %v3284 = vunpack.c.l.b16 %v1854
        %v3285 = vunpack.c.h.b16 %v1854
        %v3286 = vunpack.c.l.b16 %v1855
        %v3287 = vunpack.c.h.b16 %v1855
        %v3288 = vunpack.c.l.b16 %v1856
        %v3289 = vunpack.c.h.b16 %v1856
        %v3290 = vunpack.c.l.b16 %v1857
        %v3291 = vunpack.c.h.b16 %v1857
        %v3292 = vunpack.c.l.b16 %v1858
        %v3293 = vunpack.c.h.b16 %v1858
        %v3294 = vunpack.c.l.b16 %v1859
        %v3295 = vunpack.c.h.b16 %v1859
        %v3296 = vunpack.c.l.b16 %v1860
        %v3297 = vunpack.c.h.b16 %v1860
        %v3298 = vunpack.c.l.b16 %v1861
        %v3299 = vunpack.c.h.b16 %v1861
        %v3300 = vunpack.c.l.b16 %v1862
        %v3301 = vunpack.c.h.b16 %v1862
        %v3302 = vunpack.c.l.b16 %v1863
        %v3303 = vunpack.c.h.b16 %v1863
        %v3304 = vunpack.c.l.b16 %v1864
        %v3305 = vunpack.c.h.b16 %v1864
        %v3306 = vunpack.c.l.b16 %v1865
        %v3307 = vunpack.c.h.b16 %v1865
        %v3308 = vunpack.c.l.b16 %v1866
        %v3309 = vunpack.c.h.b16 %v1866
        %v3310 = vunpack.c.l.b16 %v1867
        %v3311 = vunpack.c.h.b16 %v1867
        %v3312 = vunpack.c.l.b16 %v1868
        %v3313 = vunpack.c.h.b16 %v1868
        %v3314 = vunpack.c.l.b16 %v1869
        %v3315 = vunpack.c.h.b16 %v1869
        %v3316 = vunpack.c.l.b16 %v1870
        %v3317 = vunpack.c.h.b16 %v1870
        %v3318 = vunpack.c.l.b16 %v1871
        %v3319 = vunpack.c.h.b16 %v1871
        %v3320 = vunpack.c.l.b16 %v1872
        %v3321 = vunpack.c.h.b16 %v1872
        %v3322 = vunpack.c.l.b16 %v1873
        %v3323 = vunpack.c.h.b16 %v1873
        %v3324 = vunpack.c.l.b16 %v1874
        %v3325 = vunpack.c.h.b16 %v1874
        %v3326 = vunpack.c.l.b16 %v1875
        %v3327 = vunpack.c.h.b16 %v1875
        %v3328 = vunpack.c.l.b16 %v1876
        %v3329 = vunpack.c.h.b16 %v1876
        %v3330 = vunpack.c.l.b16 %v1877
        %v3331 = vunpack.c.h.b16 %v1877
        %v3332 = vunpack.c.l.b16 %v1878
        %v3333 = vunpack.c.h.b16 %v1878
        %v3334 = vunpack.c.l.b16 %v1879
        %v3335 = vunpack.c.h.b16 %v1879
        %v3336 = vunpack.c.l.b16 %v1880
        %v3337 = vunpack.c.h.b16 %v1880
        %v3338 = vunpack.c.l.b16 %v1881
        %v3339 = vunpack.c.h.b16 %v1881
        %v3340 = vunpack.c.l.b16 %v1882
        %v3341 = vunpack.c.h.b16 %v1882
        %v3342 = vunpack.c.l.b16 %v1883
        %v3343 = vunpack.c.h.b16 %v1883
        %v3344 = vunpack.c.l.b16 %v1884
        %v3345 = vunpack.c.h.b16 %v1884
        %v3346 = vunpack.c.l.b16 %v1885
        %v3347 = vunpack.c.h.b16 %v1885
        %v3348 = vunpack.c.l.b16 %v1886
        %v3349 = vunpack.c.h.b16 %v1886
        %v3350 = vunpack.c.l.b16 %v1887
        %v3351 = vunpack.c.h.b16 %v1887
        %v3352 = vunpack.c.l.b16 %v1888
        %v3353 = vunpack.c.h.b16 %v1888
        %v3354 = vunpack.c.l.b16 %v1889
        %v3355 = vunpack.c.h.b16 %v1889
        %v3356 = vunpack.c.l.b16 %v1890
        %v3357 = vunpack.c.h.b16 %v1890
        %v3358 = vunpack.c.l.b16 %v1891
        %v3359 = vunpack.c.h.b16 %v1891
        %v3360 = vunpack.c.l.b16 %v1892
        %v3361 = vunpack.c.h.b16 %v1892
        %v3362 = vunpack.c.l.b16 %v1893
        %v3363 = vunpack.c.h.b16 %v1893
        %v3364 = vunpack.c.l.b16 %v1894
        %v3365 = vunpack.c.h.b16 %v1894
        %v3366 = vunpack.c.l.b16 %v1895
        %v3367 = vunpack.c.h.b16 %v1895
        %v3368 = vunpack.c.l.b16 %v1896
        %v3369 = vunpack.c.h.b16 %v1896
        %v3370 = vunpack.c.l.b16 %v1897
        %v3371 = vunpack.c.h.b16 %v1897
        %v3372 = vunpack.c.l.b16 %v1898
        %v3373 = vunpack.c.h.b16 %v1898
        %v3374 = vunpack.c.l.b16 %v1899
        %v3375 = vunpack.c.h.b16 %v1899
        %v3376 = vunpack.c.l.b16 %v1900
        %v3377 = vunpack.c.h.b16 %v1900
        %v3378 = vunpack.c.l.b16 %v1901
        %v3379 = vunpack.c.h.b16 %v1901
        %v3380 = vunpack.c.l.b16 %v1902
        %v3381 = vunpack.c.h.b16 %v1902
        %v3382 = vunpack.c.l.b16 %v1903
        %v3383 = vunpack.c.h.b16 %v1903
        %v3384 = vunpack.c.l.b16 %v1904
        %v3385 = vunpack.c.h.b16 %v1904
        %v3386 = vunpack.c.l.b16 %v1905
        %v3387 = vunpack.c.h.b16 %v1905
        %v3388 = vunpack.c.l.b16 %v1906
        %v3389 = vunpack.c.h.b16 %v1906
        %v3390 = vunpack.c.l.b16 %v1907
        %v3391 = vunpack.c.h.b16 %v1907
        %v3392 = vunpack.c.l.b16 %v1908
        %v3393 = vunpack.c.h.b16 %v1908
        %v3394 = vunpack.c.l.b16 %v1909
        %v3395 = vunpack.c.h.b16 %v1909
        %v3396 = vunpack.c.l.b16 %v1910
        %v3397 = vunpack.c.h.b16 %v1910
        %v3398 = vunpack.c.l.b16 %v1911
        %v3399 = vunpack.c.h.b16 %v1911
        %v3400 = vunpack.c.l.b16 %v1912
        %v3401 = vunpack.c.h.b16 %v1912
        %v3402 = vunpack.c.l.b16 %v1913
        %v3403 = vunpack.c.h.b16 %v1913
        %v3404 = vunpack.c.l.b16 %v1914
        %v3405 = vunpack.c.h.b16 %v1914
        %v3406 = vunpack.c.l.b16 %v1915
        %v3407 = vunpack.c.h.b16 %v1915
        %v3408 = vunpack.c.l.b16 %v1916
        %v3409 = vunpack.c.h.b16 %v1916
        %v3410 = vunpack.c.l.b16 %v1917
        %v3411 = vunpack.c.h.b16 %v1917
        %v3412 = vunpack.c.l.b16 %v1918
        %v3413 = vunpack.c.h.b16 %v1918
        %v3414 = vunpack.c.l.b16 %v1919
        %v3415 = vunpack.c.h.b16 %v1919
        %v3416 = vunpack.c.l.b16 %v1920
        %v3417 = vunpack.c.h.b16 %v1920
        %v3418 = vunpack.c.l.b16 %v1921
        %v3419 = vunpack.c.h.b16 %v1921
        %v3420 = vunpack.c.l.b16 %v1922
        %v3421 = vunpack.c.h.b16 %v1922
        %v3422 = vunpack.c.l.b16 %v1923
        %v3423 = vunpack.c.h.b16 %v1923
        %v3424 = vunpack.c.l.b16 %v1924
        %v3425 = vunpack.c.h.b16 %v1924
        %v3426 = vunpack.c.l.b16 %v1925
        %v3427 = vunpack.c.h.b16 %v1925
        %v3428 = vunpack.c.l.b16 %v1926
        %v3429 = vunpack.c.h.b16 %v1926
        %v3430 = vunpack.c.l.b16 %v1927
        %v3431 = vunpack.c.h.b16 %v1927
        %v3432 = vunpack.c.l.b16 %v1928
        %v3433 = vunpack.c.h.b16 %v1928
        %v3434 = vunpack.c.l.b16 %v1929
        %v3435 = vunpack.c.h.b16 %v1929
        %v3436 = vunpack.c.l.b16 %v1930
        %v3437 = vunpack.c.h.b16 %v1930
        %v3438 = vunpack.c.l.b16 %v1931
        %v3439 = vunpack.c.h.b16 %v1931
        %v3440 = vunpack.c.l.b16 %v1932
        %v3441 = vunpack.c.h.b16 %v1932
        %v3442 = vunpack.c.l.b16 %v1933
        %v3443 = vunpack.c.h.b16 %v1933
        %v3444 = vunpack.c.l.b16 %v1934
        %v3445 = vunpack.c.h.b16 %v1934
        %v3446 = vunpack.c.l.b16 %v1935
        %v3447 = vunpack.c.h.b16 %v1935
        %v3448 = vunpack.c.l.b16 %v1936
        %v3449 = vunpack.c.h.b16 %v1936
        %v3450 = vunpack.c.l.b16 %v1937
        %v3451 = vunpack.c.h.b16 %v1937
        %v3452 = vunpack.c.l.b16 %v1938
        %v3453 = vunpack.c.h.b16 %v1938
        %v3454 = vunpack.c.l.b16 %v1939
        %v3455 = vunpack.c.h.b16 %v1939
        %v3456 = vunpack.c.l.b16 %v1940
        %v3457 = vunpack.c.h.b16 %v1940
        %v3458 = vunpack.c.l.b16 %v1941
        %v3459 = vunpack.c.h.b16 %v1941
        %v3460 = vunpack.c.l.b16 %v1942
        %v3461 = vunpack.c.h.b16 %v1942
        %v3462 = vunpack.c.l.b16 %v1943
        %v3463 = vunpack.c.h.b16 %v1943
        %v3464 = vunpack.c.l.b16 %v1944
        %v3465 = vunpack.c.h.b16 %v1944
        %v3466 = vunpack.c.l.b16 %v1945
        %v3467 = vunpack.c.h.b16 %v1945
        %v3468 = vunpack.c.l.b16 %v1946
        %v3469 = vunpack.c.h.b16 %v1946
        %v3470 = vunpack.c.l.b16 %v1947
        %v3471 = vunpack.c.h.b16 %v1947
        %v3472 = vunpack.c.l.b16 %v1948
        %v3473 = vunpack.c.h.b16 %v1948
        %v3474 = vunpack.c.l.b16 %v1949
        %v3475 = vunpack.c.h.b16 %v1949
        %v3476 = vunpack.c.l.b16 %v1950
        %v3477 = vunpack.c.h.b16 %v1950
        %v3478 = vunpack.c.l.b16 %v1951
        %v3479 = vunpack.c.h.b16 %v1951
        %v3480 = vunpack.c.l.b16 %v1952
        %v3481 = vunpack.c.h.b16 %v1952
        %v3482 = vunpack.c.l.b16 %v1953
        %v3483 = vunpack.c.h.b16 %v1953
        %v3484 = vunpack.c.l.b16 %v1954
        %v3485 = vunpack.c.h.b16 %v1954
        %v3486 = vunpack.c.l.b16 %v1955
        %v3487 = vunpack.c.h.b16 %v1955
        %v3488 = vunpack.c.l.b16 %v1956
        %v3489 = vunpack.c.h.b16 %v1956
        %v3490 = vunpack.c.l.b16 %v1957
        %v3491 = vunpack.c.h.b16 %v1957
        %v3492 = vunpack.c.l.b16 %v1958
        %v3493 = vunpack.c.h.b16 %v1958
        %v3494 = vunpack.c.l.b16 %v1959
        %v3495 = vunpack.c.h.b16 %v1959
        %v3496 = vunpack.c.l.b16 %v1960
        %v3497 = vunpack.c.h.b16 %v1960
        %v3498 = vunpack.c.l.b16 %v1961
        %v3499 = vunpack.c.h.b16 %v1961
        %v3500 = vunpack.c.l.b16 %v1962
        %v3501 = vunpack.c.h.b16 %v1962
        %v3502 = vunpack.c.l.b16 %v1963
        %v3503 = vunpack.c.h.b16 %v1963
        %v3504 = vunpack.c.l.b16 %v1964
        %v3505 = vunpack.c.h.b16 %v1964
        %v3506 = vunpack.c.l.b16 %v1965
        %v3507 = vunpack.c.h.b16 %v1965
        %v3508 = vunpack.c.l.b16 %v1966
        %v3509 = vunpack.c.h.b16 %v1966
        %v3510 = vunpack.c.l.b16 %v1967
        %v3511 = vunpack.c.h.b16 %v1967
        %v3512 = vunpack.c.l.b16 %v1968
        %v3513 = vunpack.c.h.b16 %v1968
        %v3514 = vunpack.c.l.b16 %v1969
        %v3515 = vunpack.c.h.b16 %v1969
        %v3516 = vunpack.c.l.b16 %v1970
        %v3517 = vunpack.c.h.b16 %v1970
        %v3518 = vunpack.c.l.b16 %v1971
        %v3519 = vunpack.c.h.b16 %v1971
        %v3520 = vunpack.c.l.b16 %v1972
        %v3521 = vunpack.c.h.b16 %v1972
        %v3522 = vunpack.c.l.b16 %v1973
        %v3523 = vunpack.c.h.b16 %v1973
        %v3524 = vunpack.c.l.b16 %v1974
        %v3525 = vunpack.c.h.b16 %v1974
        %v3526 = vunpack.c.l.b16 %v1975
        %v3527 = vunpack.c.h.b16 %v1975
        %v3528 = vunpack.c.l.b16 %v1976
        %v3529 = vunpack.c.h.b16 %v1976
        %v3530 = vunpack.c.l.b16 %v1977
        %v3531 = vunpack.c.h.b16 %v1977
        %v3532 = vunpack.c.l.b16 %v1978
        %v3533 = vunpack.c.h.b16 %v1978
        %v3534 = vunpack.c.l.b16 %v1979
        %v3535 = vunpack.c.h.b16 %v1979
        %v3536 = vunpack.c.l.b16 %v1980
        %v3537 = vunpack.c.h.b16 %v1980
        %v3538 = vunpack.c.l.b16 %v1981
        %v3539 = vunpack.c.h.b16 %v1981
        %v3540 = vunpack.c.l.b16 %v1982
        %v3541 = vunpack.c.h.b16 %v1982
        %v3542 = vunpack.c.l.b16 %v1983
        %v3543 = vunpack.c.h.b16 %v1983
        %v3544 = vunpack.c.l.b16 %v1984
        %v3545 = vunpack.c.h.b16 %v1984
        %v3546 = vunpack.c.l.b16 %v1985
        %v3547 = vunpack.c.h.b16 %v1985
        %v3548 = vunpack.c.l.b16 %v1986
        %v3549 = vunpack.c.h.b16 %v1986
        %v3550 = vunpack.c.l.b16 %v1987
        %v3551 = vunpack.c.h.b16 %v1987
        %v3552 = vunpack.c.l.b16 %v1988
        %v3553 = vunpack.c.h.b16 %v1988
        %v3554 = vunpack.c.l.b16 %v1989
        %v3555 = vunpack.c.h.b16 %v1989
        %v3556 = vunpack.c.l.b16 %v1990
        %v3557 = vunpack.c.h.b16 %v1990
        %v3558 = vunpack.c.l.b16 %v1991
        %v3559 = vunpack.c.h.b16 %v1991
        %v3560 = vunpack.c.l.b16 %v1992
        %v3561 = vunpack.c.h.b16 %v1992
        %v3562 = vunpack.c.l.b16 %v1993
        %v3563 = vunpack.c.h.b16 %v1993
        %v3564 = vunpack.c.l.b16 %v1994
        %v3565 = vunpack.c.h.b16 %v1994
        %v3566 = vunpack.c.l.b16 %v1995
        %v3567 = vunpack.c.h.b16 %v1995
        %v3568 = vunpack.c.l.b16 %v1996
        %v3569 = vunpack.c.h.b16 %v1996
        %v3570 = vunpack.c.l.b16 %v1997
        %v3571 = vunpack.c.h.b16 %v1997
        %v3572 = vunpack.c.l.b16 %v1998
        %v3573 = vunpack.c.h.b16 %v1998
        %v3574 = vunpack.c.l.b16 %v1999
        %v3575 = vunpack.c.h.b16 %v1999
        %v3576 = vunpack.c.l.b16 %v2000
        %v3577 = vunpack.c.h.b16 %v2000
        %v3578 = vunpack.c.l.b16 %v2001
        %v3579 = vunpack.c.h.b16 %v2001
        %v3580 = vunpack.c.l.b16 %v2002
        %v3581 = vunpack.c.h.b16 %v2002
        %v3582 = vunpack.c.l.b16 %v2003
        %v3583 = vunpack.c.h.b16 %v2003
        %v3584 = vunpack.c.l.b16 %v2004
        %v3585 = vunpack.c.h.b16 %v2004
        %v3586 = vunpack.c.l.b16 %v2005
        %v3587 = vunpack.c.h.b16 %v2005
        %v3588 = vunpack.c.l.b16 %v2006
        %v3589 = vunpack.c.h.b16 %v2006
        %v3590 = vunpack.c.l.b16 %v2007
        %v3591 = vunpack.c.h.b16 %v2007
        %v3592 = vunpack.c.l.b16 %v2008
        %v3593 = vunpack.c.h.b16 %v2008
        %v3594 = vunpack.c.l.b16 %v2009
        %v3595 = vunpack.c.h.b16 %v2009
        %v3596 = vunpack.c.l.b16 %v2010
        %v3597 = vunpack.c.h.b16 %v2010
        %v3598 = vunpack.c.l.b16 %v2011
        %v3599 = vunpack.c.h.b16 %v2011
        %v3600 = vunpack.c.l.b16 %v2012
        %v3601 = vunpack.c.h.b16 %v2012
        %v3602 = vunpack.c.l.b16 %v2013
        %v3603 = vunpack.c.h.b16 %v2013
        %v3604 = vunpack.c.l.b16 %v2014
        %v3605 = vunpack.c.h.b16 %v2014
        %v3606 = vunpack.c.l.b16 %v2015
        %v3607 = vunpack.c.h.b16 %v2015
        %v3608 = vunpack.c.l.b16 %v2016
        %v3609 = vunpack.c.h.b16 %v2016
        %v3610 = vunpack.c.l.b16 %v2017
        %v3611 = vunpack.c.h.b16 %v2017
        %v3612 = vunpack.c.l.b16 %v2018
        %v3613 = vunpack.c.h.b16 %v2018
        %v3614 = vunpack.c.l.b16 %v2019
        %v3615 = vunpack.c.h.b16 %v2019
        %v3616 = vunpack.c.l.b16 %v2020
        %v3617 = vunpack.c.h.b16 %v2020
        %v3618 = vunpack.c.l.b16 %v2021
        %v3619 = vunpack.c.h.b16 %v2021
        %v3620 = vunpack.c.l.b16 %v2022
        %v3621 = vunpack.c.h.b16 %v2022
        %v3622 = vunpack.c.l.b16 %v2023
        %v3623 = vunpack.c.h.b16 %v2023
        %v3624 = vunpack.c.l.b16 %v2024
        %v3625 = vunpack.c.h.b16 %v2024
        %v3626 = vunpack.c.l.b16 %v2025
        %v3627 = vunpack.c.h.b16 %v2025
        %v3628 = vunpack.c.l.b16 %v2026
        %v3629 = vunpack.c.h.b16 %v2026
        %v3630 = vunpack.c.l.b16 %v2027
        %v3631 = vunpack.c.h.b16 %v2027
        %v3632 = vunpack.c.l.b16 %v2028
        %v3633 = vunpack.c.h.b16 %v2028
        %v3634 = vunpack.c.l.b16 %v2029
        %v3635 = vunpack.c.h.b16 %v2029
        %v3636 = vunpack.c.l.b16 %v2030
        %v3637 = vunpack.c.h.b16 %v2030
        %v3638 = vunpack.c.l.b16 %v2031
        %v3639 = vunpack.c.h.b16 %v2031
        %v3640 = vunpack.c.l.b16 %v2032
        %v3641 = vunpack.c.h.b16 %v2032
        %v3642 = vunpack.c.l.b16 %v2033
        %v3643 = vunpack.c.h.b16 %v2033
        %v3644 = vunpack.c.l.b16 %v2034
        %v3645 = vunpack.c.h.b16 %v2034
        %v3646 = vunpack.c.l.b16 %v2035
        %v3647 = vunpack.c.h.b16 %v2035
        %v3648 = vunpack.c.l.b16 %v2036
        %v3649 = vunpack.c.h.b16 %v2036
        %v3650 = vunpack.c.l.b16 %v2037
        %v3651 = vunpack.c.h.b16 %v2037
        %v3652 = vunpack.c.l.b16 %v2038
        %v3653 = vunpack.c.h.b16 %v2038
        %v3654 = vunpack.c.l.b16 %v2039
        %v3655 = vunpack.c.h.b16 %v2039
        %v3656 = vunpack.c.l.b16 %v2040
        %v3657 = vunpack.c.h.b16 %v2040
        %v3658 = vunpack.c.l.b16 %v2041
        %v3659 = vunpack.c.h.b16 %v2041
        %v3660 = vunpack.c.l.b16 %v2042
        %v3661 = vunpack.c.h.b16 %v2042
        %v3662 = vunpack.c.l.b16 %v2043
        %v3663 = vunpack.c.h.b16 %v2043
        %v3664 = vunpack.c.l.b16 %v2044
        %v3665 = vunpack.c.h.b16 %v2044
        %v3666 = vunpack.c.l.b16 %v2045
        %v3667 = vunpack.c.h.b16 %v2045
        %v3668 = vunpack.c.l.b16 %v2046
        %v3669 = vunpack.c.h.b16 %v2046
        %v3670 = vunpack.c.l.b16 %v2047
        %v3671 = vunpack.c.h.b16 %v2047
        %v3672 = vunpack.c.l.b16 %v2048
        %v3673 = vunpack.c.h.b16 %v2048
        %v3674 = vunpack.c.l.b16 %v2049
        %v3675 = vunpack.c.h.b16 %v2049
        %v3676 = vunpack.c.l.b16 %v2050
        %v3677 = vunpack.c.h.b16 %v2050
        %v3678 = vunpack.c.l.b16 %v2051
        %v3679 = vunpack.c.h.b16 %v2051
        %v3680 = vunpack.c.l.b16 %v2052
        %v3681 = vunpack.c.h.b16 %v2052
        %v3682 = vunpack.c.l.b16 %v2053
        %v3683 = vunpack.c.h.b16 %v2053
        %v3684 = vunpack.c.l.b16 %v2054
        %v3685 = vunpack.c.h.b16 %v2054
        %v3686 = vunpack.c.l.b16 %v2055
        %v3687 = vunpack.c.h.b16 %v2055
        %v3688 = vunpack.c.l.b16 %v2056
        %v3689 = vunpack.c.h.b16 %v2056
        %v3690 = vunpack.c.l.b16 %v2057
        %v3691 = vunpack.c.h.b16 %v2057
        %v3692 = vunpack.c.l.b16 %v2058
        %v3693 = vunpack.c.h.b16 %v2058
        %v3694 = vunpack.c.l.b16 %v2059
        %v3695 = vunpack.c.h.b16 %v2059
        %v3696 = vunpack.c.l.b16 %v2060
        %v3697 = vunpack.c.h.b16 %v2060
        %v3698 = vunpack.c.l.b16 %v2061
        %v3699 = vunpack.c.h.b16 %v2061
        %v3700 = vunpack.c.l.b16 %v2062
        %v3701 = vunpack.c.h.b16 %v2062
        %v3702 = vunpack.c.l.b16 %v2063
        %v3703 = vunpack.c.h.b16 %v2063
        %v3704 = vunpack.c.l.b16 %v2064
        %v3705 = vunpack.c.h.b16 %v2064
        %v3706 = vunpack.c.l.b16 %v2065
        %v3707 = vunpack.c.h.b16 %v2065
        %v3708 = vunpack.c.l.b16 %v2066
        %v3709 = vunpack.c.h.b16 %v2066
        %v3710 = vunpack.c.l.b16 %v2067
        %v3711 = vunpack.c.h.b16 %v2067
        %v3712 = vunpack.c.l.b16 %v2068
        %v3713 = vunpack.c.h.b16 %v2068
        %v3714 = vunpack.c.l.b16 %v2069
        %v3715 = vunpack.c.h.b16 %v2069
        %v3716 = vunpack.c.l.b16 %v2070
        %v3717 = vunpack.c.h.b16 %v2070
        %v3718 = vunpack.c.l.b16 %v2071
        %v3719 = vunpack.c.h.b16 %v2071
        %v3720 = vunpack.c.l.b16 %v2072
        %v3721 = vunpack.c.h.b16 %v2072
        %v3722 = vunpack.c.l.b16 %v2073
        %v3723 = vunpack.c.h.b16 %v2073
        %v3724 = vunpack.c.l.b16 %v2074
        %v3725 = vunpack.c.h.b16 %v2074
        %v3726 = vunpack.c.l.b16 %v2075
        %v3727 = vunpack.c.h.b16 %v2075
        %v3728 = vunpack.c.l.b16 %v2076
        %v3729 = vunpack.c.h.b16 %v2076
        %v3730 = vunpack.c.l.b16 %v2077
        %v3731 = vunpack.c.h.b16 %v2077
        %v3732 = vunpack.c.l.b16 %v2078
        %v3733 = vunpack.c.h.b16 %v2078
        %v3734 = vunpack.c.l.b16 %v2079
        %v3735 = vunpack.c.h.b16 %v2079
        %v3736 = vunpack.c.l.b16 %v2080
        %v3737 = vunpack.c.h.b16 %v2080
        %v3738 = vunpack.c.l.b16 %v2081
        %v3739 = vunpack.c.h.b16 %v2081
        %v3740 = vunpack.c.l.b16 %v2082
        %v3741 = vunpack.c.h.b16 %v2082
        %v3742 = vunpack.c.l.b16 %v2083
        %v3743 = vunpack.c.h.b16 %v2083
        %v3744 = vunpack.c.l.b16 %v2084
        %v3745 = vunpack.c.h.b16 %v2084
        %v3746 = vunpack.c.l.b16 %v2085
        %v3747 = vunpack.c.h.b16 %v2085
        %v3748 = vunpack.c.l.b16 %v2086
        %v3749 = vunpack.c.h.b16 %v2086
        %v3750 = vunpack.c.l.b16 %v2087
        %v3751 = vunpack.c.h.b16 %v2087
        %v3752 = vunpack.c.l.b16 %v2088
        %v3753 = vunpack.c.h.b16 %v2088
        %v3754 = vunpack.c.l.b16 %v2089
        %v3755 = vunpack.c.h.b16 %v2089
        %v3756 = vunpack.c.l.b16 %v2090
        %v3757 = vunpack.c.h.b16 %v2090
        %v3758 = vunpack.c.l.b16 %v2091
        %v3759 = vunpack.c.h.b16 %v2091
        %v3760 = vunpack.c.l.b16 %v2092
        %v3761 = vunpack.c.h.b16 %v2092
        %v3762 = vunpack.c.l.b16 %v2093
        %v3763 = vunpack.c.h.b16 %v2093
        %v3764 = vunpack.c.l.b16 %v2094
        %v3765 = vunpack.c.h.b16 %v2094
        %v3766 = vunpack.c.l.b16 %v2095
        %v3767 = vunpack.c.h.b16 %v2095
        %v3768 = vunpack.c.l.b16 %v2096
        %v3769 = vunpack.c.h.b16 %v2096
        %v3770 = vunpack.c.l.b16 %v2097
        %v3771 = vunpack.c.h.b16 %v2097
        %v3772 = vunpack.c.l.b16 %v2098
        %v3773 = vunpack.c.h.b16 %v2098
        %v3774 = vunpack.c.l.b16 %v2099
        %v3775 = vunpack.c.h.b16 %v2099
        %v3776 = vunpack.c.l.b16 %v2100
        %v3777 = vunpack.c.h.b16 %v2100
        %v3778 = vunpack.c.l.b16 %v2101
        %v3779 = vunpack.c.h.b16 %v2101
        %v3780 = vunpack.c.l.b16 %v2102
        %v3781 = vunpack.c.h.b16 %v2102
        %v3782 = vunpack.c.l.b16 %v2103
        %v3783 = vunpack.c.h.b16 %v2103
        %v3784 = vunpack.c.l.b16 %v2104
        %v3785 = vunpack.c.h.b16 %v2104
        %v3786 = vunpack.c.l.b16 %v2105
        %v3787 = vunpack.c.h.b16 %v2105
        %v3788 = vunpack.c.l.b16 %v2106
        %v3789 = vunpack.c.h.b16 %v2106
        %v3790 = vunpack.c.l.b16 %v2107
        %v3791 = vunpack.c.h.b16 %v2107
        %v3792 = vunpack.c.l.b16 %v2108
        %v3793 = vunpack.c.h.b16 %v2108
        %v3794 = vunpack.c.l.b16 %v2109
        %v3795 = vunpack.c.h.b16 %v2109
        %v3796 = vunpack.c.l.b16 %v2110
        %v3797 = vunpack.c.h.b16 %v2110
        %v3798 = vunpack.c.l.b16 %v2111
        %v3799 = vunpack.c.h.b16 %v2111
        %v3800 = vunpack.c.l.b16 %v2112
        %v3801 = vunpack.c.h.b16 %v2112
        %v3802 = vunpack.c.l.b16 %v2113
        %v3803 = vunpack.c.h.b16 %v2113
        %v3804 = vunpack.c.l.b16 %v2114
        %v3805 = vunpack.c.h.b16 %v2114
        %v3806 = vunpack.c.l.b16 %v2115
        %v3807 = vunpack.c.h.b16 %v2115
        %v3808 = vunpack.c.l.b16 %v2116
        %v3809 = vunpack.c.h.b16 %v2116
        %v3810 = vunpack.c.l.b16 %v2117
        %v3811 = vunpack.c.h.b16 %v2117
        %v3812 = vunpack.c.l.b16 %v2118
        %v3813 = vunpack.c.h.b16 %v2118
        %v3814 = vunpack.c.l.b16 %v2119
        %v3815 = vunpack.c.h.b16 %v2119
        %v3816 = vunpack.c.l.b16 %v2120
        %v3817 = vunpack.c.h.b16 %v2120
        %v3818 = vunpack.c.l.b16 %v2121
        %v3819 = vunpack.c.h.b16 %v2121
        %v3820 = vunpack.c.l.b16 %v2122
        %v3821 = vunpack.c.h.b16 %v2122
        %v3822 = vunpack.c.l.b16 %v2123
        %v3823 = vunpack.c.h.b16 %v2123
        %v3824 = vunpack.c.l.b16 %v2124
        %v3825 = vunpack.c.h.b16 %v2124
        %v3826 = vunpack.c.l.b16 %v2125
        %v3827 = vunpack.c.h.b16 %v2125
        %v3828 = vunpack.c.l.b16 %v2126
        %v3829 = vunpack.c.h.b16 %v2126
        %v3830 = vunpack.c.l.b16 %v2127
        %v3831 = vunpack.c.h.b16 %v2127
        %v3832 = vunpack.c.l.b16 %v2128
        %v3833 = vunpack.c.h.b16 %v2128
        %v3834 = vunpack.c.l.b16 %v2129
        %v3835 = vunpack.c.h.b16 %v2129
        %v3836 = vunpack.c.l.b16 %v2130
        %v3837 = vunpack.c.h.b16 %v2130
        %v3838 = vunpack.c.l.b16 %v2131
        %v3839 = vunpack.c.h.b16 %v2131
        %v3840 = vunpack.c.l.b16 %v2132
        %v3841 = vunpack.c.h.b16 %v2132
        %v3842 = vunpack.c.l.b16 %v2133
        %v3843 = vunpack.c.h.b16 %v2133
        %v3844 = vunpack.c.l.b16 %v2134
        %v3845 = vunpack.c.h.b16 %v2134
        %v3846 = vunpack.c.l.b16 %v2135
        %v3847 = vunpack.c.h.b16 %v2135
        %v3848 = vunpack.c.l.b16 %v2136
        %v3849 = vunpack.c.h.b16 %v2136
        %v3850 = vunpack.c.l.b16 %v2137
        %v3851 = vunpack.c.h.b16 %v2137
        %v3852 = vunpack.c.l.b16 %v2138
        %v3853 = vunpack.c.h.b16 %v2138
        %v3854 = vunpack.c.l.b16 %v2139
        %v3855 = vunpack.c.h.b16 %v2139
        %v3856 = vunpack.c.l.b16 %v2140
        %v3857 = vunpack.c.h.b16 %v2140
        %v3858 = vunpack.c.l.b16 %v2141
        %v3859 = vunpack.c.h.b16 %v2141
        %v3860 = vunpack.c.l.b16 %v2142
        %v3861 = vunpack.c.h.b16 %v2142
        %v3862 = vunpack.c.l.b16 %v2143
        %v3863 = vunpack.c.h.b16 %v2143
        %v3864 = vunpack.c.l.b16 %v2144
        %v3865 = vunpack.c.h.b16 %v2144
        %v3866 = vunpack.c.l.b16 %v2145
        %v3867 = vunpack.c.h.b16 %v2145
        %v3868 = vunpack.c.l.b16 %v2146
        %v3869 = vunpack.c.h.b16 %v2146
        %v3870 = vunpack.c.l.b16 %v2147
        %v3871 = vunpack.c.h.b16 %v2147
        %v3872 = vunpack.c.l.b16 %v2148
        %v3873 = vunpack.c.h.b16 %v2148
        %v3874 = vunpack.c.l.b16 %v2149
        %v3875 = vunpack.c.h.b16 %v2149
        %v3876 = vunpack.c.l.b16 %v2150
        %v3877 = vunpack.c.h.b16 %v2150
        %v3878 = vunpack.c.l.b16 %v2151
        %v3879 = vunpack.c.h.b16 %v2151
        %v3880 = vunpack.c.l.b16 %v2152
        %v3881 = vunpack.c.h.b16 %v2152
        %v3882 = vunpack.c.l.b16 %v2153
        %v3883 = vunpack.c.h.b16 %v2153
        %v3884 = vunpack.c.l.b16 %v2154
        %v3885 = vunpack.c.h.b16 %v2154
        %v3886 = vunpack.c.l.b16 %v2155
        %v3887 = vunpack.c.h.b16 %v2155
        %v3888 = vunpack.c.l.b16 %v2156
        %v3889 = vunpack.c.h.b16 %v2156
        %v3890 = vunpack.c.l.b16 %v2157
        %v3891 = vunpack.c.h.b16 %v2157
        %v3892 = vunpack.c.l.b16 %v2158
        %v3893 = vunpack.c.h.b16 %v2158
        %v3894 = vunpack.c.l.b16 %v2159
        %v3895 = vunpack.c.h.b16 %v2159
        %v3896 = vunpack.c.l.b16 %v2160
        %v3897 = vunpack.c.h.b16 %v2160
        %v3898 = vunpack.c.l.b16 %v2161
        %v3899 = vunpack.c.h.b16 %v2161
        %v3900 = vunpack.c.l.b16 %v2162
        %v3901 = vunpack.c.h.b16 %v2162
        %v3902 = vunpack.c.l.b16 %v2163
        %v3903 = vunpack.c.h.b16 %v2163
        %v3904 = vunpack.c.l.b16 %v2164
        %v3905 = vunpack.c.h.b16 %v2164
        %v3906 = vunpack.c.l.b16 %v2165
        %v3907 = vunpack.c.h.b16 %v2165
        %v3908 = vunpack.c.l.b16 %v2166
        %v3909 = vunpack.c.h.b16 %v2166
        %v3910 = vunpack.c.l.b16 %v2167
        %v3911 = vunpack.c.h.b16 %v2167
        %v3912 = vunpack.c.l.b16 %v2168
        %v3913 = vunpack.c.h.b16 %v2168
        %v3914 = vunpack.c.l.b16 %v2169
        %v3915 = vunpack.c.h.b16 %v2169
        %v3916 = vunpack.c.l.b16 %v2170
        %v3917 = vunpack.c.h.b16 %v2170
        %v3918 = vunpack.c.l.b16 %v2171
        %v3919 = vunpack.c.h.b16 %v2171
        %v3920 = vunpack.c.l.b16 %v2172
        %v3921 = vunpack.c.h.b16 %v2172
        %v3922 = vunpack.c.l.b16 %v2173
        %v3923 = vunpack.c.h.b16 %v2173
        %v3924 = vunpack.c.l.b16 %v2174
        %v3925 = vunpack.c.h.b16 %v2174
        %v3926 = vunpack.c.l.b16 %v2175
        %v3927 = vunpack.c.h.b16 %v2175
        %v3928 = vunpack.c.l.b16 %v2176
        %v3929 = vunpack.c.h.b16 %v2176
        %v3930 = vunpack.c.l.b16 %v2177
        %v3931 = vunpack.c.h.b16 %v2177
        %v3932 = vunpack.c.l.b16 %v2178
        %v3933 = vunpack.c.h.b16 %v2178
        %v3934 = vunpack.c.l.b16 %v2179
        %v3935 = vunpack.c.h.b16 %v2179
        %v3936 = vunpack.c.l.b16 %v2180
        %v3937 = vunpack.c.h.b16 %v2180
        %v3938 = vunpack.c.l.b16 %v2181
        %v3939 = vunpack.c.h.b16 %v2181
        %v3940 = vunpack.c.l.b16 %v2182
        %v3941 = vunpack.c.h.b16 %v2182
        %v3942 = vunpack.c.l.b16 %v2183
        %v3943 = vunpack.c.h.b16 %v2183
        %v3944 = vunpack.c.l.b16 %v2184
        %v3945 = vunpack.c.h.b16 %v2184
        %v3946 = vunpack.c.l.b16 %v2185
        %v3947 = vunpack.c.h.b16 %v2185
        %v3948 = vunpack.c.l.b16 %v2186
        %v3949 = vunpack.c.h.b16 %v2186
        %v3950 = vunpack.c.l.b16 %v2187
        %v3951 = vunpack.c.h.b16 %v2187
        %v3952 = vunpack.c.l.b16 %v2188
        %v3953 = vunpack.c.h.b16 %v2188
        %v3954 = vunpack.c.l.b16 %v2189
        %v3955 = vunpack.c.h.b16 %v2189
        %v3956 = vunpack.c.l.b16 %v2190
        %v3957 = vunpack.c.h.b16 %v2190
        %v3958 = vunpack.c.l.b16 %v2191
        %v3959 = vunpack.c.h.b16 %v2191
        %v3960 = vunpack.c.l.b16 %v2192
        %v3961 = vunpack.c.h.b16 %v2192
        %v3962 = vunpack.c.l.b16 %v2193
        %v3963 = vunpack.c.h.b16 %v2193
        %v3964 = vunpack.c.l.b16 %v2194
        %v3965 = vunpack.c.h.b16 %v2194
        %v3966 = vunpack.c.l.b16 %v2195
        %v3967 = vunpack.c.h.b16 %v2195
        %v3968 = vunpack.c.l.b16 %v2196
        %v3969 = vunpack.c.h.b16 %v2196
        %v3970 = vunpack.c.l.b16 %v2197
        %v3971 = vunpack.c.h.b16 %v2197
        %v3972 = vunpack.c.l.b16 %v2198
        %v3973 = vunpack.c.h.b16 %v2198
        %v3974 = vunpack.c.l.b16 %v2199
        %v3975 = vunpack.c.h.b16 %v2199
        %v3976 = vunpack.c.l.b16 %v2200
        %v3977 = vunpack.c.h.b16 %v2200
        %v3978 = vunpack.c.l.b16 %v2201
        %v3979 = vunpack.c.h.b16 %v2201
        %v3980 = vunpack.c.l.b16 %v2202
        %v3981 = vunpack.c.h.b16 %v2202
        %v3982 = vunpack.c.l.b16 %v2203
        %v3983 = vunpack.c.h.b16 %v2203
        %v3984 = vunpack.c.l.b16 %v2204
        %v3985 = vunpack.c.h.b16 %v2204
        %v3986 = vunpack.c.l.b16 %v2205
        %v3987 = vunpack.c.h.b16 %v2205
        %v3988 = vunpack.c.l.b16 %v2206
        %v3989 = vunpack.c.h.b16 %v2206
        %v3990 = vunpack.c.l.b16 %v2207
        %v3991 = vunpack.c.h.b16 %v2207
        %v3992 = vunpack.c.l.b16 %v2208
        %v3993 = vunpack.c.h.b16 %v2208
        %v3994 = vunpack.c.l.b16 %v2209
        %v3995 = vunpack.c.h.b16 %v2209
        %v3996 = vunpack.c.l.b16 %v2210
        %v3997 = vunpack.c.h.b16 %v2210
        %v3998 = vunpack.c.l.b16 %v2211
        %v3999 = vunpack.c.h.b16 %v2211
        %v4000 = vunpack.c.l.b16 %v2212
        %v4001 = vunpack.c.h.b16 %v2212
        %v4002 = vunpack.c.l.b16 %v2213
        %v4003 = vunpack.c.h.b16 %v2213
        %v4004 = vunpack.c.l.b16 %v2214
        %v4005 = vunpack.c.h.b16 %v2214
        %v4006 = vunpack.c.l.b16 %v2215
        %v4007 = vunpack.c.h.b16 %v2215
        %v4008 = vunpack.c.l.b16 %v2216
        %v4009 = vunpack.c.h.b16 %v2216
        %v4010 = vunpack.c.l.b16 %v2217
        %v4011 = vunpack.c.h.b16 %v2217
        %v4012 = vunpack.c.l.b16 %v2218
        %v4013 = vunpack.c.h.b16 %v2218
        %v4014 = vunpack.c.l.b16 %v2219
        %v4015 = vunpack.c.h.b16 %v2219
        %v4016 = vunpack.c.l.b16 %v2220
        %v4017 = vunpack.c.h.b16 %v2220
        %v4018 = vunpack.c.l.b16 %v2221
        %v4019 = vunpack.c.h.b16 %v2221
        %v4020 = vunpack.c.l.b16 %v2222
        %v4021 = vunpack.c.h.b16 %v2222
        %v4022 = vunpack.c.l.b16 %v2223
        %v4023 = vunpack.c.h.b16 %v2223
        %v4024 = vunpack.c.l.b16 %v2224
        %v4025 = vunpack.c.h.b16 %v2224
        %v4026 = vunpack.c.l.b16 %v2225
        %v4027 = vunpack.c.h.b16 %v2225
        %v4028 = vunpack.c.l.b16 %v2226
        %v4029 = vunpack.c.h.b16 %v2226
        %v4030 = vunpack.c.l.b16 %v2227
        %v4031 = vunpack.c.h.b16 %v2227
        %v4032 = vunpack.c.l.b16 %v2228
        %v4033 = vunpack.c.h.b16 %v2228
        %v4034 = vunpack.c.l.b16 %v2229
        %v4035 = vunpack.c.h.b16 %v2229
        %v4036 = vunpack.c.l.b16 %v2230
        %v4037 = vunpack.c.h.b16 %v2230
        %v4038 = vunpack.c.l.b16 %v2231
        %v4039 = vunpack.c.h.b16 %v2231
        %v4040 = vunpack.c.l.b16 %v2232
        %v4041 = vunpack.c.h.b16 %v2232
        %v4042 = vunpack.c.l.b16 %v2233
        %v4043 = vunpack.c.h.b16 %v2233
        %v4044 = vunpack.c.l.b16 %v2234
        %v4045 = vunpack.c.h.b16 %v2234
        %v4046 = vpack.c.b16 %v2896, %v2894
        %v4047 = vpack.c.b16 %v2897, %v2895
        %v4048 = vpack.c.b16 %v2900, %v2898
        %v4049 = vpack.c.b16 %v2901, %v2899
        %v4050 = vpack.c.b16 %v2904, %v2902
        %v4051 = vpack.c.b16 %v2905, %v2903
        %v4052 = vpack.c.b16 %v2908, %v2906
        %v4053 = vpack.c.b16 %v2909, %v2907
        %v4054 = vpack.c.b16 %v2912, %v2910
        %v4055 = vpack.c.b16 %v2913, %v2911
        %v4056 = vpack.c.b16 %v2916, %v2914
        %v4057 = vpack.c.b16 %v2917, %v2915
        %v4058 = vpack.c.b16 %v2920, %v2918
        %v4059 = vpack.c.b16 %v2921, %v2919
        %v4060 = vpack.c.b16 %v2924, %v2922
        %v4061 = vpack.c.b16 %v2925, %v2923
        %v4062 = vpack.c.b16 %v2928, %v2926
        %v4063 = vpack.c.b16 %v2929, %v2927
        %v4064 = vpack.c.b16 %v2932, %v2930
        %v4065 = vpack.c.b16 %v2933, %v2931
        %v4066 = vpack.c.b16 %v2936, %v2934
        %v4067 = vpack.c.b16 %v2937, %v2935
        %v4068 = vpack.c.b16 %v2940, %v2938
        %v4069 = vpack.c.b16 %v2941, %v2939
        %v4070 = vpack.c.b16 %v2944, %v2942
        %v4071 = vpack.c.b16 %v2945, %v2943
        %v4072 = vpack.c.b16 %v2948, %v2946
        %v4073 = vpack.c.b16 %v2949, %v2947
        %v4074 = vpack.c.b16 %v2952, %v2950
        %v4075 = vpack.c.b16 %v2953, %v2951
        %v4076 = vpack.c.b16 %v2956, %v2954
        %v4077 = vpack.c.b16 %v2957, %v2955
        %v4078 = vpack.c.b16 %v2960, %v2958
        %v4079 = vpack.c.b16 %v2961, %v2959
        %v4080 = vpack.c.b16 %v2964, %v2962
        %v4081 = vpack.c.b16 %v2965, %v2963
        %v4082 = vpack.c.b16 %v2968, %v2966
        %v4083 = vpack.c.b16 %v2969, %v2967
        %v4084 = vpack.c.b16 %v2972, %v2970
        %v4085 = vpack.c.b16 %v2973, %v2971
        %v4086 = vpack.c.b16 %v2976, %v2974
        %v4087 = vpack.c.b16 %v2977, %v2975
        %v4088 = vpack.c.b16 %v2980, %v2978
        %v4089 = vpack.c.b16 %v2981, %v2979
        %v4090 = vpack.c.b16 %v2984, %v2982
        %v4091 = vpack.c.b16 %v2985, %v2983
        %v4092 = vpack.c.b16 %v2988, %v2986
        %v4093 = vpack.c.b16 %v2989, %v2987
        %v4094 = vpack.c.b16 %v2992, %v2990
        %v4095 = vpack.c.b16 %v2993, %v2991
        %v4096 = vpack.c.b16 %v2996, %v2994
        %v4097 = vpack.c.b16 %v2997, %v2995
        %v4098 = vpack.c.b16 %v3000, %v2998
        %v4099 = vpack.c.b16 %v3001, %v2999
        %v4100 = vpack.c.b16 %v3004, %v3002
        %v4101 = vpack.c.b16 %v3005, %v3003
        %v4102 = vpack.c.b16 %v3008, %v3006
        %v4103 = vpack.c.b16 %v3009, %v3007
        %v4104 = vpack.c.b16 %v3012, %v3010
        %v4105 = vpack.c.b16 %v3013, %v3011
        %v4106 = vpack.c.b16 %v3016, %v3014
        %v4107 = vpack.c.b16 %v3017, %v3015
        %v4108 = vpack.c.b16 %v3020, %v3018
        %v4109 = vpack.c.b16 %v3021, %v3019
        %v4110 = vpack.c.b16 %v3024, %v3022
        %v4111 = vpack.c.b16 %v3025, %v3023
        %v4112 = vpack.c.b16 %v3028, %v3026
        %v4113 = vpack.c.b16 %v3029, %v3027
        %v4114 = vpack.c.b16 %v3032, %v3030
        %v4115 = vpack.c.b16 %v3033, %v3031
        %v4116 = vpack.c.b16 %v3036, %v3034
        %v4117 = vpack.c.b16 %v3037, %v3035
        %v4118 = vpack.c.b16 %v3040, %v3038
        %v4119 = vpack.c.b16 %v3041, %v3039
        %v4120 = vpack.c.b16 %v3044, %v3042
        %v4121 = vpack.c.b16 %v3045, %v3043
        %v4122 = vpack.c.b16 %v3048, %v3046
        %v4123 = vpack.c.b16 %v3049, %v3047
        %v4124 = vpack.c.b16 %v3052, %v3050
        %v4125 = vpack.c.b16 %v3053, %v3051
        %v4126 = vpack.c.b16 %v3056, %v3054
        %v4127 = vpack.c.b16 %v3057, %v3055
        %v4128 = vpack.c.b16 %v3060, %v3058
        %v4129 = vpack.c.b16 %v3061, %v3059
        %v4130 = vpack.c.b16 %v3064, %v3062
        %v4131 = vpack.c.b16 %v3065, %v3063
        %v4132 = vpack.c.b16 %v3068, %v3066
        %v4133 = vpack.c.b16 %v3069, %v3067
        %v4134 = vpack.c.b16 %v3072, %v3070
        %v4135 = vpack.c.b16 %v3073, %v3071
        %v4136 = vpack.c.b16 %v3076, %v3074
        %v4137 = vpack.c.b16 %v3077, %v3075
        %v4138 = vpack.c.b16 %v3080, %v3078
        %v4139 = vpack.c.b16 %v3081, %v3079
        %v4140 = vpack.c.b16 %v3084, %v3082
        %v4141 = vpack.c.b16 %v3085, %v3083
        %v4142 = vpack.c.b16 %v3088, %v3086
        %v4143 = vpack.c.b16 %v3089, %v3087
        %v4144 = vpack.c.b16 %v3092, %v3090
        %v4145 = vpack.c.b16 %v3093, %v3091
        %v4146 = vpack.c.b16 %v3096, %v3094
        %v4147 = vpack.c.b16 %v3097, %v3095
        %v4148 = vpack.c.b16 %v3100, %v3098
        %v4149 = vpack.c.b16 %v3101, %v3099
        %v4150 = vpack.c.b16 %v3104, %v3102
        %v4151 = vpack.c.b16 %v3105, %v3103
        %v4152 = vpack.c.b16 %v3108, %v3106
        %v4153 = vpack.c.b16 %v3109, %v3107
        %v4154 = vpack.c.b16 %v3112, %v3110
        %v4155 = vpack.c.b16 %v3113, %v3111
        %v4156 = vpack.c.b16 %v3116, %v3114
        %v4157 = vpack.c.b16 %v3117, %v3115
        %v4158 = vpack.c.b16 %v3120, %v3118
        %v4159 = vpack.c.b16 %v3121, %v3119
        %v4160 = vpack.c.b16 %v3124, %v3122
        %v4161 = vpack.c.b16 %v3125, %v3123
        %v4162 = vpack.c.b16 %v3128, %v3126
        %v4163 = vpack.c.b16 %v3129, %v3127
        %v4164 = vpack.c.b16 %v3132, %v3130
        %v4165 = vpack.c.b16 %v3133, %v3131
        %v4166 = vpack.c.b16 %v3136, %v3134
        %v4167 = vpack.c.b16 %v3137, %v3135
        %v4168 = vpack.c.b16 %v3140, %v3138
        %v4169 = vpack.c.b16 %v3141, %v3139
        %v4170 = vpack.c.b16 %v3144, %v3142
        %v4171 = vpack.c.b16 %v3145, %v3143
        %v4172 = vpack.c.b16 %v3148, %v3146
        %v4173 = vpack.c.b16 %v3149, %v3147
        %v4174 = vpack.c.b16 %v3152, %v3150
        %v4175 = vpack.c.b16 %v3153, %v3151
        %v4176 = vpack.c.b16 %v3156, %v3154
        %v4177 = vpack.c.b16 %v3157, %v3155
        %v4178 = vpack.c.b16 %v3160, %v3158
        %v4179 = vpack.c.b16 %v3161, %v3159
        %v4180 = vpack.c.b16 %v3164, %v3162
        %v4181 = vpack.c.b16 %v3165, %v3163
        %v4182 = vpack.c.b16 %v3168, %v3166
        %v4183 = vpack.c.b16 %v3169, %v3167
        %v4184 = vpack.c.b16 %v3172, %v3170
        %v4185 = vpack.c.b16 %v3173, %v3171
        %v4186 = vpack.c.b16 %v3176, %v3174
        %v4187 = vpack.c.b16 %v3177, %v3175
        %v4188 = vpack.c.b16 %v3180, %v3178
        %v4189 = vpack.c.b16 %v3181, %v3179
        %v4190 = vpack.c.b16 %v3184, %v3182
        %v4191 = vpack.c.b16 %v3185, %v3183
        %v4192 = vpack.c.b16 %v3188, %v3186
        %v4193 = vpack.c.b16 %v3189, %v3187
        %v4194 = vpack.c.b16 %v3192, %v3190
        %v4195 = vpack.c.b16 %v3193, %v3191
        %v4196 = vpack.c.b16 %v3196, %v3194
        %v4197 = vpack.c.b16 %v3197, %v3195
        %v4198 = vpack.c.b16 %v3200, %v3198
        %v4199 = vpack.c.b16 %v3201, %v3199
        %v4200 = vpack.c.b16 %v3204, %v3202
        %v4201 = vpack.c.b16 %v3205, %v3203
        %v4202 = vpack.c.b16 %v3208, %v3206
        %v4203 = vpack.c.b16 %v3209, %v3207
        %v4204 = vpack.c.b16 %v3212, %v3210
        %v4205 = vpack.c.b16 %v3213, %v3211
        %v4206 = vpack.c.b16 %v3216, %v3214
        %v4207 = vpack.c.b16 %v3217, %v3215
        %v4208 = vpack.c.b16 %v3220, %v3218
        %v4209 = vpack.c.b16 %v3221, %v3219
        %v4210 = vpack.c.b16 %v3224, %v3222
        %v4211 = vpack.c.b16 %v3225, %v3223
        %v4212 = vpack.c.b16 %v3228, %v3226
        %v4213 = vpack.c.b16 %v3229, %v3227
        %v4214 = vpack.c.b16 %v3232, %v3230
        %v4215 = vpack.c.b16 %v3233, %v3231
        %v4216 = vpack.c.b16 %v3236, %v3234
        %v4217 = vpack.c.b16 %v3237, %v3235
        %v4218 = vpack.c.b16 %v3240, %v3238
        %v4219 = vpack.c.b16 %v3241, %v3239
        %v4220 = vpack.c.b16 %v3244, %v3242
        %v4221 = vpack.c.b16 %v3245, %v3243
        %v4222 = vpack.c.b16 %v3248, %v3246
        %v4223 = vpack.c.b16 %v3249, %v3247
        %v4224 = vpack.c.b16 %v3252, %v3250
        %v4225 = vpack.c.b16 %v3253, %v3251
        %v4226 = vpack.c.b16 %v3256, %v3254
        %v4227 = vpack.c.b16 %v3257, %v3255
        %v4228 = vpack.c.b16 %v3260, %v3258
        %v4229 = vpack.c.b16 %v3261, %v3259
        %v4230 = vpack.c.b16 %v3264, %v3262
        %v4231 = vpack.c.b16 %v3265, %v3263
        %v4232 = vpack.c.b16 %v3268, %v3266
        %v4233 = vpack.c.b16 %v3269, %v3267
        %v4234 = vpack.c.b16 %v3272, %v3270
        %v4235 = vpack.c.b16 %v3273, %v3271
        %v4236 = vpack.c.b16 %v3276, %v3274
        %v4237 = vpack.c.b16 %v3277, %v3275
        %v4238 = vpack.c.b16 %v3280, %v3278
        %v4239 = vpack.c.b16 %v3281, %v3279
        %v4240 = vpack.c.b16 %v3284, %v3282
        %v4241 = vpack.c.b16 %v3285, %v3283
        %v4242 = vpack.c.b16 %v3288, %v3286
        %v4243 = vpack.c.b16 %v3289, %v3287
        %v4244 = vpack.c.b16 %v3292, %v3290
        %v4245 = vpack.c.b16 %v3293, %v3291
        %v4246 = vpack.c.b16 %v3296, %v3294
        %v4247 = vpack.c.b16 %v3297, %v3295
        %v4248 = vpack.c.b16 %v3300, %v3298
        %v4249 = vpack.c.b16 %v3301, %v3299
        %v4250 = vpack.c.b16 %v3304, %v3302
        %v4251 = vpack.c.b16 %v3305, %v3303
        %v4252 = vpack.c.b16 %v3308, %v3306
        %v4253 = vpack.c.b16 %v3309, %v3307
        %v4254 = vpack.c.b16 %v3312, %v3310
        %v4255 = vpack.c.b16 %v3313, %v3311
        %v4256 = vpack.c.b16 %v3316, %v3314
        %v4257 = vpack.c.b16 %v3317, %v3315
        %v4258 = vpack.c.b16 %v3320, %v3318
        %v4259 = vpack.c.b16 %v3321, %v3319
        %v4260 = vpack.c.b16 %v3324, %v3322
        %v4261 = vpack.c.b16 %v3325, %v3323
        %v4262 = vpack.c.b16 %v3328, %v3326
        %v4263 = vpack.c.b16 %v3329, %v3327
        %v4264 = vpack.c.b16 %v3332, %v3330
        %v4265 = vpack.c.b16 %v3333, %v3331
        %v4266 = vpack.c.b16 %v3336, %v3334
        %v4267 = vpack.c.b16 %v3337, %v3335
        %v4268 = vpack.c.b16 %v3340, %v3338
        %v4269 = vpack.c.b16 %v3341, %v3339
        %v4270 = vpack.c.b16 %v3344, %v3342
        %v4271 = vpack.c.b16 %v3345, %v3343
        %v4272 = vpack.c.b16 %v3348, %v3346
        %v4273 = vpack.c.b16 %v3349, %v3347
        %v4274 = vpack.c.b16 %v3352, %v3350
        %v4275 = vpack.c.b16 %v3353, %v3351
        %v4276 = vpack.c.b16 %v3356, %v3354
        %v4277 = vpack.c.b16 %v3357, %v3355
        %v4278 = vpack.c.b16 %v3360, %v3358
        %v4279 = vpack.c.b16 %v3361, %v3359
        %v4280 = vpack.c.b16 %v3364, %v3362
        %v4281 = vpack.c.b16 %v3365, %v3363
        %v4282 = vpack.c.b16 %v3368, %v3366
        %v4283 = vpack.c.b16 %v3369, %v3367
        %v4284 = vpack.c.b16 %v3372, %v3370
        %v4285 = vpack.c.b16 %v3373, %v3371
        %v4286 = vpack.c.b16 %v3376, %v3374
        %v4287 = vpack.c.b16 %v3377, %v3375
        %v4288 = vpack.c.b16 %v3380, %v3378
        %v4289 = vpack.c.b16 %v3381, %v3379
        %v4290 = vpack.c.b16 %v3384, %v3382
        %v4291 = vpack.c.b16 %v3385, %v3383
        %v4292 = vpack.c.b16 %v3388, %v3386
        %v4293 = vpack.c.b16 %v3389, %v3387
        %v4294 = vpack.c.b16 %v3392, %v3390
        %v4295 = vpack.c.b16 %v3393, %v3391
        %v4296 = vpack.c.b16 %v3396, %v3394
        %v4297 = vpack.c.b16 %v3397, %v3395
        %v4298 = vpack.c.b16 %v3400, %v3398
        %v4299 = vpack.c.b16 %v3401, %v3399
        %v4300 = vpack.c.b16 %v3404, %v3402
        %v4301 = vpack.c.b16 %v3405, %v3403
        %v4302 = vpack.c.b16 %v3408, %v3406
        %v4303 = vpack.c.b16 %v3409, %v3407
        %v4304 = vpack.c.b16 %v3412, %v3410
        %v4305 = vpack.c.b16 %v3413, %v3411
        %v4306 = vpack.c.b16 %v3416, %v3414
        %v4307 = vpack.c.b16 %v3417, %v3415
        %v4308 = vpack.c.b16 %v3420, %v3418
        %v4309 = vpack.c.b16 %v3421, %v3419
        %v4310 = vpack.c.b16 %v3424, %v3422
        %v4311 = vpack.c.b16 %v3425, %v3423
        %v4312 = vpack.c.b16 %v3428, %v3426
        %v4313 = vpack.c.b16 %v3429, %v3427
        %v4314 = vpack.c.b16 %v3432, %v3430
        %v4315 = vpack.c.b16 %v3433, %v3431
        %v4316 = vpack.c.b16 %v3436, %v3434
        %v4317 = vpack.c.b16 %v3437, %v3435
        %v4318 = vpack.c.b16 %v3440, %v3438
        %v4319 = vpack.c.b16 %v3441, %v3439
        %v4320 = vpack.c.b16 %v3444, %v3442
        %v4321 = vpack.c.b16 %v3445, %v3443
        %v4322 = vpack.c.b16 %v3448, %v3446
        %v4323 = vpack.c.b16 %v3449, %v3447
        %v4324 = vpack.c.b16 %v3452, %v3450
        %v4325 = vpack.c.b16 %v3453, %v3451
        %v4326 = vpack.c.b16 %v3456, %v3454
        %v4327 = vpack.c.b16 %v3457, %v3455
        %v4328 = vpack.c.b16 %v3460, %v3458
        %v4329 = vpack.c.b16 %v3461, %v3459
        %v4330 = vpack.c.b16 %v3464, %v3462
        %v4331 = vpack.c.b16 %v3465, %v3463
        %v4332 = vpack.c.b16 %v3468, %v3466
        %v4333 = vpack.c.b16 %v3469, %v3467
        %v4334 = vpack.c.b16 %v3472, %v3470
        %v4335 = vpack.c.b16 %v3473, %v3471
        %v4336 = vpack.c.b16 %v3476, %v3474
        %v4337 = vpack.c.b16 %v3477, %v3475
        %v4338 = vpack.c.b16 %v3480, %v3478
        %v4339 = vpack.c.b16 %v3481, %v3479
        %v4340 = vpack.c.b16 %v3484, %v3482
        %v4341 = vpack.c.b16 %v3485, %v3483
        %v4342 = vpack.c.b16 %v3488, %v3486
        %v4343 = vpack.c.b16 %v3489, %v3487
        %v4344 = vpack.c.b16 %v3492, %v3490
        %v4345 = vpack.c.b16 %v3493, %v3491
        %v4346 = vpack.c.b16 %v3496, %v3494
        %v4347 = vpack.c.b16 %v3497, %v3495
        %v4348 = vpack.c.b16 %v3500, %v3498
        %v4349 = vpack.c.b16 %v3501, %v3499
        %v4350 = vpack.c.b16 %v3504, %v3502
        %v4351 = vpack.c.b16 %v3505, %v3503
        %v4352 = vpack.c.b16 %v3508, %v3506
        %v4353 = vpack.c.b16 %v3509, %v3507
        %v4354 = vpack.c.b16 %v3512, %v3510
        %v4355 = vpack.c.b16 %v3513, %v3511
        %v4356 = vpack.c.b16 %v3516, %v3514
        %v4357 = vpack.c.b16 %v3517, %v3515
        %v4358 = vpack.c.b16 %v3520, %v3518
        %v4359 = vpack.c.b16 %v3521, %v3519
        %v4360 = vpack.c.b16 %v3524, %v3522
        %v4361 = vpack.c.b16 %v3525, %v3523
        %v4362 = vpack.c.b16 %v3528, %v3526
        %v4363 = vpack.c.b16 %v3529, %v3527
        %v4364 = vpack.c.b16 %v3532, %v3530
        %v4365 = vpack.c.b16 %v3533, %v3531
        %v4366 = vpack.c.b16 %v3536, %v3534
        %v4367 = vpack.c.b16 %v3537, %v3535
        %v4368 = vpack.c.b16 %v3540, %v3538
        %v4369 = vpack.c.b16 %v3541, %v3539
        %v4370 = vpack.c.b16 %v3544, %v3542
        %v4371 = vpack.c.b16 %v3545, %v3543
        %v4372 = vpack.c.b16 %v3548, %v3546
        %v4373 = vpack.c.b16 %v3549, %v3547
        %v4374 = vpack.c.b16 %v3552, %v3550
        %v4375 = vpack.c.b16 %v3553, %v3551
        %v4376 = vpack.c.b16 %v3556, %v3554
        %v4377 = vpack.c.b16 %v3557, %v3555
        %v4378 = vpack.c.b16 %v3560, %v3558
        %v4379 = vpack.c.b16 %v3561, %v3559
        %v4380 = vpack.c.b16 %v3564, %v3562
        %v4381 = vpack.c.b16 %v3565, %v3563
        %v4382 = vpack.c.b16 %v3568, %v3566
        %v4383 = vpack.c.b16 %v3569, %v3567
        %v4384 = vpack.c.b16 %v3572, %v3570
        %v4385 = vpack.c.b16 %v3573, %v3571
        %v4386 = vpack.c.b16 %v3576, %v3574
        %v4387 = vpack.c.b16 %v3577, %v3575
        %v4388 = vpack.c.b16 %v3580, %v3578
        %v4389 = vpack.c.b16 %v3581, %v3579
        %v4390 = vpack.c.b16 %v3584, %v3582
        %v4391 = vpack.c.b16 %v3585, %v3583
        %v4392 = vpack.c.b16 %v3588, %v3586
        %v4393 = vpack.c.b16 %v3589, %v3587
        %v4394 = vpack.c.b16 %v3592, %v3590
        %v4395 = vpack.c.b16 %v3593, %v3591
        %v4396 = vpack.c.b16 %v3596, %v3594
        %v4397 = vpack.c.b16 %v3597, %v3595
        %v4398 = vpack.c.b16 %v3600, %v3598
        %v4399 = vpack.c.b16 %v3601, %v3599
        %v4400 = vpack.c.b16 %v3604, %v3602
        %v4401 = vpack.c.b16 %v3605, %v3603
        %v4402 = vpack.c.b16 %v3608, %v3606
        %v4403 = vpack.c.b16 %v3609, %v3607
        %v4404 = vpack.c.b16 %v3612, %v3610
        %v4405 = vpack.c.b16 %v3613, %v3611
        %v4406 = vpack.c.b16 %v3616, %v3614
        %v4407 = vpack.c.b16 %v3617, %v3615
        %v4408 = vpack.c.b16 %v3620, %v3618
        %v4409 = vpack.c.b16 %v3621, %v3619
        %v4410 = vpack.c.b16 %v3624, %v3622
        %v4411 = vpack.c.b16 %v3625, %v3623
        %v4412 = vpack.c.b16 %v3628, %v3626
        %v4413 = vpack.c.b16 %v3629, %v3627
        %v4414 = vpack.c.b16 %v3632, %v3630
        %v4415 = vpack.c.b16 %v3633, %v3631
        %v4416 = vpack.c.b16 %v3636, %v3634
        %v4417 = vpack.c.b16 %v3637, %v3635
        %v4418 = vpack.c.b16 %v3640, %v3638
        %v4419 = vpack.c.b16 %v3641, %v3639
        %v4420 = vpack.c.b16 %v3644, %v3642
        %v4421 = vpack.c.b16 %v3645, %v3643
        %v4422 = vpack.c.b16 %v3648, %v3646
        %v4423 = vpack.c.b16 %v3649, %v3647
        %v4424 = vpack.c.b16 %v3652, %v3650
        %v4425 = vpack.c.b16 %v3653, %v3651
        %v4426 = vpack.c.b16 %v3656, %v3654
        %v4427 = vpack.c.b16 %v3657, %v3655
        %v4428 = vpack.c.b16 %v3660, %v3658
        %v4429 = vpack.c.b16 %v3661, %v3659
        %v4430 = vpack.c.b16 %v3664, %v3662
        %v4431 = vpack.c.b16 %v3665, %v3663
        %v4432 = vpack.c.b16 %v3668, %v3666
        %v4433 = vpack.c.b16 %v3669, %v3667
        %v4434 = vpack.c.b16 %v3672, %v3670
        %v4435 = vpack.c.b16 %v3673, %v3671
        %v4436 = vpack.c.b16 %v3676, %v3674
        %v4437 = vpack.c.b16 %v3677, %v3675
        %v4438 = vpack.c.b16 %v3680, %v3678
        %v4439 = vpack.c.b16 %v3681, %v3679
        %v4440 = vpack.c.b16 %v3684, %v3682
        %v4441 = vpack.c.b16 %v3685, %v3683
        %v4442 = vpack.c.b16 %v3688, %v3686
        %v4443 = vpack.c.b16 %v3689, %v3687
        %v4444 = vpack.c.b16 %v3692, %v3690
        %v4445 = vpack.c.b16 %v3693, %v3691
        %v4446 = vpack.c.b16 %v3696, %v3694
        %v4447 = vpack.c.b16 %v3697, %v3695
        %v4448 = vpack.c.b16 %v3700, %v3698
        %v4449 = vpack.c.b16 %v3701, %v3699
        %v4450 = vpack.c.b16 %v3704, %v3702
        %v4451 = vpack.c.b16 %v3705, %v3703
        %v4452 = vpack.c.b16 %v3708, %v3706
        %v4453 = vpack.c.b16 %v3709, %v3707
        %v4454 = vpack.c.b16 %v3712, %v3710
        %v4455 = vpack.c.b16 %v3713, %v3711
        %v4456 = vpack.c.b16 %v3716, %v3714
        %v4457 = vpack.c.b16 %v3717, %v3715
        %v4458 = vpack.c.b16 %v3720, %v3718
        %v4459 = vpack.c.b16 %v3721, %v3719
        %v4460 = vpack.c.b16 %v3724, %v3722
        %v4461 = vpack.c.b16 %v3725, %v3723
        %v4462 = vpack.c.b16 %v3728, %v3726
        %v4463 = vpack.c.b16 %v3729, %v3727
        %v4464 = vpack.c.b16 %v3732, %v3730
        %v4465 = vpack.c.b16 %v3733, %v3731
        %v4466 = vpack.c.b16 %v3736, %v3734
        %v4467 = vpack.c.b16 %v3737, %v3735
        %v4468 = vpack.c.b16 %v3740, %v3738
        %v4469 = vpack.c.b16 %v3741, %v3739
        %v4470 = vpack.c.b16 %v3744, %v3742
        %v4471 = vpack.c.b16 %v3745, %v3743
        %v4472 = vpack.c.b16 %v3748, %v3746
        %v4473 = vpack.c.b16 %v3749, %v3747
        %v4474 = vpack.c.b16 %v3752, %v3750
        %v4475 = vpack.c.b16 %v3753, %v3751
        %v4476 = vpack.c.b16 %v3756, %v3754
        %v4477 = vpack.c.b16 %v3757, %v3755
        %v4478 = vpack.c.b16 %v3760, %v3758
        %v4479 = vpack.c.b16 %v3761, %v3759
        %v4480 = vpack.c.b16 %v3764, %v3762
        %v4481 = vpack.c.b16 %v3765, %v3763
        %v4482 = vpack.c.b16 %v3768, %v3766
        %v4483 = vpack.c.b16 %v3769, %v3767
        %v4484 = vpack.c.b16 %v3772, %v3770
        %v4485 = vpack.c.b16 %v3773, %v3771
        %v4486 = vpack.c.b16 %v3776, %v3774
        %v4487 = vpack.c.b16 %v3777, %v3775
        %v4488 = vpack.c.b16 %v3780, %v3778
        %v4489 = vpack.c.b16 %v3781, %v3779
        %v4490 = vpack.c.b16 %v3784, %v3782
        %v4491 = vpack.c.b16 %v3785, %v3783
        %v4492 = vpack.c.b16 %v3788, %v3786
        %v4493 = vpack.c.b16 %v3789, %v3787
        %v4494 = vpack.c.b16 %v3792, %v3790
        %v4495 = vpack.c.b16 %v3793, %v3791
        %v4496 = vpack.c.b16 %v3796, %v3794
        %v4497 = vpack.c.b16 %v3797, %v3795
        %v4498 = vpack.c.b16 %v3800, %v3798
        %v4499 = vpack.c.b16 %v3801, %v3799
        %v4500 = vpack.c.b16 %v3804, %v3802
        %v4501 = vpack.c.b16 %v3805, %v3803
        %v4502 = vpack.c.b16 %v3808, %v3806
        %v4503 = vpack.c.b16 %v3809, %v3807
        %v4504 = vpack.c.b16 %v3812, %v3810
        %v4505 = vpack.c.b16 %v3813, %v3811
        %v4506 = vpack.c.b16 %v3816, %v3814
        %v4507 = vpack.c.b16 %v3817, %v3815
        %v4508 = vpack.c.b16 %v3820, %v3818
        %v4509 = vpack.c.b16 %v3821, %v3819
        %v4510 = vpack.c.b16 %v3824, %v3822
        %v4511 = vpack.c.b16 %v3825, %v3823
        %v4512 = vpack.c.b16 %v3828, %v3826
        %v4513 = vpack.c.b16 %v3829, %v3827
        %v4514 = vpack.c.b16 %v3832, %v3830
        %v4515 = vpack.c.b16 %v3833, %v3831
        %v4516 = vpack.c.b16 %v3836, %v3834
        %v4517 = vpack.c.b16 %v3837, %v3835
        %v4518 = vpack.c.b16 %v3840, %v3838
        %v4519 = vpack.c.b16 %v3841, %v3839
        %v4520 = vpack.c.b16 %v3844, %v3842
        %v4521 = vpack.c.b16 %v3845, %v3843
        %v4522 = vpack.c.b16 %v3848, %v3846
        %v4523 = vpack.c.b16 %v3849, %v3847
        %v4524 = vpack.c.b16 %v3852, %v3850
        %v4525 = vpack.c.b16 %v3853, %v3851
        %v4526 = vpack.c.b16 %v3856, %v3854
        %v4527 = vpack.c.b16 %v3857, %v3855
        %v4528 = vpack.c.b16 %v3860, %v3858
        %v4529 = vpack.c.b16 %v3861, %v3859
        %v4530 = vpack.c.b16 %v3864, %v3862
        %v4531 = vpack.c.b16 %v3865, %v3863
        %v4532 = vpack.c.b16 %v3868, %v3866
        %v4533 = vpack.c.b16 %v3869, %v3867
        %v4534 = vpack.c.b16 %v3872, %v3870
        %v4535 = vpack.c.b16 %v3873, %v3871
        %v4536 = vpack.c.b16 %v3876, %v3874
        %v4537 = vpack.c.b16 %v3877, %v3875
        %v4538 = vpack.c.b16 %v3880, %v3878
        %v4539 = vpack.c.b16 %v3881, %v3879
        %v4540 = vpack.c.b16 %v3884, %v3882
        %v4541 = vpack.c.b16 %v3885, %v3883
        %v4542 = vpack.c.b16 %v3888, %v3886
        %v4543 = vpack.c.b16 %v3889, %v3887
        %v4544 = vpack.c.b16 %v3892, %v3890
        %v4545 = vpack.c.b16 %v3893, %v3891
        %v4546 = vpack.c.b16 %v3896, %v3894
        %v4547 = vpack.c.b16 %v3897, %v3895
        %v4548 = vpack.c.b16 %v3900, %v3898
        %v4549 = vpack.c.b16 %v3901, %v3899
        %v4550 = vpack.c.b16 %v3904, %v3902
        %v4551 = vpack.c.b16 %v3905, %v3903
        %v4552 = vpack.c.b16 %v3908, %v3906
        %v4553 = vpack.c.b16 %v3909, %v3907
        %v4554 = vpack.c.b16 %v3912, %v3910
        %v4555 = vpack.c.b16 %v3913, %v3911
        %v4556 = vpack.c.b16 %v3916, %v3914
        %v4557 = vpack.c.b16 %v3917, %v3915
        %v4558 = vpack.c.b16 %v3920, %v3918
        %v4559 = vpack.c.b16 %v3921, %v3919
        %v4560 = vpack.c.b16 %v3924, %v3922
        %v4561 = vpack.c.b16 %v3925, %v3923
        %v4562 = vpack.c.b16 %v3928, %v3926
        %v4563 = vpack.c.b16 %v3929, %v3927
        %v4564 = vpack.c.b16 %v3932, %v3930
        %v4565 = vpack.c.b16 %v3933, %v3931
        %v4566 = vpack.c.b16 %v3936, %v3934
        %v4567 = vpack.c.b16 %v3937, %v3935
        %v4568 = vpack.c.b16 %v3940, %v3938
        %v4569 = vpack.c.b16 %v3941, %v3939
        %v4570 = vpack.c.b16 %v3944, %v3942
        %v4571 = vpack.c.b16 %v3945, %v3943
        %v4572 = vpack.c.b16 %v3948, %v3946
        %v4573 = vpack.c.b16 %v3949, %v3947
        %v4574 = vpack.c.b16 %v3952, %v3950
        %v4575 = vpack.c.b16 %v3953, %v3951
        %v4576 = vpack.c.b16 %v3956, %v3954
        %v4577 = vpack.c.b16 %v3957, %v3955
        %v4578 = vpack.c.b16 %v3960, %v3958
        %v4579 = vpack.c.b16 %v3961, %v3959
        %v4580 = vpack.c.b16 %v3964, %v3962
        %v4581 = vpack.c.b16 %v3965, %v3963
        %v4582 = vpack.c.b16 %v3968, %v3966
        %v4583 = vpack.c.b16 %v3969, %v3967
        %v4584 = vpack.c.b16 %v3972, %v3970
        %v4585 = vpack.c.b16 %v3973, %v3971
        %v4586 = vpack.c.b16 %v3976, %v3974
        %v4587 = vpack.c.b16 %v3977, %v3975
        %v4588 = vpack.c.b16 %v3980, %v3978
        %v4589 = vpack.c.b16 %v3981, %v3979
        %v4590 = vpack.c.b16 %v3984, %v3982
        %v4591 = vpack.c.b16 %v3985, %v3983
        %v4592 = vpack.c.b16 %v3988, %v3986
        %v4593 = vpack.c.b16 %v3989, %v3987
        %v4594 = vpack.c.b16 %v3992, %v3990
        %v4595 = vpack.c.b16 %v3993, %v3991
        %v4596 = vpack.c.b16 %v3996, %v3994
        %v4597 = vpack.c.b16 %v3997, %v3995
        %v4598 = vpack.c.b16 %v4000, %v3998
        %v4599 = vpack.c.b16 %v4001, %v3999
        %v4600 = vpack.c.b16 %v4004, %v4002
        %v4601 = vpack.c.b16 %v4005, %v4003
        %v4602 = vpack.c.b16 %v4008, %v4006
        %v4603 = vpack.c.b16 %v4009, %v4007
        %v4604 = vpack.c.b16 %v4012, %v4010
        %v4605 = vpack.c.b16 %v4013, %v4011
        %v4606 = vpack.c.b16 %v4016, %v4014
        %v4607 = vpack.c.b16 %v4017, %v4015
        %v4608 = vpack.c.b16 %v4020, %v4018
        %v4609 = vpack.c.b16 %v4021, %v4019
        %v4610 = vpack.c.b16 %v4024, %v4022
        %v4611 = vpack.c.b16 %v4025, %v4023
        %v4612 = vpack.c.b16 %v4028, %v4026
        %v4613 = vpack.c.b16 %v4029, %v4027
        %v4614 = vpack.c.b16 %v4032, %v4030
        %v4615 = vpack.c.b16 %v4033, %v4031
        %v4616 = vpack.c.b16 %v4036, %v4034
        %v4617 = vpack.c.b16 %v4037, %v4035
        %v4618 = vpack.c.b16 %v4040, %v4038
        %v4619 = vpack.c.b16 %v4041, %v4039
        %v4620 = vpack.c.b16 %v4044, %v4042
        %v4621 = vpack.c.b16 %v4045, %v4043
        %v5199 = vperm.slane %v2235, 0
        %v5200 = vperm.slane %v2235, 1
        %5203 = vmatpush.bf16.msra.mxu0 %v4060
        %5204 = vmatpush.bf16.msra.mxu0 %v4058
        %5205 = vmatpush.bf16.msra.mxu0 %v4056
        %5206 = vmatpush.bf16.msra.mxu0 %v4054
        %5207 = vmatpush.bf16.msra.mxu0 %v4052
        %5208 = vmatpush.bf16.msra.mxu0 %v4050
        %5209 = vmatpush.bf16.msra.mxu0 %v4048
        %5210 = vmatpush.bf16.msra.mxu0 %v4046
        %5211 = vmatmul.bf16.gmra.mxu0 %v2238
        %v5212 = vpop.f32.mrf.mxu0
        %v5213 = vadd.f32 %v5199, %v5212
        %v5214 = vpop.f32.mrf.mxu0
        %5215 = vdwg.mxu0
        %5216 = vmatpush.bf16.msra.mxu0 %v4076
        %5217 = vmatpush.bf16.msra.mxu0 %v4074
        %5218 = vmatpush.bf16.msra.mxu0 %v4072
        %5219 = vmatpush.bf16.msra.mxu0 %v4070
        %5220 = vmatpush.bf16.msra.mxu0 %v4068
        %5221 = vmatpush.bf16.msra.mxu0 %v4066
        %5222 = vmatpush.bf16.msra.mxu0 %v4064
        %5223 = vmatpush.bf16.msra.mxu0 %v4062
        %5224 = vmatmul.bf16.gmra.mxu0 %v2239
        %v5225 = vpop.f32.mrf.mxu0
        %v5226 = vadd.f32 %v5213, %v5225
        %v5227 = vpop.f32.mrf.mxu0
        %5228 = vdwg.mxu0
        %5229 = vmatpush.bf16.msra.mxu0 %v4092
        %5230 = vmatpush.bf16.msra.mxu0 %v4090
        %5231 = vmatpush.bf16.msra.mxu0 %v4088
        %5232 = vmatpush.bf16.msra.mxu0 %v4086
        %5233 = vmatpush.bf16.msra.mxu0 %v4084
        %5234 = vmatpush.bf16.msra.mxu0 %v4082
        %5235 = vmatpush.bf16.msra.mxu0 %v4080
        %5236 = vmatpush.bf16.msra.mxu0 %v4078
        %5237 = vmatmul.bf16.gmra.mxu0 %v2240
        %v5238 = vpop.f32.mrf.mxu0
        %v5239 = vadd.f32 %v5226, %v5238
        %v5240 = vpop.f32.mrf.mxu0
        %5241 = vdwg.mxu0
        %5242 = vmatpush.bf16.msra.mxu0 %v4108
        %5243 = vmatpush.bf16.msra.mxu0 %v4106
        %5244 = vmatpush.bf16.msra.mxu0 %v4104
        %5245 = vmatpush.bf16.msra.mxu0 %v4102
        %5246 = vmatpush.bf16.msra.mxu0 %v4100
        %5247 = vmatpush.bf16.msra.mxu0 %v4098
        %5248 = vmatpush.bf16.msra.mxu0 %v4096
        %5249 = vmatpush.bf16.msra.mxu0 %v4094
        %5250 = vmatmul.bf16.gmra.mxu0 %v2241
        %v5251 = vpop.f32.mrf.mxu0
        %v5252 = vadd.f32 %v5239, %v5251
        %v5253 = vpop.f32.mrf.mxu0
        %5254 = vdwg.mxu0
        %5255 = vmatpush.bf16.msra.mxu0 %v4124
        %5256 = vmatpush.bf16.msra.mxu0 %v4122
        %5257 = vmatpush.bf16.msra.mxu0 %v4120
        %5258 = vmatpush.bf16.msra.mxu0 %v4118
        %5259 = vmatpush.bf16.msra.mxu0 %v4116
        %5260 = vmatpush.bf16.msra.mxu0 %v4114
        %5261 = vmatpush.bf16.msra.mxu0 %v4112
        %5262 = vmatpush.bf16.msra.mxu0 %v4110
        %5263 = vmatmul.bf16.gmra.mxu0 %v2242
        %v5264 = vpop.f32.mrf.mxu0
        %v5265 = vadd.f32 %v5252, %v5264
        %v5266 = vpop.f32.mrf.mxu0
        %5267 = vdwg.mxu0
        %5268 = vmatpush.bf16.msra.mxu0 %v4140
        %5269 = vmatpush.bf16.msra.mxu0 %v4138
        %5270 = vmatpush.bf16.msra.mxu0 %v4136
        %5271 = vmatpush.bf16.msra.mxu0 %v4134
        %5272 = vmatpush.bf16.msra.mxu0 %v4132
        %5273 = vmatpush.bf16.msra.mxu0 %v4130
        %5274 = vmatpush.bf16.msra.mxu0 %v4128
        %5275 = vmatpush.bf16.msra.mxu0 %v4126
        %5276 = vmatmul.bf16.gmra.mxu0 %v2243
        %v5277 = vpop.f32.mrf.mxu0
        %v5278 = vadd.f32 %v5265, %v5277
        %v5279 = vpop.f32.mrf.mxu0
        %5280 = vdwg.mxu0
        %5281 = vmatpush.bf16.msra.mxu0 %v4156
        %5282 = vmatpush.bf16.msra.mxu0 %v4154
        %5283 = vmatpush.bf16.msra.mxu0 %v4152
        %5284 = vmatpush.bf16.msra.mxu0 %v4150
        %5285 = vmatpush.bf16.msra.mxu0 %v4148
        %5286 = vmatpush.bf16.msra.mxu0 %v4146
        %5287 = vmatpush.bf16.msra.mxu0 %v4144
        %5288 = vmatpush.bf16.msra.mxu0 %v4142
        %5289 = vmatmul.bf16.gmra.mxu0 %v2244
        %v5290 = vpop.f32.mrf.mxu0
        %v5291 = vadd.f32 %v5278, %v5290
        %v5292 = vpop.f32.mrf.mxu0
        %5293 = vdwg.mxu0
        %5294 = vmatpush.bf16.msra.mxu0 %v4172
        %5295 = vmatpush.bf16.msra.mxu0 %v4170
        %5296 = vmatpush.bf16.msra.mxu0 %v4168
        %5297 = vmatpush.bf16.msra.mxu0 %v4166
        %5298 = vmatpush.bf16.msra.mxu0 %v4164
        %5299 = vmatpush.bf16.msra.mxu0 %v4162
        %5300 = vmatpush.bf16.msra.mxu0 %v4160
        %5301 = vmatpush.bf16.msra.mxu0 %v4158
        %5302 = vmatmul.bf16.gmra.mxu0 %v2245
        %v5303 = vpop.f32.mrf.mxu0
        %v5304 = vadd.f32 %v5291, %v5303
        %v5305 = vpop.f32.mrf.mxu0
        %5306 = vdwg.mxu0
        %5307 = vmatpush.bf16.msra.mxu0 %v4188
        %5308 = vmatpush.bf16.msra.mxu0 %v4186
        %5309 = vmatpush.bf16.msra.mxu0 %v4184
        %5310 = vmatpush.bf16.msra.mxu0 %v4182
        %5311 = vmatpush.bf16.msra.mxu0 %v4180
        %5312 = vmatpush.bf16.msra.mxu0 %v4178
        %5313 = vmatpush.bf16.msra.mxu0 %v4176
        %5314 = vmatpush.bf16.msra.mxu0 %v4174
        %5315 = vmatmul.bf16.gmra.mxu0 %v2248
        %v5316 = vpop.f32.mrf.mxu0
        %v5317 = vadd.f32 %v5304, %v5316
        %v5318 = vpop.f32.mrf.mxu0
        %5319 = vdwg.mxu0
        %5320 = vmatpush.bf16.msra.mxu0 %v4204
        %5321 = vmatpush.bf16.msra.mxu0 %v4202
        %5322 = vmatpush.bf16.msra.mxu0 %v4200
        %5323 = vmatpush.bf16.msra.mxu0 %v4198
        %5324 = vmatpush.bf16.msra.mxu0 %v4196
        %5325 = vmatpush.bf16.msra.mxu0 %v4194
        %5326 = vmatpush.bf16.msra.mxu0 %v4192
        %5327 = vmatpush.bf16.msra.mxu0 %v4190
        %5328 = vmatmul.bf16.gmra.mxu0 %v2249
        %v5329 = vpop.f32.mrf.mxu0
        %v5330 = vadd.f32 %v5317, %v5329
        %v5331 = vpop.f32.mrf.mxu0
        %5332 = vdwg.mxu0
        %5333 = vmatpush.bf16.msra.mxu0 %v4220
        %5334 = vmatpush.bf16.msra.mxu0 %v4218
        %5335 = vmatpush.bf16.msra.mxu0 %v4216
        %5336 = vmatpush.bf16.msra.mxu0 %v4214
        %5337 = vmatpush.bf16.msra.mxu0 %v4212
        %5338 = vmatpush.bf16.msra.mxu0 %v4210
        %5339 = vmatpush.bf16.msra.mxu0 %v4208
        %5340 = vmatpush.bf16.msra.mxu0 %v4206
        %5341 = vmatmul.bf16.gmra.mxu0 %v2250
        %v5342 = vpop.f32.mrf.mxu0
        %v5343 = vadd.f32 %v5330, %v5342
        %v5344 = vpop.f32.mrf.mxu0
        %5345 = vdwg.mxu0
        %5346 = vmatpush.bf16.msra.mxu0 %v4236
        %5347 = vmatpush.bf16.msra.mxu0 %v4234
        %5348 = vmatpush.bf16.msra.mxu0 %v4232
        %5349 = vmatpush.bf16.msra.mxu0 %v4230
        %5350 = vmatpush.bf16.msra.mxu0 %v4228
        %5351 = vmatpush.bf16.msra.mxu0 %v4226
        %5352 = vmatpush.bf16.msra.mxu0 %v4224
        %5353 = vmatpush.bf16.msra.mxu0 %v4222
        %5354 = vmatmul.bf16.gmra.mxu0 %v2251
        %v5355 = vpop.f32.mrf.mxu0
        %v5356 = vadd.f32 %v5343, %v5355
        %v5357 = vpop.f32.mrf.mxu0
        %5358 = vdwg.mxu0
        %5359 = vmatpush.bf16.msra.mxu0 %v4252
        %5360 = vmatpush.bf16.msra.mxu0 %v4250
        %5361 = vmatpush.bf16.msra.mxu0 %v4248
        %5362 = vmatpush.bf16.msra.mxu0 %v4246
        %5363 = vmatpush.bf16.msra.mxu0 %v4244
        %5364 = vmatpush.bf16.msra.mxu0 %v4242
        %5365 = vmatpush.bf16.msra.mxu0 %v4240
        %5366 = vmatpush.bf16.msra.mxu0 %v4238
        %5367 = vmatmul.bf16.gmra.mxu0 %v2252
        %v5368 = vpop.f32.mrf.mxu0
        %v5369 = vadd.f32 %v5356, %v5368
        %v5370 = vpop.f32.mrf.mxu0
        %5371 = vdwg.mxu0
        %5372 = vmatpush.bf16.msra.mxu0 %v4268
        %5373 = vmatpush.bf16.msra.mxu0 %v4266
        %5374 = vmatpush.bf16.msra.mxu0 %v4264
        %5375 = vmatpush.bf16.msra.mxu0 %v4262
        %5376 = vmatpush.bf16.msra.mxu0 %v4260
        %5377 = vmatpush.bf16.msra.mxu0 %v4258
        %5378 = vmatpush.bf16.msra.mxu0 %v4256
        %5379 = vmatpush.bf16.msra.mxu0 %v4254
        %5380 = vmatmul.bf16.gmra.mxu0 %v2253
        %v5381 = vpop.f32.mrf.mxu0
        %v5382 = vadd.f32 %v5369, %v5381
        %v5383 = vpop.f32.mrf.mxu0
        %5384 = vdwg.mxu0
        %5385 = vmatpush.bf16.msra.mxu0 %v4284
        %5386 = vmatpush.bf16.msra.mxu0 %v4282
        %5387 = vmatpush.bf16.msra.mxu0 %v4280
        %5388 = vmatpush.bf16.msra.mxu0 %v4278
        %5389 = vmatpush.bf16.msra.mxu0 %v4276
        %5390 = vmatpush.bf16.msra.mxu0 %v4274
        %5391 = vmatpush.bf16.msra.mxu0 %v4272
        %5392 = vmatpush.bf16.msra.mxu0 %v4270
        %5393 = vmatmul.bf16.gmra.mxu0 %v2254
        %v5394 = vpop.f32.mrf.mxu0
        %v5395 = vadd.f32 %v5382, %v5394
        %v5396 = vpop.f32.mrf.mxu0
        %5397 = vdwg.mxu0
        %5398 = vmatpush.bf16.msra.mxu0 %v4300
        %5399 = vmatpush.bf16.msra.mxu0 %v4298
        %5400 = vmatpush.bf16.msra.mxu0 %v4296
        %5401 = vmatpush.bf16.msra.mxu0 %v4294
        %5402 = vmatpush.bf16.msra.mxu0 %v4292
        %5403 = vmatpush.bf16.msra.mxu0 %v4290
        %5404 = vmatpush.bf16.msra.mxu0 %v4288
        %5405 = vmatpush.bf16.msra.mxu0 %v4286
        %5406 = vmatmul.bf16.gmra.mxu0 %v2255
        %v5407 = vpop.f32.mrf.mxu0
        %v5408 = vadd.f32 %v5395, %v5407
        %v5409 = vpop.f32.mrf.mxu0
        %5410 = vdwg.mxu0
        %5411 = vmatpush.bf16.msra.mxu0 %v4316
        %5412 = vmatpush.bf16.msra.mxu0 %v4314
        %5413 = vmatpush.bf16.msra.mxu0 %v4312
        %5414 = vmatpush.bf16.msra.mxu0 %v4310
        %5415 = vmatpush.bf16.msra.mxu0 %v4308
        %5416 = vmatpush.bf16.msra.mxu0 %v4306
        %5417 = vmatpush.bf16.msra.mxu0 %v4304
        %5418 = vmatpush.bf16.msra.mxu0 %v4302
        %5419 = vmatmul.bf16.gmra.mxu0 %v2258
        %v5420 = vpop.f32.mrf.mxu0
        %v5421 = vadd.f32 %v5408, %v5420
        %v5422 = vpop.f32.mrf.mxu0
        %5423 = vdwg.mxu0
        %5424 = vmatpush.bf16.msra.mxu0 %v4332
        %5425 = vmatpush.bf16.msra.mxu0 %v4330
        %5426 = vmatpush.bf16.msra.mxu0 %v4328
        %5427 = vmatpush.bf16.msra.mxu0 %v4326
        %5428 = vmatpush.bf16.msra.mxu0 %v4324
        %5429 = vmatpush.bf16.msra.mxu0 %v4322
        %5430 = vmatpush.bf16.msra.mxu0 %v4320
        %5431 = vmatpush.bf16.msra.mxu0 %v4318
        %5432 = vmatmul.bf16.gmra.mxu0 %v2259
        %v5433 = vpop.f32.mrf.mxu0
        %v5434 = vadd.f32 %v5421, %v5433
        %v5435 = vpop.f32.mrf.mxu0
        %5436 = vdwg.mxu0
        %5437 = vmatpush.bf16.msra.mxu0 %v4348
        %5438 = vmatpush.bf16.msra.mxu0 %v4346
        %5439 = vmatpush.bf16.msra.mxu0 %v4344
        %5440 = vmatpush.bf16.msra.mxu0 %v4342
        %5441 = vmatpush.bf16.msra.mxu0 %v4340
        %5442 = vmatpush.bf16.msra.mxu0 %v4338
        %5443 = vmatpush.bf16.msra.mxu0 %v4336
        %5444 = vmatpush.bf16.msra.mxu0 %v4334
        %5445 = vmatmul.bf16.gmra.mxu0 %v2260
        %v5446 = vpop.f32.mrf.mxu0
        %v5447 = vadd.f32 %v5434, %v5446
        %v5448 = vpop.f32.mrf.mxu0
        %5449 = vdwg.mxu0
        %5450 = vmatpush.bf16.msra.mxu0 %v4364
        %5451 = vmatpush.bf16.msra.mxu0 %v4362
        %5452 = vmatpush.bf16.msra.mxu0 %v4360
        %5453 = vmatpush.bf16.msra.mxu0 %v4358
        %5454 = vmatpush.bf16.msra.mxu0 %v4356
        %5455 = vmatpush.bf16.msra.mxu0 %v4354
        %5456 = vmatpush.bf16.msra.mxu0 %v4352
        %5457 = vmatpush.bf16.msra.mxu0 %v4350
        %5458 = vmatmul.bf16.gmra.mxu0 %v2261
        %v5459 = vpop.f32.mrf.mxu0
        %v5460 = vadd.f32 %v5447, %v5459
        %v5461 = vpop.f32.mrf.mxu0
        %5462 = vdwg.mxu0
        %5463 = vmatpush.bf16.msra.mxu0 %v4380
        %5464 = vmatpush.bf16.msra.mxu0 %v4378
        %5465 = vmatpush.bf16.msra.mxu0 %v4376
        %5466 = vmatpush.bf16.msra.mxu0 %v4374
        %5467 = vmatpush.bf16.msra.mxu0 %v4372
        %5468 = vmatpush.bf16.msra.mxu0 %v4370
        %5469 = vmatpush.bf16.msra.mxu0 %v4368
        %5470 = vmatpush.bf16.msra.mxu0 %v4366
        %5471 = vmatmul.bf16.gmra.mxu0 %v2262
        %v5472 = vpop.f32.mrf.mxu0
        %v5473 = vadd.f32 %v5460, %v5472
        %v5474 = vpop.f32.mrf.mxu0
        %5475 = vdwg.mxu0
        %5476 = vmatpush.bf16.msra.mxu0 %v4396
        %5477 = vmatpush.bf16.msra.mxu0 %v4394
        %5478 = vmatpush.bf16.msra.mxu0 %v4392
        %5479 = vmatpush.bf16.msra.mxu0 %v4390
        %5480 = vmatpush.bf16.msra.mxu0 %v4388
        %5481 = vmatpush.bf16.msra.mxu0 %v4386
        %5482 = vmatpush.bf16.msra.mxu0 %v4384
        %5483 = vmatpush.bf16.msra.mxu0 %v4382
        %5484 = vmatmul.bf16.gmra.mxu0 %v2263
        %v5485 = vpop.f32.mrf.mxu0
        %v5486 = vadd.f32 %v5473, %v5485
        %v5487 = vpop.f32.mrf.mxu0
        %5488 = vdwg.mxu0
        %5489 = vmatpush.bf16.msra.mxu0 %v4412
        %5490 = vmatpush.bf16.msra.mxu0 %v4410
        %5491 = vmatpush.bf16.msra.mxu0 %v4408
        %5492 = vmatpush.bf16.msra.mxu0 %v4406
        %5493 = vmatpush.bf16.msra.mxu0 %v4404
        %5494 = vmatpush.bf16.msra.mxu0 %v4402
        %5495 = vmatpush.bf16.msra.mxu0 %v4400
        %5496 = vmatpush.bf16.msra.mxu0 %v4398
        %5497 = vmatmul.bf16.gmra.mxu0 %v2264
        %v5498 = vpop.f32.mrf.mxu0
        %v5499 = vadd.f32 %v5486, %v5498
        %v5500 = vpop.f32.mrf.mxu0
        %5501 = vdwg.mxu0
        %5502 = vmatpush.bf16.msra.mxu0 %v4428
        %5503 = vmatpush.bf16.msra.mxu0 %v4426
        %5504 = vmatpush.bf16.msra.mxu0 %v4424
        %5505 = vmatpush.bf16.msra.mxu0 %v4422
        %5506 = vmatpush.bf16.msra.mxu0 %v4420
        %5507 = vmatpush.bf16.msra.mxu0 %v4418
        %5508 = vmatpush.bf16.msra.mxu0 %v4416
        %5509 = vmatpush.bf16.msra.mxu0 %v4414
        %5510 = vmatmul.bf16.gmra.mxu0 %v2265
        %v5511 = vpop.f32.mrf.mxu0
        %v5512 = vadd.f32 %v5499, %v5511
        %v5513 = vpop.f32.mrf.mxu0
        %5514 = vdwg.mxu0
        %5515 = vmatpush.bf16.msra.mxu0 %v4444
        %5516 = vmatpush.bf16.msra.mxu0 %v4442
        %5517 = vmatpush.bf16.msra.mxu0 %v4440
        %5518 = vmatpush.bf16.msra.mxu0 %v4438
        %5519 = vmatpush.bf16.msra.mxu0 %v4436
        %5520 = vmatpush.bf16.msra.mxu0 %v4434
        %5521 = vmatpush.bf16.msra.mxu0 %v4432
        %5522 = vmatpush.bf16.msra.mxu0 %v4430
        %5523 = vmatmul.bf16.gmra.mxu0 %v2268
        %v5524 = vpop.f32.mrf.mxu0
        %v5525 = vadd.f32 %v5512, %v5524
        %v5526 = vpop.f32.mrf.mxu0
        %5527 = vdwg.mxu0
        %5528 = vmatpush.bf16.msra.mxu0 %v4460
        %5529 = vmatpush.bf16.msra.mxu0 %v4458
        %5530 = vmatpush.bf16.msra.mxu0 %v4456
        %5531 = vmatpush.bf16.msra.mxu0 %v4454
        %5532 = vmatpush.bf16.msra.mxu0 %v4452
        %5533 = vmatpush.bf16.msra.mxu0 %v4450
        %5534 = vmatpush.bf16.msra.mxu0 %v4448
        %5535 = vmatpush.bf16.msra.mxu0 %v4446
        %5536 = vmatmul.bf16.gmra.mxu0 %v2269
        %v5537 = vpop.f32.mrf.mxu0
        %v5538 = vadd.f32 %v5525, %v5537
        %v5539 = vpop.f32.mrf.mxu0
        %5540 = vdwg.mxu0
        %5541 = vmatpush.bf16.msra.mxu0 %v4476
        %5542 = vmatpush.bf16.msra.mxu0 %v4474
        %5543 = vmatpush.bf16.msra.mxu0 %v4472
        %5544 = vmatpush.bf16.msra.mxu0 %v4470
        %5545 = vmatpush.bf16.msra.mxu0 %v4468
        %5546 = vmatpush.bf16.msra.mxu0 %v4466
        %5547 = vmatpush.bf16.msra.mxu0 %v4464
        %5548 = vmatpush.bf16.msra.mxu0 %v4462
        %5549 = vmatmul.bf16.gmra.mxu0 %v2270
        %v5550 = vpop.f32.mrf.mxu0
        %v5551 = vadd.f32 %v5538, %v5550
        %v5552 = vpop.f32.mrf.mxu0
        %5553 = vdwg.mxu0
        %5554 = vmatpush.bf16.msra.mxu0 %v4492
        %5555 = vmatpush.bf16.msra.mxu0 %v4490
        %5556 = vmatpush.bf16.msra.mxu0 %v4488
        %5557 = vmatpush.bf16.msra.mxu0 %v4486
        %5558 = vmatpush.bf16.msra.mxu0 %v4484
        %5559 = vmatpush.bf16.msra.mxu0 %v4482
        %5560 = vmatpush.bf16.msra.mxu0 %v4480
        %5561 = vmatpush.bf16.msra.mxu0 %v4478
        %5562 = vmatmul.bf16.gmra.mxu0 %v2271
        %v5563 = vpop.f32.mrf.mxu0
        %v5564 = vadd.f32 %v5551, %v5563
        %v5565 = vpop.f32.mrf.mxu0
        %5566 = vdwg.mxu0
        %5567 = vmatpush.bf16.msra.mxu0 %v4508
        %5568 = vmatpush.bf16.msra.mxu0 %v4506
        %5569 = vmatpush.bf16.msra.mxu0 %v4504
        %5570 = vmatpush.bf16.msra.mxu0 %v4502
        %5571 = vmatpush.bf16.msra.mxu0 %v4500
        %5572 = vmatpush.bf16.msra.mxu0 %v4498
        %5573 = vmatpush.bf16.msra.mxu0 %v4496
        %5574 = vmatpush.bf16.msra.mxu0 %v4494
        %5575 = vmatmul.bf16.gmra.mxu0 %v2272
        %v5576 = vpop.f32.mrf.mxu0
        %v5577 = vadd.f32 %v5564, %v5576
        %v5578 = vpop.f32.mrf.mxu0
        %5579 = vdwg.mxu0
        %5580 = vmatpush.bf16.msra.mxu0 %v4524
        %5581 = vmatpush.bf16.msra.mxu0 %v4522
        %5582 = vmatpush.bf16.msra.mxu0 %v4520
        %5583 = vmatpush.bf16.msra.mxu0 %v4518
        %5584 = vmatpush.bf16.msra.mxu0 %v4516
        %5585 = vmatpush.bf16.msra.mxu0 %v4514
        %5586 = vmatpush.bf16.msra.mxu0 %v4512
        %5587 = vmatpush.bf16.msra.mxu0 %v4510
        %5588 = vmatmul.bf16.gmra.mxu0 %v2273
        %v5589 = vpop.f32.mrf.mxu0
        %v5590 = vadd.f32 %v5577, %v5589
        %v5591 = vpop.f32.mrf.mxu0
        %5592 = vdwg.mxu0
        %5593 = vmatpush.bf16.msra.mxu0 %v4540
        %5594 = vmatpush.bf16.msra.mxu0 %v4538
        %5595 = vmatpush.bf16.msra.mxu0 %v4536
        %5596 = vmatpush.bf16.msra.mxu0 %v4534
        %5597 = vmatpush.bf16.msra.mxu0 %v4532
        %5598 = vmatpush.bf16.msra.mxu0 %v4530
        %5599 = vmatpush.bf16.msra.mxu0 %v4528
        %5600 = vmatpush.bf16.msra.mxu0 %v4526
        %5601 = vmatmul.bf16.gmra.mxu0 %v2274
        %v5602 = vpop.f32.mrf.mxu0
        %v5603 = vadd.f32 %v5590, %v5602
        %v5604 = vpop.f32.mrf.mxu0
        %5605 = vdwg.mxu0
        %5606 = vmatpush.bf16.msra.mxu0 %v4556
        %5607 = vmatpush.bf16.msra.mxu0 %v4554
        %5608 = vmatpush.bf16.msra.mxu0 %v4552
        %5609 = vmatpush.bf16.msra.mxu0 %v4550
        %5610 = vmatpush.bf16.msra.mxu0 %v4548
        %5611 = vmatpush.bf16.msra.mxu0 %v4546
        %5612 = vmatpush.bf16.msra.mxu0 %v4544
        %5613 = vmatpush.bf16.msra.mxu0 %v4542
        %5614 = vmatmul.bf16.gmra.mxu0 %v2275
        %v5615 = vpop.f32.mrf.mxu0
        %v5616 = vadd.f32 %v5603, %v5615
        %v5617 = vpop.f32.mrf.mxu0
        %5618 = vdwg.mxu0
        %5619 = vmatpush.bf16.msra.mxu0 %v4572
        %5620 = vmatpush.bf16.msra.mxu0 %v4570
        %5621 = vmatpush.bf16.msra.mxu0 %v4568
        %5622 = vmatpush.bf16.msra.mxu0 %v4566
        %5623 = vmatpush.bf16.msra.mxu0 %v4564
        %5624 = vmatpush.bf16.msra.mxu0 %v4562
        %5625 = vmatpush.bf16.msra.mxu0 %v4560
        %5626 = vmatpush.bf16.msra.mxu0 %v4558
        %5627 = vmatmul.bf16.gmra.mxu0 %v2278
        %v5628 = vpop.f32.mrf.mxu0
        %v5629 = vadd.f32 %v5616, %v5628
        %v5630 = vpop.f32.mrf.mxu0
        %5631 = vdwg.mxu0
        %5632 = vmatpush.bf16.msra.mxu0 %v4588
        %5633 = vmatpush.bf16.msra.mxu0 %v4586
        %5634 = vmatpush.bf16.msra.mxu0 %v4584
        %5635 = vmatpush.bf16.msra.mxu0 %v4582
        %5636 = vmatpush.bf16.msra.mxu0 %v4580
        %5637 = vmatpush.bf16.msra.mxu0 %v4578
        %5638 = vmatpush.bf16.msra.mxu0 %v4576
        %5639 = vmatpush.bf16.msra.mxu0 %v4574
        %5640 = vmatmul.bf16.gmra.mxu0 %v2279
        %v5641 = vpop.f32.mrf.mxu0
        %v5642 = vadd.f32 %v5629, %v5641
        %v5643 = vpop.f32.mrf.mxu0
        %5644 = vdwg.mxu0
        %5645 = vmatpush.bf16.msra.mxu0 %v4604
        %5646 = vmatpush.bf16.msra.mxu0 %v4602
        %5647 = vmatpush.bf16.msra.mxu0 %v4600
        %5648 = vmatpush.bf16.msra.mxu0 %v4598
        %5649 = vmatpush.bf16.msra.mxu0 %v4596
        %5650 = vmatpush.bf16.msra.mxu0 %v4594
        %5651 = vmatpush.bf16.msra.mxu0 %v4592
        %5652 = vmatpush.bf16.msra.mxu0 %v4590
        %5653 = vmatmul.bf16.gmra.mxu0 %v2280
        %v5654 = vpop.f32.mrf.mxu0
        %v5655 = vadd.f32 %v5642, %v5654
        %v5656 = vpop.f32.mrf.mxu0
        %5657 = vdwg.mxu0
        %5658 = vmatpush.bf16.msra.mxu0 %v4620
        %5659 = vmatpush.bf16.msra.mxu0 %v4618
        %5660 = vmatpush.bf16.msra.mxu0 %v4616
        %5661 = vmatpush.bf16.msra.mxu0 %v4614
        %5662 = vmatpush.bf16.msra.mxu0 %v4612
        %5663 = vmatpush.bf16.msra.mxu0 %v4610
        %5664 = vmatpush.bf16.msra.mxu0 %v4608
        %5665 = vmatpush.bf16.msra.mxu0 %v4606
        %5666 = vmatmul.bf16.gmra.mxu0 %v2281
        %v5667 = vpop.f32.mrf.mxu0
        %v5668 = vadd.f32 %v5655, %v5667
        %v5669 = vpop.f32.mrf.mxu0
        %5670 = vdwg.mxu0
        %5671 = vmatpush.bf16.msra.mxu0 %v4061
        %5672 = vmatpush.bf16.msra.mxu0 %v4059
        %5673 = vmatpush.bf16.msra.mxu0 %v4057
        %5674 = vmatpush.bf16.msra.mxu0 %v4055
        %5675 = vmatpush.bf16.msra.mxu0 %v4053
        %5676 = vmatpush.bf16.msra.mxu0 %v4051
        %5677 = vmatpush.bf16.msra.mxu0 %v4049
        %5678 = vmatpush.bf16.msra.mxu0 %v4047
        %5679 = vmatmul.bf16.gmra.mxu0 %v2238
        %v5680 = vpop.f32.mrf.mxu0
        %v5681 = vadd.f32 %v5200, %v5680
        %v5682 = vpop.f32.mrf.mxu0
        %5683 = vdwg.mxu0
        %5684 = vmatpush.bf16.msra.mxu0 %v4077
        %5685 = vmatpush.bf16.msra.mxu0 %v4075
        %5686 = vmatpush.bf16.msra.mxu0 %v4073
        %5687 = vmatpush.bf16.msra.mxu0 %v4071
        %5688 = vmatpush.bf16.msra.mxu0 %v4069
        %5689 = vmatpush.bf16.msra.mxu0 %v4067
        %5690 = vmatpush.bf16.msra.mxu0 %v4065
        %5691 = vmatpush.bf16.msra.mxu0 %v4063
        %5692 = vmatmul.bf16.gmra.mxu0 %v2239
        %v5693 = vpop.f32.mrf.mxu0
        %v5694 = vadd.f32 %v5681, %v5693
        %v5695 = vpop.f32.mrf.mxu0
        %5696 = vdwg.mxu0
        %5697 = vmatpush.bf16.msra.mxu0 %v4093
        %5698 = vmatpush.bf16.msra.mxu0 %v4091
        %5699 = vmatpush.bf16.msra.mxu0 %v4089
        %5700 = vmatpush.bf16.msra.mxu0 %v4087
        %5701 = vmatpush.bf16.msra.mxu0 %v4085
        %5702 = vmatpush.bf16.msra.mxu0 %v4083
        %5703 = vmatpush.bf16.msra.mxu0 %v4081
        %5704 = vmatpush.bf16.msra.mxu0 %v4079
        %5705 = vmatmul.bf16.gmra.mxu0 %v2240
        %v5706 = vpop.f32.mrf.mxu0
        %v5707 = vadd.f32 %v5694, %v5706
        %v5708 = vpop.f32.mrf.mxu0
        %5709 = vdwg.mxu0
        %5710 = vmatpush.bf16.msra.mxu0 %v4109
        %5711 = vmatpush.bf16.msra.mxu0 %v4107
        %5712 = vmatpush.bf16.msra.mxu0 %v4105
        %5713 = vmatpush.bf16.msra.mxu0 %v4103
        %5714 = vmatpush.bf16.msra.mxu0 %v4101
        %5715 = vmatpush.bf16.msra.mxu0 %v4099
        %5716 = vmatpush.bf16.msra.mxu0 %v4097
        %5717 = vmatpush.bf16.msra.mxu0 %v4095
        %5718 = vmatmul.bf16.gmra.mxu0 %v2241
        %v5719 = vpop.f32.mrf.mxu0
        %v5720 = vadd.f32 %v5707, %v5719
        %v5721 = vpop.f32.mrf.mxu0
        %5722 = vdwg.mxu0
        %5723 = vmatpush.bf16.msra.mxu0 %v4125
        %5724 = vmatpush.bf16.msra.mxu0 %v4123
        %5725 = vmatpush.bf16.msra.mxu0 %v4121
        %5726 = vmatpush.bf16.msra.mxu0 %v4119
        %5727 = vmatpush.bf16.msra.mxu0 %v4117
        %5728 = vmatpush.bf16.msra.mxu0 %v4115
        %5729 = vmatpush.bf16.msra.mxu0 %v4113
        %5730 = vmatpush.bf16.msra.mxu0 %v4111
        %5731 = vmatmul.bf16.gmra.mxu0 %v2242
        %v5732 = vpop.f32.mrf.mxu0
        %v5733 = vadd.f32 %v5720, %v5732
        %v5734 = vpop.f32.mrf.mxu0
        %5735 = vdwg.mxu0
        %5736 = vmatpush.bf16.msra.mxu0 %v4141
        %5737 = vmatpush.bf16.msra.mxu0 %v4139
        %5738 = vmatpush.bf16.msra.mxu0 %v4137
        %5739 = vmatpush.bf16.msra.mxu0 %v4135
        %5740 = vmatpush.bf16.msra.mxu0 %v4133
        %5741 = vmatpush.bf16.msra.mxu0 %v4131
        %5742 = vmatpush.bf16.msra.mxu0 %v4129
        %5743 = vmatpush.bf16.msra.mxu0 %v4127
        %5744 = vmatmul.bf16.gmra.mxu0 %v2243
        %v5745 = vpop.f32.mrf.mxu0
        %v5746 = vadd.f32 %v5733, %v5745
        %v5747 = vpop.f32.mrf.mxu0
        %5748 = vdwg.mxu0
        %5749 = vmatpush.bf16.msra.mxu0 %v4157
        %5750 = vmatpush.bf16.msra.mxu0 %v4155
        %5751 = vmatpush.bf16.msra.mxu0 %v4153
        %5752 = vmatpush.bf16.msra.mxu0 %v4151
        %5753 = vmatpush.bf16.msra.mxu0 %v4149
        %5754 = vmatpush.bf16.msra.mxu0 %v4147
        %5755 = vmatpush.bf16.msra.mxu0 %v4145
        %5756 = vmatpush.bf16.msra.mxu0 %v4143
        %5757 = vmatmul.bf16.gmra.mxu0 %v2244
        %v5758 = vpop.f32.mrf.mxu0
        %v5759 = vadd.f32 %v5746, %v5758
        %v5760 = vpop.f32.mrf.mxu0
        %5761 = vdwg.mxu0
        %5762 = vmatpush.bf16.msra.mxu0 %v4173
        %5763 = vmatpush.bf16.msra.mxu0 %v4171
        %5764 = vmatpush.bf16.msra.mxu0 %v4169
        %5765 = vmatpush.bf16.msra.mxu0 %v4167
        %5766 = vmatpush.bf16.msra.mxu0 %v4165
        %5767 = vmatpush.bf16.msra.mxu0 %v4163
        %5768 = vmatpush.bf16.msra.mxu0 %v4161
        %5769 = vmatpush.bf16.msra.mxu0 %v4159
        %5770 = vmatmul.bf16.gmra.mxu0 %v2245
        %v5771 = vpop.f32.mrf.mxu0
        %v5772 = vadd.f32 %v5759, %v5771
        %v5773 = vpop.f32.mrf.mxu0
        %5774 = vdwg.mxu0
        %5775 = vmatpush.bf16.msra.mxu0 %v4189
        %5776 = vmatpush.bf16.msra.mxu0 %v4187
        %5777 = vmatpush.bf16.msra.mxu0 %v4185
        %5778 = vmatpush.bf16.msra.mxu0 %v4183
        %5779 = vmatpush.bf16.msra.mxu0 %v4181
        %5780 = vmatpush.bf16.msra.mxu0 %v4179
        %5781 = vmatpush.bf16.msra.mxu0 %v4177
        %5782 = vmatpush.bf16.msra.mxu0 %v4175
        %5783 = vmatmul.bf16.gmra.mxu0 %v2248
        %v5784 = vpop.f32.mrf.mxu0
        %v5785 = vadd.f32 %v5772, %v5784
        %v5786 = vpop.f32.mrf.mxu0
        %5787 = vdwg.mxu0
        %5788 = vmatpush.bf16.msra.mxu0 %v4205
        %5789 = vmatpush.bf16.msra.mxu0 %v4203
        %5790 = vmatpush.bf16.msra.mxu0 %v4201
        %5791 = vmatpush.bf16.msra.mxu0 %v4199
        %5792 = vmatpush.bf16.msra.mxu0 %v4197
        %5793 = vmatpush.bf16.msra.mxu0 %v4195
        %5794 = vmatpush.bf16.msra.mxu0 %v4193
        %5795 = vmatpush.bf16.msra.mxu0 %v4191
        %5796 = vmatmul.bf16.gmra.mxu0 %v2249
        %v5797 = vpop.f32.mrf.mxu0
        %v5798 = vadd.f32 %v5785, %v5797
        %v5799 = vpop.f32.mrf.mxu0
        %5800 = vdwg.mxu0
        %5801 = vmatpush.bf16.msra.mxu0 %v4221
        %5802 = vmatpush.bf16.msra.mxu0 %v4219
        %5803 = vmatpush.bf16.msra.mxu0 %v4217
        %5804 = vmatpush.bf16.msra.mxu0 %v4215
        %5805 = vmatpush.bf16.msra.mxu0 %v4213
        %5806 = vmatpush.bf16.msra.mxu0 %v4211
        %5807 = vmatpush.bf16.msra.mxu0 %v4209
        %5808 = vmatpush.bf16.msra.mxu0 %v4207
        %5809 = vmatmul.bf16.gmra.mxu0 %v2250
        %v5810 = vpop.f32.mrf.mxu0
        %v5811 = vadd.f32 %v5798, %v5810
        %v5812 = vpop.f32.mrf.mxu0
        %5813 = vdwg.mxu0
        %5814 = vmatpush.bf16.msra.mxu0 %v4237
        %5815 = vmatpush.bf16.msra.mxu0 %v4235
        %5816 = vmatpush.bf16.msra.mxu0 %v4233
        %5817 = vmatpush.bf16.msra.mxu0 %v4231
        %5818 = vmatpush.bf16.msra.mxu0 %v4229
        %5819 = vmatpush.bf16.msra.mxu0 %v4227
        %5820 = vmatpush.bf16.msra.mxu0 %v4225
        %5821 = vmatpush.bf16.msra.mxu0 %v4223
        %5822 = vmatmul.bf16.gmra.mxu0 %v2251
        %v5823 = vpop.f32.mrf.mxu0
        %v5824 = vadd.f32 %v5811, %v5823
        %v5825 = vpop.f32.mrf.mxu0
        %5826 = vdwg.mxu0
        %5827 = vmatpush.bf16.msra.mxu0 %v4253
        %5828 = vmatpush.bf16.msra.mxu0 %v4251
        %5829 = vmatpush.bf16.msra.mxu0 %v4249
        %5830 = vmatpush.bf16.msra.mxu0 %v4247
        %5831 = vmatpush.bf16.msra.mxu0 %v4245
        %5832 = vmatpush.bf16.msra.mxu0 %v4243
        %5833 = vmatpush.bf16.msra.mxu0 %v4241
        %5834 = vmatpush.bf16.msra.mxu0 %v4239
        %5835 = vmatmul.bf16.gmra.mxu0 %v2252
        %v5836 = vpop.f32.mrf.mxu0
        %v5837 = vadd.f32 %v5824, %v5836
        %v5838 = vpop.f32.mrf.mxu0
        %5839 = vdwg.mxu0
        %5840 = vmatpush.bf16.msra.mxu0 %v4269
        %5841 = vmatpush.bf16.msra.mxu0 %v4267
        %5842 = vmatpush.bf16.msra.mxu0 %v4265
        %5843 = vmatpush.bf16.msra.mxu0 %v4263
        %5844 = vmatpush.bf16.msra.mxu0 %v4261
        %5845 = vmatpush.bf16.msra.mxu0 %v4259
        %5846 = vmatpush.bf16.msra.mxu0 %v4257
        %5847 = vmatpush.bf16.msra.mxu0 %v4255
        %5848 = vmatmul.bf16.gmra.mxu0 %v2253
        %v5849 = vpop.f32.mrf.mxu0
        %v5850 = vadd.f32 %v5837, %v5849
        %v5851 = vpop.f32.mrf.mxu0
        %5852 = vdwg.mxu0
        %5853 = vmatpush.bf16.msra.mxu0 %v4285
        %5854 = vmatpush.bf16.msra.mxu0 %v4283
        %5855 = vmatpush.bf16.msra.mxu0 %v4281
        %5856 = vmatpush.bf16.msra.mxu0 %v4279
        %5857 = vmatpush.bf16.msra.mxu0 %v4277
        %5858 = vmatpush.bf16.msra.mxu0 %v4275
        %5859 = vmatpush.bf16.msra.mxu0 %v4273
        %5860 = vmatpush.bf16.msra.mxu0 %v4271
        %5861 = vmatmul.bf16.gmra.mxu0 %v2254
        %v5862 = vpop.f32.mrf.mxu0
        %v5863 = vadd.f32 %v5850, %v5862
        %v5864 = vpop.f32.mrf.mxu0
        %5865 = vdwg.mxu0
        %5866 = vmatpush.bf16.msra.mxu0 %v4301
        %5867 = vmatpush.bf16.msra.mxu0 %v4299
        %5868 = vmatpush.bf16.msra.mxu0 %v4297
        %5869 = vmatpush.bf16.msra.mxu0 %v4295
        %5870 = vmatpush.bf16.msra.mxu0 %v4293
        %5871 = vmatpush.bf16.msra.mxu0 %v4291
        %5872 = vmatpush.bf16.msra.mxu0 %v4289
        %5873 = vmatpush.bf16.msra.mxu0 %v4287
        %5874 = vmatmul.bf16.gmra.mxu0 %v2255
        %v5875 = vpop.f32.mrf.mxu0
        %v5876 = vadd.f32 %v5863, %v5875
        %v5877 = vpop.f32.mrf.mxu0
        %5878 = vdwg.mxu0
        %5879 = vmatpush.bf16.msra.mxu0 %v4317
        %5880 = vmatpush.bf16.msra.mxu0 %v4315
        %5881 = vmatpush.bf16.msra.mxu0 %v4313
        %5882 = vmatpush.bf16.msra.mxu0 %v4311
        %5883 = vmatpush.bf16.msra.mxu0 %v4309
        %5884 = vmatpush.bf16.msra.mxu0 %v4307
        %5885 = vmatpush.bf16.msra.mxu0 %v4305
        %5886 = vmatpush.bf16.msra.mxu0 %v4303
        %5887 = vmatmul.bf16.gmra.mxu0 %v2258
        %v5888 = vpop.f32.mrf.mxu0
        %v5889 = vadd.f32 %v5876, %v5888
        %v5890 = vpop.f32.mrf.mxu0
        %5891 = vdwg.mxu0
        %5892 = vmatpush.bf16.msra.mxu0 %v4333
        %5893 = vmatpush.bf16.msra.mxu0 %v4331
        %5894 = vmatpush.bf16.msra.mxu0 %v4329
        %5895 = vmatpush.bf16.msra.mxu0 %v4327
        %5896 = vmatpush.bf16.msra.mxu0 %v4325
        %5897 = vmatpush.bf16.msra.mxu0 %v4323
        %5898 = vmatpush.bf16.msra.mxu0 %v4321
        %5899 = vmatpush.bf16.msra.mxu0 %v4319
        %5900 = vmatmul.bf16.gmra.mxu0 %v2259
        %v5901 = vpop.f32.mrf.mxu0
        %v5902 = vadd.f32 %v5889, %v5901
        %v5903 = vpop.f32.mrf.mxu0
        %5904 = vdwg.mxu0
        %5905 = vmatpush.bf16.msra.mxu0 %v4349
        %5906 = vmatpush.bf16.msra.mxu0 %v4347
        %5907 = vmatpush.bf16.msra.mxu0 %v4345
        %5908 = vmatpush.bf16.msra.mxu0 %v4343
        %5909 = vmatpush.bf16.msra.mxu0 %v4341
        %5910 = vmatpush.bf16.msra.mxu0 %v4339
        %5911 = vmatpush.bf16.msra.mxu0 %v4337
        %5912 = vmatpush.bf16.msra.mxu0 %v4335
        %5913 = vmatmul.bf16.gmra.mxu0 %v2260
        %v5914 = vpop.f32.mrf.mxu0
        %v5915 = vadd.f32 %v5902, %v5914
        %v5916 = vpop.f32.mrf.mxu0
        %5917 = vdwg.mxu0
        %5918 = vmatpush.bf16.msra.mxu0 %v4365
        %5919 = vmatpush.bf16.msra.mxu0 %v4363
        %5920 = vmatpush.bf16.msra.mxu0 %v4361
        %5921 = vmatpush.bf16.msra.mxu0 %v4359
        %5922 = vmatpush.bf16.msra.mxu0 %v4357
        %5923 = vmatpush.bf16.msra.mxu0 %v4355
        %5924 = vmatpush.bf16.msra.mxu0 %v4353
        %5925 = vmatpush.bf16.msra.mxu0 %v4351
        %5926 = vmatmul.bf16.gmra.mxu0 %v2261
        %v5927 = vpop.f32.mrf.mxu0
        %v5928 = vadd.f32 %v5915, %v5927
        %v5929 = vpop.f32.mrf.mxu0
        %5930 = vdwg.mxu0
        %5931 = vmatpush.bf16.msra.mxu0 %v4381
        %5932 = vmatpush.bf16.msra.mxu0 %v4379
        %5933 = vmatpush.bf16.msra.mxu0 %v4377
        %5934 = vmatpush.bf16.msra.mxu0 %v4375
        %5935 = vmatpush.bf16.msra.mxu0 %v4373
        %5936 = vmatpush.bf16.msra.mxu0 %v4371
        %5937 = vmatpush.bf16.msra.mxu0 %v4369
        %5938 = vmatpush.bf16.msra.mxu0 %v4367
        %5939 = vmatmul.bf16.gmra.mxu0 %v2262
        %v5940 = vpop.f32.mrf.mxu0
        %v5941 = vadd.f32 %v5928, %v5940
        %v5942 = vpop.f32.mrf.mxu0
        %5943 = vdwg.mxu0
        %5944 = vmatpush.bf16.msra.mxu0 %v4397
        %5945 = vmatpush.bf16.msra.mxu0 %v4395
        %5946 = vmatpush.bf16.msra.mxu0 %v4393
        %5947 = vmatpush.bf16.msra.mxu0 %v4391
        %5948 = vmatpush.bf16.msra.mxu0 %v4389
        %5949 = vmatpush.bf16.msra.mxu0 %v4387
        %5950 = vmatpush.bf16.msra.mxu0 %v4385
        %5951 = vmatpush.bf16.msra.mxu0 %v4383
        %5952 = vmatmul.bf16.gmra.mxu0 %v2263
        %v5953 = vpop.f32.mrf.mxu0
        %v5954 = vadd.f32 %v5941, %v5953
        %v5955 = vpop.f32.mrf.mxu0
        %5956 = vdwg.mxu0
        %5957 = vmatpush.bf16.msra.mxu0 %v4413
        %5958 = vmatpush.bf16.msra.mxu0 %v4411
        %5959 = vmatpush.bf16.msra.mxu0 %v4409
        %5960 = vmatpush.bf16.msra.mxu0 %v4407
        %5961 = vmatpush.bf16.msra.mxu0 %v4405
        %5962 = vmatpush.bf16.msra.mxu0 %v4403
        %5963 = vmatpush.bf16.msra.mxu0 %v4401
        %5964 = vmatpush.bf16.msra.mxu0 %v4399
        %5965 = vmatmul.bf16.gmra.mxu0 %v2264
        %v5966 = vpop.f32.mrf.mxu0
        %v5967 = vadd.f32 %v5954, %v5966
        %v5968 = vpop.f32.mrf.mxu0
        %5969 = vdwg.mxu0
        %5970 = vmatpush.bf16.msra.mxu0 %v4429
        %5971 = vmatpush.bf16.msra.mxu0 %v4427
        %5972 = vmatpush.bf16.msra.mxu0 %v4425
        %5973 = vmatpush.bf16.msra.mxu0 %v4423
        %5974 = vmatpush.bf16.msra.mxu0 %v4421
        %5975 = vmatpush.bf16.msra.mxu0 %v4419
        %5976 = vmatpush.bf16.msra.mxu0 %v4417
        %5977 = vmatpush.bf16.msra.mxu0 %v4415
        %5978 = vmatmul.bf16.gmra.mxu0 %v2265
        %v5979 = vpop.f32.mrf.mxu0
        %v5980 = vadd.f32 %v5967, %v5979
        %v5981 = vpop.f32.mrf.mxu0
        %5982 = vdwg.mxu0
        %5983 = vmatpush.bf16.msra.mxu0 %v4445
        %5984 = vmatpush.bf16.msra.mxu0 %v4443
        %5985 = vmatpush.bf16.msra.mxu0 %v4441
        %5986 = vmatpush.bf16.msra.mxu0 %v4439
        %5987 = vmatpush.bf16.msra.mxu0 %v4437
        %5988 = vmatpush.bf16.msra.mxu0 %v4435
        %5989 = vmatpush.bf16.msra.mxu0 %v4433
        %5990 = vmatpush.bf16.msra.mxu0 %v4431
        %5991 = vmatmul.bf16.gmra.mxu0 %v2268
        %v5992 = vpop.f32.mrf.mxu0
        %v5993 = vadd.f32 %v5980, %v5992
        %v5994 = vpop.f32.mrf.mxu0
        %5995 = vdwg.mxu0
        %5996 = vmatpush.bf16.msra.mxu0 %v4461
        %5997 = vmatpush.bf16.msra.mxu0 %v4459
        %5998 = vmatpush.bf16.msra.mxu0 %v4457
        %5999 = vmatpush.bf16.msra.mxu0 %v4455
        %6000 = vmatpush.bf16.msra.mxu0 %v4453
        %6001 = vmatpush.bf16.msra.mxu0 %v4451
        %6002 = vmatpush.bf16.msra.mxu0 %v4449
        %6003 = vmatpush.bf16.msra.mxu0 %v4447
        %6004 = vmatmul.bf16.gmra.mxu0 %v2269
        %v6005 = vpop.f32.mrf.mxu0
        %v6006 = vadd.f32 %v5993, %v6005
        %v6007 = vpop.f32.mrf.mxu0
        %6008 = vdwg.mxu0
        %6009 = vmatpush.bf16.msra.mxu0 %v4477
        %6010 = vmatpush.bf16.msra.mxu0 %v4475
        %6011 = vmatpush.bf16.msra.mxu0 %v4473
        %6012 = vmatpush.bf16.msra.mxu0 %v4471
        %6013 = vmatpush.bf16.msra.mxu0 %v4469
        %6014 = vmatpush.bf16.msra.mxu0 %v4467
        %6015 = vmatpush.bf16.msra.mxu0 %v4465
        %6016 = vmatpush.bf16.msra.mxu0 %v4463
        %6017 = vmatmul.bf16.gmra.mxu0 %v2270
        %v6018 = vpop.f32.mrf.mxu0
        %v6019 = vadd.f32 %v6006, %v6018
        %v6020 = vpop.f32.mrf.mxu0
        %6021 = vdwg.mxu0
        %6022 = vmatpush.bf16.msra.mxu0 %v4493
        %6023 = vmatpush.bf16.msra.mxu0 %v4491
        %6024 = vmatpush.bf16.msra.mxu0 %v4489
        %6025 = vmatpush.bf16.msra.mxu0 %v4487
        %6026 = vmatpush.bf16.msra.mxu0 %v4485
        %6027 = vmatpush.bf16.msra.mxu0 %v4483
        %6028 = vmatpush.bf16.msra.mxu0 %v4481
        %6029 = vmatpush.bf16.msra.mxu0 %v4479
        %6030 = vmatmul.bf16.gmra.mxu0 %v2271
        %v6031 = vpop.f32.mrf.mxu0
        %v6032 = vadd.f32 %v6019, %v6031
        %v6033 = vpop.f32.mrf.mxu0
        %6034 = vdwg.mxu0
        %6035 = vmatpush.bf16.msra.mxu0 %v4509
        %6036 = vmatpush.bf16.msra.mxu0 %v4507
        %6037 = vmatpush.bf16.msra.mxu0 %v4505
        %6038 = vmatpush.bf16.msra.mxu0 %v4503
        %6039 = vmatpush.bf16.msra.mxu0 %v4501
        %6040 = vmatpush.bf16.msra.mxu0 %v4499
        %6041 = vmatpush.bf16.msra.mxu0 %v4497
        %6042 = vmatpush.bf16.msra.mxu0 %v4495
        %6043 = vmatmul.bf16.gmra.mxu0 %v2272
        %v6044 = vpop.f32.mrf.mxu0
        %v6045 = vadd.f32 %v6032, %v6044
        %v6046 = vpop.f32.mrf.mxu0
        %6047 = vdwg.mxu0
        %6048 = vmatpush.bf16.msra.mxu0 %v4525
        %6049 = vmatpush.bf16.msra.mxu0 %v4523
        %6050 = vmatpush.bf16.msra.mxu0 %v4521
        %6051 = vmatpush.bf16.msra.mxu0 %v4519
        %6052 = vmatpush.bf16.msra.mxu0 %v4517
        %6053 = vmatpush.bf16.msra.mxu0 %v4515
        %6054 = vmatpush.bf16.msra.mxu0 %v4513
        %6055 = vmatpush.bf16.msra.mxu0 %v4511
        %6056 = vmatmul.bf16.gmra.mxu0 %v2273
        %v6057 = vpop.f32.mrf.mxu0
        %v6058 = vadd.f32 %v6045, %v6057
        %v6059 = vpop.f32.mrf.mxu0
        %6060 = vdwg.mxu0
        %6061 = vmatpush.bf16.msra.mxu0 %v4541
        %6062 = vmatpush.bf16.msra.mxu0 %v4539
        %6063 = vmatpush.bf16.msra.mxu0 %v4537
        %6064 = vmatpush.bf16.msra.mxu0 %v4535
        %6065 = vmatpush.bf16.msra.mxu0 %v4533
        %6066 = vmatpush.bf16.msra.mxu0 %v4531
        %6067 = vmatpush.bf16.msra.mxu0 %v4529
        %6068 = vmatpush.bf16.msra.mxu0 %v4527
        %6069 = vmatmul.bf16.gmra.mxu0 %v2274
        %v6070 = vpop.f32.mrf.mxu0
        %v6071 = vadd.f32 %v6058, %v6070
        %v6072 = vpop.f32.mrf.mxu0
        %6073 = vdwg.mxu0
        %6074 = vmatpush.bf16.msra.mxu0 %v4557
        %6075 = vmatpush.bf16.msra.mxu0 %v4555
        %6076 = vmatpush.bf16.msra.mxu0 %v4553
        %6077 = vmatpush.bf16.msra.mxu0 %v4551
        %6078 = vmatpush.bf16.msra.mxu0 %v4549
        %6079 = vmatpush.bf16.msra.mxu0 %v4547
        %6080 = vmatpush.bf16.msra.mxu0 %v4545
        %6081 = vmatpush.bf16.msra.mxu0 %v4543
        %6082 = vmatmul.bf16.gmra.mxu0 %v2275
        %v6083 = vpop.f32.mrf.mxu0
        %v6084 = vadd.f32 %v6071, %v6083
        %v6085 = vpop.f32.mrf.mxu0
        %6086 = vdwg.mxu0
        %6087 = vmatpush.bf16.msra.mxu0 %v4573
        %6088 = vmatpush.bf16.msra.mxu0 %v4571
        %6089 = vmatpush.bf16.msra.mxu0 %v4569
        %6090 = vmatpush.bf16.msra.mxu0 %v4567
        %6091 = vmatpush.bf16.msra.mxu0 %v4565
        %6092 = vmatpush.bf16.msra.mxu0 %v4563
        %6093 = vmatpush.bf16.msra.mxu0 %v4561
        %6094 = vmatpush.bf16.msra.mxu0 %v4559
        %6095 = vmatmul.bf16.gmra.mxu0 %v2278
        %v6096 = vpop.f32.mrf.mxu0
        %v6097 = vadd.f32 %v6084, %v6096
        %v6098 = vpop.f32.mrf.mxu0
        %6099 = vdwg.mxu0
        %6100 = vmatpush.bf16.msra.mxu0 %v4589
        %6101 = vmatpush.bf16.msra.mxu0 %v4587
        %6102 = vmatpush.bf16.msra.mxu0 %v4585
        %6103 = vmatpush.bf16.msra.mxu0 %v4583
        %6104 = vmatpush.bf16.msra.mxu0 %v4581
        %6105 = vmatpush.bf16.msra.mxu0 %v4579
        %6106 = vmatpush.bf16.msra.mxu0 %v4577
        %6107 = vmatpush.bf16.msra.mxu0 %v4575
        %6108 = vmatmul.bf16.gmra.mxu0 %v2279
        %v6109 = vpop.f32.mrf.mxu0
        %v6110 = vadd.f32 %v6097, %v6109
        %v6111 = vpop.f32.mrf.mxu0
        %6112 = vdwg.mxu0
        %6113 = vmatpush.bf16.msra.mxu0 %v4605
        %6114 = vmatpush.bf16.msra.mxu0 %v4603
        %6115 = vmatpush.bf16.msra.mxu0 %v4601
        %6116 = vmatpush.bf16.msra.mxu0 %v4599
        %6117 = vmatpush.bf16.msra.mxu0 %v4597
        %6118 = vmatpush.bf16.msra.mxu0 %v4595
        %6119 = vmatpush.bf16.msra.mxu0 %v4593
        %6120 = vmatpush.bf16.msra.mxu0 %v4591
        %6121 = vmatmul.bf16.gmra.mxu0 %v2280
        %v6122 = vpop.f32.mrf.mxu0
        %v6123 = vadd.f32 %v6110, %v6122
        %v6124 = vpop.f32.mrf.mxu0
        %6125 = vdwg.mxu0
        %6126 = vmatpush.bf16.msra.mxu0 %v4621
        %6127 = vmatpush.bf16.msra.mxu0 %v4619
        %6128 = vmatpush.bf16.msra.mxu0 %v4617
        %6129 = vmatpush.bf16.msra.mxu0 %v4615
        %6130 = vmatpush.bf16.msra.mxu0 %v4613
        %6131 = vmatpush.bf16.msra.mxu0 %v4611
        %6132 = vmatpush.bf16.msra.mxu0 %v4609
        %6133 = vmatpush.bf16.msra.mxu0 %v4607
        %6134 = vmatmul.bf16.gmra.mxu0 %v2281
        %v6135 = vpop.f32.mrf.mxu0
        %v6136 = vadd.f32 %v6123, %v6135
        %v6137 = vpop.f32.mrf.mxu0
        %6138 = vdwg.mxu0
        %v6139 = vmax.f32 %v5668, 0.0
        %v6140 = vmax.f32 %v6136, 0.0
        %v6141 = vpack.c.bf16 %v6139, %v6139
        %v6142 = vpack.c.bf16 %v6140, %v6140
        %v6143 = vld [vmem:[#allocation11] sm:$0xff]
        %v6144 = vld [vmem:[#allocation11 + $0x8] sm:$0xff]
        %v6145 = vld [vmem:[#allocation11 + $0x10] sm:$0xff]
        %v6146 = vld [vmem:[#allocation11 + $0x18] sm:$0xff]
        %v6147 = vld [vmem:[#allocation11 + $0x20] sm:$0xff]
        %v6148 = vld [vmem:[#allocation11 + $0x28] sm:$0xff]
        %v6149 = vld [vmem:[#allocation11 + $0x30] sm:$0xff]
        %v6150 = vld [vmem:[#allocation11 + $0x38] sm:$0xff]
        %v6151 = vld [vmem:[#allocation11 + $0x40] sm:$0xff]
        %v6152 = vld [vmem:[#allocation11 + $0x48] sm:$0xff]
        %v6153 = vld [vmem:[#allocation11 + $0x50] sm:$0xff]
        %v6154 = vld [vmem:[#allocation11 + $0x58] sm:$0xff]
        %v6155 = vld [vmem:[#allocation11 + $0x60] sm:$0xff]
        %v6156 = vld [vmem:[#allocation11 + $0x68] sm:$0xff]
        %v6157 = vld [vmem:[#allocation11 + $0x70] sm:$0xff]
        %v6158 = vld [vmem:[#allocation11 + $0x78] sm:$0xff]
        %v6159 = vld [vmem:[#allocation11 + $0x80] sm:$0xff]
        %v6160 = vld [vmem:[#allocation11 + $0x88] sm:$0xff]
        %v6161 = vld [vmem:[#allocation11 + $0x90] sm:$0xff]
        %v6162 = vld [vmem:[#allocation11 + $0x98] sm:$0xff]
        %v6163 = vld [vmem:[#allocation11 + $0xa0] sm:$0xff]
        %v6164 = vld [vmem:[#allocation11 + $0xa8] sm:$0xff]
        %v6165 = vld [vmem:[#allocation11 + $0xb0] sm:$0xff]
        %v6166 = vld [vmem:[#allocation11 + $0xb8] sm:$0xff]
        %v6167 = vld [vmem:[#allocation11 + $0xc0] sm:$0xff]
        %v6168 = vld [vmem:[#allocation11 + $0xc8] sm:$0xff]
        %v6169 = vld [vmem:[#allocation11 + $0xd0] sm:$0xff]
        %v6170 = vld [vmem:[#allocation11 + $0xd8] sm:$0xff]
        %v6171 = vld [vmem:[#allocation11 + $0xe0] sm:$0xff]
        %v6172 = vld [vmem:[#allocation11 + $0xe8] sm:$0xff]
        %v6173 = vld [vmem:[#allocation11 + $0xf0] sm:$0xff]
        %v6174 = vld [vmem:[#allocation11 + $0xf8] sm:$0xff]
        %v6175 = vld [vmem:[#allocation11 + $0x100] sm:$0xff]
        %v6176 = vld [vmem:[#allocation11 + $0x108] sm:$0xff]
        %v6177 = vld [vmem:[#allocation11 + $0x110] sm:$0xff]
        %v6178 = vld [vmem:[#allocation11 + $0x118] sm:$0xff]
        %v6179 = vld [vmem:[#allocation11 + $0x120] sm:$0xff]
        %v6180 = vld [vmem:[#allocation11 + $0x128] sm:$0xff]
        %v6181 = vld [vmem:[#allocation11 + $0x130] sm:$0xff]
        %v6182 = vld [vmem:[#allocation11 + $0x138] sm:$0xff]
        %v6183 = vld [vmem:[#allocation11 + $0x140] sm:$0xff]
        %v6184 = vld [vmem:[#allocation11 + $0x148] sm:$0xff]
        %v6185 = vld [vmem:[#allocation11 + $0x150] sm:$0xff]
        %v6186 = vld [vmem:[#allocation11 + $0x158] sm:$0xff]
        %v6187 = vld [vmem:[#allocation11 + $0x160] sm:$0xff]
        %v6188 = vld [vmem:[#allocation11 + $0x168] sm:$0xff]
        %v6189 = vld [vmem:[#allocation11 + $0x170] sm:$0xff]
        %v6190 = vld [vmem:[#allocation11 + $0x178] sm:$0xff]
        %v6191 = vld [vmem:[#allocation11 + $0x180] sm:$0xff]
        %v6192 = vld [vmem:[#allocation11 + $0x188] sm:$0xff]
        %v6193 = vld [vmem:[#allocation11 + $0x190] sm:$0xff]
        %v6194 = vld [vmem:[#allocation11 + $0x198] sm:$0xff]
        %v6195 = vld [vmem:[#allocation11 + $0x1a0] sm:$0xff]
        %v6196 = vld [vmem:[#allocation11 + $0x1a8] sm:$0xff]
        %v6197 = vld [vmem:[#allocation11 + $0x1b0] sm:$0xff]
        %v6198 = vld [vmem:[#allocation11 + $0x1b8] sm:$0xff]
        %v6199 = vld [vmem:[#allocation11 + $0x1c0] sm:$0xff]
        %v6200 = vld [vmem:[#allocation11 + $0x1c8] sm:$0xff]
        %v6201 = vld [vmem:[#allocation11 + $0x1d0] sm:$0xff]
        %v6202 = vld [vmem:[#allocation11 + $0x1d8] sm:$0xff]
        %v6203 = vld [vmem:[#allocation11 + $0x1e0] sm:$0xff]
        %v6204 = vld [vmem:[#allocation11 + $0x1e8] sm:$0xff]
        %v6205 = vld [vmem:[#allocation11 + $0x1f0] sm:$0xff]
        %v6206 = vld [vmem:[#allocation11 + $0x1f8] sm:$0xff]
        %v6207 = vld [vmem:[#allocation12] sm:$0xf]
        %v6272 = vunpack.c.l.b16 %v6143
        %v6273 = vunpack.c.h.b16 %v6143
        %v6274 = vunpack.c.l.b16 %v6144
        %v6275 = vunpack.c.h.b16 %v6144
        %v6276 = vunpack.c.l.b16 %v6145
        %v6277 = vunpack.c.h.b16 %v6145
        %v6278 = vunpack.c.l.b16 %v6146
        %v6279 = vunpack.c.h.b16 %v6146
        %v6280 = vunpack.c.l.b16 %v6147
        %v6281 = vunpack.c.h.b16 %v6147
        %v6282 = vunpack.c.l.b16 %v6148
        %v6283 = vunpack.c.h.b16 %v6148
        %v6284 = vunpack.c.l.b16 %v6149
        %v6285 = vunpack.c.h.b16 %v6149
        %v6286 = vunpack.c.l.b16 %v6150
        %v6287 = vunpack.c.h.b16 %v6150
        %v6288 = vunpack.c.l.b16 %v6151
        %v6289 = vunpack.c.h.b16 %v6151
        %v6290 = vunpack.c.l.b16 %v6152
        %v6291 = vunpack.c.h.b16 %v6152
        %v6292 = vunpack.c.l.b16 %v6153
        %v6293 = vunpack.c.h.b16 %v6153
        %v6294 = vunpack.c.l.b16 %v6154
        %v6295 = vunpack.c.h.b16 %v6154
        %v6296 = vunpack.c.l.b16 %v6155
        %v6297 = vunpack.c.h.b16 %v6155
        %v6298 = vunpack.c.l.b16 %v6156
        %v6299 = vunpack.c.h.b16 %v6156
        %v6300 = vunpack.c.l.b16 %v6157
        %v6301 = vunpack.c.h.b16 %v6157
        %v6302 = vunpack.c.l.b16 %v6158
        %v6303 = vunpack.c.h.b16 %v6158
        %v6304 = vunpack.c.l.b16 %v6159
        %v6305 = vunpack.c.h.b16 %v6159
        %v6306 = vunpack.c.l.b16 %v6160
        %v6307 = vunpack.c.h.b16 %v6160
        %v6308 = vunpack.c.l.b16 %v6161
        %v6309 = vunpack.c.h.b16 %v6161
        %v6310 = vunpack.c.l.b16 %v6162
        %v6311 = vunpack.c.h.b16 %v6162
        %v6312 = vunpack.c.l.b16 %v6163
        %v6313 = vunpack.c.h.b16 %v6163
        %v6314 = vunpack.c.l.b16 %v6164
        %v6315 = vunpack.c.h.b16 %v6164
        %v6316 = vunpack.c.l.b16 %v6165
        %v6317 = vunpack.c.h.b16 %v6165
        %v6318 = vunpack.c.l.b16 %v6166
        %v6319 = vunpack.c.h.b16 %v6166
        %v6320 = vunpack.c.l.b16 %v6167
        %v6321 = vunpack.c.h.b16 %v6167
        %v6322 = vunpack.c.l.b16 %v6168
        %v6323 = vunpack.c.h.b16 %v6168
        %v6324 = vunpack.c.l.b16 %v6169
        %v6325 = vunpack.c.h.b16 %v6169
        %v6326 = vunpack.c.l.b16 %v6170
        %v6327 = vunpack.c.h.b16 %v6170
        %v6328 = vunpack.c.l.b16 %v6171
        %v6329 = vunpack.c.h.b16 %v6171
        %v6330 = vunpack.c.l.b16 %v6172
        %v6331 = vunpack.c.h.b16 %v6172
        %v6332 = vunpack.c.l.b16 %v6173
        %v6333 = vunpack.c.h.b16 %v6173
        %v6334 = vunpack.c.l.b16 %v6174
        %v6335 = vunpack.c.h.b16 %v6174
        %v6336 = vunpack.c.l.b16 %v6175
        %v6337 = vunpack.c.h.b16 %v6175
        %v6338 = vunpack.c.l.b16 %v6176
        %v6339 = vunpack.c.h.b16 %v6176
        %v6340 = vunpack.c.l.b16 %v6177
        %v6341 = vunpack.c.h.b16 %v6177
        %v6342 = vunpack.c.l.b16 %v6178
        %v6343 = vunpack.c.h.b16 %v6178
        %v6344 = vunpack.c.l.b16 %v6179
        %v6345 = vunpack.c.h.b16 %v6179
        %v6346 = vunpack.c.l.b16 %v6180
        %v6347 = vunpack.c.h.b16 %v6180
        %v6348 = vunpack.c.l.b16 %v6181
        %v6349 = vunpack.c.h.b16 %v6181
        %v6350 = vunpack.c.l.b16 %v6182
        %v6351 = vunpack.c.h.b16 %v6182
        %v6352 = vunpack.c.l.b16 %v6183
        %v6353 = vunpack.c.h.b16 %v6183
        %v6354 = vunpack.c.l.b16 %v6184
        %v6355 = vunpack.c.h.b16 %v6184
        %v6356 = vunpack.c.l.b16 %v6185
        %v6357 = vunpack.c.h.b16 %v6185
        %v6358 = vunpack.c.l.b16 %v6186
        %v6359 = vunpack.c.h.b16 %v6186
        %v6360 = vunpack.c.l.b16 %v6187
        %v6361 = vunpack.c.h.b16 %v6187
        %v6362 = vunpack.c.l.b16 %v6188
        %v6363 = vunpack.c.h.b16 %v6188
        %v6364 = vunpack.c.l.b16 %v6189
        %v6365 = vunpack.c.h.b16 %v6189
        %v6366 = vunpack.c.l.b16 %v6190
        %v6367 = vunpack.c.h.b16 %v6190
        %v6368 = vunpack.c.l.b16 %v6191
        %v6369 = vunpack.c.h.b16 %v6191
        %v6370 = vunpack.c.l.b16 %v6192
        %v6371 = vunpack.c.h.b16 %v6192
        %v6372 = vunpack.c.l.b16 %v6193
        %v6373 = vunpack.c.h.b16 %v6193
        %v6374 = vunpack.c.l.b16 %v6194
        %v6375 = vunpack.c.h.b16 %v6194
        %v6376 = vunpack.c.l.b16 %v6195
        %v6377 = vunpack.c.h.b16 %v6195
        %v6378 = vunpack.c.l.b16 %v6196
        %v6379 = vunpack.c.h.b16 %v6196
        %v6380 = vunpack.c.l.b16 %v6197
        %v6381 = vunpack.c.h.b16 %v6197
        %v6382 = vunpack.c.l.b16 %v6198
        %v6383 = vunpack.c.h.b16 %v6198
        %v6384 = vunpack.c.l.b16 %v6199
        %v6385 = vunpack.c.h.b16 %v6199
        %v6386 = vunpack.c.l.b16 %v6200
        %v6387 = vunpack.c.h.b16 %v6200
        %v6388 = vunpack.c.l.b16 %v6201
        %v6389 = vunpack.c.h.b16 %v6201
        %v6390 = vunpack.c.l.b16 %v6202
        %v6391 = vunpack.c.h.b16 %v6202
        %v6392 = vunpack.c.l.b16 %v6203
        %v6393 = vunpack.c.h.b16 %v6203
        %v6394 = vunpack.c.l.b16 %v6204
        %v6395 = vunpack.c.h.b16 %v6204
        %v6396 = vunpack.c.l.b16 %v6205
        %v6397 = vunpack.c.h.b16 %v6205
        %v6398 = vunpack.c.l.b16 %v6206
        %v6399 = vunpack.c.h.b16 %v6206
        %v6400 = vpack.c.b16 %v6276, %v6272
        %v6401 = vpack.c.b16 %v6277, %v6273
        %v6402 = vpack.c.b16 %v6278, %v6274
        %v6403 = vpack.c.b16 %v6279, %v6275
        %v6404 = vpack.c.b16 %v6284, %v6280
        %v6405 = vpack.c.b16 %v6285, %v6281
        %v6406 = vpack.c.b16 %v6286, %v6282
        %v6407 = vpack.c.b16 %v6287, %v6283
        %v6408 = vpack.c.b16 %v6292, %v6288
        %v6409 = vpack.c.b16 %v6293, %v6289
        %v6410 = vpack.c.b16 %v6294, %v6290
        %v6411 = vpack.c.b16 %v6295, %v6291
        %v6412 = vpack.c.b16 %v6300, %v6296
        %v6413 = vpack.c.b16 %v6301, %v6297
        %v6414 = vpack.c.b16 %v6302, %v6298
        %v6415 = vpack.c.b16 %v6303, %v6299
        %v6416 = vpack.c.b16 %v6308, %v6304
        %v6417 = vpack.c.b16 %v6309, %v6305
        %v6418 = vpack.c.b16 %v6310, %v6306
        %v6419 = vpack.c.b16 %v6311, %v6307
        %v6420 = vpack.c.b16 %v6316, %v6312
        %v6421 = vpack.c.b16 %v6317, %v6313
        %v6422 = vpack.c.b16 %v6318, %v6314
        %v6423 = vpack.c.b16 %v6319, %v6315
        %v6424 = vpack.c.b16 %v6324, %v6320
        %v6425 = vpack.c.b16 %v6325, %v6321
        %v6426 = vpack.c.b16 %v6326, %v6322
        %v6427 = vpack.c.b16 %v6327, %v6323
        %v6428 = vpack.c.b16 %v6332, %v6328
        %v6429 = vpack.c.b16 %v6333, %v6329
        %v6430 = vpack.c.b16 %v6334, %v6330
        %v6431 = vpack.c.b16 %v6335, %v6331
        %v6432 = vpack.c.b16 %v6340, %v6336
        %v6433 = vpack.c.b16 %v6341, %v6337
        %v6434 = vpack.c.b16 %v6342, %v6338
        %v6435 = vpack.c.b16 %v6343, %v6339
        %v6436 = vpack.c.b16 %v6348, %v6344
        %v6437 = vpack.c.b16 %v6349, %v6345
        %v6438 = vpack.c.b16 %v6350, %v6346
        %v6439 = vpack.c.b16 %v6351, %v6347
        %v6440 = vpack.c.b16 %v6356, %v6352
        %v6441 = vpack.c.b16 %v6357, %v6353
        %v6442 = vpack.c.b16 %v6358, %v6354
        %v6443 = vpack.c.b16 %v6359, %v6355
        %v6444 = vpack.c.b16 %v6364, %v6360
        %v6445 = vpack.c.b16 %v6365, %v6361
        %v6446 = vpack.c.b16 %v6366, %v6362
        %v6447 = vpack.c.b16 %v6367, %v6363
        %v6448 = vpack.c.b16 %v6372, %v6368
        %v6449 = vpack.c.b16 %v6373, %v6369
        %v6450 = vpack.c.b16 %v6374, %v6370
        %v6451 = vpack.c.b16 %v6375, %v6371
        %v6452 = vpack.c.b16 %v6380, %v6376
        %v6453 = vpack.c.b16 %v6381, %v6377
        %v6454 = vpack.c.b16 %v6382, %v6378
        %v6455 = vpack.c.b16 %v6383, %v6379
        %v6456 = vpack.c.b16 %v6388, %v6384
        %v6457 = vpack.c.b16 %v6389, %v6385
        %v6458 = vpack.c.b16 %v6390, %v6386
        %v6459 = vpack.c.b16 %v6391, %v6387
        %v6460 = vpack.c.b16 %v6396, %v6392
        %v6461 = vpack.c.b16 %v6397, %v6393
        %v6462 = vpack.c.b16 %v6398, %v6394
        %v6463 = vpack.c.b16 %v6399, %v6395
        %v6529 = vperm.slane %v6207, 0
        %v6530 = vperm.slane %v6207, 1
        %v6531 = vperm.slane %v6207, 2
        %v6532 = vperm.slane %v6207, 3
        %6537 = vmatpush.bf16.msra.mxu0 %v6428
        %6538 = vmatpush.bf16.msra.mxu0 %v6424
        %6539 = vmatpush.bf16.msra.mxu0 %v6420
        %6540 = vmatpush.bf16.msra.mxu0 %v6416
        %6541 = vmatpush.bf16.msra.mxu0 %v6412
        %6542 = vmatpush.bf16.msra.mxu0 %v6408
        %6543 = vmatpush.bf16.msra.mxu0 %v6404
        %6544 = vmatpush.bf16.msra.mxu0 %v6400
        %6545 = vmatmul.bf16.gmra.mxu0 %v6141
        %v6546 = vpop.f32.mrf.mxu0
        %v6547 = vadd.f32 %v6529, %v6546
        %v6548 = vpop.f32.mrf.mxu0
        %6549 = vdwg.mxu0
        %6550 = vmatpush.bf16.msra.mxu0 %v6460
        %6551 = vmatpush.bf16.msra.mxu0 %v6456
        %6552 = vmatpush.bf16.msra.mxu0 %v6452
        %6553 = vmatpush.bf16.msra.mxu0 %v6448
        %6554 = vmatpush.bf16.msra.mxu0 %v6444
        %6555 = vmatpush.bf16.msra.mxu0 %v6440
        %6556 = vmatpush.bf16.msra.mxu0 %v6436
        %6557 = vmatpush.bf16.msra.mxu0 %v6432
        %6558 = vmatmul.bf16.gmra.mxu0 %v6142
        %v6559 = vpop.f32.mrf.mxu0
        %v6560 = vadd.f32 %v6547, %v6559
        %v6561 = vpop.f32.mrf.mxu0
        %6562 = vdwg.mxu0
        %6563 = vmatpush.bf16.msra.mxu0 %v6429
        %6564 = vmatpush.bf16.msra.mxu0 %v6425
        %6565 = vmatpush.bf16.msra.mxu0 %v6421
        %6566 = vmatpush.bf16.msra.mxu0 %v6417
        %6567 = vmatpush.bf16.msra.mxu0 %v6413
        %6568 = vmatpush.bf16.msra.mxu0 %v6409
        %6569 = vmatpush.bf16.msra.mxu0 %v6405
        %6570 = vmatpush.bf16.msra.mxu0 %v6401
        %6571 = vmatmul.bf16.gmra.mxu0 %v6141
        %v6572 = vpop.f32.mrf.mxu0
        %v6573 = vadd.f32 %v6530, %v6572
        %v6574 = vpop.f32.mrf.mxu0
        %6575 = vdwg.mxu0
        %6576 = vmatpush.bf16.msra.mxu0 %v6461
        %6577 = vmatpush.bf16.msra.mxu0 %v6457
        %6578 = vmatpush.bf16.msra.mxu0 %v6453
        %6579 = vmatpush.bf16.msra.mxu0 %v6449
        %6580 = vmatpush.bf16.msra.mxu0 %v6445
        %6581 = vmatpush.bf16.msra.mxu0 %v6441
        %6582 = vmatpush.bf16.msra.mxu0 %v6437
        %6583 = vmatpush.bf16.msra.mxu0 %v6433
        %6584 = vmatmul.bf16.gmra.mxu0 %v6142
        %v6585 = vpop.f32.mrf.mxu0
        %v6586 = vadd.f32 %v6573, %v6585
        %v6587 = vpop.f32.mrf.mxu0
        %6588 = vdwg.mxu0
        %6589 = vmatpush.bf16.msra.mxu0 %v6430
        %6590 = vmatpush.bf16.msra.mxu0 %v6426
        %6591 = vmatpush.bf16.msra.mxu0 %v6422
        %6592 = vmatpush.bf16.msra.mxu0 %v6418
        %6593 = vmatpush.bf16.msra.mxu0 %v6414
        %6594 = vmatpush.bf16.msra.mxu0 %v6410
        %6595 = vmatpush.bf16.msra.mxu0 %v6406
        %6596 = vmatpush.bf16.msra.mxu0 %v6402
        %6597 = vmatmul.bf16.gmra.mxu0 %v6141
        %v6598 = vpop.f32.mrf.mxu0
        %v6599 = vadd.f32 %v6531, %v6598
        %v6600 = vpop.f32.mrf.mxu0
        %6601 = vdwg.mxu0
        %6602 = vmatpush.bf16.msra.mxu0 %v6462
        %6603 = vmatpush.bf16.msra.mxu0 %v6458
        %6604 = vmatpush.bf16.msra.mxu0 %v6454
        %6605 = vmatpush.bf16.msra.mxu0 %v6450
        %6606 = vmatpush.bf16.msra.mxu0 %v6446
        %6607 = vmatpush.bf16.msra.mxu0 %v6442
        %6608 = vmatpush.bf16.msra.mxu0 %v6438
        %6609 = vmatpush.bf16.msra.mxu0 %v6434
        %6610 = vmatmul.bf16.gmra.mxu0 %v6142
        %v6611 = vpop.f32.mrf.mxu0
        %v6612 = vadd.f32 %v6599, %v6611
        %v6613 = vpop.f32.mrf.mxu0
        %6614 = vdwg.mxu0
        %6615 = vmatpush.bf16.msra.mxu0 %v6431
        %6616 = vmatpush.bf16.msra.mxu0 %v6427
        %6617 = vmatpush.bf16.msra.mxu0 %v6423
        %6618 = vmatpush.bf16.msra.mxu0 %v6419
        %6619 = vmatpush.bf16.msra.mxu0 %v6415
        %6620 = vmatpush.bf16.msra.mxu0 %v6411
        %6621 = vmatpush.bf16.msra.mxu0 %v6407
        %6622 = vmatpush.bf16.msra.mxu0 %v6403
        %6623 = vmatmul.bf16.gmra.mxu0 %v6141
        %v6624 = vpop.f32.mrf.mxu0
        %v6625 = vadd.f32 %v6532, %v6624
        %v6626 = vpop.f32.mrf.mxu0
        %6627 = vdwg.mxu0
        %6628 = vmatpush.bf16.msra.mxu0 %v6463
        %6629 = vmatpush.bf16.msra.mxu0 %v6459
        %6630 = vmatpush.bf16.msra.mxu0 %v6455
        %6631 = vmatpush.bf16.msra.mxu0 %v6451
        %6632 = vmatpush.bf16.msra.mxu0 %v6447
        %6633 = vmatpush.bf16.msra.mxu0 %v6443
        %6634 = vmatpush.bf16.msra.mxu0 %v6439
        %6635 = vmatpush.bf16.msra.mxu0 %v6435
        %6636 = vmatmul.bf16.gmra.mxu0 %v6142
        %v6637 = vpop.f32.mrf.mxu0
        %v6638 = vadd.f32 %v6625, %v6637
        %v6639 = vpop.f32.mrf.mxu0
        %6640 = vdwg.mxu0
        %v6641 = vmax.f32 %v6560, 0.0
        %v6642 = vmax.f32 %v6586, 0.0
        %v6643 = vmax.f32 %v6612, 0.0
        %v6644 = vmax.f32 %v6638, 0.0
        %v6645 = vpack.c.bf16 %v6642, %v6641
        %v6646 = vpack.c.bf16 %v6644, %v6643
        %v6647 = vld [vmem:[#allocation14] sm:$0xf]
        %v6648 = vld [vmem:[#allocation14 + $0x4] sm:$0xf]
        %v6649 = vld [vmem:[#allocation14 + $0x8] sm:$0xf]
        %v6650 = vld [vmem:[#allocation14 + $0xc] sm:$0xf]
        %v6651 = vld [vmem:[#allocation14 + $0x10] sm:$0xf]
        %v6652 = vld [vmem:[#allocation14 + $0x14] sm:$0xf]
        %v6653 = vld [vmem:[#allocation14 + $0x18] sm:$0xf]
        %v6654 = vld [vmem:[#allocation14 + $0x1c] sm:$0xf]
        %v6655 = vld [vmem:[#allocation14 + $0x20] sm:$0xf]
        %v6656 = vld [vmem:[#allocation14 + $0x24] sm:$0xf]
        %v6657 = vld [vmem:[#allocation14 + $0x28] sm:$0xf]
        %v6658 = vld [vmem:[#allocation14 + $0x2c] sm:$0xf]
        %v6659 = vld [vmem:[#allocation14 + $0x30] sm:$0xf]
        %v6660 = vld [vmem:[#allocation14 + $0x34] sm:$0xf]
        %v6661 = vld [vmem:[#allocation14 + $0x38] sm:$0xf]
        %v6662 = vld [vmem:[#allocation14 + $0x3c] sm:$0xf]
        %v6663 = vld [vmem:[#allocation14 + $0x40] sm:$0xf]
        %v6664 = vld [vmem:[#allocation14 + $0x44] sm:$0xf]
        %v6665 = vld [vmem:[#allocation14 + $0x48] sm:$0xf]
        %v6666 = vld [vmem:[#allocation14 + $0x4c] sm:$0xf]
        %v6667 = vld [vmem:[#allocation14 + $0x50] sm:$0xf]
        %v6668 = vld [vmem:[#allocation14 + $0x54] sm:$0xf]
        %v6669 = vld [vmem:[#allocation14 + $0x58] sm:$0xf]
        %v6670 = vld [vmem:[#allocation14 + $0x5c] sm:$0xf]
        %v6671 = vld [vmem:[#allocation14 + $0x60] sm:$0xf]
        %v6672 = vld [vmem:[#allocation14 + $0x64] sm:$0xf]
        %v6673 = vld [vmem:[#allocation14 + $0x68] sm:$0xf]
        %v6674 = vld [vmem:[#allocation14 + $0x6c] sm:$0xf]
        %v6675 = vld [vmem:[#allocation14 + $0x70] sm:$0xf]
        %v6676 = vld [vmem:[#allocation14 + $0x74] sm:$0xf]
        %v6677 = vld [vmem:[#allocation14 + $0x78] sm:$0xf]
        %v6678 = vld [vmem:[#allocation14 + $0x7c] sm:$0xf]
        %v6679 = vld [vmem:[#allocation15] sm:$0x1]
        %v6681 = vunpack.c.l.b16 %v6645
        %v6682 = vunpack.c.h.b16 %v6645
        %v6683 = vpack.c.b16 %v6681, %v6681
        %v6684 = vpack.c.b16 %v6682, %v6682
        %v6719 = vunpack.c.l.b16 %v6647
        %v6720 = vunpack.c.l.b16 %v6648
        %v6721 = vunpack.c.l.b16 %v6649
        %v6722 = vunpack.c.l.b16 %v6650
        %v6723 = vunpack.c.l.b16 %v6651
        %v6724 = vunpack.c.l.b16 %v6652
        %v6725 = vunpack.c.l.b16 %v6653
        %v6726 = vunpack.c.l.b16 %v6654
        %v6727 = vunpack.c.l.b16 %v6655
        %v6728 = vunpack.c.l.b16 %v6656
        %v6729 = vunpack.c.l.b16 %v6657
        %v6730 = vunpack.c.l.b16 %v6658
        %v6731 = vunpack.c.l.b16 %v6659
        %v6732 = vunpack.c.l.b16 %v6660
        %v6733 = vunpack.c.l.b16 %v6661
        %v6734 = vunpack.c.l.b16 %v6662
        %v6735 = vunpack.c.l.b16 %v6663
        %v6736 = vunpack.c.l.b16 %v6664
        %v6737 = vunpack.c.l.b16 %v6665
        %v6738 = vunpack.c.l.b16 %v6666
        %v6739 = vunpack.c.l.b16 %v6667
        %v6740 = vunpack.c.l.b16 %v6668
        %v6741 = vunpack.c.l.b16 %v6669
        %v6742 = vunpack.c.l.b16 %v6670
        %v6743 = vunpack.c.l.b16 %v6671
        %v6744 = vunpack.c.l.b16 %v6672
        %v6745 = vunpack.c.l.b16 %v6673
        %v6746 = vunpack.c.l.b16 %v6674
        %v6747 = vunpack.c.l.b16 %v6675
        %v6748 = vunpack.c.l.b16 %v6676
        %v6749 = vunpack.c.l.b16 %v6677
        %v6750 = vunpack.c.l.b16 %v6678
        %v6751 = vpack.c.b16 %v6720, %v6719
        %v6752 = vpack.c.b16 %v6722, %v6721
        %v6753 = vpack.c.b16 %v6724, %v6723
        %v6754 = vpack.c.b16 %v6726, %v6725
        %v6755 = vpack.c.b16 %v6728, %v6727
        %v6756 = vpack.c.b16 %v6730, %v6729
        %v6757 = vpack.c.b16 %v6732, %v6731
        %v6758 = vpack.c.b16 %v6734, %v6733
        %v6759 = vpack.c.b16 %v6736, %v6735
        %v6760 = vpack.c.b16 %v6738, %v6737
        %v6761 = vpack.c.b16 %v6740, %v6739
        %v6762 = vpack.c.b16 %v6742, %v6741
        %v6763 = vpack.c.b16 %v6744, %v6743
        %v6764 = vpack.c.b16 %v6746, %v6745
        %v6765 = vpack.c.b16 %v6748, %v6747
        %v6766 = vpack.c.b16 %v6750, %v6749
        %6783 = vmatpush.bf16.msra.mxu0 %v6758
        %6784 = vmatpush.bf16.msra.mxu0 %v6757
        %6785 = vmatpush.bf16.msra.mxu0 %v6756
        %6786 = vmatpush.bf16.msra.mxu0 %v6755
        %6787 = vmatpush.bf16.msra.mxu0 %v6754
        %6788 = vmatpush.bf16.msra.mxu0 %v6753
        %6789 = vmatpush.bf16.msra.mxu0 %v6752
        %6790 = vmatpush.bf16.msra.mxu0 %v6751
        %6791 = vmatmul.bf16.gmra.mxu0 %v6683
        %v6792 = vpop.f32.mrf.mxu0
        %v6793 = vadd.f32 %v6679, %v6792
        %v6794 = vpop.f32.mrf.mxu0
        %6795 = vdwg.mxu0
        %6796 = vmatpush.bf16.msra.mxu0 %v6766
        %6797 = vmatpush.bf16.msra.mxu0 %v6765
        %6798 = vmatpush.bf16.msra.mxu0 %v6764
        %6799 = vmatpush.bf16.msra.mxu0 %v6763
        %6800 = vmatpush.bf16.msra.mxu0 %v6762
        %6801 = vmatpush.bf16.msra.mxu0 %v6761
        %6802 = vmatpush.bf16.msra.mxu0 %v6760
        %6803 = vmatpush.bf16.msra.mxu0 %v6759
        %6804 = vmatmul.bf16.gmra.mxu0 %v6684
        %v6805 = vpop.f32.mrf.mxu0
        %v6806 = vadd.f32 %v6793, %v6805
        %v6807 = vpop.f32.mrf.mxu0
        %6808 = vdwg.mxu0
        %v6809 = vld [vmem:[#allocation17] sm:$0xf]
        %v6810 = vld [vmem:[#allocation17 + $0x4] sm:$0xf]
        %v6811 = vld [vmem:[#allocation17 + $0x8] sm:$0xf]
        %v6812 = vld [vmem:[#allocation17 + $0xc] sm:$0xf]
        %v6813 = vld [vmem:[#allocation17 + $0x10] sm:$0xf]
        %v6814 = vld [vmem:[#allocation17 + $0x14] sm:$0xf]
        %v6815 = vld [vmem:[#allocation17 + $0x18] sm:$0xf]
        %v6816 = vld [vmem:[#allocation17 + $0x1c] sm:$0xf]
        %v6817 = vld [vmem:[#allocation17 + $0x20] sm:$0xf]
        %v6818 = vld [vmem:[#allocation17 + $0x24] sm:$0xf]
        %v6819 = vld [vmem:[#allocation17 + $0x28] sm:$0xf]
        %v6820 = vld [vmem:[#allocation17 + $0x2c] sm:$0xf]
        %v6821 = vld [vmem:[#allocation17 + $0x30] sm:$0xf]
        %v6822 = vld [vmem:[#allocation17 + $0x34] sm:$0xf]
        %v6823 = vld [vmem:[#allocation17 + $0x38] sm:$0xf]
        %v6824 = vld [vmem:[#allocation17 + $0x3c] sm:$0xf]
        %v6825 = vld [vmem:[#allocation17 + $0x40] sm:$0xf]
        %v6826 = vld [vmem:[#allocation17 + $0x44] sm:$0xf]
        %v6827 = vld [vmem:[#allocation17 + $0x48] sm:$0xf]
        %v6828 = vld [vmem:[#allocation17 + $0x4c] sm:$0xf]
        %v6829 = vld [vmem:[#allocation17 + $0x50] sm:$0xf]
        %v6830 = vld [vmem:[#allocation17 + $0x54] sm:$0xf]
        %v6831 = vld [vmem:[#allocation17 + $0x58] sm:$0xf]
        %v6832 = vld [vmem:[#allocation17 + $0x5c] sm:$0xf]
        %v6833 = vld [vmem:[#allocation17 + $0x60] sm:$0xf]
        %v6834 = vld [vmem:[#allocation17 + $0x64] sm:$0xf]
        %v6835 = vld [vmem:[#allocation17 + $0x68] sm:$0xf]
        %v6836 = vld [vmem:[#allocation17 + $0x6c] sm:$0xf]
        %v6837 = vld [vmem:[#allocation17 + $0x70] sm:$0xf]
        %v6838 = vld [vmem:[#allocation17 + $0x74] sm:$0xf]
        %v6839 = vld [vmem:[#allocation17 + $0x78] sm:$0xf]
        %v6840 = vld [vmem:[#allocation17 + $0x7c] sm:$0xf]
        %v6841 = vld [vmem:[#allocation18] sm:$0x1]
        %v6843 = vunpack.c.l.b16 %v6646
        %v6844 = vunpack.c.h.b16 %v6646
        %v6845 = vpack.c.b16 %v6843, %v6843
        %v6846 = vpack.c.b16 %v6844, %v6844
        %v6881 = vunpack.c.l.b16 %v6809
        %v6882 = vunpack.c.l.b16 %v6810
        %v6883 = vunpack.c.l.b16 %v6811
        %v6884 = vunpack.c.l.b16 %v6812
        %v6885 = vunpack.c.l.b16 %v6813
        %v6886 = vunpack.c.l.b16 %v6814
        %v6887 = vunpack.c.l.b16 %v6815
        %v6888 = vunpack.c.l.b16 %v6816
        %v6889 = vunpack.c.l.b16 %v6817
        %v6890 = vunpack.c.l.b16 %v6818
        %v6891 = vunpack.c.l.b16 %v6819
        %v6892 = vunpack.c.l.b16 %v6820
        %v6893 = vunpack.c.l.b16 %v6821
        %v6894 = vunpack.c.l.b16 %v6822
        %v6895 = vunpack.c.l.b16 %v6823
        %v6896 = vunpack.c.l.b16 %v6824
        %v6897 = vunpack.c.l.b16 %v6825
        %v6898 = vunpack.c.l.b16 %v6826
        %v6899 = vunpack.c.l.b16 %v6827
        %v6900 = vunpack.c.l.b16 %v6828
        %v6901 = vunpack.c.l.b16 %v6829
        %v6902 = vunpack.c.l.b16 %v6830
        %v6903 = vunpack.c.l.b16 %v6831
        %v6904 = vunpack.c.l.b16 %v6832
        %v6905 = vunpack.c.l.b16 %v6833
        %v6906 = vunpack.c.l.b16 %v6834
        %v6907 = vunpack.c.l.b16 %v6835
        %v6908 = vunpack.c.l.b16 %v6836
        %v6909 = vunpack.c.l.b16 %v6837
        %v6910 = vunpack.c.l.b16 %v6838
        %v6911 = vunpack.c.l.b16 %v6839
        %v6912 = vunpack.c.l.b16 %v6840
        %v6913 = vpack.c.b16 %v6882, %v6881
        %v6914 = vpack.c.b16 %v6884, %v6883
        %v6915 = vpack.c.b16 %v6886, %v6885
        %v6916 = vpack.c.b16 %v6888, %v6887
        %v6917 = vpack.c.b16 %v6890, %v6889
        %v6918 = vpack.c.b16 %v6892, %v6891
        %v6919 = vpack.c.b16 %v6894, %v6893
        %v6920 = vpack.c.b16 %v6896, %v6895
        %v6921 = vpack.c.b16 %v6898, %v6897
        %v6922 = vpack.c.b16 %v6900, %v6899
        %v6923 = vpack.c.b16 %v6902, %v6901
        %v6924 = vpack.c.b16 %v6904, %v6903
        %v6925 = vpack.c.b16 %v6906, %v6905
        %v6926 = vpack.c.b16 %v6908, %v6907
        %v6927 = vpack.c.b16 %v6910, %v6909
        %v6928 = vpack.c.b16 %v6912, %v6911
        %6945 = vmatpush.bf16.msra.mxu0 %v6920
        %6946 = vmatpush.bf16.msra.mxu0 %v6919
        %6947 = vmatpush.bf16.msra.mxu0 %v6918
        %6948 = vmatpush.bf16.msra.mxu0 %v6917
        %6949 = vmatpush.bf16.msra.mxu0 %v6916
        %6950 = vmatpush.bf16.msra.mxu0 %v6915
        %6951 = vmatpush.bf16.msra.mxu0 %v6914
        %6952 = vmatpush.bf16.msra.mxu0 %v6913
        %6953 = vmatmul.bf16.gmra.mxu0 %v6845
        %v6954 = vpop.f32.mrf.mxu0
        %v6955 = vadd.f32 %v6841, %v6954
        %v6956 = vpop.f32.mrf.mxu0
        %6957 = vdwg.mxu0
        %6958 = vmatpush.bf16.msra.mxu0 %v6928
        %6959 = vmatpush.bf16.msra.mxu0 %v6927
        %6960 = vmatpush.bf16.msra.mxu0 %v6926
        %6961 = vmatpush.bf16.msra.mxu0 %v6925
        %6962 = vmatpush.bf16.msra.mxu0 %v6924
        %6963 = vmatpush.bf16.msra.mxu0 %v6923
        %6964 = vmatpush.bf16.msra.mxu0 %v6922
        %6965 = vmatpush.bf16.msra.mxu0 %v6921
        %6966 = vmatmul.bf16.gmra.mxu0 %v6846
        %v6967 = vpop.f32.mrf.mxu0
        %v6968 = vadd.f32 %v6955, %v6967
        %v6969 = vpop.f32.mrf.mxu0
        %6970 = vdwg.mxu0
        %6971 = vst [vmem:[%s621] sm:$0x1] %v6968
        %6972 = vst [vmem:[%s627] sm:$0x1] %v6806
        %s6973 = sand.u32 %s324, 1
        %s6974 = scalar_lea.sflag [#allocation5], %s6973
        %s6975 = sand.u32 %s324, 1
        %s6976 = scalar_lea.vmem [#allocation20], %s6975
        %s6977 = sand.u32 %s350, 1
        %s6978 = scalar_lea.sflag [#allocation22], %s6977
        %s6979 = sand.u32 %s350, 1
        %s6980 = scalar_lea.vmem [#allocation21], %s6979
        // Predicated region
        $region113: #{rndnet_forward.1} parent=71 // pred_check
          %p6981 = pneg %p334
        $region114: #{rndnet_forward.1} parent=71 // pred_check_branch
          %6983 = sbr.rel (%p6981) target = $region116
        $region115: #{rndnet_forward.1} parent=71 // pred_region
          %6985 = vsyncadd %s6974, 0
          %s6986 = scalar_lea.hbm %s13, %s38
          %s6988 = sshll.u32 %s6976, 4
          %s6989 = int_to_ptr.vmem [resolvable:$true] %s6988
          %s6990 = sshll.u32 %s6986, 4
          %s6991 = int_to_ptr.hbm [resolvable:$true] %s6990
          %6993 = dma.vmem_to_hbm [thread:$0]  %s6989, 16, %s6991, %s6974
        $region116: #{rndnet_forward.1} parent=71 // pred_fallthru
          _
        // Predicated region
        $region117: #{rndnet_forward.1} parent=71 // pred_check
          %p6994 = pneg %p360
        $region118: #{rndnet_forward.1} parent=71 // pred_check_branch
          %6996 = sbr.rel (%p6994) target = $region120
        $region119: #{rndnet_forward.1} parent=71 // pred_region
          %6998 = vsyncadd %s6978, 0
          %s6999 = scalar_lea.hbm %s14, %s38
          %s7001 = sshll.u32 %s6980, 4
          %s7002 = int_to_ptr.vmem [resolvable:$true] %s7001
          %s7003 = sshll.u32 %s6999, 4
          %s7004 = int_to_ptr.hbm [resolvable:$true] %s7003
          %7006 = dma.vmem_to_hbm [thread:$0]  %s7002, 16, %s7004, %s6978
        $region120: #{rndnet_forward.1} parent=71 // pred_fallthru
          _
      $region72: #{rndnet_forward.1} parent=5 // pred_fallthru
        _
      %p7007 = scmp.le.s32.totalorder 2, %s33
      // Predicated region
      $region121: #{rndnet_forward.1} parent=5 // pred_check
        %p7008 = pneg %p7007
      $region122: #{rndnet_forward.1} parent=5 // pred_check_branch
        %7010 = sbr.rel (%p7008) target = $region124
      $region123: #{rndnet_forward.1} parent=5 // pred_region
        %s7011 = ssub.s32 %s33, 2
        // Predicated region
        $region125: #{rndnet_forward.1} parent=123 // pred_check
          %p7012 = pneg %p340
        $region126: #{rndnet_forward.1} parent=123 // pred_check_branch
          %7014 = sbr.rel (%p7012) target = $region128
        $region127: #{rndnet_forward.1} parent=123 // pred_region
          %s7015 = sand.u32 %s325, 1
          %s7016 = scalar_lea.sflag [#allocation5], %s7015
          %s7017 = sand.u32 %s325, 1
          %s7018 = scalar_lea.vmem [#allocation20], %s7017
          %7020 = dma.done %s7016, 16
        $region128: #{rndnet_forward.1} parent=123 // pred_fallthru
          _
        // Predicated region
        $region129: #{rndnet_forward.1} parent=123 // pred_check
          %p7021 = pneg %p366
        $region130: #{rndnet_forward.1} parent=123 // pred_check_branch
          %7023 = sbr.rel (%p7021) target = $region132
        $region131: #{rndnet_forward.1} parent=123 // pred_region
          %s7024 = sand.u32 %s351, 1
          %s7025 = scalar_lea.sflag [#allocation22], %s7024
          %s7026 = sand.u32 %s351, 1
          %s7027 = scalar_lea.vmem [#allocation21], %s7026
          %7029 = dma.done %s7025, 16
        $region132: #{rndnet_forward.1} parent=123 // pred_fallthru
          _
      $region124: #{rndnet_forward.1} parent=5 // pred_fallthru
        _
    $region6: #{rndnet_forward.1} parent=1 // loop_footer
      %s37 = sadd.s32 1, %s33
    $region7: #{rndnet_forward.1} parent=1 // loop_footer_branch
      %32 = sbr.rel target = $region3
    $region8: #{rndnet_forward.1} parent=1 // loop_exit
      _
    %7030 = vsyncpa [#allocation4], 1
    %s7031 = scalar_lea.sflag [#allocation4], 1
    %7032 = vsyncpa %s7031, 1
    %7033 = vsyncpa [#allocation7], 1
    %7034 = vsyncpa [#allocation10], 1
    %7035 = vsyncpa [#allocation13], 1
    %7036 = vsyncpa [#allocation16], 1
    %7037 = vsyncpa [#allocation19], 1
    %7038 = vsyncpa [#allocation5], 1
    %s7039 = scalar_lea.sflag [#allocation5], 1
    %7040 = vsyncpa %s7039, 1
    %7041 = vsyncpa [#allocation22], 1
    %s7042 = scalar_lea.sflag [#allocation22], 1
    %7043 = vsyncpa %s7042, 1

</llo_original>
